<compile_context>
chip_gen: v5e
topology: v5e:2x2
jax: 0.10.0
libtpu: 0.0.40
codegen_flags: <defaults>
</compile_context>

<pallas_src>
import functools
import math

import jax
import jax.numpy as jnp
from jax import lax
from jax.experimental import pallas as pl
from jax.experimental.pallas import tpu as pltpu

PAD_TOKEN_ID = 0
NEG_INF = -1e30
LN_EPS = 1e-5
F32 = jnp.float32
BF16 = jnp.bfloat16

WEIGHT_KEYS = (
    "e_wqkv", "e_bqkv", "e_wo", "e_bo", "e_ln1g", "e_ln1b",
    "e_w1", "e_b1", "e_w2", "e_b2", "e_ln2g", "e_ln2b", "e_ng", "e_nb",
    "s_wqkv", "s_bqkv", "s_wo", "s_bo", "d_ln1g", "d_ln1b",
    "c_wq", "c_bq", "c_wkv", "c_bkv", "c_wo", "c_bo", "d_ln2g", "d_ln2b",
    "d_w1", "d_b1", "d_w2", "d_b2", "d_ln3g", "d_ln3b",
    "d_ng", "d_nb", "fc_w", "fc_b",
)


def _round_up(x, m):
    return ((x + m - 1) // m) * m


# ----------------------------------------------------------------------------------
# In-kernel helpers (pure functions of VMEM-resident values; f32 residual stream)
# ----------------------------------------------------------------------------------
def _layernorm(z, g, b):
    mu = jnp.mean(z, axis=-1, keepdims=True)
    var = jnp.mean((z - mu) ** 2, axis=-1, keepdims=True)
    return (z - mu) * lax.rsqrt(var + LN_EPS) * g + b


def _attn_core(q2, k2, v2, bias, num_heads, wo, bo):
    """q2: (Lq, H*hd) f32, k2/v2: (Lk, H*hd) f32, bias: (Lq|1, Lk) additive f32 or None.
    1/sqrt(hd) is pre-folded into the Q projection.  Returns (Lq, D) f32."""
    Hd = q2.shape[-1]
    hd = Hd // num_heads
    # single bf16 cast per operand (MXU inputs), f32 accumulation everywhere.
    q2b, k2b, v2b = q2.astype(BF16), k2.astype(BF16), v2.astype(BF16)
    ctx = []
    for h in range(num_heads):                       # static unroll, 2D matmuls per head
        sl = slice(h * hd, (h + 1) * hd)
        s = lax.dot_general(q2b[:, sl], k2b[:, sl],
                            (((1,), (1,)), ((), ())),
                            preferred_element_type=F32)            # (Lq, Lk)
        if bias is not None:
            s = s + bias
        s = s - jnp.max(s, axis=-1, keepdims=True)
        p = jnp.exp(s)
        p = p * pl.reciprocal(jnp.sum(p, axis=-1, keepdims=True), approx=True)
        ctx.append(jnp.dot(p.astype(BF16), v2b[:, sl],
                           preferred_element_type=F32))            # (Lq, hd)
    ctx = jnp.concatenate(ctx, axis=-1)                            # (Lq, H*hd)
    # single fused output projection: concat(heads) @ Wo
    return jnp.dot(ctx.astype(BF16), wo, preferred_element_type=F32) + bo


def _self_attn(x, wqkv, bqkv, wo, bo, bias, num_heads):
    # one 2D matmul for the fused QKV projection: (L, D) @ (D, 3*H*hd)
    qkv = jnp.dot(x.astype(BF16), wqkv, preferred_element_type=F32) + bqkv
    Hd = qkv.shape[-1] // 3
    return _attn_core(qkv[:, :Hd], qkv[:, Hd:2 * Hd], qkv[:, 2 * Hd:],
                      bias, num_heads, wo, bo)


def _cross_attn(y, mem, wq, bq, wkv, bkv, wo, bo, num_heads):
    q = jnp.dot(y.astype(BF16), wq, preferred_element_type=F32) + bq
    kv = jnp.dot(mem.astype(BF16), wkv, preferred_element_type=F32) + bkv
    Hd = q.shape[-1]
    return _attn_core(q, kv[:, :Hd], kv[:, Hd:], None, num_heads, wo, bo)


def _ffn(x, w1, b1, w2, b2):
    h = jnp.maximum(
        jnp.dot(x.astype(BF16), w1, preferred_element_type=F32) + b1, 0.0)
    return jnp.dot(h.astype(BF16), w2, preferred_element_type=F32) + b2


# ----------------------------------------------------------------------------------
# Fused encoder+decoder Pallas kernel (grid over batch chunks)
# ----------------------------------------------------------------------------------
def transformer_kernel(num_layers, bc, num_heads, *refs):
    src_ref, tgt_ref, skp_ref, tkp_ref = refs[:4]
    w = dict(zip(WEIGHT_KEYS, refs[4:4 + len(WEIGHT_KEYS)]))
    o_ref = refs[-1]

    T = tgt_ref.shape[1]
    # causal additive bias, built ONCE (hoisted out of batch & layer loops)
    row = lax.broadcasted_iota(jnp.int32, (T, T), 0)
    col = lax.broadcasted_iota(jnp.int32, (T, T), 1)
    causal = jnp.where(col > row, NEG_INF, 0.0).astype(F32)

    for bi in range(bc):                                  # static unroll over batch chunk
        # ---------------- encoder stack (memory stays resident in VMEM) ----------------
        x = src_ref[bi]                                   # (S, D) f32
        enc_bias = skp_ref[bi]                            # (1, S) key-padding bias
        for l in range(num_layers):
            a = _self_attn(x, w["e_wqkv"][l], w["e_bqkv"][l], w["e_wo"][l],
                           w["e_bo"][l], enc_bias, num_heads)
            x = _layernorm(x + a, w["e_ln1g"][l], w["e_ln1b"][l])
            f = _ffn(x, w["e_w1"][l], w["e_b1"][l], w["e_w2"][l], w["e_b2"][l])
            x = _layernorm(x + f, w["e_ln2g"][l], w["e_ln2b"][l])
        mem = _layernorm(x, w["e_ng"][...], w["e_nb"][...])   # final encoder LayerNorm

        # ---------------- decoder stack + final norm + fc_out ----------------
        y = tgt_ref[bi]                                   # (T, D) f32
        dec_bias = causal + tkp_ref[bi]                   # (T, T) causal + key padding
        for l in range(num_layers):
            a = _self_attn(y, w["s_wqkv"][l], w["s_bqkv"][l], w["s_wo"][l],
                           w["s_bo"][l], dec_bias, num_heads)
            y = _layernorm(y + a, w["d_ln1g"][l], w["d_ln1b"][l])
            a = _cross_attn(y, mem, w["c_wq"][l], w["c_bq"][l], w["c_wkv"][l],
                            w["c_bkv"][l], w["c_wo"][l], w["c_bo"][l], num_heads)
            y = _layernorm(y + a, w["d_ln2g"][l], w["d_ln2b"][l])
            f = _ffn(y, w["d_w1"][l], w["d_b1"][l], w["d_w2"][l], w["d_b2"][l])
            y = _layernorm(y + f, w["d_ln3g"][l], w["d_ln3b"][l])
        y = _layernorm(y, w["d_ng"][...], w["d_nb"][...])      # final decoder LayerNorm
        # lane-dense (vocab padded to 128) logits store
        o_ref[bi] = (jnp.dot(y.astype(BF16), w["fc_w"][...],
                             preferred_element_type=F32) + w["fc_b"][...])


# ----------------------------------------------------------------------------------
# Pallas wrapper
# ----------------------------------------------------------------------------------
def _rep_spec(arr):
    """Full-array block, replicated across the (batch-chunk) grid."""
    zero = (0,) * arr.ndim
    return pl.BlockSpec(arr.shape, lambda g, _z=zero: _z)


def _grid_size(batch):
    # one program per TensorCore: v7x has 2 TCs/chip, v5e/v6e have 1 (grid=(B,) there
    # would only add per-step pipeline overhead).
    try:
        kind = jax.devices()[0].device_kind.lower()
    except Exception:
        kind = ""
    n_tc = 2 if "v7" in kind else 1
    return n_tc if (n_tc > 1 and batch % n_tc == 0) else 1


def run_transformer(src_emb, tgt_emb, src_kp, tgt_kp, params, num_heads):
    B, S, D = src_emb.shape
    T = tgt_emb.shape[1]
    Vp = params["fc_w"].shape[1]
    num_layers = params["e_wqkv"].shape[0]

    G = _grid_size(B)
    BC = B // G

    weights = [params[k] for k in WEIGHT_KEYS]   # already bf16/f32 kernel-ready layouts
    in_specs = ([pl.BlockSpec((BC, S, D), lambda g: (g, 0, 0)),
                 pl.BlockSpec((BC, T, D), lambda g: (g, 0, 0)),
                 pl.BlockSpec((BC, 1, S), lambda g: (g, 0, 0)),
                 pl.BlockSpec((BC, 1, T), lambda g: (g, 0, 0))]
                + [_rep_spec(x) for x in weights])

    return pl.pallas_call(
        functools.partial(transformer_kernel, num_layers, BC, num_heads),
        out_shape=jax.ShapeDtypeStruct((B, T, Vp), F32),
        grid=(G,),
        in_specs=in_specs,
        out_specs=pl.BlockSpec((BC, T, Vp), lambda g: (g, 0, 0)),
        compiler_params=pltpu.CompilerParams(dimension_semantics=("parallel",)),
    )(src_emb, tgt_emb, src_kp, tgt_kp, *weights)


# ----------------------------------------------------------------------------------
# Parameters / positional encoding (deterministic init, kernel-ready layouts)
# ----------------------------------------------------------------------------------
def positional_encoding(max_len, d_model):
    position = jnp.arange(max_len, dtype=F32)[:, None]
    div_term = jnp.exp(jnp.arange(0, d_model, 2, dtype=F32)
                       * -(math.log(10000.0) / d_model))
    pe = jnp.zeros((max_len, d_model), F32)
    pe = pe.at[:, 0::2].set(jnp.sin(position * div_term))
    pe = pe.at[:, 1::2].set(jnp.cos(position * div_term))
    return pe


def init_params(key, num_layers, d_model, num_heads, dff, vocab_size, max_len=128):
    L, D, H = num_layers, d_model, num_heads
    hd = D // H
    Hd = H * hd
    dffp = _round_up(dff, 128)        # zero-padded FFN hidden (exact: ReLU(0)=0, zero rows)
    Vp = _round_up(vocab_size, 128)   # zero-padded vocab for lane-dense logits
    scale = 1.0 / math.sqrt(hd)       # folded into Q projection
    keys = iter(jax.random.split(key, 64))

    def w(shape, fan_in):
        return jax.random.normal(next(keys), shape, F32) / math.sqrt(fan_in)

    def b(shape):
        return jax.random.normal(next(keys), shape, F32) * 0.01

    def self_attn():
        wqkv = w((L, D, 3 * Hd), D).at[:, :, :Hd].multiply(scale)
        bqkv = b((L, 1, 3 * Hd)).at[:, :, :Hd].multiply(scale)
        return (wqkv.astype(BF16), bqkv,
                w((L, Hd, D), D).astype(BF16), b((L, 1, D)))

    def cross_attn():
        return ((w((L, D, Hd), D) * scale).astype(BF16), b((L, 1, Hd)) * scale,
                w((L, D, 2 * Hd), D).astype(BF16), b((L, 1, 2 * Hd)),
                w((L, Hd, D), D).astype(BF16), b((L, 1, D)))

    def ffn():
        w1 = jnp.zeros((L, D, dffp), F32).at[:, :, :dff].set(w((L, D, dff), D))
        b1 = jnp.zeros((L, 1, dffp), F32).at[:, :, :dff].set(b((L, 1, dff)))
        w2 = jnp.zeros((L, dffp, D), F32).at[:, :dff, :].set(w((L, dff, D), dff))
        return w1.astype(BF16), b1, w2.astype(BF16), b((L, 1, D))

    def ln():
        return jnp.ones((L, 1, D), F32), jnp.zeros((L, 1, D), F32)

    p = {}
    p["e_wqkv"], p["e_bqkv"], p["e_wo"], p["e_bo"] = self_attn()
    p["e_ln1g"], p["e_ln1b"] = ln()
    p["e_w1"], p["e_b1"], p["e_w2"], p["e_b2"] = ffn()
    p["e_ln2g"], p["e_ln2b"] = ln()
    p["e_ng"], p["e_nb"] = jnp.ones((1, D), F32), jnp.zeros((1, D), F32)

    p["s_wqkv"], p["s_bqkv"], p["s_wo"], p["s_bo"] = self_attn()
    p["d_ln1g"], p["d_ln1b"] = ln()
    (p["c_wq"], p["c_bq"], p["c_wkv"], p["c_bkv"],
     p["c_wo"], p["c_bo"]) = cross_attn()
    p["d_ln2g"], p["d_ln2b"] = ln()
    p["d_w1"], p["d_b1"], p["d_w2"], p["d_b2"] = ffn()
    p["d_ln3g"], p["d_ln3b"] = ln()
    p["d_ng"], p["d_nb"] = jnp.ones((1, D), F32), jnp.zeros((1, D), F32)

    fc_w = jnp.zeros((D, Vp), F32).at[:, :vocab_size].set(w((D, vocab_size), D))
    fc_b = jnp.zeros((1, Vp), F32).at[:, :vocab_size].set(b((1, vocab_size)))
    p["fc_w"], p["fc_b"] = fc_w.astype(BF16), fc_b

    p["embedding"] = jax.random.normal(next(keys), (vocab_size, D), F32)
    p["pe"] = positional_encoding(max_len, D)
    return p


# ----------------------------------------------------------------------------------
# Forward pass (mirrors Transformer.forward, eval mode)
# ----------------------------------------------------------------------------------
def transformer_forward(params, src, tgt, *, num_heads, vocab_size):
    B, S = src.shape
    T = tgt.shape[1]
    emb, pe = params["embedding"], params["pe"]
    # TODO(synk): embedding gather + positional add stay in XLA (tiny, gather-heavy).
    src_emb = (emb[src] + pe[:S][None]).astype(F32)
    tgt_emb = (emb[tgt] + pe[:T][None]).astype(F32)

    # key-padding masks as compact (B, 1, L) additive f32 biases; the causal mask is
    # regenerated in-kernel once from iota, so no (B, L, L) float masks hit HBM.
    src_kp = jnp.where(src == PAD_TOKEN_ID, NEG_INF, 0.0).astype(F32)[:, None, :]
    tgt_kp = jnp.where(tgt == PAD_TOKEN_ID, NEG_INF, 0.0).astype(F32)[:, None, :]

    logits_padded = run_transformer(src_emb, tgt_emb, src_kp, tgt_kp,
                                    params, num_heads)
    return logits_padded[:, :, :vocab_size]


# ----------------------------------------------------------------------------------
if __name__ == "__main__":
    num_layers, d_model, num_heads, dff, vocab_size = 2, 32, 4, 64, 64
    B, S, T = 2, 12, 8

    key = jax.random.PRNGKey(0)
    k_params, k_src, k_tgt = jax.random.split(key, 3)
    params = init_params(k_params, num_layers, d_model, num_heads, dff, vocab_size)

    src = jax.random.randint(k_src, (B, S), 1, vocab_size, dtype=jnp.int32)
    tgt = jax.random.randint(k_tgt, (B, T), 1, vocab_size, dtype=jnp.int32)
    # trailing padding tokens (first positions stay non-pad so no fully-masked rows)
    src = src.at[:, -2:].set(PAD_TOKEN_ID)
    tgt = tgt.at[:, -1:].set(PAD_TOKEN_ID)

    fwd = jax.jit(functools.partial(transformer_forward,
                                    num_heads=num_heads, vocab_size=vocab_size))
    logits = fwd(params, src, tgt)
    jax.block_until_ready(logits)

    assert logits.shape == (B, T, vocab_size), logits.shape
    assert bool(jnp.all(jnp.isfinite(logits)))
    print("KERNEL_OK")
</pallas_src>

<mosaic_0001>
module attributes {stable_mosaic.version = 11 : i64} {
  func.func @transformer_kernel(%arg0: i32, %arg1: memref<2x12x32xf32, #tpu.memory_space<vmem>>, %arg2: memref<2x8x32xf32, #tpu.memory_space<vmem>>, %arg3: memref<2x1x12xf32, #tpu.memory_space<vmem>>, %arg4: memref<2x1x8xf32, #tpu.memory_space<vmem>>, %arg5: memref<2x32x96xbf16, #tpu.memory_space<vmem>>, %arg6: memref<2x1x96xf32, #tpu.memory_space<vmem>>, %arg7: memref<2x32x32xbf16, #tpu.memory_space<vmem>>, %arg8: memref<2x1x32xf32, #tpu.memory_space<vmem>>, %arg9: memref<2x1x32xf32, #tpu.memory_space<vmem>>, %arg10: memref<2x1x32xf32, #tpu.memory_space<vmem>>, %arg11: memref<2x32x128xbf16, #tpu.memory_space<vmem>>, %arg12: memref<2x1x128xf32, #tpu.memory_space<vmem>>, %arg13: memref<2x128x32xbf16, #tpu.memory_space<vmem>>, %arg14: memref<2x1x32xf32, #tpu.memory_space<vmem>>, %arg15: memref<2x1x32xf32, #tpu.memory_space<vmem>>, %arg16: memref<2x1x32xf32, #tpu.memory_space<vmem>>, %arg17: memref<1x32xf32, #tpu.memory_space<vmem>>, %arg18: memref<1x32xf32, #tpu.memory_space<vmem>>, %arg19: memref<2x32x96xbf16, #tpu.memory_space<vmem>>, %arg20: memref<2x1x96xf32, #tpu.memory_space<vmem>>, %arg21: memref<2x32x32xbf16, #tpu.memory_space<vmem>>, %arg22: memref<2x1x32xf32, #tpu.memory_space<vmem>>, %arg23: memref<2x1x32xf32, #tpu.memory_space<vmem>>, %arg24: memref<2x1x32xf32, #tpu.memory_space<vmem>>, %arg25: memref<2x32x32xbf16, #tpu.memory_space<vmem>>, %arg26: memref<2x1x32xf32, #tpu.memory_space<vmem>>, %arg27: memref<2x32x64xbf16, #tpu.memory_space<vmem>>, %arg28: memref<2x1x64xf32, #tpu.memory_space<vmem>>, %arg29: memref<2x32x32xbf16, #tpu.memory_space<vmem>>, %arg30: memref<2x1x32xf32, #tpu.memory_space<vmem>>, %arg31: memref<2x1x32xf32, #tpu.memory_space<vmem>>, %arg32: memref<2x1x32xf32, #tpu.memory_space<vmem>>, %arg33: memref<2x32x128xbf16, #tpu.memory_space<vmem>>, %arg34: memref<2x1x128xf32, #tpu.memory_space<vmem>>, %arg35: memref<2x128x32xbf16, #tpu.memory_space<vmem>>, %arg36: memref<2x1x32xf32, #tpu.memory_space<vmem>>, %arg37: memref<2x1x32xf32, #tpu.memory_space<vmem>>, %arg38: memref<2x1x32xf32, #tpu.memory_space<vmem>>, %arg39: memref<1x32xf32, #tpu.memory_space<vmem>>, %arg40: memref<1x32xf32, #tpu.memory_space<vmem>>, %arg41: memref<32x128xbf16, #tpu.memory_space<vmem>>, %arg42: memref<1x128xf32, #tpu.memory_space<vmem>>, %arg43: memref<2x8x128xf32, #tpu.memory_space<vmem>>) attributes {dimension_semantics = [#tpu.dimension_semantics<parallel>], iteration_bounds = array<i64: 1>, scalar_prefetch = 0 : i64, scratch_operands = 0 : i64, tpu.core_type = #tpu.core_type<tc>, window_params = [{transform_indices = @transform_0, window_bounds = array<i64: 2, 12, 32>}, {transform_indices = @transform_1, window_bounds = array<i64: 2, 8, 32>}, {transform_indices = @transform_2, window_bounds = array<i64: 2, 1, 12>}, {transform_indices = @transform_3, window_bounds = array<i64: 2, 1, 8>}, {pipeline_mode = #tpu.pipeline_mode<synchronous>, transform_indices = @transform_4, window_bounds = array<i64: 2, 32, 96>}, {pipeline_mode = #tpu.pipeline_mode<synchronous>, transform_indices = @transform_5, window_bounds = array<i64: 2, 1, 96>}, {pipeline_mode = #tpu.pipeline_mode<synchronous>, transform_indices = @transform_6, window_bounds = array<i64: 2, 32, 32>}, {pipeline_mode = #tpu.pipeline_mode<synchronous>, transform_indices = @transform_7, window_bounds = array<i64: 2, 1, 32>}, {pipeline_mode = #tpu.pipeline_mode<synchronous>, transform_indices = @transform_8, window_bounds = array<i64: 2, 1, 32>}, {pipeline_mode = #tpu.pipeline_mode<synchronous>, transform_indices = @transform_9, window_bounds = array<i64: 2, 1, 32>}, {pipeline_mode = #tpu.pipeline_mode<synchronous>, transform_indices = @transform_10, window_bounds = array<i64: 2, 32, 128>}, {pipeline_mode = #tpu.pipeline_mode<synchronous>, transform_indices = @transform_11, window_bounds = array<i64: 2, 1, 128>}, {pipeline_mode = #tpu.pipeline_mode<synchronous>, transform_indices = @transform_12, window_bounds = array<i64: 2, 128, 32>}, {pipeline_mode = #tpu.pipeline_mode<synchronous>, transform_indices = @transform_13, window_bounds = array<i64: 2, 1, 32>}, {pipeline_mode = #tpu.pipeline_mode<synchronous>, transform_indices = @transform_14, window_bounds = array<i64: 2, 1, 32>}, {pipeline_mode = #tpu.pipeline_mode<synchronous>, transform_indices = @transform_15, window_bounds = array<i64: 2, 1, 32>}, {pipeline_mode = #tpu.pipeline_mode<synchronous>, transform_indices = @transform_16, window_bounds = array<i64: 1, 32>}, {pipeline_mode = #tpu.pipeline_mode<synchronous>, transform_indices = @transform_17, window_bounds = array<i64: 1, 32>}, {pipeline_mode = #tpu.pipeline_mode<synchronous>, transform_indices = @transform_18, window_bounds = array<i64: 2, 32, 96>}, {pipeline_mode = #tpu.pipeline_mode<synchronous>, transform_indices = @transform_19, window_bounds = array<i64: 2, 1, 96>}, {pipeline_mode = #tpu.pipeline_mode<synchronous>, transform_indices = @transform_20, window_bounds = array<i64: 2, 32, 32>}, {pipeline_mode = #tpu.pipeline_mode<synchronous>, transform_indices = @transform_21, window_bounds = array<i64: 2, 1, 32>}, {pipeline_mode = #tpu.pipeline_mode<synchronous>, transform_indices = @transform_22, window_bounds = array<i64: 2, 1, 32>}, {pipeline_mode = #tpu.pipeline_mode<synchronous>, transform_indices = @transform_23, window_bounds = array<i64: 2, 1, 32>}, {pipeline_mode = #tpu.pipeline_mode<synchronous>, transform_indices = @transform_24, window_bounds = array<i64: 2, 32, 32>}, {pipeline_mode = #tpu.pipeline_mode<synchronous>, transform_indices = @transform_25, window_bounds = array<i64: 2, 1, 32>}, {pipeline_mode = #tpu.pipeline_mode<synchronous>, transform_indices = @transform_26, window_bounds = array<i64: 2, 32, 64>}, {pipeline_mode = #tpu.pipeline_mode<synchronous>, transform_indices = @transform_27, window_bounds = array<i64: 2, 1, 64>}, {pipeline_mode = #tpu.pipeline_mode<synchronous>, transform_indices = @transform_28, window_bounds = array<i64: 2, 32, 32>}, {pipeline_mode = #tpu.pipeline_mode<synchronous>, transform_indices = @transform_29, window_bounds = array<i64: 2, 1, 32>}, {pipeline_mode = #tpu.pipeline_mode<synchronous>, transform_indices = @transform_30, window_bounds = array<i64: 2, 1, 32>}, {pipeline_mode = #tpu.pipeline_mode<synchronous>, transform_indices = @transform_31, window_bounds = array<i64: 2, 1, 32>}, {pipeline_mode = #tpu.pipeline_mode<synchronous>, transform_indices = @transform_32, window_bounds = array<i64: 2, 32, 128>}, {pipeline_mode = #tpu.pipeline_mode<synchronous>, transform_indices = @transform_33, window_bounds = array<i64: 2, 1, 128>}, {pipeline_mode = #tpu.pipeline_mode<synchronous>, transform_indices = @transform_34, window_bounds = array<i64: 2, 128, 32>}, {pipeline_mode = #tpu.pipeline_mode<synchronous>, transform_indices = @transform_35, window_bounds = array<i64: 2, 1, 32>}, {pipeline_mode = #tpu.pipeline_mode<synchronous>, transform_indices = @transform_36, window_bounds = array<i64: 2, 1, 32>}, {pipeline_mode = #tpu.pipeline_mode<synchronous>, transform_indices = @transform_37, window_bounds = array<i64: 2, 1, 32>}, {pipeline_mode = #tpu.pipeline_mode<synchronous>, transform_indices = @transform_38, window_bounds = array<i64: 1, 32>}, {pipeline_mode = #tpu.pipeline_mode<synchronous>, transform_indices = @transform_39, window_bounds = array<i64: 1, 32>}, {pipeline_mode = #tpu.pipeline_mode<synchronous>, transform_indices = @transform_40, window_bounds = array<i64: 32, 128>}, {pipeline_mode = #tpu.pipeline_mode<synchronous>, transform_indices = @transform_41, window_bounds = array<i64: 1, 128>}, {transform_indices = @transform_42, window_bounds = array<i64: 2, 8, 128>}]} {
    %0 = tpu.iota {dimensions = array<i32: 0>} : vector<8x8xi32>
    %1 = tpu.iota {dimensions = array<i32: 1>} : vector<8x8xi32>
    %2 = arith.cmpi sgt, %1, %0 : vector<8x8xi32>
    %cst = arith.constant -1.000000e+30 : f32
    %cst_0 = arith.constant 0.000000e+00 : f32
    %3 = vector.broadcast %cst : f32 to vector<8x8xf32>
    %4 = vector.broadcast %cst_0 : f32 to vector<8x8xf32>
    %5 = arith.select %2, %3, %4 : vector<8x8xi1>, vector<8x8xf32>
    %c0 = arith.constant 0 : index
    %c0_1 = arith.constant 0 : index
    %c0_2 = arith.constant 0 : index
    %6 = vector.load %arg1[%c0, %c0_1, %c0_2] : memref<2x12x32xf32, #tpu.memory_space<vmem>>, vector<1x12x32xf32>
    %7 = vector.shape_cast %6 : vector<1x12x32xf32> to vector<12x32xf32>
    %c0_3 = arith.constant 0 : index
    %c0_4 = arith.constant 0 : index
    %c0_5 = arith.constant 0 : index
    %8 = vector.load %arg3[%c0_3, %c0_4, %c0_5] : memref<2x1x12xf32, #tpu.memory_space<vmem>>, vector<1x1x12xf32>
    %9 = vector.shape_cast %8 : vector<1x1x12xf32> to vector<1x12xf32>
    %c0_6 = arith.constant 0 : index
    %c0_7 = arith.constant 0 : index
    %c0_8 = arith.constant 0 : index
    %10 = vector.load %arg5[%c0_6, %c0_7, %c0_8] : memref<2x32x96xbf16, #tpu.memory_space<vmem>>, vector<1x32x96xbf16>
    %11 = vector.shape_cast %10 : vector<1x32x96xbf16> to vector<32x96xbf16>
    %c0_9 = arith.constant 0 : index
    %c0_10 = arith.constant 0 : index
    %c0_11 = arith.constant 0 : index
    %12 = vector.load %arg6[%c0_9, %c0_10, %c0_11] : memref<2x1x96xf32, #tpu.memory_space<vmem>>, vector<1x1x96xf32>
    %13 = vector.shape_cast %12 : vector<1x1x96xf32> to vector<1x96xf32>
    %c0_12 = arith.constant 0 : index
    %c0_13 = arith.constant 0 : index
    %c0_14 = arith.constant 0 : index
    %14 = vector.load %arg7[%c0_12, %c0_13, %c0_14] : memref<2x32x32xbf16, #tpu.memory_space<vmem>>, vector<1x32x32xbf16>
    %15 = vector.shape_cast %14 : vector<1x32x32xbf16> to vector<32x32xbf16>
    %c0_15 = arith.constant 0 : index
    %c0_16 = arith.constant 0 : index
    %c0_17 = arith.constant 0 : index
    %16 = vector.load %arg8[%c0_15, %c0_16, %c0_17] : memref<2x1x32xf32, #tpu.memory_space<vmem>>, vector<1x1x32xf32>
    %17 = vector.shape_cast %16 : vector<1x1x32xf32> to vector<1x32xf32>
    %18 = arith.truncf %7 : vector<12x32xf32> to vector<12x32xbf16>
    %cst_18 = arith.constant dense<0.000000e+00> : vector<12x96xf32>
    %19 = tpu.matmul %18, %11, %cst_18 {dimension_numbers = #tpu.dot_dimension_numbers<[1], [0], [0], [1], [0, 0, 1, 1], [], []>} : vector<12x32xbf16>, vector<32x96xbf16>, vector<12x96xf32> -> vector<12x96xf32>
    %20 = vector.broadcast %13 : vector<1x96xf32> to vector<12x96xf32>
    %21 = arith.addf %19, %20 : vector<12x96xf32>
    %22 = vector.extract_strided_slice %21 {offsets = [0, 0], sizes = [12, 32], strides = [1, 1]} : vector<12x96xf32> to vector<12x32xf32>
    %23 = vector.extract_strided_slice %21 {offsets = [0, 32], sizes = [12, 32], strides = [1, 1]} : vector<12x96xf32> to vector<12x32xf32>
    %24 = vector.extract_strided_slice %21 {offsets = [0, 64], sizes = [12, 32], strides = [1, 1]} : vector<12x96xf32> to vector<12x32xf32>
    %25 = arith.truncf %22 : vector<12x32xf32> to vector<12x32xbf16>
    %26 = arith.truncf %23 : vector<12x32xf32> to vector<12x32xbf16>
    %27 = arith.truncf %24 : vector<12x32xf32> to vector<12x32xbf16>
    %28 = vector.extract_strided_slice %25 {offsets = [0, 0], sizes = [12, 8], strides = [1, 1]} : vector<12x32xbf16> to vector<12x8xbf16>
    %29 = vector.extract_strided_slice %26 {offsets = [0, 0], sizes = [12, 8], strides = [1, 1]} : vector<12x32xbf16> to vector<12x8xbf16>
    %cst_19 = arith.constant dense<0.000000e+00> : vector<12x12xf32>
    %30 = tpu.matmul %28, %29, %cst_19 {dimension_numbers = #tpu.dot_dimension_numbers<[1], [1], [0], [0], [0, 0, 1, 0], [], []>} : vector<12x8xbf16>, vector<12x8xbf16>, vector<12x12xf32> -> vector<12x12xf32>
    %31 = vector.broadcast %9 : vector<1x12xf32> to vector<12x12xf32>
    %32 = arith.addf %30, %31 : vector<12x12xf32>
    %cst_20 = arith.constant dense<0xFF800000> : vector<12xf32>
    %33 = vector.multi_reduction <maximumf>, %32, %cst_20 [1] : vector<12x12xf32> to vector<12xf32>
    %34 = vector.shape_cast %33 : vector<12xf32> to vector<12x1xf32>
    %35 = vector.broadcast %34 : vector<12x1xf32> to vector<12x12xf32>
    %36 = arith.subf %32, %35 : vector<12x12xf32>
    %37 = math.exp %36 : vector<12x12xf32>
    %cst_21 = arith.constant dense<0.000000e+00> : vector<12xf32>
    %38 = vector.multi_reduction <add>, %37, %cst_21 [1] : vector<12x12xf32> to vector<12xf32>
    %39 = vector.shape_cast %38 : vector<12xf32> to vector<12x1xf32>
    %40 = tpu.reciprocal %39 {approx = true} : vector<12x1xf32> -> vector<12x1xf32>
    %41 = vector.broadcast %40 : vector<12x1xf32> to vector<12x12xf32>
    %42 = arith.mulf %37, %41 : vector<12x12xf32>
    %43 = arith.truncf %42 : vector<12x12xf32> to vector<12x12xbf16>
    %44 = vector.extract_strided_slice %27 {offsets = [0, 0], sizes = [12, 8], strides = [1, 1]} : vector<12x32xbf16> to vector<12x8xbf16>
    %cst_22 = arith.constant dense<0.000000e+00> : vector<12x8xf32>
    %45 = tpu.matmul %43, %44, %cst_22 {dimension_numbers = #tpu.dot_dimension_numbers<[1], [0], [0], [1], [0, 0, 1, 1], [], []>} : vector<12x12xbf16>, vector<12x8xbf16>, vector<12x8xf32> -> vector<12x8xf32>
    %46 = vector.extract_strided_slice %25 {offsets = [0, 8], sizes = [12, 8], strides = [1, 1]} : vector<12x32xbf16> to vector<12x8xbf16>
    %47 = vector.extract_strided_slice %26 {offsets = [0, 8], sizes = [12, 8], strides = [1, 1]} : vector<12x32xbf16> to vector<12x8xbf16>
    %cst_23 = arith.constant dense<0.000000e+00> : vector<12x12xf32>
    %48 = tpu.matmul %46, %47, %cst_23 {dimension_numbers = #tpu.dot_dimension_numbers<[1], [1], [0], [0], [0, 0, 1, 0], [], []>} : vector<12x8xbf16>, vector<12x8xbf16>, vector<12x12xf32> -> vector<12x12xf32>
    %49 = vector.broadcast %9 : vector<1x12xf32> to vector<12x12xf32>
    %50 = arith.addf %48, %49 : vector<12x12xf32>
    %cst_24 = arith.constant dense<0xFF800000> : vector<12xf32>
    %51 = vector.multi_reduction <maximumf>, %50, %cst_24 [1] : vector<12x12xf32> to vector<12xf32>
    %52 = vector.shape_cast %51 : vector<12xf32> to vector<12x1xf32>
    %53 = vector.broadcast %52 : vector<12x1xf32> to vector<12x12xf32>
    %54 = arith.subf %50, %53 : vector<12x12xf32>
    %55 = math.exp %54 : vector<12x12xf32>
    %cst_25 = arith.constant dense<0.000000e+00> : vector<12xf32>
    %56 = vector.multi_reduction <add>, %55, %cst_25 [1] : vector<12x12xf32> to vector<12xf32>
    %57 = vector.shape_cast %56 : vector<12xf32> to vector<12x1xf32>
    %58 = tpu.reciprocal %57 {approx = true} : vector<12x1xf32> -> vector<12x1xf32>
    %59 = vector.broadcast %58 : vector<12x1xf32> to vector<12x12xf32>
    %60 = arith.mulf %55, %59 : vector<12x12xf32>
    %61 = arith.truncf %60 : vector<12x12xf32> to vector<12x12xbf16>
    %62 = vector.extract_strided_slice %27 {offsets = [0, 8], sizes = [12, 8], strides = [1, 1]} : vector<12x32xbf16> to vector<12x8xbf16>
    %cst_26 = arith.constant dense<0.000000e+00> : vector<12x8xf32>
    %63 = tpu.matmul %61, %62, %cst_26 {dimension_numbers = #tpu.dot_dimension_numbers<[1], [0], [0], [1], [0, 0, 1, 1], [], []>} : vector<12x12xbf16>, vector<12x8xbf16>, vector<12x8xf32> -> vector<12x8xf32>
    %64 = vector.extract_strided_slice %25 {offsets = [0, 16], sizes = [12, 8], strides = [1, 1]} : vector<12x32xbf16> to vector<12x8xbf16>
    %65 = vector.extract_strided_slice %26 {offsets = [0, 16], sizes = [12, 8], strides = [1, 1]} : vector<12x32xbf16> to vector<12x8xbf16>
    %cst_27 = arith.constant dense<0.000000e+00> : vector<12x12xf32>
    %66 = tpu.matmul %64, %65, %cst_27 {dimension_numbers = #tpu.dot_dimension_numbers<[1], [1], [0], [0], [0, 0, 1, 0], [], []>} : vector<12x8xbf16>, vector<12x8xbf16>, vector<12x12xf32> -> vector<12x12xf32>
    %67 = vector.broadcast %9 : vector<1x12xf32> to vector<12x12xf32>
    %68 = arith.addf %66, %67 : vector<12x12xf32>
    %cst_28 = arith.constant dense<0xFF800000> : vector<12xf32>
    %69 = vector.multi_reduction <maximumf>, %68, %cst_28 [1] : vector<12x12xf32> to vector<12xf32>
    %70 = vector.shape_cast %69 : vector<12xf32> to vector<12x1xf32>
    %71 = vector.broadcast %70 : vector<12x1xf32> to vector<12x12xf32>
    %72 = arith.subf %68, %71 : vector<12x12xf32>
    %73 = math.exp %72 : vector<12x12xf32>
    %cst_29 = arith.constant dense<0.000000e+00> : vector<12xf32>
    %74 = vector.multi_reduction <add>, %73, %cst_29 [1] : vector<12x12xf32> to vector<12xf32>
    %75 = vector.shape_cast %74 : vector<12xf32> to vector<12x1xf32>
    %76 = tpu.reciprocal %75 {approx = true} : vector<12x1xf32> -> vector<12x1xf32>
    %77 = vector.broadcast %76 : vector<12x1xf32> to vector<12x12xf32>
    %78 = arith.mulf %73, %77 : vector<12x12xf32>
    %79 = arith.truncf %78 : vector<12x12xf32> to vector<12x12xbf16>
    %80 = vector.extract_strided_slice %27 {offsets = [0, 16], sizes = [12, 8], strides = [1, 1]} : vector<12x32xbf16> to vector<12x8xbf16>
    %cst_30 = arith.constant dense<0.000000e+00> : vector<12x8xf32>
    %81 = tpu.matmul %79, %80, %cst_30 {dimension_numbers = #tpu.dot_dimension_numbers<[1], [0], [0], [1], [0, 0, 1, 1], [], []>} : vector<12x12xbf16>, vector<12x8xbf16>, vector<12x8xf32> -> vector<12x8xf32>
    %82 = vector.extract_strided_slice %25 {offsets = [0, 24], sizes = [12, 8], strides = [1, 1]} : vector<12x32xbf16> to vector<12x8xbf16>
    %83 = vector.extract_strided_slice %26 {offsets = [0, 24], sizes = [12, 8], strides = [1, 1]} : vector<12x32xbf16> to vector<12x8xbf16>
    %cst_31 = arith.constant dense<0.000000e+00> : vector<12x12xf32>
    %84 = tpu.matmul %82, %83, %cst_31 {dimension_numbers = #tpu.dot_dimension_numbers<[1], [1], [0], [0], [0, 0, 1, 0], [], []>} : vector<12x8xbf16>, vector<12x8xbf16>, vector<12x12xf32> -> vector<12x12xf32>
    %85 = vector.broadcast %9 : vector<1x12xf32> to vector<12x12xf32>
    %86 = arith.addf %84, %85 : vector<12x12xf32>
    %cst_32 = arith.constant dense<0xFF800000> : vector<12xf32>
    %87 = vector.multi_reduction <maximumf>, %86, %cst_32 [1] : vector<12x12xf32> to vector<12xf32>
    %88 = vector.shape_cast %87 : vector<12xf32> to vector<12x1xf32>
    %89 = vector.broadcast %88 : vector<12x1xf32> to vector<12x12xf32>
    %90 = arith.subf %86, %89 : vector<12x12xf32>
    %91 = math.exp %90 : vector<12x12xf32>
    %cst_33 = arith.constant dense<0.000000e+00> : vector<12xf32>
    %92 = vector.multi_reduction <add>, %91, %cst_33 [1] : vector<12x12xf32> to vector<12xf32>
    %93 = vector.shape_cast %92 : vector<12xf32> to vector<12x1xf32>
    %94 = tpu.reciprocal %93 {approx = true} : vector<12x1xf32> -> vector<12x1xf32>
    %95 = vector.broadcast %94 : vector<12x1xf32> to vector<12x12xf32>
    %96 = arith.mulf %91, %95 : vector<12x12xf32>
    %97 = arith.truncf %96 : vector<12x12xf32> to vector<12x12xbf16>
    %98 = vector.extract_strided_slice %27 {offsets = [0, 24], sizes = [12, 8], strides = [1, 1]} : vector<12x32xbf16> to vector<12x8xbf16>
    %cst_34 = arith.constant dense<0.000000e+00> : vector<12x8xf32>
    %99 = tpu.matmul %97, %98, %cst_34 {dimension_numbers = #tpu.dot_dimension_numbers<[1], [0], [0], [1], [0, 0, 1, 1], [], []>} : vector<12x12xbf16>, vector<12x8xbf16>, vector<12x8xf32> -> vector<12x8xf32>
    %100 = tpu.concatenate %45, %63, %81, %99 in 1 : vector<12x8xf32>, vector<12x8xf32>, vector<12x8xf32>, vector<12x8xf32> -> vector<12x32xf32>
    %101 = arith.truncf %100 : vector<12x32xf32> to vector<12x32xbf16>
    %cst_35 = arith.constant dense<0.000000e+00> : vector<12x32xf32>
    %102 = tpu.matmul %101, %15, %cst_35 {dimension_numbers = #tpu.dot_dimension_numbers<[1], [0], [0], [1], [0, 0, 1, 1], [], []>} : vector<12x32xbf16>, vector<32x32xbf16>, vector<12x32xf32> -> vector<12x32xf32>
    %103 = vector.broadcast %17 : vector<1x32xf32> to vector<12x32xf32>
    %104 = arith.addf %102, %103 : vector<12x32xf32>
    %105 = arith.addf %7, %104 : vector<12x32xf32>
    %c0_36 = arith.constant 0 : index
    %c0_37 = arith.constant 0 : index
    %c0_38 = arith.constant 0 : index
    %106 = vector.load %arg9[%c0_36, %c0_37, %c0_38] : memref<2x1x32xf32, #tpu.memory_space<vmem>>, vector<1x1x32xf32>
    %107 = vector.shape_cast %106 : vector<1x1x32xf32> to vector<1x32xf32>
    %c0_39 = arith.constant 0 : index
    %c0_40 = arith.constant 0 : index
    %c0_41 = arith.constant 0 : index
    %108 = vector.load %arg10[%c0_39, %c0_40, %c0_41] : memref<2x1x32xf32, #tpu.memory_space<vmem>>, vector<1x1x32xf32>
    %109 = vector.shape_cast %108 : vector<1x1x32xf32> to vector<1x32xf32>
    %cst_42 = arith.constant dense<0.000000e+00> : vector<12xf32>
    %110 = vector.multi_reduction <add>, %105, %cst_42 [1] : vector<12x32xf32> to vector<12xf32>
    %111 = vector.shape_cast %110 : vector<12xf32> to vector<12x1xf32>
    %cst_43 = arith.constant 3.200000e+01 : f32
    %112 = vector.broadcast %cst_43 : f32 to vector<12x1xf32>
    %113 = arith.divf %111, %112 : vector<12x1xf32>
    %114 = vector.broadcast %113 : vector<12x1xf32> to vector<12x32xf32>
    %115 = arith.subf %105, %114 : vector<12x32xf32>
    %116 = arith.mulf %115, %115 : vector<12x32xf32>
    %cst_44 = arith.constant dense<0.000000e+00> : vector<12xf32>
    %117 = vector.multi_reduction <add>, %116, %cst_44 [1] : vector<12x32xf32> to vector<12xf32>
    %118 = vector.shape_cast %117 : vector<12xf32> to vector<12x1xf32>
    %cst_45 = arith.constant 3.200000e+01 : f32
    %119 = vector.broadcast %cst_45 : f32 to vector<12x1xf32>
    %120 = arith.divf %118, %119 : vector<12x1xf32>
    %121 = vector.broadcast %113 : vector<12x1xf32> to vector<12x32xf32>
    %122 = arith.subf %105, %121 : vector<12x32xf32>
    %cst_46 = arith.constant 9.99999974E-6 : f32
    %123 = vector.broadcast %cst_46 : f32 to vector<12x1xf32>
    %124 = arith.addf %120, %123 : vector<12x1xf32>
    %125 = math.rsqrt %124 : vector<12x1xf32>
    %126 = vector.broadcast %125 : vector<12x1xf32> to vector<12x32xf32>
    %127 = arith.mulf %122, %126 : vector<12x32xf32>
    %128 = vector.broadcast %107 : vector<1x32xf32> to vector<12x32xf32>
    %129 = arith.mulf %127, %128 : vector<12x32xf32>
    %130 = vector.broadcast %109 : vector<1x32xf32> to vector<12x32xf32>
    %131 = arith.addf %129, %130 : vector<12x32xf32>
    %c0_47 = arith.constant 0 : index
    %c0_48 = arith.constant 0 : index
    %c0_49 = arith.constant 0 : index
    %132 = vector.load %arg11[%c0_47, %c0_48, %c0_49] : memref<2x32x128xbf16, #tpu.memory_space<vmem>>, vector<1x32x128xbf16>
    %133 = vector.shape_cast %132 : vector<1x32x128xbf16> to vector<32x128xbf16>
    %c0_50 = arith.constant 0 : index
    %c0_51 = arith.constant 0 : index
    %c0_52 = arith.constant 0 : index
    %134 = vector.load %arg12[%c0_50, %c0_51, %c0_52] : memref<2x1x128xf32, #tpu.memory_space<vmem>>, vector<1x1x128xf32>
    %135 = vector.shape_cast %134 : vector<1x1x128xf32> to vector<1x128xf32>
    %c0_53 = arith.constant 0 : index
    %c0_54 = arith.constant 0 : index
    %c0_55 = arith.constant 0 : index
    %136 = vector.load %arg13[%c0_53, %c0_54, %c0_55] : memref<2x128x32xbf16, #tpu.memory_space<vmem>>, vector<1x128x32xbf16>
    %137 = vector.shape_cast %136 : vector<1x128x32xbf16> to vector<128x32xbf16>
    %c0_56 = arith.constant 0 : index
    %c0_57 = arith.constant 0 : index
    %c0_58 = arith.constant 0 : index
    %138 = vector.load %arg14[%c0_56, %c0_57, %c0_58] : memref<2x1x32xf32, #tpu.memory_space<vmem>>, vector<1x1x32xf32>
    %139 = vector.shape_cast %138 : vector<1x1x32xf32> to vector<1x32xf32>
    %140 = arith.truncf %131 : vector<12x32xf32> to vector<12x32xbf16>
    %cst_59 = arith.constant dense<0.000000e+00> : vector<12x128xf32>
    %141 = tpu.matmul %140, %133, %cst_59 {dimension_numbers = #tpu.dot_dimension_numbers<[1], [0], [0], [1], [0, 0, 1, 1], [], []>} : vector<12x32xbf16>, vector<32x128xbf16>, vector<12x128xf32> -> vector<12x128xf32>
    %142 = vector.broadcast %135 : vector<1x128xf32> to vector<12x128xf32>
    %143 = arith.addf %141, %142 : vector<12x128xf32>
    %cst_60 = arith.constant 0.000000e+00 : f32
    %144 = vector.broadcast %cst_60 : f32 to vector<12x128xf32>
    %145 = arith.maximumf %143, %144 : vector<12x128xf32>
    %146 = arith.truncf %145 : vector<12x128xf32> to vector<12x128xbf16>
    %cst_61 = arith.constant dense<0.000000e+00> : vector<12x32xf32>
    %147 = tpu.matmul %146, %137, %cst_61 {dimension_numbers = #tpu.dot_dimension_numbers<[1], [0], [0], [1], [0, 0, 1, 1], [], []>} : vector<12x128xbf16>, vector<128x32xbf16>, vector<12x32xf32> -> vector<12x32xf32>
    %148 = vector.broadcast %139 : vector<1x32xf32> to vector<12x32xf32>
    %149 = arith.addf %147, %148 : vector<12x32xf32>
    %150 = arith.addf %131, %149 : vector<12x32xf32>
    %c0_62 = arith.constant 0 : index
    %c0_63 = arith.constant 0 : index
    %c0_64 = arith.constant 0 : index
    %151 = vector.load %arg15[%c0_62, %c0_63, %c0_64] : memref<2x1x32xf32, #tpu.memory_space<vmem>>, vector<1x1x32xf32>
    %152 = vector.shape_cast %151 : vector<1x1x32xf32> to vector<1x32xf32>
    %c0_65 = arith.constant 0 : index
    %c0_66 = arith.constant 0 : index
    %c0_67 = arith.constant 0 : index
    %153 = vector.load %arg16[%c0_65, %c0_66, %c0_67] : memref<2x1x32xf32, #tpu.memory_space<vmem>>, vector<1x1x32xf32>
    %154 = vector.shape_cast %153 : vector<1x1x32xf32> to vector<1x32xf32>
    %cst_68 = arith.constant dense<0.000000e+00> : vector<12xf32>
    %155 = vector.multi_reduction <add>, %150, %cst_68 [1] : vector<12x32xf32> to vector<12xf32>
    %156 = vector.shape_cast %155 : vector<12xf32> to vector<12x1xf32>
    %cst_69 = arith.constant 3.200000e+01 : f32
    %157 = vector.broadcast %cst_69 : f32 to vector<12x1xf32>
    %158 = arith.divf %156, %157 : vector<12x1xf32>
    %159 = vector.broadcast %158 : vector<12x1xf32> to vector<12x32xf32>
    %160 = arith.subf %150, %159 : vector<12x32xf32>
    %161 = arith.mulf %160, %160 : vector<12x32xf32>
    %cst_70 = arith.constant dense<0.000000e+00> : vector<12xf32>
    %162 = vector.multi_reduction <add>, %161, %cst_70 [1] : vector<12x32xf32> to vector<12xf32>
    %163 = vector.shape_cast %162 : vector<12xf32> to vector<12x1xf32>
    %cst_71 = arith.constant 3.200000e+01 : f32
    %164 = vector.broadcast %cst_71 : f32 to vector<12x1xf32>
    %165 = arith.divf %163, %164 : vector<12x1xf32>
    %166 = vector.broadcast %158 : vector<12x1xf32> to vector<12x32xf32>
    %167 = arith.subf %150, %166 : vector<12x32xf32>
    %cst_72 = arith.constant 9.99999974E-6 : f32
    %168 = vector.broadcast %cst_72 : f32 to vector<12x1xf32>
    %169 = arith.addf %165, %168 : vector<12x1xf32>
    %170 = math.rsqrt %169 : vector<12x1xf32>
    %171 = vector.broadcast %170 : vector<12x1xf32> to vector<12x32xf32>
    %172 = arith.mulf %167, %171 : vector<12x32xf32>
    %173 = vector.broadcast %152 : vector<1x32xf32> to vector<12x32xf32>
    %174 = arith.mulf %172, %173 : vector<12x32xf32>
    %175 = vector.broadcast %154 : vector<1x32xf32> to vector<12x32xf32>
    %176 = arith.addf %174, %175 : vector<12x32xf32>
    %c1 = arith.constant 1 : index
    %c0_73 = arith.constant 0 : index
    %c0_74 = arith.constant 0 : index
    %177 = vector.load %arg5[%c1, %c0_73, %c0_74] : memref<2x32x96xbf16, #tpu.memory_space<vmem>>, vector<1x32x96xbf16>
    %178 = vector.shape_cast %177 : vector<1x32x96xbf16> to vector<32x96xbf16>
    %c1_75 = arith.constant 1 : index
    %c0_76 = arith.constant 0 : index
    %c0_77 = arith.constant 0 : index
    %179 = vector.load %arg6[%c1_75, %c0_76, %c0_77] : memref<2x1x96xf32, #tpu.memory_space<vmem>>, vector<1x1x96xf32>
    %180 = vector.shape_cast %179 : vector<1x1x96xf32> to vector<1x96xf32>
    %c1_78 = arith.constant 1 : index
    %c0_79 = arith.constant 0 : index
    %c0_80 = arith.constant 0 : index
    %181 = vector.load %arg7[%c1_78, %c0_79, %c0_80] : memref<2x32x32xbf16, #tpu.memory_space<vmem>>, vector<1x32x32xbf16>
    %182 = vector.shape_cast %181 : vector<1x32x32xbf16> to vector<32x32xbf16>
    %c1_81 = arith.constant 1 : index
    %c0_82 = arith.constant 0 : index
    %c0_83 = arith.constant 0 : index
    %183 = vector.load %arg8[%c1_81, %c0_82, %c0_83] : memref<2x1x32xf32, #tpu.memory_space<vmem>>, vector<1x1x32xf32>
    %184 = vector.shape_cast %183 : vector<1x1x32xf32> to vector<1x32xf32>
    %185 = arith.truncf %176 : vector<12x32xf32> to vector<12x32xbf16>
    %cst_84 = arith.constant dense<0.000000e+00> : vector<12x96xf32>
    %186 = tpu.matmul %185, %178, %cst_84 {dimension_numbers = #tpu.dot_dimension_numbers<[1], [0], [0], [1], [0, 0, 1, 1], [], []>} : vector<12x32xbf16>, vector<32x96xbf16>, vector<12x96xf32> -> vector<12x96xf32>
    %187 = vector.broadcast %180 : vector<1x96xf32> to vector<12x96xf32>
    %188 = arith.addf %186, %187 : vector<12x96xf32>
    %189 = vector.extract_strided_slice %188 {offsets = [0, 0], sizes = [12, 32], strides = [1, 1]} : vector<12x96xf32> to vector<12x32xf32>
    %190 = vector.extract_strided_slice %188 {offsets = [0, 32], sizes = [12, 32], strides = [1, 1]} : vector<12x96xf32> to vector<12x32xf32>
    %191 = vector.extract_strided_slice %188 {offsets = [0, 64], sizes = [12, 32], strides = [1, 1]} : vector<12x96xf32> to vector<12x32xf32>
    %192 = arith.truncf %189 : vector<12x32xf32> to vector<12x32xbf16>
    %193 = arith.truncf %190 : vector<12x32xf32> to vector<12x32xbf16>
    %194 = arith.truncf %191 : vector<12x32xf32> to vector<12x32xbf16>
    %195 = vector.extract_strided_slice %192 {offsets = [0, 0], sizes = [12, 8], strides = [1, 1]} : vector<12x32xbf16> to vector<12x8xbf16>
    %196 = vector.extract_strided_slice %193 {offsets = [0, 0], sizes = [12, 8], strides = [1, 1]} : vector<12x32xbf16> to vector<12x8xbf16>
    %cst_85 = arith.constant dense<0.000000e+00> : vector<12x12xf32>
    %197 = tpu.matmul %195, %196, %cst_85 {dimension_numbers = #tpu.dot_dimension_numbers<[1], [1], [0], [0], [0, 0, 1, 0], [], []>} : vector<12x8xbf16>, vector<12x8xbf16>, vector<12x12xf32> -> vector<12x12xf32>
    %198 = vector.broadcast %9 : vector<1x12xf32> to vector<12x12xf32>
    %199 = arith.addf %197, %198 : vector<12x12xf32>
    %cst_86 = arith.constant dense<0xFF800000> : vector<12xf32>
    %200 = vector.multi_reduction <maximumf>, %199, %cst_86 [1] : vector<12x12xf32> to vector<12xf32>
    %201 = vector.shape_cast %200 : vector<12xf32> to vector<12x1xf32>
    %202 = vector.broadcast %201 : vector<12x1xf32> to vector<12x12xf32>
    %203 = arith.subf %199, %202 : vector<12x12xf32>
    %204 = math.exp %203 : vector<12x12xf32>
    %cst_87 = arith.constant dense<0.000000e+00> : vector<12xf32>
    %205 = vector.multi_reduction <add>, %204, %cst_87 [1] : vector<12x12xf32> to vector<12xf32>
    %206 = vector.shape_cast %205 : vector<12xf32> to vector<12x1xf32>
    %207 = tpu.reciprocal %206 {approx = true} : vector<12x1xf32> -> vector<12x1xf32>
    %208 = vector.broadcast %207 : vector<12x1xf32> to vector<12x12xf32>
    %209 = arith.mulf %204, %208 : vector<12x12xf32>
    %210 = arith.truncf %209 : vector<12x12xf32> to vector<12x12xbf16>
    %211 = vector.extract_strided_slice %194 {offsets = [0, 0], sizes = [12, 8], strides = [1, 1]} : vector<12x32xbf16> to vector<12x8xbf16>
    %cst_88 = arith.constant dense<0.000000e+00> : vector<12x8xf32>
    %212 = tpu.matmul %210, %211, %cst_88 {dimension_numbers = #tpu.dot_dimension_numbers<[1], [0], [0], [1], [0, 0, 1, 1], [], []>} : vector<12x12xbf16>, vector<12x8xbf16>, vector<12x8xf32> -> vector<12x8xf32>
    %213 = vector.extract_strided_slice %192 {offsets = [0, 8], sizes = [12, 8], strides = [1, 1]} : vector<12x32xbf16> to vector<12x8xbf16>
    %214 = vector.extract_strided_slice %193 {offsets = [0, 8], sizes = [12, 8], strides = [1, 1]} : vector<12x32xbf16> to vector<12x8xbf16>
    %cst_89 = arith.constant dense<0.000000e+00> : vector<12x12xf32>
    %215 = tpu.matmul %213, %214, %cst_89 {dimension_numbers = #tpu.dot_dimension_numbers<[1], [1], [0], [0], [0, 0, 1, 0], [], []>} : vector<12x8xbf16>, vector<12x8xbf16>, vector<12x12xf32> -> vector<12x12xf32>
    %216 = vector.broadcast %9 : vector<1x12xf32> to vector<12x12xf32>
    %217 = arith.addf %215, %216 : vector<12x12xf32>
    %cst_90 = arith.constant dense<0xFF800000> : vector<12xf32>
    %218 = vector.multi_reduction <maximumf>, %217, %cst_90 [1] : vector<12x12xf32> to vector<12xf32>
    %219 = vector.shape_cast %218 : vector<12xf32> to vector<12x1xf32>
    %220 = vector.broadcast %219 : vector<12x1xf32> to vector<12x12xf32>
    %221 = arith.subf %217, %220 : vector<12x12xf32>
    %222 = math.exp %221 : vector<12x12xf32>
    %cst_91 = arith.constant dense<0.000000e+00> : vector<12xf32>
    %223 = vector.multi_reduction <add>, %222, %cst_91 [1] : vector<12x12xf32> to vector<12xf32>
    %224 = vector.shape_cast %223 : vector<12xf32> to vector<12x1xf32>
    %225 = tpu.reciprocal %224 {approx = true} : vector<12x1xf32> -> vector<12x1xf32>
    %226 = vector.broadcast %225 : vector<12x1xf32> to vector<12x12xf32>
    %227 = arith.mulf %222, %226 : vector<12x12xf32>
    %228 = arith.truncf %227 : vector<12x12xf32> to vector<12x12xbf16>
    %229 = vector.extract_strided_slice %194 {offsets = [0, 8], sizes = [12, 8], strides = [1, 1]} : vector<12x32xbf16> to vector<12x8xbf16>
    %cst_92 = arith.constant dense<0.000000e+00> : vector<12x8xf32>
    %230 = tpu.matmul %228, %229, %cst_92 {dimension_numbers = #tpu.dot_dimension_numbers<[1], [0], [0], [1], [0, 0, 1, 1], [], []>} : vector<12x12xbf16>, vector<12x8xbf16>, vector<12x8xf32> -> vector<12x8xf32>
    %231 = vector.extract_strided_slice %192 {offsets = [0, 16], sizes = [12, 8], strides = [1, 1]} : vector<12x32xbf16> to vector<12x8xbf16>
    %232 = vector.extract_strided_slice %193 {offsets = [0, 16], sizes = [12, 8], strides = [1, 1]} : vector<12x32xbf16> to vector<12x8xbf16>
    %cst_93 = arith.constant dense<0.000000e+00> : vector<12x12xf32>
    %233 = tpu.matmul %231, %232, %cst_93 {dimension_numbers = #tpu.dot_dimension_numbers<[1], [1], [0], [0], [0, 0, 1, 0], [], []>} : vector<12x8xbf16>, vector<12x8xbf16>, vector<12x12xf32> -> vector<12x12xf32>
    %234 = vector.broadcast %9 : vector<1x12xf32> to vector<12x12xf32>
    %235 = arith.addf %233, %234 : vector<12x12xf32>
    %cst_94 = arith.constant dense<0xFF800000> : vector<12xf32>
    %236 = vector.multi_reduction <maximumf>, %235, %cst_94 [1] : vector<12x12xf32> to vector<12xf32>
    %237 = vector.shape_cast %236 : vector<12xf32> to vector<12x1xf32>
    %238 = vector.broadcast %237 : vector<12x1xf32> to vector<12x12xf32>
    %239 = arith.subf %235, %238 : vector<12x12xf32>
    %240 = math.exp %239 : vector<12x12xf32>
    %cst_95 = arith.constant dense<0.000000e+00> : vector<12xf32>
    %241 = vector.multi_reduction <add>, %240, %cst_95 [1] : vector<12x12xf32> to vector<12xf32>
    %242 = vector.shape_cast %241 : vector<12xf32> to vector<12x1xf32>
    %243 = tpu.reciprocal %242 {approx = true} : vector<12x1xf32> -> vector<12x1xf32>
    %244 = vector.broadcast %243 : vector<12x1xf32> to vector<12x12xf32>
    %245 = arith.mulf %240, %244 : vector<12x12xf32>
    %246 = arith.truncf %245 : vector<12x12xf32> to vector<12x12xbf16>
    %247 = vector.extract_strided_slice %194 {offsets = [0, 16], sizes = [12, 8], strides = [1, 1]} : vector<12x32xbf16> to vector<12x8xbf16>
    %cst_96 = arith.constant dense<0.000000e+00> : vector<12x8xf32>
    %248 = tpu.matmul %246, %247, %cst_96 {dimension_numbers = #tpu.dot_dimension_numbers<[1], [0], [0], [1], [0, 0, 1, 1], [], []>} : vector<12x12xbf16>, vector<12x8xbf16>, vector<12x8xf32> -> vector<12x8xf32>
    %249 = vector.extract_strided_slice %192 {offsets = [0, 24], sizes = [12, 8], strides = [1, 1]} : vector<12x32xbf16> to vector<12x8xbf16>
    %250 = vector.extract_strided_slice %193 {offsets = [0, 24], sizes = [12, 8], strides = [1, 1]} : vector<12x32xbf16> to vector<12x8xbf16>
    %cst_97 = arith.constant dense<0.000000e+00> : vector<12x12xf32>
    %251 = tpu.matmul %249, %250, %cst_97 {dimension_numbers = #tpu.dot_dimension_numbers<[1], [1], [0], [0], [0, 0, 1, 0], [], []>} : vector<12x8xbf16>, vector<12x8xbf16>, vector<12x12xf32> -> vector<12x12xf32>
    %252 = vector.broadcast %9 : vector<1x12xf32> to vector<12x12xf32>
    %253 = arith.addf %251, %252 : vector<12x12xf32>
    %cst_98 = arith.constant dense<0xFF800000> : vector<12xf32>
    %254 = vector.multi_reduction <maximumf>, %253, %cst_98 [1] : vector<12x12xf32> to vector<12xf32>
    %255 = vector.shape_cast %254 : vector<12xf32> to vector<12x1xf32>
    %256 = vector.broadcast %255 : vector<12x1xf32> to vector<12x12xf32>
    %257 = arith.subf %253, %256 : vector<12x12xf32>
    %258 = math.exp %257 : vector<12x12xf32>
    %cst_99 = arith.constant dense<0.000000e+00> : vector<12xf32>
    %259 = vector.multi_reduction <add>, %258, %cst_99 [1] : vector<12x12xf32> to vector<12xf32>
    %260 = vector.shape_cast %259 : vector<12xf32> to vector<12x1xf32>
    %261 = tpu.reciprocal %260 {approx = true} : vector<12x1xf32> -> vector<12x1xf32>
    %262 = vector.broadcast %261 : vector<12x1xf32> to vector<12x12xf32>
    %263 = arith.mulf %258, %262 : vector<12x12xf32>
    %264 = arith.truncf %263 : vector<12x12xf32> to vector<12x12xbf16>
    %265 = vector.extract_strided_slice %194 {offsets = [0, 24], sizes = [12, 8], strides = [1, 1]} : vector<12x32xbf16> to vector<12x8xbf16>
    %cst_100 = arith.constant dense<0.000000e+00> : vector<12x8xf32>
    %266 = tpu.matmul %264, %265, %cst_100 {dimension_numbers = #tpu.dot_dimension_numbers<[1], [0], [0], [1], [0, 0, 1, 1], [], []>} : vector<12x12xbf16>, vector<12x8xbf16>, vector<12x8xf32> -> vector<12x8xf32>
    %267 = tpu.concatenate %212, %230, %248, %266 in 1 : vector<12x8xf32>, vector<12x8xf32>, vector<12x8xf32>, vector<12x8xf32> -> vector<12x32xf32>
    %268 = arith.truncf %267 : vector<12x32xf32> to vector<12x32xbf16>
    %cst_101 = arith.constant dense<0.000000e+00> : vector<12x32xf32>
    %269 = tpu.matmul %268, %182, %cst_101 {dimension_numbers = #tpu.dot_dimension_numbers<[1], [0], [0], [1], [0, 0, 1, 1], [], []>} : vector<12x32xbf16>, vector<32x32xbf16>, vector<12x32xf32> -> vector<12x32xf32>
    %270 = vector.broadcast %184 : vector<1x32xf32> to vector<12x32xf32>
    %271 = arith.addf %269, %270 : vector<12x32xf32>
    %272 = arith.addf %176, %271 : vector<12x32xf32>
    %c1_102 = arith.constant 1 : index
    %c0_103 = arith.constant 0 : index
    %c0_104 = arith.constant 0 : index
    %273 = vector.load %arg9[%c1_102, %c0_103, %c0_104] : memref<2x1x32xf32, #tpu.memory_space<vmem>>, vector<1x1x32xf32>
    %274 = vector.shape_cast %273 : vector<1x1x32xf32> to vector<1x32xf32>
    %c1_105 = arith.constant 1 : index
    %c0_106 = arith.constant 0 : index
    %c0_107 = arith.constant 0 : index
    %275 = vector.load %arg10[%c1_105, %c0_106, %c0_107] : memref<2x1x32xf32, #tpu.memory_space<vmem>>, vector<1x1x32xf32>
    %276 = vector.shape_cast %275 : vector<1x1x32xf32> to vector<1x32xf32>
    %cst_108 = arith.constant dense<0.000000e+00> : vector<12xf32>
    %277 = vector.multi_reduction <add>, %272, %cst_108 [1] : vector<12x32xf32> to vector<12xf32>
    %278 = vector.shape_cast %277 : vector<12xf32> to vector<12x1xf32>
    %cst_109 = arith.constant 3.200000e+01 : f32
    %279 = vector.broadcast %cst_109 : f32 to vector<12x1xf32>
    %280 = arith.divf %278, %279 : vector<12x1xf32>
    %281 = vector.broadcast %280 : vector<12x1xf32> to vector<12x32xf32>
    %282 = arith.subf %272, %281 : vector<12x32xf32>
    %283 = arith.mulf %282, %282 : vector<12x32xf32>
    %cst_110 = arith.constant dense<0.000000e+00> : vector<12xf32>
    %284 = vector.multi_reduction <add>, %283, %cst_110 [1] : vector<12x32xf32> to vector<12xf32>
    %285 = vector.shape_cast %284 : vector<12xf32> to vector<12x1xf32>
    %cst_111 = arith.constant 3.200000e+01 : f32
    %286 = vector.broadcast %cst_111 : f32 to vector<12x1xf32>
    %287 = arith.divf %285, %286 : vector<12x1xf32>
    %288 = vector.broadcast %280 : vector<12x1xf32> to vector<12x32xf32>
    %289 = arith.subf %272, %288 : vector<12x32xf32>
    %cst_112 = arith.constant 9.99999974E-6 : f32
    %290 = vector.broadcast %cst_112 : f32 to vector<12x1xf32>
    %291 = arith.addf %287, %290 : vector<12x1xf32>
    %292 = math.rsqrt %291 : vector<12x1xf32>
    %293 = vector.broadcast %292 : vector<12x1xf32> to vector<12x32xf32>
    %294 = arith.mulf %289, %293 : vector<12x32xf32>
    %295 = vector.broadcast %274 : vector<1x32xf32> to vector<12x32xf32>
    %296 = arith.mulf %294, %295 : vector<12x32xf32>
    %297 = vector.broadcast %276 : vector<1x32xf32> to vector<12x32xf32>
    %298 = arith.addf %296, %297 : vector<12x32xf32>
    %c1_113 = arith.constant 1 : index
    %c0_114 = arith.constant 0 : index
    %c0_115 = arith.constant 0 : index
    %299 = vector.load %arg11[%c1_113, %c0_114, %c0_115] : memref<2x32x128xbf16, #tpu.memory_space<vmem>>, vector<1x32x128xbf16>
    %300 = vector.shape_cast %299 : vector<1x32x128xbf16> to vector<32x128xbf16>
    %c1_116 = arith.constant 1 : index
    %c0_117 = arith.constant 0 : index
    %c0_118 = arith.constant 0 : index
    %301 = vector.load %arg12[%c1_116, %c0_117, %c0_118] : memref<2x1x128xf32, #tpu.memory_space<vmem>>, vector<1x1x128xf32>
    %302 = vector.shape_cast %301 : vector<1x1x128xf32> to vector<1x128xf32>
    %c1_119 = arith.constant 1 : index
    %c0_120 = arith.constant 0 : index
    %c0_121 = arith.constant 0 : index
    %303 = vector.load %arg13[%c1_119, %c0_120, %c0_121] : memref<2x128x32xbf16, #tpu.memory_space<vmem>>, vector<1x128x32xbf16>
    %304 = vector.shape_cast %303 : vector<1x128x32xbf16> to vector<128x32xbf16>
    %c1_122 = arith.constant 1 : index
    %c0_123 = arith.constant 0 : index
    %c0_124 = arith.constant 0 : index
    %305 = vector.load %arg14[%c1_122, %c0_123, %c0_124] : memref<2x1x32xf32, #tpu.memory_space<vmem>>, vector<1x1x32xf32>
    %306 = vector.shape_cast %305 : vector<1x1x32xf32> to vector<1x32xf32>
    %307 = arith.truncf %298 : vector<12x32xf32> to vector<12x32xbf16>
    %cst_125 = arith.constant dense<0.000000e+00> : vector<12x128xf32>
    %308 = tpu.matmul %307, %300, %cst_125 {dimension_numbers = #tpu.dot_dimension_numbers<[1], [0], [0], [1], [0, 0, 1, 1], [], []>} : vector<12x32xbf16>, vector<32x128xbf16>, vector<12x128xf32> -> vector<12x128xf32>
    %309 = vector.broadcast %302 : vector<1x128xf32> to vector<12x128xf32>
    %310 = arith.addf %308, %309 : vector<12x128xf32>
    %cst_126 = arith.constant 0.000000e+00 : f32
    %311 = vector.broadcast %cst_126 : f32 to vector<12x128xf32>
    %312 = arith.maximumf %310, %311 : vector<12x128xf32>
    %313 = arith.truncf %312 : vector<12x128xf32> to vector<12x128xbf16>
    %cst_127 = arith.constant dense<0.000000e+00> : vector<12x32xf32>
    %314 = tpu.matmul %313, %304, %cst_127 {dimension_numbers = #tpu.dot_dimension_numbers<[1], [0], [0], [1], [0, 0, 1, 1], [], []>} : vector<12x128xbf16>, vector<128x32xbf16>, vector<12x32xf32> -> vector<12x32xf32>
    %315 = vector.broadcast %306 : vector<1x32xf32> to vector<12x32xf32>
    %316 = arith.addf %314, %315 : vector<12x32xf32>
    %317 = arith.addf %298, %316 : vector<12x32xf32>
    %c1_128 = arith.constant 1 : index
    %c0_129 = arith.constant 0 : index
    %c0_130 = arith.constant 0 : index
    %318 = vector.load %arg15[%c1_128, %c0_129, %c0_130] : memref<2x1x32xf32, #tpu.memory_space<vmem>>, vector<1x1x32xf32>
    %319 = vector.shape_cast %318 : vector<1x1x32xf32> to vector<1x32xf32>
    %c1_131 = arith.constant 1 : index
    %c0_132 = arith.constant 0 : index
    %c0_133 = arith.constant 0 : index
    %320 = vector.load %arg16[%c1_131, %c0_132, %c0_133] : memref<2x1x32xf32, #tpu.memory_space<vmem>>, vector<1x1x32xf32>
    %321 = vector.shape_cast %320 : vector<1x1x32xf32> to vector<1x32xf32>
    %cst_134 = arith.constant dense<0.000000e+00> : vector<12xf32>
    %322 = vector.multi_reduction <add>, %317, %cst_134 [1] : vector<12x32xf32> to vector<12xf32>
    %323 = vector.shape_cast %322 : vector<12xf32> to vector<12x1xf32>
    %cst_135 = arith.constant 3.200000e+01 : f32
    %324 = vector.broadcast %cst_135 : f32 to vector<12x1xf32>
    %325 = arith.divf %323, %324 : vector<12x1xf32>
    %326 = vector.broadcast %325 : vector<12x1xf32> to vector<12x32xf32>
    %327 = arith.subf %317, %326 : vector<12x32xf32>
    %328 = arith.mulf %327, %327 : vector<12x32xf32>
    %cst_136 = arith.constant dense<0.000000e+00> : vector<12xf32>
    %329 = vector.multi_reduction <add>, %328, %cst_136 [1] : vector<12x32xf32> to vector<12xf32>
    %330 = vector.shape_cast %329 : vector<12xf32> to vector<12x1xf32>
    %cst_137 = arith.constant 3.200000e+01 : f32
    %331 = vector.broadcast %cst_137 : f32 to vector<12x1xf32>
    %332 = arith.divf %330, %331 : vector<12x1xf32>
    %333 = vector.broadcast %325 : vector<12x1xf32> to vector<12x32xf32>
    %334 = arith.subf %317, %333 : vector<12x32xf32>
    %cst_138 = arith.constant 9.99999974E-6 : f32
    %335 = vector.broadcast %cst_138 : f32 to vector<12x1xf32>
    %336 = arith.addf %332, %335 : vector<12x1xf32>
    %337 = math.rsqrt %336 : vector<12x1xf32>
    %338 = vector.broadcast %337 : vector<12x1xf32> to vector<12x32xf32>
    %339 = arith.mulf %334, %338 : vector<12x32xf32>
    %340 = vector.broadcast %319 : vector<1x32xf32> to vector<12x32xf32>
    %341 = arith.mulf %339, %340 : vector<12x32xf32>
    %342 = vector.broadcast %321 : vector<1x32xf32> to vector<12x32xf32>
    %343 = arith.addf %341, %342 : vector<12x32xf32>
    %c0_139 = arith.constant 0 : index
    %c0_140 = arith.constant 0 : index
    %344 = vector.load %arg17[%c0_139, %c0_140] : memref<1x32xf32, #tpu.memory_space<vmem>>, vector<1x32xf32>
    %c0_141 = arith.constant 0 : index
    %c0_142 = arith.constant 0 : index
    %345 = vector.load %arg18[%c0_141, %c0_142] : memref<1x32xf32, #tpu.memory_space<vmem>>, vector<1x32xf32>
    %cst_143 = arith.constant dense<0.000000e+00> : vector<12xf32>
    %346 = vector.multi_reduction <add>, %343, %cst_143 [1] : vector<12x32xf32> to vector<12xf32>
    %347 = vector.shape_cast %346 : vector<12xf32> to vector<12x1xf32>
    %cst_144 = arith.constant 3.200000e+01 : f32
    %348 = vector.broadcast %cst_144 : f32 to vector<12x1xf32>
    %349 = arith.divf %347, %348 : vector<12x1xf32>
    %350 = vector.broadcast %349 : vector<12x1xf32> to vector<12x32xf32>
    %351 = arith.subf %343, %350 : vector<12x32xf32>
    %352 = arith.mulf %351, %351 : vector<12x32xf32>
    %cst_145 = arith.constant dense<0.000000e+00> : vector<12xf32>
    %353 = vector.multi_reduction <add>, %352, %cst_145 [1] : vector<12x32xf32> to vector<12xf32>
    %354 = vector.shape_cast %353 : vector<12xf32> to vector<12x1xf32>
    %cst_146 = arith.constant 3.200000e+01 : f32
    %355 = vector.broadcast %cst_146 : f32 to vector<12x1xf32>
    %356 = arith.divf %354, %355 : vector<12x1xf32>
    %357 = vector.broadcast %349 : vector<12x1xf32> to vector<12x32xf32>
    %358 = arith.subf %343, %357 : vector<12x32xf32>
    %cst_147 = arith.constant 9.99999974E-6 : f32
    %359 = vector.broadcast %cst_147 : f32 to vector<12x1xf32>
    %360 = arith.addf %356, %359 : vector<12x1xf32>
    %361 = math.rsqrt %360 : vector<12x1xf32>
    %362 = vector.broadcast %361 : vector<12x1xf32> to vector<12x32xf32>
    %363 = arith.mulf %358, %362 : vector<12x32xf32>
    %364 = vector.broadcast %344 : vector<1x32xf32> to vector<12x32xf32>
    %365 = arith.mulf %363, %364 : vector<12x32xf32>
    %366 = vector.broadcast %345 : vector<1x32xf32> to vector<12x32xf32>
    %367 = arith.addf %365, %366 : vector<12x32xf32>
    %c0_148 = arith.constant 0 : index
    %c0_149 = arith.constant 0 : index
    %c0_150 = arith.constant 0 : index
    %368 = vector.load %arg2[%c0_148, %c0_149, %c0_150] : memref<2x8x32xf32, #tpu.memory_space<vmem>>, vector<1x8x32xf32>
    %369 = vector.shape_cast %368 : vector<1x8x32xf32> to vector<8x32xf32>
    %c0_151 = arith.constant 0 : index
    %c0_152 = arith.constant 0 : index
    %c0_153 = arith.constant 0 : index
    %370 = vector.load %arg4[%c0_151, %c0_152, %c0_153] : memref<2x1x8xf32, #tpu.memory_space<vmem>>, vector<1x1x8xf32>
    %371 = vector.shape_cast %370 : vector<1x1x8xf32> to vector<1x8xf32>
    %372 = vector.broadcast %371 : vector<1x8xf32> to vector<8x8xf32>
    %373 = arith.addf %5, %372 : vector<8x8xf32>
    %c0_154 = arith.constant 0 : index
    %c0_155 = arith.constant 0 : index
    %c0_156 = arith.constant 0 : index
    %374 = vector.load %arg19[%c0_154, %c0_155, %c0_156] : memref<2x32x96xbf16, #tpu.memory_space<vmem>>, vector<1x32x96xbf16>
    %375 = vector.shape_cast %374 : vector<1x32x96xbf16> to vector<32x96xbf16>
    %c0_157 = arith.constant 0 : index
    %c0_158 = arith.constant 0 : index
    %c0_159 = arith.constant 0 : index
    %376 = vector.load %arg20[%c0_157, %c0_158, %c0_159] : memref<2x1x96xf32, #tpu.memory_space<vmem>>, vector<1x1x96xf32>
    %377 = vector.shape_cast %376 : vector<1x1x96xf32> to vector<1x96xf32>
    %c0_160 = arith.constant 0 : index
    %c0_161 = arith.constant 0 : index
    %c0_162 = arith.constant 0 : index
    %378 = vector.load %arg21[%c0_160, %c0_161, %c0_162] : memref<2x32x32xbf16, #tpu.memory_space<vmem>>, vector<1x32x32xbf16>
    %379 = vector.shape_cast %378 : vector<1x32x32xbf16> to vector<32x32xbf16>
    %c0_163 = arith.constant 0 : index
    %c0_164 = arith.constant 0 : index
    %c0_165 = arith.constant 0 : index
    %380 = vector.load %arg22[%c0_163, %c0_164, %c0_165] : memref<2x1x32xf32, #tpu.memory_space<vmem>>, vector<1x1x32xf32>
    %381 = vector.shape_cast %380 : vector<1x1x32xf32> to vector<1x32xf32>
    %382 = arith.truncf %369 : vector<8x32xf32> to vector<8x32xbf16>
    %cst_166 = arith.constant dense<0.000000e+00> : vector<8x96xf32>
    %383 = tpu.matmul %382, %375, %cst_166 {dimension_numbers = #tpu.dot_dimension_numbers<[1], [0], [0], [1], [0, 0, 1, 1], [], []>} : vector<8x32xbf16>, vector<32x96xbf16>, vector<8x96xf32> -> vector<8x96xf32>
    %384 = vector.broadcast %377 : vector<1x96xf32> to vector<8x96xf32>
    %385 = arith.addf %383, %384 : vector<8x96xf32>
    %386 = vector.extract_strided_slice %385 {offsets = [0, 0], sizes = [8, 32], strides = [1, 1]} : vector<8x96xf32> to vector<8x32xf32>
    %387 = vector.extract_strided_slice %385 {offsets = [0, 32], sizes = [8, 32], strides = [1, 1]} : vector<8x96xf32> to vector<8x32xf32>
    %388 = vector.extract_strided_slice %385 {offsets = [0, 64], sizes = [8, 32], strides = [1, 1]} : vector<8x96xf32> to vector<8x32xf32>
    %389 = arith.truncf %386 : vector<8x32xf32> to vector<8x32xbf16>
    %390 = arith.truncf %387 : vector<8x32xf32> to vector<8x32xbf16>
    %391 = arith.truncf %388 : vector<8x32xf32> to vector<8x32xbf16>
    %392 = vector.extract_strided_slice %389 {offsets = [0, 0], sizes = [8, 8], strides = [1, 1]} : vector<8x32xbf16> to vector<8x8xbf16>
    %393 = vector.extract_strided_slice %390 {offsets = [0, 0], sizes = [8, 8], strides = [1, 1]} : vector<8x32xbf16> to vector<8x8xbf16>
    %cst_167 = arith.constant dense<0.000000e+00> : vector<8x8xf32>
    %394 = tpu.matmul %392, %393, %cst_167 {dimension_numbers = #tpu.dot_dimension_numbers<[1], [1], [0], [0], [0, 0, 1, 0], [], []>} : vector<8x8xbf16>, vector<8x8xbf16>, vector<8x8xf32> -> vector<8x8xf32>
    %395 = arith.addf %394, %373 : vector<8x8xf32>
    %cst_168 = arith.constant dense<0xFF800000> : vector<8xf32>
    %396 = vector.multi_reduction <maximumf>, %395, %cst_168 [1] : vector<8x8xf32> to vector<8xf32>
    %397 = vector.shape_cast %396 : vector<8xf32> to vector<8x1xf32>
    %398 = vector.broadcast %397 : vector<8x1xf32> to vector<8x8xf32>
    %399 = arith.subf %395, %398 : vector<8x8xf32>
    %400 = math.exp %399 : vector<8x8xf32>
    %cst_169 = arith.constant dense<0.000000e+00> : vector<8xf32>
    %401 = vector.multi_reduction <add>, %400, %cst_169 [1] : vector<8x8xf32> to vector<8xf32>
    %402 = vector.shape_cast %401 : vector<8xf32> to vector<8x1xf32>
    %403 = tpu.reciprocal %402 {approx = true} : vector<8x1xf32> -> vector<8x1xf32>
    %404 = vector.broadcast %403 : vector<8x1xf32> to vector<8x8xf32>
    %405 = arith.mulf %400, %404 : vector<8x8xf32>
    %406 = arith.truncf %405 : vector<8x8xf32> to vector<8x8xbf16>
    %407 = vector.extract_strided_slice %391 {offsets = [0, 0], sizes = [8, 8], strides = [1, 1]} : vector<8x32xbf16> to vector<8x8xbf16>
    %cst_170 = arith.constant dense<0.000000e+00> : vector<8x8xf32>
    %408 = tpu.matmul %406, %407, %cst_170 {dimension_numbers = #tpu.dot_dimension_numbers<[1], [0], [0], [1], [0, 0, 1, 1], [], []>} : vector<8x8xbf16>, vector<8x8xbf16>, vector<8x8xf32> -> vector<8x8xf32>
    %409 = vector.extract_strided_slice %389 {offsets = [0, 8], sizes = [8, 8], strides = [1, 1]} : vector<8x32xbf16> to vector<8x8xbf16>
    %410 = vector.extract_strided_slice %390 {offsets = [0, 8], sizes = [8, 8], strides = [1, 1]} : vector<8x32xbf16> to vector<8x8xbf16>
    %cst_171 = arith.constant dense<0.000000e+00> : vector<8x8xf32>
    %411 = tpu.matmul %409, %410, %cst_171 {dimension_numbers = #tpu.dot_dimension_numbers<[1], [1], [0], [0], [0, 0, 1, 0], [], []>} : vector<8x8xbf16>, vector<8x8xbf16>, vector<8x8xf32> -> vector<8x8xf32>
    %412 = arith.addf %411, %373 : vector<8x8xf32>
    %cst_172 = arith.constant dense<0xFF800000> : vector<8xf32>
    %413 = vector.multi_reduction <maximumf>, %412, %cst_172 [1] : vector<8x8xf32> to vector<8xf32>
    %414 = vector.shape_cast %413 : vector<8xf32> to vector<8x1xf32>
    %415 = vector.broadcast %414 : vector<8x1xf32> to vector<8x8xf32>
    %416 = arith.subf %412, %415 : vector<8x8xf32>
    %417 = math.exp %416 : vector<8x8xf32>
    %cst_173 = arith.constant dense<0.000000e+00> : vector<8xf32>
    %418 = vector.multi_reduction <add>, %417, %cst_173 [1] : vector<8x8xf32> to vector<8xf32>
    %419 = vector.shape_cast %418 : vector<8xf32> to vector<8x1xf32>
    %420 = tpu.reciprocal %419 {approx = true} : vector<8x1xf32> -> vector<8x1xf32>
    %421 = vector.broadcast %420 : vector<8x1xf32> to vector<8x8xf32>
    %422 = arith.mulf %417, %421 : vector<8x8xf32>
    %423 = arith.truncf %422 : vector<8x8xf32> to vector<8x8xbf16>
    %424 = vector.extract_strided_slice %391 {offsets = [0, 8], sizes = [8, 8], strides = [1, 1]} : vector<8x32xbf16> to vector<8x8xbf16>
    %cst_174 = arith.constant dense<0.000000e+00> : vector<8x8xf32>
    %425 = tpu.matmul %423, %424, %cst_174 {dimension_numbers = #tpu.dot_dimension_numbers<[1], [0], [0], [1], [0, 0, 1, 1], [], []>} : vector<8x8xbf16>, vector<8x8xbf16>, vector<8x8xf32> -> vector<8x8xf32>
    %426 = vector.extract_strided_slice %389 {offsets = [0, 16], sizes = [8, 8], strides = [1, 1]} : vector<8x32xbf16> to vector<8x8xbf16>
    %427 = vector.extract_strided_slice %390 {offsets = [0, 16], sizes = [8, 8], strides = [1, 1]} : vector<8x32xbf16> to vector<8x8xbf16>
    %cst_175 = arith.constant dense<0.000000e+00> : vector<8x8xf32>
    %428 = tpu.matmul %426, %427, %cst_175 {dimension_numbers = #tpu.dot_dimension_numbers<[1], [1], [0], [0], [0, 0, 1, 0], [], []>} : vector<8x8xbf16>, vector<8x8xbf16>, vector<8x8xf32> -> vector<8x8xf32>
    %429 = arith.addf %428, %373 : vector<8x8xf32>
    %cst_176 = arith.constant dense<0xFF800000> : vector<8xf32>
    %430 = vector.multi_reduction <maximumf>, %429, %cst_176 [1] : vector<8x8xf32> to vector<8xf32>
    %431 = vector.shape_cast %430 : vector<8xf32> to vector<8x1xf32>
    %432 = vector.broadcast %431 : vector<8x1xf32> to vector<8x8xf32>
    %433 = arith.subf %429, %432 : vector<8x8xf32>
    %434 = math.exp %433 : vector<8x8xf32>
    %cst_177 = arith.constant dense<0.000000e+00> : vector<8xf32>
    %435 = vector.multi_reduction <add>, %434, %cst_177 [1] : vector<8x8xf32> to vector<8xf32>
    %436 = vector.shape_cast %435 : vector<8xf32> to vector<8x1xf32>
    %437 = tpu.reciprocal %436 {approx = true} : vector<8x1xf32> -> vector<8x1xf32>
    %438 = vector.broadcast %437 : vector<8x1xf32> to vector<8x8xf32>
    %439 = arith.mulf %434, %438 : vector<8x8xf32>
    %440 = arith.truncf %439 : vector<8x8xf32> to vector<8x8xbf16>
    %441 = vector.extract_strided_slice %391 {offsets = [0, 16], sizes = [8, 8], strides = [1, 1]} : vector<8x32xbf16> to vector<8x8xbf16>
    %cst_178 = arith.constant dense<0.000000e+00> : vector<8x8xf32>
    %442 = tpu.matmul %440, %441, %cst_178 {dimension_numbers = #tpu.dot_dimension_numbers<[1], [0], [0], [1], [0, 0, 1, 1], [], []>} : vector<8x8xbf16>, vector<8x8xbf16>, vector<8x8xf32> -> vector<8x8xf32>
    %443 = vector.extract_strided_slice %389 {offsets = [0, 24], sizes = [8, 8], strides = [1, 1]} : vector<8x32xbf16> to vector<8x8xbf16>
    %444 = vector.extract_strided_slice %390 {offsets = [0, 24], sizes = [8, 8], strides = [1, 1]} : vector<8x32xbf16> to vector<8x8xbf16>
    %cst_179 = arith.constant dense<0.000000e+00> : vector<8x8xf32>
    %445 = tpu.matmul %443, %444, %cst_179 {dimension_numbers = #tpu.dot_dimension_numbers<[1], [1], [0], [0], [0, 0, 1, 0], [], []>} : vector<8x8xbf16>, vector<8x8xbf16>, vector<8x8xf32> -> vector<8x8xf32>
    %446 = arith.addf %445, %373 : vector<8x8xf32>
    %cst_180 = arith.constant dense<0xFF800000> : vector<8xf32>
    %447 = vector.multi_reduction <maximumf>, %446, %cst_180 [1] : vector<8x8xf32> to vector<8xf32>
    %448 = vector.shape_cast %447 : vector<8xf32> to vector<8x1xf32>
    %449 = vector.broadcast %448 : vector<8x1xf32> to vector<8x8xf32>
    %450 = arith.subf %446, %449 : vector<8x8xf32>
    %451 = math.exp %450 : vector<8x8xf32>
    %cst_181 = arith.constant dense<0.000000e+00> : vector<8xf32>
    %452 = vector.multi_reduction <add>, %451, %cst_181 [1] : vector<8x8xf32> to vector<8xf32>
    %453 = vector.shape_cast %452 : vector<8xf32> to vector<8x1xf32>
    %454 = tpu.reciprocal %453 {approx = true} : vector<8x1xf32> -> vector<8x1xf32>
    %455 = vector.broadcast %454 : vector<8x1xf32> to vector<8x8xf32>
    %456 = arith.mulf %451, %455 : vector<8x8xf32>
    %457 = arith.truncf %456 : vector<8x8xf32> to vector<8x8xbf16>
    %458 = vector.extract_strided_slice %391 {offsets = [0, 24], sizes = [8, 8], strides = [1, 1]} : vector<8x32xbf16> to vector<8x8xbf16>
    %cst_182 = arith.constant dense<0.000000e+00> : vector<8x8xf32>
    %459 = tpu.matmul %457, %458, %cst_182 {dimension_numbers = #tpu.dot_dimension_numbers<[1], [0], [0], [1], [0, 0, 1, 1], [], []>} : vector<8x8xbf16>, vector<8x8xbf16>, vector<8x8xf32> -> vector<8x8xf32>
    %460 = tpu.concatenate %408, %425, %442, %459 in 1 : vector<8x8xf32>, vector<8x8xf32>, vector<8x8xf32>, vector<8x8xf32> -> vector<8x32xf32>
    %461 = arith.truncf %460 : vector<8x32xf32> to vector<8x32xbf16>
    %cst_183 = arith.constant dense<0.000000e+00> : vector<8x32xf32>
    %462 = tpu.matmul %461, %379, %cst_183 {dimension_numbers = #tpu.dot_dimension_numbers<[1], [0], [0], [1], [0, 0, 1, 1], [], []>} : vector<8x32xbf16>, vector<32x32xbf16>, vector<8x32xf32> -> vector<8x32xf32>
    %463 = vector.broadcast %381 : vector<1x32xf32> to vector<8x32xf32>
    %464 = arith.addf %462, %463 : vector<8x32xf32>
    %465 = arith.addf %369, %464 : vector<8x32xf32>
    %c0_184 = arith.constant 0 : index
    %c0_185 = arith.constant 0 : index
    %c0_186 = arith.constant 0 : index
    %466 = vector.load %arg23[%c0_184, %c0_185, %c0_186] : memref<2x1x32xf32, #tpu.memory_space<vmem>>, vector<1x1x32xf32>
    %467 = vector.shape_cast %466 : vector<1x1x32xf32> to vector<1x32xf32>
    %c0_187 = arith.constant 0 : index
    %c0_188 = arith.constant 0 : index
    %c0_189 = arith.constant 0 : index
    %468 = vector.load %arg24[%c0_187, %c0_188, %c0_189] : memref<2x1x32xf32, #tpu.memory_space<vmem>>, vector<1x1x32xf32>
    %469 = vector.shape_cast %468 : vector<1x1x32xf32> to vector<1x32xf32>
    %cst_190 = arith.constant dense<0.000000e+00> : vector<8xf32>
    %470 = vector.multi_reduction <add>, %465, %cst_190 [1] : vector<8x32xf32> to vector<8xf32>
    %471 = vector.shape_cast %470 : vector<8xf32> to vector<8x1xf32>
    %cst_191 = arith.constant 3.200000e+01 : f32
    %472 = vector.broadcast %cst_191 : f32 to vector<8x1xf32>
    %473 = arith.divf %471, %472 : vector<8x1xf32>
    %474 = vector.broadcast %473 : vector<8x1xf32> to vector<8x32xf32>
    %475 = arith.subf %465, %474 : vector<8x32xf32>
    %476 = arith.mulf %475, %475 : vector<8x32xf32>
    %cst_192 = arith.constant dense<0.000000e+00> : vector<8xf32>
    %477 = vector.multi_reduction <add>, %476, %cst_192 [1] : vector<8x32xf32> to vector<8xf32>
    %478 = vector.shape_cast %477 : vector<8xf32> to vector<8x1xf32>
    %cst_193 = arith.constant 3.200000e+01 : f32
    %479 = vector.broadcast %cst_193 : f32 to vector<8x1xf32>
    %480 = arith.divf %478, %479 : vector<8x1xf32>
    %481 = vector.broadcast %473 : vector<8x1xf32> to vector<8x32xf32>
    %482 = arith.subf %465, %481 : vector<8x32xf32>
    %cst_194 = arith.constant 9.99999974E-6 : f32
    %483 = vector.broadcast %cst_194 : f32 to vector<8x1xf32>
    %484 = arith.addf %480, %483 : vector<8x1xf32>
    %485 = math.rsqrt %484 : vector<8x1xf32>
    %486 = vector.broadcast %485 : vector<8x1xf32> to vector<8x32xf32>
    %487 = arith.mulf %482, %486 : vector<8x32xf32>
    %488 = vector.broadcast %467 : vector<1x32xf32> to vector<8x32xf32>
    %489 = arith.mulf %487, %488 : vector<8x32xf32>
    %490 = vector.broadcast %469 : vector<1x32xf32> to vector<8x32xf32>
    %491 = arith.addf %489, %490 : vector<8x32xf32>
    %c0_195 = arith.constant 0 : index
    %c0_196 = arith.constant 0 : index
    %c0_197 = arith.constant 0 : index
    %492 = vector.load %arg25[%c0_195, %c0_196, %c0_197] : memref<2x32x32xbf16, #tpu.memory_space<vmem>>, vector<1x32x32xbf16>
    %493 = vector.shape_cast %492 : vector<1x32x32xbf16> to vector<32x32xbf16>
    %c0_198 = arith.constant 0 : index
    %c0_199 = arith.constant 0 : index
    %c0_200 = arith.constant 0 : index
    %494 = vector.load %arg26[%c0_198, %c0_199, %c0_200] : memref<2x1x32xf32, #tpu.memory_space<vmem>>, vector<1x1x32xf32>
    %495 = vector.shape_cast %494 : vector<1x1x32xf32> to vector<1x32xf32>
    %c0_201 = arith.constant 0 : index
    %c0_202 = arith.constant 0 : index
    %c0_203 = arith.constant 0 : index
    %496 = vector.load %arg27[%c0_201, %c0_202, %c0_203] : memref<2x32x64xbf16, #tpu.memory_space<vmem>>, vector<1x32x64xbf16>
    %497 = vector.shape_cast %496 : vector<1x32x64xbf16> to vector<32x64xbf16>
    %c0_204 = arith.constant 0 : index
    %c0_205 = arith.constant 0 : index
    %c0_206 = arith.constant 0 : index
    %498 = vector.load %arg28[%c0_204, %c0_205, %c0_206] : memref<2x1x64xf32, #tpu.memory_space<vmem>>, vector<1x1x64xf32>
    %499 = vector.shape_cast %498 : vector<1x1x64xf32> to vector<1x64xf32>
    %c0_207 = arith.constant 0 : index
    %c0_208 = arith.constant 0 : index
    %c0_209 = arith.constant 0 : index
    %500 = vector.load %arg29[%c0_207, %c0_208, %c0_209] : memref<2x32x32xbf16, #tpu.memory_space<vmem>>, vector<1x32x32xbf16>
    %501 = vector.shape_cast %500 : vector<1x32x32xbf16> to vector<32x32xbf16>
    %c0_210 = arith.constant 0 : index
    %c0_211 = arith.constant 0 : index
    %c0_212 = arith.constant 0 : index
    %502 = vector.load %arg30[%c0_210, %c0_211, %c0_212] : memref<2x1x32xf32, #tpu.memory_space<vmem>>, vector<1x1x32xf32>
    %503 = vector.shape_cast %502 : vector<1x1x32xf32> to vector<1x32xf32>
    %504 = arith.truncf %491 : vector<8x32xf32> to vector<8x32xbf16>
    %cst_213 = arith.constant dense<0.000000e+00> : vector<8x32xf32>
    %505 = tpu.matmul %504, %493, %cst_213 {dimension_numbers = #tpu.dot_dimension_numbers<[1], [0], [0], [1], [0, 0, 1, 1], [], []>} : vector<8x32xbf16>, vector<32x32xbf16>, vector<8x32xf32> -> vector<8x32xf32>
    %506 = vector.broadcast %495 : vector<1x32xf32> to vector<8x32xf32>
    %507 = arith.addf %505, %506 : vector<8x32xf32>
    %508 = arith.truncf %367 : vector<12x32xf32> to vector<12x32xbf16>
    %cst_214 = arith.constant dense<0.000000e+00> : vector<12x64xf32>
    %509 = tpu.matmul %508, %497, %cst_214 {dimension_numbers = #tpu.dot_dimension_numbers<[1], [0], [0], [1], [0, 0, 1, 1], [], []>} : vector<12x32xbf16>, vector<32x64xbf16>, vector<12x64xf32> -> vector<12x64xf32>
    %510 = vector.broadcast %499 : vector<1x64xf32> to vector<12x64xf32>
    %511 = arith.addf %509, %510 : vector<12x64xf32>
    %512 = vector.extract_strided_slice %511 {offsets = [0, 0], sizes = [12, 32], strides = [1, 1]} : vector<12x64xf32> to vector<12x32xf32>
    %513 = vector.extract_strided_slice %511 {offsets = [0, 32], sizes = [12, 32], strides = [1, 1]} : vector<12x64xf32> to vector<12x32xf32>
    %514 = arith.truncf %507 : vector<8x32xf32> to vector<8x32xbf16>
    %515 = arith.truncf %512 : vector<12x32xf32> to vector<12x32xbf16>
    %516 = arith.truncf %513 : vector<12x32xf32> to vector<12x32xbf16>
    %517 = vector.extract_strided_slice %514 {offsets = [0, 0], sizes = [8, 8], strides = [1, 1]} : vector<8x32xbf16> to vector<8x8xbf16>
    %518 = vector.extract_strided_slice %515 {offsets = [0, 0], sizes = [12, 8], strides = [1, 1]} : vector<12x32xbf16> to vector<12x8xbf16>
    %cst_215 = arith.constant dense<0.000000e+00> : vector<8x12xf32>
    %519 = tpu.matmul %517, %518, %cst_215 {dimension_numbers = #tpu.dot_dimension_numbers<[1], [1], [0], [0], [0, 0, 1, 0], [], []>} : vector<8x8xbf16>, vector<12x8xbf16>, vector<8x12xf32> -> vector<8x12xf32>
    %cst_216 = arith.constant dense<0xFF800000> : vector<8xf32>
    %520 = vector.multi_reduction <maximumf>, %519, %cst_216 [1] : vector<8x12xf32> to vector<8xf32>
    %521 = vector.shape_cast %520 : vector<8xf32> to vector<8x1xf32>
    %522 = vector.broadcast %521 : vector<8x1xf32> to vector<8x12xf32>
    %523 = arith.subf %519, %522 : vector<8x12xf32>
    %524 = math.exp %523 : vector<8x12xf32>
    %cst_217 = arith.constant dense<0.000000e+00> : vector<8xf32>
    %525 = vector.multi_reduction <add>, %524, %cst_217 [1] : vector<8x12xf32> to vector<8xf32>
    %526 = vector.shape_cast %525 : vector<8xf32> to vector<8x1xf32>
    %527 = tpu.reciprocal %526 {approx = true} : vector<8x1xf32> -> vector<8x1xf32>
    %528 = vector.broadcast %527 : vector<8x1xf32> to vector<8x12xf32>
    %529 = arith.mulf %524, %528 : vector<8x12xf32>
    %530 = arith.truncf %529 : vector<8x12xf32> to vector<8x12xbf16>
    %531 = vector.extract_strided_slice %516 {offsets = [0, 0], sizes = [12, 8], strides = [1, 1]} : vector<12x32xbf16> to vector<12x8xbf16>
    %cst_218 = arith.constant dense<0.000000e+00> : vector<8x8xf32>
    %532 = tpu.matmul %530, %531, %cst_218 {dimension_numbers = #tpu.dot_dimension_numbers<[1], [0], [0], [1], [0, 0, 1, 1], [], []>} : vector<8x12xbf16>, vector<12x8xbf16>, vector<8x8xf32> -> vector<8x8xf32>
    %533 = vector.extract_strided_slice %514 {offsets = [0, 8], sizes = [8, 8], strides = [1, 1]} : vector<8x32xbf16> to vector<8x8xbf16>
    %534 = vector.extract_strided_slice %515 {offsets = [0, 8], sizes = [12, 8], strides = [1, 1]} : vector<12x32xbf16> to vector<12x8xbf16>
    %cst_219 = arith.constant dense<0.000000e+00> : vector<8x12xf32>
    %535 = tpu.matmul %533, %534, %cst_219 {dimension_numbers = #tpu.dot_dimension_numbers<[1], [1], [0], [0], [0, 0, 1, 0], [], []>} : vector<8x8xbf16>, vector<12x8xbf16>, vector<8x12xf32> -> vector<8x12xf32>
    %cst_220 = arith.constant dense<0xFF800000> : vector<8xf32>
    %536 = vector.multi_reduction <maximumf>, %535, %cst_220 [1] : vector<8x12xf32> to vector<8xf32>
    %537 = vector.shape_cast %536 : vector<8xf32> to vector<8x1xf32>
    %538 = vector.broadcast %537 : vector<8x1xf32> to vector<8x12xf32>
    %539 = arith.subf %535, %538 : vector<8x12xf32>
    %540 = math.exp %539 : vector<8x12xf32>
    %cst_221 = arith.constant dense<0.000000e+00> : vector<8xf32>
    %541 = vector.multi_reduction <add>, %540, %cst_221 [1] : vector<8x12xf32> to vector<8xf32>
    %542 = vector.shape_cast %541 : vector<8xf32> to vector<8x1xf32>
    %543 = tpu.reciprocal %542 {approx = true} : vector<8x1xf32> -> vector<8x1xf32>
    %544 = vector.broadcast %543 : vector<8x1xf32> to vector<8x12xf32>
    %545 = arith.mulf %540, %544 : vector<8x12xf32>
    %546 = arith.truncf %545 : vector<8x12xf32> to vector<8x12xbf16>
    %547 = vector.extract_strided_slice %516 {offsets = [0, 8], sizes = [12, 8], strides = [1, 1]} : vector<12x32xbf16> to vector<12x8xbf16>
    %cst_222 = arith.constant dense<0.000000e+00> : vector<8x8xf32>
    %548 = tpu.matmul %546, %547, %cst_222 {dimension_numbers = #tpu.dot_dimension_numbers<[1], [0], [0], [1], [0, 0, 1, 1], [], []>} : vector<8x12xbf16>, vector<12x8xbf16>, vector<8x8xf32> -> vector<8x8xf32>
    %549 = vector.extract_strided_slice %514 {offsets = [0, 16], sizes = [8, 8], strides = [1, 1]} : vector<8x32xbf16> to vector<8x8xbf16>
    %550 = vector.extract_strided_slice %515 {offsets = [0, 16], sizes = [12, 8], strides = [1, 1]} : vector<12x32xbf16> to vector<12x8xbf16>
    %cst_223 = arith.constant dense<0.000000e+00> : vector<8x12xf32>
    %551 = tpu.matmul %549, %550, %cst_223 {dimension_numbers = #tpu.dot_dimension_numbers<[1], [1], [0], [0], [0, 0, 1, 0], [], []>} : vector<8x8xbf16>, vector<12x8xbf16>, vector<8x12xf32> -> vector<8x12xf32>
    %cst_224 = arith.constant dense<0xFF800000> : vector<8xf32>
    %552 = vector.multi_reduction <maximumf>, %551, %cst_224 [1] : vector<8x12xf32> to vector<8xf32>
    %553 = vector.shape_cast %552 : vector<8xf32> to vector<8x1xf32>
    %554 = vector.broadcast %553 : vector<8x1xf32> to vector<8x12xf32>
    %555 = arith.subf %551, %554 : vector<8x12xf32>
    %556 = math.exp %555 : vector<8x12xf32>
    %cst_225 = arith.constant dense<0.000000e+00> : vector<8xf32>
    %557 = vector.multi_reduction <add>, %556, %cst_225 [1] : vector<8x12xf32> to vector<8xf32>
    %558 = vector.shape_cast %557 : vector<8xf32> to vector<8x1xf32>
    %559 = tpu.reciprocal %558 {approx = true} : vector<8x1xf32> -> vector<8x1xf32>
    %560 = vector.broadcast %559 : vector<8x1xf32> to vector<8x12xf32>
    %561 = arith.mulf %556, %560 : vector<8x12xf32>
    %562 = arith.truncf %561 : vector<8x12xf32> to vector<8x12xbf16>
    %563 = vector.extract_strided_slice %516 {offsets = [0, 16], sizes = [12, 8], strides = [1, 1]} : vector<12x32xbf16> to vector<12x8xbf16>
    %cst_226 = arith.constant dense<0.000000e+00> : vector<8x8xf32>
    %564 = tpu.matmul %562, %563, %cst_226 {dimension_numbers = #tpu.dot_dimension_numbers<[1], [0], [0], [1], [0, 0, 1, 1], [], []>} : vector<8x12xbf16>, vector<12x8xbf16>, vector<8x8xf32> -> vector<8x8xf32>
    %565 = vector.extract_strided_slice %514 {offsets = [0, 24], sizes = [8, 8], strides = [1, 1]} : vector<8x32xbf16> to vector<8x8xbf16>
    %566 = vector.extract_strided_slice %515 {offsets = [0, 24], sizes = [12, 8], strides = [1, 1]} : vector<12x32xbf16> to vector<12x8xbf16>
    %cst_227 = arith.constant dense<0.000000e+00> : vector<8x12xf32>
    %567 = tpu.matmul %565, %566, %cst_227 {dimension_numbers = #tpu.dot_dimension_numbers<[1], [1], [0], [0], [0, 0, 1, 0], [], []>} : vector<8x8xbf16>, vector<12x8xbf16>, vector<8x12xf32> -> vector<8x12xf32>
    %cst_228 = arith.constant dense<0xFF800000> : vector<8xf32>
    %568 = vector.multi_reduction <maximumf>, %567, %cst_228 [1] : vector<8x12xf32> to vector<8xf32>
    %569 = vector.shape_cast %568 : vector<8xf32> to vector<8x1xf32>
    %570 = vector.broadcast %569 : vector<8x1xf32> to vector<8x12xf32>
    %571 = arith.subf %567, %570 : vector<8x12xf32>
    %572 = math.exp %571 : vector<8x12xf32>
    %cst_229 = arith.constant dense<0.000000e+00> : vector<8xf32>
    %573 = vector.multi_reduction <add>, %572, %cst_229 [1] : vector<8x12xf32> to vector<8xf32>
    %574 = vector.shape_cast %573 : vector<8xf32> to vector<8x1xf32>
    %575 = tpu.reciprocal %574 {approx = true} : vector<8x1xf32> -> vector<8x1xf32>
    %576 = vector.broadcast %575 : vector<8x1xf32> to vector<8x12xf32>
    %577 = arith.mulf %572, %576 : vector<8x12xf32>
    %578 = arith.truncf %577 : vector<8x12xf32> to vector<8x12xbf16>
    %579 = vector.extract_strided_slice %516 {offsets = [0, 24], sizes = [12, 8], strides = [1, 1]} : vector<12x32xbf16> to vector<12x8xbf16>
    %cst_230 = arith.constant dense<0.000000e+00> : vector<8x8xf32>
    %580 = tpu.matmul %578, %579, %cst_230 {dimension_numbers = #tpu.dot_dimension_numbers<[1], [0], [0], [1], [0, 0, 1, 1], [], []>} : vector<8x12xbf16>, vector<12x8xbf16>, vector<8x8xf32> -> vector<8x8xf32>
    %581 = tpu.concatenate %532, %548, %564, %580 in 1 : vector<8x8xf32>, vector<8x8xf32>, vector<8x8xf32>, vector<8x8xf32> -> vector<8x32xf32>
    %582 = arith.truncf %581 : vector<8x32xf32> to vector<8x32xbf16>
    %cst_231 = arith.constant dense<0.000000e+00> : vector<8x32xf32>
    %583 = tpu.matmul %582, %501, %cst_231 {dimension_numbers = #tpu.dot_dimension_numbers<[1], [0], [0], [1], [0, 0, 1, 1], [], []>} : vector<8x32xbf16>, vector<32x32xbf16>, vector<8x32xf32> -> vector<8x32xf32>
    %584 = vector.broadcast %503 : vector<1x32xf32> to vector<8x32xf32>
    %585 = arith.addf %583, %584 : vector<8x32xf32>
    %586 = arith.addf %491, %585 : vector<8x32xf32>
    %c0_232 = arith.constant 0 : index
    %c0_233 = arith.constant 0 : index
    %c0_234 = arith.constant 0 : index
    %587 = vector.load %arg31[%c0_232, %c0_233, %c0_234] : memref<2x1x32xf32, #tpu.memory_space<vmem>>, vector<1x1x32xf32>
    %588 = vector.shape_cast %587 : vector<1x1x32xf32> to vector<1x32xf32>
    %c0_235 = arith.constant 0 : index
    %c0_236 = arith.constant 0 : index
    %c0_237 = arith.constant 0 : index
    %589 = vector.load %arg32[%c0_235, %c0_236, %c0_237] : memref<2x1x32xf32, #tpu.memory_space<vmem>>, vector<1x1x32xf32>
    %590 = vector.shape_cast %589 : vector<1x1x32xf32> to vector<1x32xf32>
    %cst_238 = arith.constant dense<0.000000e+00> : vector<8xf32>
    %591 = vector.multi_reduction <add>, %586, %cst_238 [1] : vector<8x32xf32> to vector<8xf32>
    %592 = vector.shape_cast %591 : vector<8xf32> to vector<8x1xf32>
    %cst_239 = arith.constant 3.200000e+01 : f32
    %593 = vector.broadcast %cst_239 : f32 to vector<8x1xf32>
    %594 = arith.divf %592, %593 : vector<8x1xf32>
    %595 = vector.broadcast %594 : vector<8x1xf32> to vector<8x32xf32>
    %596 = arith.subf %586, %595 : vector<8x32xf32>
    %597 = arith.mulf %596, %596 : vector<8x32xf32>
    %cst_240 = arith.constant dense<0.000000e+00> : vector<8xf32>
    %598 = vector.multi_reduction <add>, %597, %cst_240 [1] : vector<8x32xf32> to vector<8xf32>
    %599 = vector.shape_cast %598 : vector<8xf32> to vector<8x1xf32>
    %cst_241 = arith.constant 3.200000e+01 : f32
    %600 = vector.broadcast %cst_241 : f32 to vector<8x1xf32>
    %601 = arith.divf %599, %600 : vector<8x1xf32>
    %602 = vector.broadcast %594 : vector<8x1xf32> to vector<8x32xf32>
    %603 = arith.subf %586, %602 : vector<8x32xf32>
    %cst_242 = arith.constant 9.99999974E-6 : f32
    %604 = vector.broadcast %cst_242 : f32 to vector<8x1xf32>
    %605 = arith.addf %601, %604 : vector<8x1xf32>
    %606 = math.rsqrt %605 : vector<8x1xf32>
    %607 = vector.broadcast %606 : vector<8x1xf32> to vector<8x32xf32>
    %608 = arith.mulf %603, %607 : vector<8x32xf32>
    %609 = vector.broadcast %588 : vector<1x32xf32> to vector<8x32xf32>
    %610 = arith.mulf %608, %609 : vector<8x32xf32>
    %611 = vector.broadcast %590 : vector<1x32xf32> to vector<8x32xf32>
    %612 = arith.addf %610, %611 : vector<8x32xf32>
    %c0_243 = arith.constant 0 : index
    %c0_244 = arith.constant 0 : index
    %c0_245 = arith.constant 0 : index
    %613 = vector.load %arg33[%c0_243, %c0_244, %c0_245] : memref<2x32x128xbf16, #tpu.memory_space<vmem>>, vector<1x32x128xbf16>
    %614 = vector.shape_cast %613 : vector<1x32x128xbf16> to vector<32x128xbf16>
    %c0_246 = arith.constant 0 : index
    %c0_247 = arith.constant 0 : index
    %c0_248 = arith.constant 0 : index
    %615 = vector.load %arg34[%c0_246, %c0_247, %c0_248] : memref<2x1x128xf32, #tpu.memory_space<vmem>>, vector<1x1x128xf32>
    %616 = vector.shape_cast %615 : vector<1x1x128xf32> to vector<1x128xf32>
    %c0_249 = arith.constant 0 : index
    %c0_250 = arith.constant 0 : index
    %c0_251 = arith.constant 0 : index
    %617 = vector.load %arg35[%c0_249, %c0_250, %c0_251] : memref<2x128x32xbf16, #tpu.memory_space<vmem>>, vector<1x128x32xbf16>
    %618 = vector.shape_cast %617 : vector<1x128x32xbf16> to vector<128x32xbf16>
    %c0_252 = arith.constant 0 : index
    %c0_253 = arith.constant 0 : index
    %c0_254 = arith.constant 0 : index
    %619 = vector.load %arg36[%c0_252, %c0_253, %c0_254] : memref<2x1x32xf32, #tpu.memory_space<vmem>>, vector<1x1x32xf32>
    %620 = vector.shape_cast %619 : vector<1x1x32xf32> to vector<1x32xf32>
    %621 = arith.truncf %612 : vector<8x32xf32> to vector<8x32xbf16>
    %cst_255 = arith.constant dense<0.000000e+00> : vector<8x128xf32>
    %622 = tpu.matmul %621, %614, %cst_255 {dimension_numbers = #tpu.dot_dimension_numbers<[1], [0], [0], [1], [0, 0, 1, 1], [], []>} : vector<8x32xbf16>, vector<32x128xbf16>, vector<8x128xf32> -> vector<8x128xf32>
    %623 = vector.broadcast %616 : vector<1x128xf32> to vector<8x128xf32>
    %624 = arith.addf %622, %623 : vector<8x128xf32>
    %cst_256 = arith.constant 0.000000e+00 : f32
    %625 = vector.broadcast %cst_256 : f32 to vector<8x128xf32>
    %626 = arith.maximumf %624, %625 : vector<8x128xf32>
    %627 = arith.truncf %626 : vector<8x128xf32> to vector<8x128xbf16>
    %cst_257 = arith.constant dense<0.000000e+00> : vector<8x32xf32>
    %628 = tpu.matmul %627, %618, %cst_257 {dimension_numbers = #tpu.dot_dimension_numbers<[1], [0], [0], [1], [0, 0, 1, 1], [], []>} : vector<8x128xbf16>, vector<128x32xbf16>, vector<8x32xf32> -> vector<8x32xf32>
    %629 = vector.broadcast %620 : vector<1x32xf32> to vector<8x32xf32>
    %630 = arith.addf %628, %629 : vector<8x32xf32>
    %631 = arith.addf %612, %630 : vector<8x32xf32>
    %c0_258 = arith.constant 0 : index
    %c0_259 = arith.constant 0 : index
    %c0_260 = arith.constant 0 : index
    %632 = vector.load %arg37[%c0_258, %c0_259, %c0_260] : memref<2x1x32xf32, #tpu.memory_space<vmem>>, vector<1x1x32xf32>
    %633 = vector.shape_cast %632 : vector<1x1x32xf32> to vector<1x32xf32>
    %c0_261 = arith.constant 0 : index
    %c0_262 = arith.constant 0 : index
    %c0_263 = arith.constant 0 : index
    %634 = vector.load %arg38[%c0_261, %c0_262, %c0_263] : memref<2x1x32xf32, #tpu.memory_space<vmem>>, vector<1x1x32xf32>
    %635 = vector.shape_cast %634 : vector<1x1x32xf32> to vector<1x32xf32>
    %cst_264 = arith.constant dense<0.000000e+00> : vector<8xf32>
    %636 = vector.multi_reduction <add>, %631, %cst_264 [1] : vector<8x32xf32> to vector<8xf32>
    %637 = vector.shape_cast %636 : vector<8xf32> to vector<8x1xf32>
    %cst_265 = arith.constant 3.200000e+01 : f32
    %638 = vector.broadcast %cst_265 : f32 to vector<8x1xf32>
    %639 = arith.divf %637, %638 : vector<8x1xf32>
    %640 = vector.broadcast %639 : vector<8x1xf32> to vector<8x32xf32>
    %641 = arith.subf %631, %640 : vector<8x32xf32>
    %642 = arith.mulf %641, %641 : vector<8x32xf32>
    %cst_266 = arith.constant dense<0.000000e+00> : vector<8xf32>
    %643 = vector.multi_reduction <add>, %642, %cst_266 [1] : vector<8x32xf32> to vector<8xf32>
    %644 = vector.shape_cast %643 : vector<8xf32> to vector<8x1xf32>
    %cst_267 = arith.constant 3.200000e+01 : f32
    %645 = vector.broadcast %cst_267 : f32 to vector<8x1xf32>
    %646 = arith.divf %644, %645 : vector<8x1xf32>
    %647 = vector.broadcast %639 : vector<8x1xf32> to vector<8x32xf32>
    %648 = arith.subf %631, %647 : vector<8x32xf32>
    %cst_268 = arith.constant 9.99999974E-6 : f32
    %649 = vector.broadcast %cst_268 : f32 to vector<8x1xf32>
    %650 = arith.addf %646, %649 : vector<8x1xf32>
    %651 = math.rsqrt %650 : vector<8x1xf32>
    %652 = vector.broadcast %651 : vector<8x1xf32> to vector<8x32xf32>
    %653 = arith.mulf %648, %652 : vector<8x32xf32>
    %654 = vector.broadcast %633 : vector<1x32xf32> to vector<8x32xf32>
    %655 = arith.mulf %653, %654 : vector<8x32xf32>
    %656 = vector.broadcast %635 : vector<1x32xf32> to vector<8x32xf32>
    %657 = arith.addf %655, %656 : vector<8x32xf32>
    %c1_269 = arith.constant 1 : index
    %c0_270 = arith.constant 0 : index
    %c0_271 = arith.constant 0 : index
    %658 = vector.load %arg19[%c1_269, %c0_270, %c0_271] : memref<2x32x96xbf16, #tpu.memory_space<vmem>>, vector<1x32x96xbf16>
    %659 = vector.shape_cast %658 : vector<1x32x96xbf16> to vector<32x96xbf16>
    %c1_272 = arith.constant 1 : index
    %c0_273 = arith.constant 0 : index
    %c0_274 = arith.constant 0 : index
    %660 = vector.load %arg20[%c1_272, %c0_273, %c0_274] : memref<2x1x96xf32, #tpu.memory_space<vmem>>, vector<1x1x96xf32>
    %661 = vector.shape_cast %660 : vector<1x1x96xf32> to vector<1x96xf32>
    %c1_275 = arith.constant 1 : index
    %c0_276 = arith.constant 0 : index
    %c0_277 = arith.constant 0 : index
    %662 = vector.load %arg21[%c1_275, %c0_276, %c0_277] : memref<2x32x32xbf16, #tpu.memory_space<vmem>>, vector<1x32x32xbf16>
    %663 = vector.shape_cast %662 : vector<1x32x32xbf16> to vector<32x32xbf16>
    %c1_278 = arith.constant 1 : index
    %c0_279 = arith.constant 0 : index
    %c0_280 = arith.constant 0 : index
    %664 = vector.load %arg22[%c1_278, %c0_279, %c0_280] : memref<2x1x32xf32, #tpu.memory_space<vmem>>, vector<1x1x32xf32>
    %665 = vector.shape_cast %664 : vector<1x1x32xf32> to vector<1x32xf32>
    %666 = arith.truncf %657 : vector<8x32xf32> to vector<8x32xbf16>
    %cst_281 = arith.constant dense<0.000000e+00> : vector<8x96xf32>
    %667 = tpu.matmul %666, %659, %cst_281 {dimension_numbers = #tpu.dot_dimension_numbers<[1], [0], [0], [1], [0, 0, 1, 1], [], []>} : vector<8x32xbf16>, vector<32x96xbf16>, vector<8x96xf32> -> vector<8x96xf32>
    %668 = vector.broadcast %661 : vector<1x96xf32> to vector<8x96xf32>
    %669 = arith.addf %667, %668 : vector<8x96xf32>
    %670 = vector.extract_strided_slice %669 {offsets = [0, 0], sizes = [8, 32], strides = [1, 1]} : vector<8x96xf32> to vector<8x32xf32>
    %671 = vector.extract_strided_slice %669 {offsets = [0, 32], sizes = [8, 32], strides = [1, 1]} : vector<8x96xf32> to vector<8x32xf32>
    %672 = vector.extract_strided_slice %669 {offsets = [0, 64], sizes = [8, 32], strides = [1, 1]} : vector<8x96xf32> to vector<8x32xf32>
    %673 = arith.truncf %670 : vector<8x32xf32> to vector<8x32xbf16>
    %674 = arith.truncf %671 : vector<8x32xf32> to vector<8x32xbf16>
    %675 = arith.truncf %672 : vector<8x32xf32> to vector<8x32xbf16>
    %676 = vector.extract_strided_slice %673 {offsets = [0, 0], sizes = [8, 8], strides = [1, 1]} : vector<8x32xbf16> to vector<8x8xbf16>
    %677 = vector.extract_strided_slice %674 {offsets = [0, 0], sizes = [8, 8], strides = [1, 1]} : vector<8x32xbf16> to vector<8x8xbf16>
    %cst_282 = arith.constant dense<0.000000e+00> : vector<8x8xf32>
    %678 = tpu.matmul %676, %677, %cst_282 {dimension_numbers = #tpu.dot_dimension_numbers<[1], [1], [0], [0], [0, 0, 1, 0], [], []>} : vector<8x8xbf16>, vector<8x8xbf16>, vector<8x8xf32> -> vector<8x8xf32>
    %679 = arith.addf %678, %373 : vector<8x8xf32>
    %cst_283 = arith.constant dense<0xFF800000> : vector<8xf32>
    %680 = vector.multi_reduction <maximumf>, %679, %cst_283 [1] : vector<8x8xf32> to vector<8xf32>
    %681 = vector.shape_cast %680 : vector<8xf32> to vector<8x1xf32>
    %682 = vector.broadcast %681 : vector<8x1xf32> to vector<8x8xf32>
    %683 = arith.subf %679, %682 : vector<8x8xf32>
    %684 = math.exp %683 : vector<8x8xf32>
    %cst_284 = arith.constant dense<0.000000e+00> : vector<8xf32>
    %685 = vector.multi_reduction <add>, %684, %cst_284 [1] : vector<8x8xf32> to vector<8xf32>
    %686 = vector.shape_cast %685 : vector<8xf32> to vector<8x1xf32>
    %687 = tpu.reciprocal %686 {approx = true} : vector<8x1xf32> -> vector<8x1xf32>
    %688 = vector.broadcast %687 : vector<8x1xf32> to vector<8x8xf32>
    %689 = arith.mulf %684, %688 : vector<8x8xf32>
    %690 = arith.truncf %689 : vector<8x8xf32> to vector<8x8xbf16>
    %691 = vector.extract_strided_slice %675 {offsets = [0, 0], sizes = [8, 8], strides = [1, 1]} : vector<8x32xbf16> to vector<8x8xbf16>
    %cst_285 = arith.constant dense<0.000000e+00> : vector<8x8xf32>
    %692 = tpu.matmul %690, %691, %cst_285 {dimension_numbers = #tpu.dot_dimension_numbers<[1], [0], [0], [1], [0, 0, 1, 1], [], []>} : vector<8x8xbf16>, vector<8x8xbf16>, vector<8x8xf32> -> vector<8x8xf32>
    %693 = vector.extract_strided_slice %673 {offsets = [0, 8], sizes = [8, 8], strides = [1, 1]} : vector<8x32xbf16> to vector<8x8xbf16>
    %694 = vector.extract_strided_slice %674 {offsets = [0, 8], sizes = [8, 8], strides = [1, 1]} : vector<8x32xbf16> to vector<8x8xbf16>
    %cst_286 = arith.constant dense<0.000000e+00> : vector<8x8xf32>
    %695 = tpu.matmul %693, %694, %cst_286 {dimension_numbers = #tpu.dot_dimension_numbers<[1], [1], [0], [0], [0, 0, 1, 0], [], []>} : vector<8x8xbf16>, vector<8x8xbf16>, vector<8x8xf32> -> vector<8x8xf32>
    %696 = arith.addf %695, %373 : vector<8x8xf32>
    %cst_287 = arith.constant dense<0xFF800000> : vector<8xf32>
    %697 = vector.multi_reduction <maximumf>, %696, %cst_287 [1] : vector<8x8xf32> to vector<8xf32>
    %698 = vector.shape_cast %697 : vector<8xf32> to vector<8x1xf32>
    %699 = vector.broadcast %698 : vector<8x1xf32> to vector<8x8xf32>
    %700 = arith.subf %696, %699 : vector<8x8xf32>
    %701 = math.exp %700 : vector<8x8xf32>
    %cst_288 = arith.constant dense<0.000000e+00> : vector<8xf32>
    %702 = vector.multi_reduction <add>, %701, %cst_288 [1] : vector<8x8xf32> to vector<8xf32>
    %703 = vector.shape_cast %702 : vector<8xf32> to vector<8x1xf32>
    %704 = tpu.reciprocal %703 {approx = true} : vector<8x1xf32> -> vector<8x1xf32>
    %705 = vector.broadcast %704 : vector<8x1xf32> to vector<8x8xf32>
    %706 = arith.mulf %701, %705 : vector<8x8xf32>
    %707 = arith.truncf %706 : vector<8x8xf32> to vector<8x8xbf16>
    %708 = vector.extract_strided_slice %675 {offsets = [0, 8], sizes = [8, 8], strides = [1, 1]} : vector<8x32xbf16> to vector<8x8xbf16>
    %cst_289 = arith.constant dense<0.000000e+00> : vector<8x8xf32>
    %709 = tpu.matmul %707, %708, %cst_289 {dimension_numbers = #tpu.dot_dimension_numbers<[1], [0], [0], [1], [0, 0, 1, 1], [], []>} : vector<8x8xbf16>, vector<8x8xbf16>, vector<8x8xf32> -> vector<8x8xf32>
    %710 = vector.extract_strided_slice %673 {offsets = [0, 16], sizes = [8, 8], strides = [1, 1]} : vector<8x32xbf16> to vector<8x8xbf16>
    %711 = vector.extract_strided_slice %674 {offsets = [0, 16], sizes = [8, 8], strides = [1, 1]} : vector<8x32xbf16> to vector<8x8xbf16>
    %cst_290 = arith.constant dense<0.000000e+00> : vector<8x8xf32>
    %712 = tpu.matmul %710, %711, %cst_290 {dimension_numbers = #tpu.dot_dimension_numbers<[1], [1], [0], [0], [0, 0, 1, 0], [], []>} : vector<8x8xbf16>, vector<8x8xbf16>, vector<8x8xf32> -> vector<8x8xf32>
    %713 = arith.addf %712, %373 : vector<8x8xf32>
    %cst_291 = arith.constant dense<0xFF800000> : vector<8xf32>
    %714 = vector.multi_reduction <maximumf>, %713, %cst_291 [1] : vector<8x8xf32> to vector<8xf32>
    %715 = vector.shape_cast %714 : vector<8xf32> to vector<8x1xf32>
    %716 = vector.broadcast %715 : vector<8x1xf32> to vector<8x8xf32>
    %717 = arith.subf %713, %716 : vector<8x8xf32>
    %718 = math.exp %717 : vector<8x8xf32>
    %cst_292 = arith.constant dense<0.000000e+00> : vector<8xf32>
    %719 = vector.multi_reduction <add>, %718, %cst_292 [1] : vector<8x8xf32> to vector<8xf32>
    %720 = vector.shape_cast %719 : vector<8xf32> to vector<8x1xf32>
    %721 = tpu.reciprocal %720 {approx = true} : vector<8x1xf32> -> vector<8x1xf32>
    %722 = vector.broadcast %721 : vector<8x1xf32> to vector<8x8xf32>
    %723 = arith.mulf %718, %722 : vector<8x8xf32>
    %724 = arith.truncf %723 : vector<8x8xf32> to vector<8x8xbf16>
    %725 = vector.extract_strided_slice %675 {offsets = [0, 16], sizes = [8, 8], strides = [1, 1]} : vector<8x32xbf16> to vector<8x8xbf16>
    %cst_293 = arith.constant dense<0.000000e+00> : vector<8x8xf32>
    %726 = tpu.matmul %724, %725, %cst_293 {dimension_numbers = #tpu.dot_dimension_numbers<[1], [0], [0], [1], [0, 0, 1, 1], [], []>} : vector<8x8xbf16>, vector<8x8xbf16>, vector<8x8xf32> -> vector<8x8xf32>
    %727 = vector.extract_strided_slice %673 {offsets = [0, 24], sizes = [8, 8], strides = [1, 1]} : vector<8x32xbf16> to vector<8x8xbf16>
    %728 = vector.extract_strided_slice %674 {offsets = [0, 24], sizes = [8, 8], strides = [1, 1]} : vector<8x32xbf16> to vector<8x8xbf16>
    %cst_294 = arith.constant dense<0.000000e+00> : vector<8x8xf32>
    %729 = tpu.matmul %727, %728, %cst_294 {dimension_numbers = #tpu.dot_dimension_numbers<[1], [1], [0], [0], [0, 0, 1, 0], [], []>} : vector<8x8xbf16>, vector<8x8xbf16>, vector<8x8xf32> -> vector<8x8xf32>
    %730 = arith.addf %729, %373 : vector<8x8xf32>
    %cst_295 = arith.constant dense<0xFF800000> : vector<8xf32>
    %731 = vector.multi_reduction <maximumf>, %730, %cst_295 [1] : vector<8x8xf32> to vector<8xf32>
    %732 = vector.shape_cast %731 : vector<8xf32> to vector<8x1xf32>
    %733 = vector.broadcast %732 : vector<8x1xf32> to vector<8x8xf32>
    %734 = arith.subf %730, %733 : vector<8x8xf32>
    %735 = math.exp %734 : vector<8x8xf32>
    %cst_296 = arith.constant dense<0.000000e+00> : vector<8xf32>
    %736 = vector.multi_reduction <add>, %735, %cst_296 [1] : vector<8x8xf32> to vector<8xf32>
    %737 = vector.shape_cast %736 : vector<8xf32> to vector<8x1xf32>
    %738 = tpu.reciprocal %737 {approx = true} : vector<8x1xf32> -> vector<8x1xf32>
    %739 = vector.broadcast %738 : vector<8x1xf32> to vector<8x8xf32>
    %740 = arith.mulf %735, %739 : vector<8x8xf32>
    %741 = arith.truncf %740 : vector<8x8xf32> to vector<8x8xbf16>
    %742 = vector.extract_strided_slice %675 {offsets = [0, 24], sizes = [8, 8], strides = [1, 1]} : vector<8x32xbf16> to vector<8x8xbf16>
    %cst_297 = arith.constant dense<0.000000e+00> : vector<8x8xf32>
    %743 = tpu.matmul %741, %742, %cst_297 {dimension_numbers = #tpu.dot_dimension_numbers<[1], [0], [0], [1], [0, 0, 1, 1], [], []>} : vector<8x8xbf16>, vector<8x8xbf16>, vector<8x8xf32> -> vector<8x8xf32>
    %744 = tpu.concatenate %692, %709, %726, %743 in 1 : vector<8x8xf32>, vector<8x8xf32>, vector<8x8xf32>, vector<8x8xf32> -> vector<8x32xf32>
    %745 = arith.truncf %744 : vector<8x32xf32> to vector<8x32xbf16>
    %cst_298 = arith.constant dense<0.000000e+00> : vector<8x32xf32>
    %746 = tpu.matmul %745, %663, %cst_298 {dimension_numbers = #tpu.dot_dimension_numbers<[1], [0], [0], [1], [0, 0, 1, 1], [], []>} : vector<8x32xbf16>, vector<32x32xbf16>, vector<8x32xf32> -> vector<8x32xf32>
    %747 = vector.broadcast %665 : vector<1x32xf32> to vector<8x32xf32>
    %748 = arith.addf %746, %747 : vector<8x32xf32>
    %749 = arith.addf %657, %748 : vector<8x32xf32>
    %c1_299 = arith.constant 1 : index
    %c0_300 = arith.constant 0 : index
    %c0_301 = arith.constant 0 : index
    %750 = vector.load %arg23[%c1_299, %c0_300, %c0_301] : memref<2x1x32xf32, #tpu.memory_space<vmem>>, vector<1x1x32xf32>
    %751 = vector.shape_cast %750 : vector<1x1x32xf32> to vector<1x32xf32>
    %c1_302 = arith.constant 1 : index
    %c0_303 = arith.constant 0 : index
    %c0_304 = arith.constant 0 : index
    %752 = vector.load %arg24[%c1_302, %c0_303, %c0_304] : memref<2x1x32xf32, #tpu.memory_space<vmem>>, vector<1x1x32xf32>
    %753 = vector.shape_cast %752 : vector<1x1x32xf32> to vector<1x32xf32>
    %cst_305 = arith.constant dense<0.000000e+00> : vector<8xf32>
    %754 = vector.multi_reduction <add>, %749, %cst_305 [1] : vector<8x32xf32> to vector<8xf32>
    %755 = vector.shape_cast %754 : vector<8xf32> to vector<8x1xf32>
    %cst_306 = arith.constant 3.200000e+01 : f32
    %756 = vector.broadcast %cst_306 : f32 to vector<8x1xf32>
    %757 = arith.divf %755, %756 : vector<8x1xf32>
    %758 = vector.broadcast %757 : vector<8x1xf32> to vector<8x32xf32>
    %759 = arith.subf %749, %758 : vector<8x32xf32>
    %760 = arith.mulf %759, %759 : vector<8x32xf32>
    %cst_307 = arith.constant dense<0.000000e+00> : vector<8xf32>
    %761 = vector.multi_reduction <add>, %760, %cst_307 [1] : vector<8x32xf32> to vector<8xf32>
    %762 = vector.shape_cast %761 : vector<8xf32> to vector<8x1xf32>
    %cst_308 = arith.constant 3.200000e+01 : f32
    %763 = vector.broadcast %cst_308 : f32 to vector<8x1xf32>
    %764 = arith.divf %762, %763 : vector<8x1xf32>
    %765 = vector.broadcast %757 : vector<8x1xf32> to vector<8x32xf32>
    %766 = arith.subf %749, %765 : vector<8x32xf32>
    %cst_309 = arith.constant 9.99999974E-6 : f32
    %767 = vector.broadcast %cst_309 : f32 to vector<8x1xf32>
    %768 = arith.addf %764, %767 : vector<8x1xf32>
    %769 = math.rsqrt %768 : vector<8x1xf32>
    %770 = vector.broadcast %769 : vector<8x1xf32> to vector<8x32xf32>
    %771 = arith.mulf %766, %770 : vector<8x32xf32>
    %772 = vector.broadcast %751 : vector<1x32xf32> to vector<8x32xf32>
    %773 = arith.mulf %771, %772 : vector<8x32xf32>
    %774 = vector.broadcast %753 : vector<1x32xf32> to vector<8x32xf32>
    %775 = arith.addf %773, %774 : vector<8x32xf32>
    %c1_310 = arith.constant 1 : index
    %c0_311 = arith.constant 0 : index
    %c0_312 = arith.constant 0 : index
    %776 = vector.load %arg25[%c1_310, %c0_311, %c0_312] : memref<2x32x32xbf16, #tpu.memory_space<vmem>>, vector<1x32x32xbf16>
    %777 = vector.shape_cast %776 : vector<1x32x32xbf16> to vector<32x32xbf16>
    %c1_313 = arith.constant 1 : index
    %c0_314 = arith.constant 0 : index
    %c0_315 = arith.constant 0 : index
    %778 = vector.load %arg26[%c1_313, %c0_314, %c0_315] : memref<2x1x32xf32, #tpu.memory_space<vmem>>, vector<1x1x32xf32>
    %779 = vector.shape_cast %778 : vector<1x1x32xf32> to vector<1x32xf32>
    %c1_316 = arith.constant 1 : index
    %c0_317 = arith.constant 0 : index
    %c0_318 = arith.constant 0 : index
    %780 = vector.load %arg27[%c1_316, %c0_317, %c0_318] : memref<2x32x64xbf16, #tpu.memory_space<vmem>>, vector<1x32x64xbf16>
    %781 = vector.shape_cast %780 : vector<1x32x64xbf16> to vector<32x64xbf16>
    %c1_319 = arith.constant 1 : index
    %c0_320 = arith.constant 0 : index
    %c0_321 = arith.constant 0 : index
    %782 = vector.load %arg28[%c1_319, %c0_320, %c0_321] : memref<2x1x64xf32, #tpu.memory_space<vmem>>, vector<1x1x64xf32>
    %783 = vector.shape_cast %782 : vector<1x1x64xf32> to vector<1x64xf32>
    %c1_322 = arith.constant 1 : index
    %c0_323 = arith.constant 0 : index
    %c0_324 = arith.constant 0 : index
    %784 = vector.load %arg29[%c1_322, %c0_323, %c0_324] : memref<2x32x32xbf16, #tpu.memory_space<vmem>>, vector<1x32x32xbf16>
    %785 = vector.shape_cast %784 : vector<1x32x32xbf16> to vector<32x32xbf16>
    %c1_325 = arith.constant 1 : index
    %c0_326 = arith.constant 0 : index
    %c0_327 = arith.constant 0 : index
    %786 = vector.load %arg30[%c1_325, %c0_326, %c0_327] : memref<2x1x32xf32, #tpu.memory_space<vmem>>, vector<1x1x32xf32>
    %787 = vector.shape_cast %786 : vector<1x1x32xf32> to vector<1x32xf32>
    %788 = arith.truncf %775 : vector<8x32xf32> to vector<8x32xbf16>
    %cst_328 = arith.constant dense<0.000000e+00> : vector<8x32xf32>
    %789 = tpu.matmul %788, %777, %cst_328 {dimension_numbers = #tpu.dot_dimension_numbers<[1], [0], [0], [1], [0, 0, 1, 1], [], []>} : vector<8x32xbf16>, vector<32x32xbf16>, vector<8x32xf32> -> vector<8x32xf32>
    %790 = vector.broadcast %779 : vector<1x32xf32> to vector<8x32xf32>
    %791 = arith.addf %789, %790 : vector<8x32xf32>
    %792 = arith.truncf %367 : vector<12x32xf32> to vector<12x32xbf16>
    %cst_329 = arith.constant dense<0.000000e+00> : vector<12x64xf32>
    %793 = tpu.matmul %792, %781, %cst_329 {dimension_numbers = #tpu.dot_dimension_numbers<[1], [0], [0], [1], [0, 0, 1, 1], [], []>} : vector<12x32xbf16>, vector<32x64xbf16>, vector<12x64xf32> -> vector<12x64xf32>
    %794 = vector.broadcast %783 : vector<1x64xf32> to vector<12x64xf32>
    %795 = arith.addf %793, %794 : vector<12x64xf32>
    %796 = vector.extract_strided_slice %795 {offsets = [0, 0], sizes = [12, 32], strides = [1, 1]} : vector<12x64xf32> to vector<12x32xf32>
    %797 = vector.extract_strided_slice %795 {offsets = [0, 32], sizes = [12, 32], strides = [1, 1]} : vector<12x64xf32> to vector<12x32xf32>
    %798 = arith.truncf %791 : vector<8x32xf32> to vector<8x32xbf16>
    %799 = arith.truncf %796 : vector<12x32xf32> to vector<12x32xbf16>
    %800 = arith.truncf %797 : vector<12x32xf32> to vector<12x32xbf16>
    %801 = vector.extract_strided_slice %798 {offsets = [0, 0], sizes = [8, 8], strides = [1, 1]} : vector<8x32xbf16> to vector<8x8xbf16>
    %802 = vector.extract_strided_slice %799 {offsets = [0, 0], sizes = [12, 8], strides = [1, 1]} : vector<12x32xbf16> to vector<12x8xbf16>
    %cst_330 = arith.constant dense<0.000000e+00> : vector<8x12xf32>
    %803 = tpu.matmul %801, %802, %cst_330 {dimension_numbers = #tpu.dot_dimension_numbers<[1], [1], [0], [0], [0, 0, 1, 0], [], []>} : vector<8x8xbf16>, vector<12x8xbf16>, vector<8x12xf32> -> vector<8x12xf32>
    %cst_331 = arith.constant dense<0xFF800000> : vector<8xf32>
    %804 = vector.multi_reduction <maximumf>, %803, %cst_331 [1] : vector<8x12xf32> to vector<8xf32>
    %805 = vector.shape_cast %804 : vector<8xf32> to vector<8x1xf32>
    %806 = vector.broadcast %805 : vector<8x1xf32> to vector<8x12xf32>
    %807 = arith.subf %803, %806 : vector<8x12xf32>
    %808 = math.exp %807 : vector<8x12xf32>
    %cst_332 = arith.constant dense<0.000000e+00> : vector<8xf32>
    %809 = vector.multi_reduction <add>, %808, %cst_332 [1] : vector<8x12xf32> to vector<8xf32>
    %810 = vector.shape_cast %809 : vector<8xf32> to vector<8x1xf32>
    %811 = tpu.reciprocal %810 {approx = true} : vector<8x1xf32> -> vector<8x1xf32>
    %812 = vector.broadcast %811 : vector<8x1xf32> to vector<8x12xf32>
    %813 = arith.mulf %808, %812 : vector<8x12xf32>
    %814 = arith.truncf %813 : vector<8x12xf32> to vector<8x12xbf16>
    %815 = vector.extract_strided_slice %800 {offsets = [0, 0], sizes = [12, 8], strides = [1, 1]} : vector<12x32xbf16> to vector<12x8xbf16>
    %cst_333 = arith.constant dense<0.000000e+00> : vector<8x8xf32>
    %816 = tpu.matmul %814, %815, %cst_333 {dimension_numbers = #tpu.dot_dimension_numbers<[1], [0], [0], [1], [0, 0, 1, 1], [], []>} : vector<8x12xbf16>, vector<12x8xbf16>, vector<8x8xf32> -> vector<8x8xf32>
    %817 = vector.extract_strided_slice %798 {offsets = [0, 8], sizes = [8, 8], strides = [1, 1]} : vector<8x32xbf16> to vector<8x8xbf16>
    %818 = vector.extract_strided_slice %799 {offsets = [0, 8], sizes = [12, 8], strides = [1, 1]} : vector<12x32xbf16> to vector<12x8xbf16>
    %cst_334 = arith.constant dense<0.000000e+00> : vector<8x12xf32>
    %819 = tpu.matmul %817, %818, %cst_334 {dimension_numbers = #tpu.dot_dimension_numbers<[1], [1], [0], [0], [0, 0, 1, 0], [], []>} : vector<8x8xbf16>, vector<12x8xbf16>, vector<8x12xf32> -> vector<8x12xf32>
    %cst_335 = arith.constant dense<0xFF800000> : vector<8xf32>
    %820 = vector.multi_reduction <maximumf>, %819, %cst_335 [1] : vector<8x12xf32> to vector<8xf32>
    %821 = vector.shape_cast %820 : vector<8xf32> to vector<8x1xf32>
    %822 = vector.broadcast %821 : vector<8x1xf32> to vector<8x12xf32>
    %823 = arith.subf %819, %822 : vector<8x12xf32>
    %824 = math.exp %823 : vector<8x12xf32>
    %cst_336 = arith.constant dense<0.000000e+00> : vector<8xf32>
    %825 = vector.multi_reduction <add>, %824, %cst_336 [1] : vector<8x12xf32> to vector<8xf32>
    %826 = vector.shape_cast %825 : vector<8xf32> to vector<8x1xf32>
    %827 = tpu.reciprocal %826 {approx = true} : vector<8x1xf32> -> vector<8x1xf32>
    %828 = vector.broadcast %827 : vector<8x1xf32> to vector<8x12xf32>
    %829 = arith.mulf %824, %828 : vector<8x12xf32>
    %830 = arith.truncf %829 : vector<8x12xf32> to vector<8x12xbf16>
    %831 = vector.extract_strided_slice %800 {offsets = [0, 8], sizes = [12, 8], strides = [1, 1]} : vector<12x32xbf16> to vector<12x8xbf16>
    %cst_337 = arith.constant dense<0.000000e+00> : vector<8x8xf32>
    %832 = tpu.matmul %830, %831, %cst_337 {dimension_numbers = #tpu.dot_dimension_numbers<[1], [0], [0], [1], [0, 0, 1, 1], [], []>} : vector<8x12xbf16>, vector<12x8xbf16>, vector<8x8xf32> -> vector<8x8xf32>
    %833 = vector.extract_strided_slice %798 {offsets = [0, 16], sizes = [8, 8], strides = [1, 1]} : vector<8x32xbf16> to vector<8x8xbf16>
    %834 = vector.extract_strided_slice %799 {offsets = [0, 16], sizes = [12, 8], strides = [1, 1]} : vector<12x32xbf16> to vector<12x8xbf16>
    %cst_338 = arith.constant dense<0.000000e+00> : vector<8x12xf32>
    %835 = tpu.matmul %833, %834, %cst_338 {dimension_numbers = #tpu.dot_dimension_numbers<[1], [1], [0], [0], [0, 0, 1, 0], [], []>} : vector<8x8xbf16>, vector<12x8xbf16>, vector<8x12xf32> -> vector<8x12xf32>
    %cst_339 = arith.constant dense<0xFF800000> : vector<8xf32>
    %836 = vector.multi_reduction <maximumf>, %835, %cst_339 [1] : vector<8x12xf32> to vector<8xf32>
    %837 = vector.shape_cast %836 : vector<8xf32> to vector<8x1xf32>
    %838 = vector.broadcast %837 : vector<8x1xf32> to vector<8x12xf32>
    %839 = arith.subf %835, %838 : vector<8x12xf32>
    %840 = math.exp %839 : vector<8x12xf32>
    %cst_340 = arith.constant dense<0.000000e+00> : vector<8xf32>
    %841 = vector.multi_reduction <add>, %840, %cst_340 [1] : vector<8x12xf32> to vector<8xf32>
    %842 = vector.shape_cast %841 : vector<8xf32> to vector<8x1xf32>
    %843 = tpu.reciprocal %842 {approx = true} : vector<8x1xf32> -> vector<8x1xf32>
    %844 = vector.broadcast %843 : vector<8x1xf32> to vector<8x12xf32>
    %845 = arith.mulf %840, %844 : vector<8x12xf32>
    %846 = arith.truncf %845 : vector<8x12xf32> to vector<8x12xbf16>
    %847 = vector.extract_strided_slice %800 {offsets = [0, 16], sizes = [12, 8], strides = [1, 1]} : vector<12x32xbf16> to vector<12x8xbf16>
    %cst_341 = arith.constant dense<0.000000e+00> : vector<8x8xf32>
    %848 = tpu.matmul %846, %847, %cst_341 {dimension_numbers = #tpu.dot_dimension_numbers<[1], [0], [0], [1], [0, 0, 1, 1], [], []>} : vector<8x12xbf16>, vector<12x8xbf16>, vector<8x8xf32> -> vector<8x8xf32>
    %849 = vector.extract_strided_slice %798 {offsets = [0, 24], sizes = [8, 8], strides = [1, 1]} : vector<8x32xbf16> to vector<8x8xbf16>
    %850 = vector.extract_strided_slice %799 {offsets = [0, 24], sizes = [12, 8], strides = [1, 1]} : vector<12x32xbf16> to vector<12x8xbf16>
    %cst_342 = arith.constant dense<0.000000e+00> : vector<8x12xf32>
    %851 = tpu.matmul %849, %850, %cst_342 {dimension_numbers = #tpu.dot_dimension_numbers<[1], [1], [0], [0], [0, 0, 1, 0], [], []>} : vector<8x8xbf16>, vector<12x8xbf16>, vector<8x12xf32> -> vector<8x12xf32>
    %cst_343 = arith.constant dense<0xFF800000> : vector<8xf32>
    %852 = vector.multi_reduction <maximumf>, %851, %cst_343 [1] : vector<8x12xf32> to vector<8xf32>
    %853 = vector.shape_cast %852 : vector<8xf32> to vector<8x1xf32>
    %854 = vector.broadcast %853 : vector<8x1xf32> to vector<8x12xf32>
    %855 = arith.subf %851, %854 : vector<8x12xf32>
    %856 = math.exp %855 : vector<8x12xf32>
    %cst_344 = arith.constant dense<0.000000e+00> : vector<8xf32>
    %857 = vector.multi_reduction <add>, %856, %cst_344 [1] : vector<8x12xf32> to vector<8xf32>
    %858 = vector.shape_cast %857 : vector<8xf32> to vector<8x1xf32>
    %859 = tpu.reciprocal %858 {approx = true} : vector<8x1xf32> -> vector<8x1xf32>
    %860 = vector.broadcast %859 : vector<8x1xf32> to vector<8x12xf32>
    %861 = arith.mulf %856, %860 : vector<8x12xf32>
    %862 = arith.truncf %861 : vector<8x12xf32> to vector<8x12xbf16>
    %863 = vector.extract_strided_slice %800 {offsets = [0, 24], sizes = [12, 8], strides = [1, 1]} : vector<12x32xbf16> to vector<12x8xbf16>
    %cst_345 = arith.constant dense<0.000000e+00> : vector<8x8xf32>
    %864 = tpu.matmul %862, %863, %cst_345 {dimension_numbers = #tpu.dot_dimension_numbers<[1], [0], [0], [1], [0, 0, 1, 1], [], []>} : vector<8x12xbf16>, vector<12x8xbf16>, vector<8x8xf32> -> vector<8x8xf32>
    %865 = tpu.concatenate %816, %832, %848, %864 in 1 : vector<8x8xf32>, vector<8x8xf32>, vector<8x8xf32>, vector<8x8xf32> -> vector<8x32xf32>
    %866 = arith.truncf %865 : vector<8x32xf32> to vector<8x32xbf16>
    %cst_346 = arith.constant dense<0.000000e+00> : vector<8x32xf32>
    %867 = tpu.matmul %866, %785, %cst_346 {dimension_numbers = #tpu.dot_dimension_numbers<[1], [0], [0], [1], [0, 0, 1, 1], [], []>} : vector<8x32xbf16>, vector<32x32xbf16>, vector<8x32xf32> -> vector<8x32xf32>
    %868 = vector.broadcast %787 : vector<1x32xf32> to vector<8x32xf32>
    %869 = arith.addf %867, %868 : vector<8x32xf32>
    %870 = arith.addf %775, %869 : vector<8x32xf32>
    %c1_347 = arith.constant 1 : index
    %c0_348 = arith.constant 0 : index
    %c0_349 = arith.constant 0 : index
    %871 = vector.load %arg31[%c1_347, %c0_348, %c0_349] : memref<2x1x32xf32, #tpu.memory_space<vmem>>, vector<1x1x32xf32>
    %872 = vector.shape_cast %871 : vector<1x1x32xf32> to vector<1x32xf32>
    %c1_350 = arith.constant 1 : index
    %c0_351 = arith.constant 0 : index
    %c0_352 = arith.constant 0 : index
    %873 = vector.load %arg32[%c1_350, %c0_351, %c0_352] : memref<2x1x32xf32, #tpu.memory_space<vmem>>, vector<1x1x32xf32>
    %874 = vector.shape_cast %873 : vector<1x1x32xf32> to vector<1x32xf32>
    %cst_353 = arith.constant dense<0.000000e+00> : vector<8xf32>
    %875 = vector.multi_reduction <add>, %870, %cst_353 [1] : vector<8x32xf32> to vector<8xf32>
    %876 = vector.shape_cast %875 : vector<8xf32> to vector<8x1xf32>
    %cst_354 = arith.constant 3.200000e+01 : f32
    %877 = vector.broadcast %cst_354 : f32 to vector<8x1xf32>
    %878 = arith.divf %876, %877 : vector<8x1xf32>
    %879 = vector.broadcast %878 : vector<8x1xf32> to vector<8x32xf32>
    %880 = arith.subf %870, %879 : vector<8x32xf32>
    %881 = arith.mulf %880, %880 : vector<8x32xf32>
    %cst_355 = arith.constant dense<0.000000e+00> : vector<8xf32>
    %882 = vector.multi_reduction <add>, %881, %cst_355 [1] : vector<8x32xf32> to vector<8xf32>
    %883 = vector.shape_cast %882 : vector<8xf32> to vector<8x1xf32>
    %cst_356 = arith.constant 3.200000e+01 : f32
    %884 = vector.broadcast %cst_356 : f32 to vector<8x1xf32>
    %885 = arith.divf %883, %884 : vector<8x1xf32>
    %886 = vector.broadcast %878 : vector<8x1xf32> to vector<8x32xf32>
    %887 = arith.subf %870, %886 : vector<8x32xf32>
    %cst_357 = arith.constant 9.99999974E-6 : f32
    %888 = vector.broadcast %cst_357 : f32 to vector<8x1xf32>
    %889 = arith.addf %885, %888 : vector<8x1xf32>
    %890 = math.rsqrt %889 : vector<8x1xf32>
    %891 = vector.broadcast %890 : vector<8x1xf32> to vector<8x32xf32>
    %892 = arith.mulf %887, %891 : vector<8x32xf32>
    %893 = vector.broadcast %872 : vector<1x32xf32> to vector<8x32xf32>
    %894 = arith.mulf %892, %893 : vector<8x32xf32>
    %895 = vector.broadcast %874 : vector<1x32xf32> to vector<8x32xf32>
    %896 = arith.addf %894, %895 : vector<8x32xf32>
    %c1_358 = arith.constant 1 : index
    %c0_359 = arith.constant 0 : index
    %c0_360 = arith.constant 0 : index
    %897 = vector.load %arg33[%c1_358, %c0_359, %c0_360] : memref<2x32x128xbf16, #tpu.memory_space<vmem>>, vector<1x32x128xbf16>
    %898 = vector.shape_cast %897 : vector<1x32x128xbf16> to vector<32x128xbf16>
    %c1_361 = arith.constant 1 : index
    %c0_362 = arith.constant 0 : index
    %c0_363 = arith.constant 0 : index
    %899 = vector.load %arg34[%c1_361, %c0_362, %c0_363] : memref<2x1x128xf32, #tpu.memory_space<vmem>>, vector<1x1x128xf32>
    %900 = vector.shape_cast %899 : vector<1x1x128xf32> to vector<1x128xf32>
    %c1_364 = arith.constant 1 : index
    %c0_365 = arith.constant 0 : index
    %c0_366 = arith.constant 0 : index
    %901 = vector.load %arg35[%c1_364, %c0_365, %c0_366] : memref<2x128x32xbf16, #tpu.memory_space<vmem>>, vector<1x128x32xbf16>
    %902 = vector.shape_cast %901 : vector<1x128x32xbf16> to vector<128x32xbf16>
    %c1_367 = arith.constant 1 : index
    %c0_368 = arith.constant 0 : index
    %c0_369 = arith.constant 0 : index
    %903 = vector.load %arg36[%c1_367, %c0_368, %c0_369] : memref<2x1x32xf32, #tpu.memory_space<vmem>>, vector<1x1x32xf32>
    %904 = vector.shape_cast %903 : vector<1x1x32xf32> to vector<1x32xf32>
    %905 = arith.truncf %896 : vector<8x32xf32> to vector<8x32xbf16>
    %cst_370 = arith.constant dense<0.000000e+00> : vector<8x128xf32>
    %906 = tpu.matmul %905, %898, %cst_370 {dimension_numbers = #tpu.dot_dimension_numbers<[1], [0], [0], [1], [0, 0, 1, 1], [], []>} : vector<8x32xbf16>, vector<32x128xbf16>, vector<8x128xf32> -> vector<8x128xf32>
    %907 = vector.broadcast %900 : vector<1x128xf32> to vector<8x128xf32>
    %908 = arith.addf %906, %907 : vector<8x128xf32>
    %cst_371 = arith.constant 0.000000e+00 : f32
    %909 = vector.broadcast %cst_371 : f32 to vector<8x128xf32>
    %910 = arith.maximumf %908, %909 : vector<8x128xf32>
    %911 = arith.truncf %910 : vector<8x128xf32> to vector<8x128xbf16>
    %cst_372 = arith.constant dense<0.000000e+00> : vector<8x32xf32>
    %912 = tpu.matmul %911, %902, %cst_372 {dimension_numbers = #tpu.dot_dimension_numbers<[1], [0], [0], [1], [0, 0, 1, 1], [], []>} : vector<8x128xbf16>, vector<128x32xbf16>, vector<8x32xf32> -> vector<8x32xf32>
    %913 = vector.broadcast %904 : vector<1x32xf32> to vector<8x32xf32>
    %914 = arith.addf %912, %913 : vector<8x32xf32>
    %915 = arith.addf %896, %914 : vector<8x32xf32>
    %c1_373 = arith.constant 1 : index
    %c0_374 = arith.constant 0 : index
    %c0_375 = arith.constant 0 : index
    %916 = vector.load %arg37[%c1_373, %c0_374, %c0_375] : memref<2x1x32xf32, #tpu.memory_space<vmem>>, vector<1x1x32xf32>
    %917 = vector.shape_cast %916 : vector<1x1x32xf32> to vector<1x32xf32>
    %c1_376 = arith.constant 1 : index
    %c0_377 = arith.constant 0 : index
    %c0_378 = arith.constant 0 : index
    %918 = vector.load %arg38[%c1_376, %c0_377, %c0_378] : memref<2x1x32xf32, #tpu.memory_space<vmem>>, vector<1x1x32xf32>
    %919 = vector.shape_cast %918 : vector<1x1x32xf32> to vector<1x32xf32>
    %cst_379 = arith.constant dense<0.000000e+00> : vector<8xf32>
    %920 = vector.multi_reduction <add>, %915, %cst_379 [1] : vector<8x32xf32> to vector<8xf32>
    %921 = vector.shape_cast %920 : vector<8xf32> to vector<8x1xf32>
    %cst_380 = arith.constant 3.200000e+01 : f32
    %922 = vector.broadcast %cst_380 : f32 to vector<8x1xf32>
    %923 = arith.divf %921, %922 : vector<8x1xf32>
    %924 = vector.broadcast %923 : vector<8x1xf32> to vector<8x32xf32>
    %925 = arith.subf %915, %924 : vector<8x32xf32>
    %926 = arith.mulf %925, %925 : vector<8x32xf32>
    %cst_381 = arith.constant dense<0.000000e+00> : vector<8xf32>
    %927 = vector.multi_reduction <add>, %926, %cst_381 [1] : vector<8x32xf32> to vector<8xf32>
    %928 = vector.shape_cast %927 : vector<8xf32> to vector<8x1xf32>
    %cst_382 = arith.constant 3.200000e+01 : f32
    %929 = vector.broadcast %cst_382 : f32 to vector<8x1xf32>
    %930 = arith.divf %928, %929 : vector<8x1xf32>
    %931 = vector.broadcast %923 : vector<8x1xf32> to vector<8x32xf32>
    %932 = arith.subf %915, %931 : vector<8x32xf32>
    %cst_383 = arith.constant 9.99999974E-6 : f32
    %933 = vector.broadcast %cst_383 : f32 to vector<8x1xf32>
    %934 = arith.addf %930, %933 : vector<8x1xf32>
    %935 = math.rsqrt %934 : vector<8x1xf32>
    %936 = vector.broadcast %935 : vector<8x1xf32> to vector<8x32xf32>
    %937 = arith.mulf %932, %936 : vector<8x32xf32>
    %938 = vector.broadcast %917 : vector<1x32xf32> to vector<8x32xf32>
    %939 = arith.mulf %937, %938 : vector<8x32xf32>
    %940 = vector.broadcast %919 : vector<1x32xf32> to vector<8x32xf32>
    %941 = arith.addf %939, %940 : vector<8x32xf32>
    %c0_384 = arith.constant 0 : index
    %c0_385 = arith.constant 0 : index
    %942 = vector.load %arg39[%c0_384, %c0_385] : memref<1x32xf32, #tpu.memory_space<vmem>>, vector<1x32xf32>
    %c0_386 = arith.constant 0 : index
    %c0_387 = arith.constant 0 : index
    %943 = vector.load %arg40[%c0_386, %c0_387] : memref<1x32xf32, #tpu.memory_space<vmem>>, vector<1x32xf32>
    %cst_388 = arith.constant dense<0.000000e+00> : vector<8xf32>
    %944 = vector.multi_reduction <add>, %941, %cst_388 [1] : vector<8x32xf32> to vector<8xf32>
    %945 = vector.shape_cast %944 : vector<8xf32> to vector<8x1xf32>
    %cst_389 = arith.constant 3.200000e+01 : f32
    %946 = vector.broadcast %cst_389 : f32 to vector<8x1xf32>
    %947 = arith.divf %945, %946 : vector<8x1xf32>
    %948 = vector.broadcast %947 : vector<8x1xf32> to vector<8x32xf32>
    %949 = arith.subf %941, %948 : vector<8x32xf32>
    %950 = arith.mulf %949, %949 : vector<8x32xf32>
    %cst_390 = arith.constant dense<0.000000e+00> : vector<8xf32>
    %951 = vector.multi_reduction <add>, %950, %cst_390 [1] : vector<8x32xf32> to vector<8xf32>
    %952 = vector.shape_cast %951 : vector<8xf32> to vector<8x1xf32>
    %cst_391 = arith.constant 3.200000e+01 : f32
    %953 = vector.broadcast %cst_391 : f32 to vector<8x1xf32>
    %954 = arith.divf %952, %953 : vector<8x1xf32>
    %955 = vector.broadcast %947 : vector<8x1xf32> to vector<8x32xf32>
    %956 = arith.subf %941, %955 : vector<8x32xf32>
    %cst_392 = arith.constant 9.99999974E-6 : f32
    %957 = vector.broadcast %cst_392 : f32 to vector<8x1xf32>
    %958 = arith.addf %954, %957 : vector<8x1xf32>
    %959 = math.rsqrt %958 : vector<8x1xf32>
    %960 = vector.broadcast %959 : vector<8x1xf32> to vector<8x32xf32>
    %961 = arith.mulf %956, %960 : vector<8x32xf32>
    %962 = vector.broadcast %942 : vector<1x32xf32> to vector<8x32xf32>
    %963 = arith.mulf %961, %962 : vector<8x32xf32>
    %964 = vector.broadcast %943 : vector<1x32xf32> to vector<8x32xf32>
    %965 = arith.addf %963, %964 : vector<8x32xf32>
    %966 = arith.truncf %965 : vector<8x32xf32> to vector<8x32xbf16>
    %c0_393 = arith.constant 0 : index
    %c0_394 = arith.constant 0 : index
    %967 = vector.load %arg41[%c0_393, %c0_394] : memref<32x128xbf16, #tpu.memory_space<vmem>>, vector<32x128xbf16>
    %cst_395 = arith.constant dense<0.000000e+00> : vector<8x128xf32>
    %968 = tpu.matmul %966, %967, %cst_395 {dimension_numbers = #tpu.dot_dimension_numbers<[1], [0], [0], [1], [0, 0, 1, 1], [], []>} : vector<8x32xbf16>, vector<32x128xbf16>, vector<8x128xf32> -> vector<8x128xf32>
    %c0_396 = arith.constant 0 : index
    %c0_397 = arith.constant 0 : index
    %969 = vector.load %arg42[%c0_396, %c0_397] : memref<1x128xf32, #tpu.memory_space<vmem>>, vector<1x128xf32>
    %970 = vector.broadcast %969 : vector<1x128xf32> to vector<8x128xf32>
    %971 = arith.addf %968, %970 : vector<8x128xf32>
    %c0_398 = arith.constant 0 : index
    %c0_399 = arith.constant 0 : index
    %c0_400 = arith.constant 0 : index
    %972 = vector.load %arg43[%c0_398, %c0_399, %c0_400] : memref<2x8x128xf32, #tpu.memory_space<vmem>>, vector<1x8x128xf32>
    %973 = vector.shape_cast %972 : vector<1x8x128xf32> to vector<8x128xf32>
    %974 = vector.shape_cast %971 : vector<8x128xf32> to vector<1x8x128xf32>
    tpu.vector_store %arg43[%c0_398, %c0_399, %c0_400], %974 {strides = array<i32>} : memref<2x8x128xf32, #tpu.memory_space<vmem>>, vector<1x8x128xf32>,
    %c1_401 = arith.constant 1 : index
    %c0_402 = arith.constant 0 : index
    %c0_403 = arith.constant 0 : index
    %975 = vector.load %arg1[%c1_401, %c0_402, %c0_403] : memref<2x12x32xf32, #tpu.memory_space<vmem>>, vector<1x12x32xf32>
    %976 = vector.shape_cast %975 : vector<1x12x32xf32> to vector<12x32xf32>
    %c1_404 = arith.constant 1 : index
    %c0_405 = arith.constant 0 : index
    %c0_406 = arith.constant 0 : index
    %977 = vector.load %arg3[%c1_404, %c0_405, %c0_406] : memref<2x1x12xf32, #tpu.memory_space<vmem>>, vector<1x1x12xf32>
    %978 = vector.shape_cast %977 : vector<1x1x12xf32> to vector<1x12xf32>
    %c0_407 = arith.constant 0 : index
    %c0_408 = arith.constant 0 : index
    %c0_409 = arith.constant 0 : index
    %979 = vector.load %arg5[%c0_407, %c0_408, %c0_409] : memref<2x32x96xbf16, #tpu.memory_space<vmem>>, vector<1x32x96xbf16>
    %980 = vector.shape_cast %979 : vector<1x32x96xbf16> to vector<32x96xbf16>
    %c0_410 = arith.constant 0 : index
    %c0_411 = arith.constant 0 : index
    %c0_412 = arith.constant 0 : index
    %981 = vector.load %arg6[%c0_410, %c0_411, %c0_412] : memref<2x1x96xf32, #tpu.memory_space<vmem>>, vector<1x1x96xf32>
    %982 = vector.shape_cast %981 : vector<1x1x96xf32> to vector<1x96xf32>
    %c0_413 = arith.constant 0 : index
    %c0_414 = arith.constant 0 : index
    %c0_415 = arith.constant 0 : index
    %983 = vector.load %arg7[%c0_413, %c0_414, %c0_415] : memref<2x32x32xbf16, #tpu.memory_space<vmem>>, vector<1x32x32xbf16>
    %984 = vector.shape_cast %983 : vector<1x32x32xbf16> to vector<32x32xbf16>
    %c0_416 = arith.constant 0 : index
    %c0_417 = arith.constant 0 : index
    %c0_418 = arith.constant 0 : index
    %985 = vector.load %arg8[%c0_416, %c0_417, %c0_418] : memref<2x1x32xf32, #tpu.memory_space<vmem>>, vector<1x1x32xf32>
    %986 = vector.shape_cast %985 : vector<1x1x32xf32> to vector<1x32xf32>
    %987 = arith.truncf %976 : vector<12x32xf32> to vector<12x32xbf16>
    %cst_419 = arith.constant dense<0.000000e+00> : vector<12x96xf32>
    %988 = tpu.matmul %987, %980, %cst_419 {dimension_numbers = #tpu.dot_dimension_numbers<[1], [0], [0], [1], [0, 0, 1, 1], [], []>} : vector<12x32xbf16>, vector<32x96xbf16>, vector<12x96xf32> -> vector<12x96xf32>
    %989 = vector.broadcast %982 : vector<1x96xf32> to vector<12x96xf32>
    %990 = arith.addf %988, %989 : vector<12x96xf32>
    %991 = vector.extract_strided_slice %990 {offsets = [0, 0], sizes = [12, 32], strides = [1, 1]} : vector<12x96xf32> to vector<12x32xf32>
    %992 = vector.extract_strided_slice %990 {offsets = [0, 32], sizes = [12, 32], strides = [1, 1]} : vector<12x96xf32> to vector<12x32xf32>
    %993 = vector.extract_strided_slice %990 {offsets = [0, 64], sizes = [12, 32], strides = [1, 1]} : vector<12x96xf32> to vector<12x32xf32>
    %994 = arith.truncf %991 : vector<12x32xf32> to vector<12x32xbf16>
    %995 = arith.truncf %992 : vector<12x32xf32> to vector<12x32xbf16>
    %996 = arith.truncf %993 : vector<12x32xf32> to vector<12x32xbf16>
    %997 = vector.extract_strided_slice %994 {offsets = [0, 0], sizes = [12, 8], strides = [1, 1]} : vector<12x32xbf16> to vector<12x8xbf16>
    %998 = vector.extract_strided_slice %995 {offsets = [0, 0], sizes = [12, 8], strides = [1, 1]} : vector<12x32xbf16> to vector<12x8xbf16>
    %cst_420 = arith.constant dense<0.000000e+00> : vector<12x12xf32>
    %999 = tpu.matmul %997, %998, %cst_420 {dimension_numbers = #tpu.dot_dimension_numbers<[1], [1], [0], [0], [0, 0, 1, 0], [], []>} : vector<12x8xbf16>, vector<12x8xbf16>, vector<12x12xf32> -> vector<12x12xf32>
    %1000 = vector.broadcast %978 : vector<1x12xf32> to vector<12x12xf32>
    %1001 = arith.addf %999, %1000 : vector<12x12xf32>
    %cst_421 = arith.constant dense<0xFF800000> : vector<12xf32>
    %1002 = vector.multi_reduction <maximumf>, %1001, %cst_421 [1] : vector<12x12xf32> to vector<12xf32>
    %1003 = vector.shape_cast %1002 : vector<12xf32> to vector<12x1xf32>
    %1004 = vector.broadcast %1003 : vector<12x1xf32> to vector<12x12xf32>
    %1005 = arith.subf %1001, %1004 : vector<12x12xf32>
    %1006 = math.exp %1005 : vector<12x12xf32>
    %cst_422 = arith.constant dense<0.000000e+00> : vector<12xf32>
    %1007 = vector.multi_reduction <add>, %1006, %cst_422 [1] : vector<12x12xf32> to vector<12xf32>
    %1008 = vector.shape_cast %1007 : vector<12xf32> to vector<12x1xf32>
    %1009 = tpu.reciprocal %1008 {approx = true} : vector<12x1xf32> -> vector<12x1xf32>
    %1010 = vector.broadcast %1009 : vector<12x1xf32> to vector<12x12xf32>
    %1011 = arith.mulf %1006, %1010 : vector<12x12xf32>
    %1012 = arith.truncf %1011 : vector<12x12xf32> to vector<12x12xbf16>
    %1013 = vector.extract_strided_slice %996 {offsets = [0, 0], sizes = [12, 8], strides = [1, 1]} : vector<12x32xbf16> to vector<12x8xbf16>
    %cst_423 = arith.constant dense<0.000000e+00> : vector<12x8xf32>
    %1014 = tpu.matmul %1012, %1013, %cst_423 {dimension_numbers = #tpu.dot_dimension_numbers<[1], [0], [0], [1], [0, 0, 1, 1], [], []>} : vector<12x12xbf16>, vector<12x8xbf16>, vector<12x8xf32> -> vector<12x8xf32>
    %1015 = vector.extract_strided_slice %994 {offsets = [0, 8], sizes = [12, 8], strides = [1, 1]} : vector<12x32xbf16> to vector<12x8xbf16>
    %1016 = vector.extract_strided_slice %995 {offsets = [0, 8], sizes = [12, 8], strides = [1, 1]} : vector<12x32xbf16> to vector<12x8xbf16>
    %cst_424 = arith.constant dense<0.000000e+00> : vector<12x12xf32>
    %1017 = tpu.matmul %1015, %1016, %cst_424 {dimension_numbers = #tpu.dot_dimension_numbers<[1], [1], [0], [0], [0, 0, 1, 0], [], []>} : vector<12x8xbf16>, vector<12x8xbf16>, vector<12x12xf32> -> vector<12x12xf32>
    %1018 = vector.broadcast %978 : vector<1x12xf32> to vector<12x12xf32>
    %1019 = arith.addf %1017, %1018 : vector<12x12xf32>
    %cst_425 = arith.constant dense<0xFF800000> : vector<12xf32>
    %1020 = vector.multi_reduction <maximumf>, %1019, %cst_425 [1] : vector<12x12xf32> to vector<12xf32>
    %1021 = vector.shape_cast %1020 : vector<12xf32> to vector<12x1xf32>
    %1022 = vector.broadcast %1021 : vector<12x1xf32> to vector<12x12xf32>
    %1023 = arith.subf %1019, %1022 : vector<12x12xf32>
    %1024 = math.exp %1023 : vector<12x12xf32>
    %cst_426 = arith.constant dense<0.000000e+00> : vector<12xf32>
    %1025 = vector.multi_reduction <add>, %1024, %cst_426 [1] : vector<12x12xf32> to vector<12xf32>
    %1026 = vector.shape_cast %1025 : vector<12xf32> to vector<12x1xf32>
    %1027 = tpu.reciprocal %1026 {approx = true} : vector<12x1xf32> -> vector<12x1xf32>
    %1028 = vector.broadcast %1027 : vector<12x1xf32> to vector<12x12xf32>
    %1029 = arith.mulf %1024, %1028 : vector<12x12xf32>
    %1030 = arith.truncf %1029 : vector<12x12xf32> to vector<12x12xbf16>
    %1031 = vector.extract_strided_slice %996 {offsets = [0, 8], sizes = [12, 8], strides = [1, 1]} : vector<12x32xbf16> to vector<12x8xbf16>
    %cst_427 = arith.constant dense<0.000000e+00> : vector<12x8xf32>
    %1032 = tpu.matmul %1030, %1031, %cst_427 {dimension_numbers = #tpu.dot_dimension_numbers<[1], [0], [0], [1], [0, 0, 1, 1], [], []>} : vector<12x12xbf16>, vector<12x8xbf16>, vector<12x8xf32> -> vector<12x8xf32>
    %1033 = vector.extract_strided_slice %994 {offsets = [0, 16], sizes = [12, 8], strides = [1, 1]} : vector<12x32xbf16> to vector<12x8xbf16>
    %1034 = vector.extract_strided_slice %995 {offsets = [0, 16], sizes = [12, 8], strides = [1, 1]} : vector<12x32xbf16> to vector<12x8xbf16>
    %cst_428 = arith.constant dense<0.000000e+00> : vector<12x12xf32>
    %1035 = tpu.matmul %1033, %1034, %cst_428 {dimension_numbers = #tpu.dot_dimension_numbers<[1], [1], [0], [0], [0, 0, 1, 0], [], []>} : vector<12x8xbf16>, vector<12x8xbf16>, vector<12x12xf32> -> vector<12x12xf32>
    %1036 = vector.broadcast %978 : vector<1x12xf32> to vector<12x12xf32>
    %1037 = arith.addf %1035, %1036 : vector<12x12xf32>
    %cst_429 = arith.constant dense<0xFF800000> : vector<12xf32>
    %1038 = vector.multi_reduction <maximumf>, %1037, %cst_429 [1] : vector<12x12xf32> to vector<12xf32>
    %1039 = vector.shape_cast %1038 : vector<12xf32> to vector<12x1xf32>
    %1040 = vector.broadcast %1039 : vector<12x1xf32> to vector<12x12xf32>
    %1041 = arith.subf %1037, %1040 : vector<12x12xf32>
    %1042 = math.exp %1041 : vector<12x12xf32>
    %cst_430 = arith.constant dense<0.000000e+00> : vector<12xf32>
    %1043 = vector.multi_reduction <add>, %1042, %cst_430 [1] : vector<12x12xf32> to vector<12xf32>
    %1044 = vector.shape_cast %1043 : vector<12xf32> to vector<12x1xf32>
    %1045 = tpu.reciprocal %1044 {approx = true} : vector<12x1xf32> -> vector<12x1xf32>
    %1046 = vector.broadcast %1045 : vector<12x1xf32> to vector<12x12xf32>
    %1047 = arith.mulf %1042, %1046 : vector<12x12xf32>
    %1048 = arith.truncf %1047 : vector<12x12xf32> to vector<12x12xbf16>
    %1049 = vector.extract_strided_slice %996 {offsets = [0, 16], sizes = [12, 8], strides = [1, 1]} : vector<12x32xbf16> to vector<12x8xbf16>
    %cst_431 = arith.constant dense<0.000000e+00> : vector<12x8xf32>
    %1050 = tpu.matmul %1048, %1049, %cst_431 {dimension_numbers = #tpu.dot_dimension_numbers<[1], [0], [0], [1], [0, 0, 1, 1], [], []>} : vector<12x12xbf16>, vector<12x8xbf16>, vector<12x8xf32> -> vector<12x8xf32>
    %1051 = vector.extract_strided_slice %994 {offsets = [0, 24], sizes = [12, 8], strides = [1, 1]} : vector<12x32xbf16> to vector<12x8xbf16>
    %1052 = vector.extract_strided_slice %995 {offsets = [0, 24], sizes = [12, 8], strides = [1, 1]} : vector<12x32xbf16> to vector<12x8xbf16>
    %cst_432 = arith.constant dense<0.000000e+00> : vector<12x12xf32>
    %1053 = tpu.matmul %1051, %1052, %cst_432 {dimension_numbers = #tpu.dot_dimension_numbers<[1], [1], [0], [0], [0, 0, 1, 0], [], []>} : vector<12x8xbf16>, vector<12x8xbf16>, vector<12x12xf32> -> vector<12x12xf32>
    %1054 = vector.broadcast %978 : vector<1x12xf32> to vector<12x12xf32>
    %1055 = arith.addf %1053, %1054 : vector<12x12xf32>
    %cst_433 = arith.constant dense<0xFF800000> : vector<12xf32>
    %1056 = vector.multi_reduction <maximumf>, %1055, %cst_433 [1] : vector<12x12xf32> to vector<12xf32>
    %1057 = vector.shape_cast %1056 : vector<12xf32> to vector<12x1xf32>
    %1058 = vector.broadcast %1057 : vector<12x1xf32> to vector<12x12xf32>
    %1059 = arith.subf %1055, %1058 : vector<12x12xf32>
    %1060 = math.exp %1059 : vector<12x12xf32>
    %cst_434 = arith.constant dense<0.000000e+00> : vector<12xf32>
    %1061 = vector.multi_reduction <add>, %1060, %cst_434 [1] : vector<12x12xf32> to vector<12xf32>
    %1062 = vector.shape_cast %1061 : vector<12xf32> to vector<12x1xf32>
    %1063 = tpu.reciprocal %1062 {approx = true} : vector<12x1xf32> -> vector<12x1xf32>
    %1064 = vector.broadcast %1063 : vector<12x1xf32> to vector<12x12xf32>
    %1065 = arith.mulf %1060, %1064 : vector<12x12xf32>
    %1066 = arith.truncf %1065 : vector<12x12xf32> to vector<12x12xbf16>
    %1067 = vector.extract_strided_slice %996 {offsets = [0, 24], sizes = [12, 8], strides = [1, 1]} : vector<12x32xbf16> to vector<12x8xbf16>
    %cst_435 = arith.constant dense<0.000000e+00> : vector<12x8xf32>
    %1068 = tpu.matmul %1066, %1067, %cst_435 {dimension_numbers = #tpu.dot_dimension_numbers<[1], [0], [0], [1], [0, 0, 1, 1], [], []>} : vector<12x12xbf16>, vector<12x8xbf16>, vector<12x8xf32> -> vector<12x8xf32>
    %1069 = tpu.concatenate %1014, %1032, %1050, %1068 in 1 : vector<12x8xf32>, vector<12x8xf32>, vector<12x8xf32>, vector<12x8xf32> -> vector<12x32xf32>
    %1070 = arith.truncf %1069 : vector<12x32xf32> to vector<12x32xbf16>
    %cst_436 = arith.constant dense<0.000000e+00> : vector<12x32xf32>
    %1071 = tpu.matmul %1070, %984, %cst_436 {dimension_numbers = #tpu.dot_dimension_numbers<[1], [0], [0], [1], [0, 0, 1, 1], [], []>} : vector<12x32xbf16>, vector<32x32xbf16>, vector<12x32xf32> -> vector<12x32xf32>
    %1072 = vector.broadcast %986 : vector<1x32xf32> to vector<12x32xf32>
    %1073 = arith.addf %1071, %1072 : vector<12x32xf32>
    %1074 = arith.addf %976, %1073 : vector<12x32xf32>
    %c0_437 = arith.constant 0 : index
    %c0_438 = arith.constant 0 : index
    %c0_439 = arith.constant 0 : index
    %1075 = vector.load %arg9[%c0_437, %c0_438, %c0_439] : memref<2x1x32xf32, #tpu.memory_space<vmem>>, vector<1x1x32xf32>
    %1076 = vector.shape_cast %1075 : vector<1x1x32xf32> to vector<1x32xf32>
    %c0_440 = arith.constant 0 : index
    %c0_441 = arith.constant 0 : index
    %c0_442 = arith.constant 0 : index
    %1077 = vector.load %arg10[%c0_440, %c0_441, %c0_442] : memref<2x1x32xf32, #tpu.memory_space<vmem>>, vector<1x1x32xf32>
    %1078 = vector.shape_cast %1077 : vector<1x1x32xf32> to vector<1x32xf32>
    %cst_443 = arith.constant dense<0.000000e+00> : vector<12xf32>
    %1079 = vector.multi_reduction <add>, %1074, %cst_443 [1] : vector<12x32xf32> to vector<12xf32>
    %1080 = vector.shape_cast %1079 : vector<12xf32> to vector<12x1xf32>
    %cst_444 = arith.constant 3.200000e+01 : f32
    %1081 = vector.broadcast %cst_444 : f32 to vector<12x1xf32>
    %1082 = arith.divf %1080, %1081 : vector<12x1xf32>
    %1083 = vector.broadcast %1082 : vector<12x1xf32> to vector<12x32xf32>
    %1084 = arith.subf %1074, %1083 : vector<12x32xf32>
    %1085 = arith.mulf %1084, %1084 : vector<12x32xf32>
    %cst_445 = arith.constant dense<0.000000e+00> : vector<12xf32>
    %1086 = vector.multi_reduction <add>, %1085, %cst_445 [1] : vector<12x32xf32> to vector<12xf32>
    %1087 = vector.shape_cast %1086 : vector<12xf32> to vector<12x1xf32>
    %cst_446 = arith.constant 3.200000e+01 : f32
    %1088 = vector.broadcast %cst_446 : f32 to vector<12x1xf32>
    %1089 = arith.divf %1087, %1088 : vector<12x1xf32>
    %1090 = vector.broadcast %1082 : vector<12x1xf32> to vector<12x32xf32>
    %1091 = arith.subf %1074, %1090 : vector<12x32xf32>
    %cst_447 = arith.constant 9.99999974E-6 : f32
    %1092 = vector.broadcast %cst_447 : f32 to vector<12x1xf32>
    %1093 = arith.addf %1089, %1092 : vector<12x1xf32>
    %1094 = math.rsqrt %1093 : vector<12x1xf32>
    %1095 = vector.broadcast %1094 : vector<12x1xf32> to vector<12x32xf32>
    %1096 = arith.mulf %1091, %1095 : vector<12x32xf32>
    %1097 = vector.broadcast %1076 : vector<1x32xf32> to vector<12x32xf32>
    %1098 = arith.mulf %1096, %1097 : vector<12x32xf32>
    %1099 = vector.broadcast %1078 : vector<1x32xf32> to vector<12x32xf32>
    %1100 = arith.addf %1098, %1099 : vector<12x32xf32>
    %c0_448 = arith.constant 0 : index
    %c0_449 = arith.constant 0 : index
    %c0_450 = arith.constant 0 : index
    %1101 = vector.load %arg11[%c0_448, %c0_449, %c0_450] : memref<2x32x128xbf16, #tpu.memory_space<vmem>>, vector<1x32x128xbf16>
    %1102 = vector.shape_cast %1101 : vector<1x32x128xbf16> to vector<32x128xbf16>
    %c0_451 = arith.constant 0 : index
    %c0_452 = arith.constant 0 : index
    %c0_453 = arith.constant 0 : index
    %1103 = vector.load %arg12[%c0_451, %c0_452, %c0_453] : memref<2x1x128xf32, #tpu.memory_space<vmem>>, vector<1x1x128xf32>
    %1104 = vector.shape_cast %1103 : vector<1x1x128xf32> to vector<1x128xf32>
    %c0_454 = arith.constant 0 : index
    %c0_455 = arith.constant 0 : index
    %c0_456 = arith.constant 0 : index
    %1105 = vector.load %arg13[%c0_454, %c0_455, %c0_456] : memref<2x128x32xbf16, #tpu.memory_space<vmem>>, vector<1x128x32xbf16>
    %1106 = vector.shape_cast %1105 : vector<1x128x32xbf16> to vector<128x32xbf16>
    %c0_457 = arith.constant 0 : index
    %c0_458 = arith.constant 0 : index
    %c0_459 = arith.constant 0 : index
    %1107 = vector.load %arg14[%c0_457, %c0_458, %c0_459] : memref<2x1x32xf32, #tpu.memory_space<vmem>>, vector<1x1x32xf32>
    %1108 = vector.shape_cast %1107 : vector<1x1x32xf32> to vector<1x32xf32>
    %1109 = arith.truncf %1100 : vector<12x32xf32> to vector<12x32xbf16>
    %cst_460 = arith.constant dense<0.000000e+00> : vector<12x128xf32>
    %1110 = tpu.matmul %1109, %1102, %cst_460 {dimension_numbers = #tpu.dot_dimension_numbers<[1], [0], [0], [1], [0, 0, 1, 1], [], []>} : vector<12x32xbf16>, vector<32x128xbf16>, vector<12x128xf32> -> vector<12x128xf32>
    %1111 = vector.broadcast %1104 : vector<1x128xf32> to vector<12x128xf32>
    %1112 = arith.addf %1110, %1111 : vector<12x128xf32>
    %cst_461 = arith.constant 0.000000e+00 : f32
    %1113 = vector.broadcast %cst_461 : f32 to vector<12x128xf32>
    %1114 = arith.maximumf %1112, %1113 : vector<12x128xf32>
    %1115 = arith.truncf %1114 : vector<12x128xf32> to vector<12x128xbf16>
    %cst_462 = arith.constant dense<0.000000e+00> : vector<12x32xf32>
    %1116 = tpu.matmul %1115, %1106, %cst_462 {dimension_numbers = #tpu.dot_dimension_numbers<[1], [0], [0], [1], [0, 0, 1, 1], [], []>} : vector<12x128xbf16>, vector<128x32xbf16>, vector<12x32xf32> -> vector<12x32xf32>
    %1117 = vector.broadcast %1108 : vector<1x32xf32> to vector<12x32xf32>
    %1118 = arith.addf %1116, %1117 : vector<12x32xf32>
    %1119 = arith.addf %1100, %1118 : vector<12x32xf32>
    %c0_463 = arith.constant 0 : index
    %c0_464 = arith.constant 0 : index
    %c0_465 = arith.constant 0 : index
    %1120 = vector.load %arg15[%c0_463, %c0_464, %c0_465] : memref<2x1x32xf32, #tpu.memory_space<vmem>>, vector<1x1x32xf32>
    %1121 = vector.shape_cast %1120 : vector<1x1x32xf32> to vector<1x32xf32>
    %c0_466 = arith.constant 0 : index
    %c0_467 = arith.constant 0 : index
    %c0_468 = arith.constant 0 : index
    %1122 = vector.load %arg16[%c0_466, %c0_467, %c0_468] : memref<2x1x32xf32, #tpu.memory_space<vmem>>, vector<1x1x32xf32>
    %1123 = vector.shape_cast %1122 : vector<1x1x32xf32> to vector<1x32xf32>
    %cst_469 = arith.constant dense<0.000000e+00> : vector<12xf32>
    %1124 = vector.multi_reduction <add>, %1119, %cst_469 [1] : vector<12x32xf32> to vector<12xf32>
    %1125 = vector.shape_cast %1124 : vector<12xf32> to vector<12x1xf32>
    %cst_470 = arith.constant 3.200000e+01 : f32
    %1126 = vector.broadcast %cst_470 : f32 to vector<12x1xf32>
    %1127 = arith.divf %1125, %1126 : vector<12x1xf32>
    %1128 = vector.broadcast %1127 : vector<12x1xf32> to vector<12x32xf32>
    %1129 = arith.subf %1119, %1128 : vector<12x32xf32>
    %1130 = arith.mulf %1129, %1129 : vector<12x32xf32>
    %cst_471 = arith.constant dense<0.000000e+00> : vector<12xf32>
    %1131 = vector.multi_reduction <add>, %1130, %cst_471 [1] : vector<12x32xf32> to vector<12xf32>
    %1132 = vector.shape_cast %1131 : vector<12xf32> to vector<12x1xf32>
    %cst_472 = arith.constant 3.200000e+01 : f32
    %1133 = vector.broadcast %cst_472 : f32 to vector<12x1xf32>
    %1134 = arith.divf %1132, %1133 : vector<12x1xf32>
    %1135 = vector.broadcast %1127 : vector<12x1xf32> to vector<12x32xf32>
    %1136 = arith.subf %1119, %1135 : vector<12x32xf32>
    %cst_473 = arith.constant 9.99999974E-6 : f32
    %1137 = vector.broadcast %cst_473 : f32 to vector<12x1xf32>
    %1138 = arith.addf %1134, %1137 : vector<12x1xf32>
    %1139 = math.rsqrt %1138 : vector<12x1xf32>
    %1140 = vector.broadcast %1139 : vector<12x1xf32> to vector<12x32xf32>
    %1141 = arith.mulf %1136, %1140 : vector<12x32xf32>
    %1142 = vector.broadcast %1121 : vector<1x32xf32> to vector<12x32xf32>
    %1143 = arith.mulf %1141, %1142 : vector<12x32xf32>
    %1144 = vector.broadcast %1123 : vector<1x32xf32> to vector<12x32xf32>
    %1145 = arith.addf %1143, %1144 : vector<12x32xf32>
    %c1_474 = arith.constant 1 : index
    %c0_475 = arith.constant 0 : index
    %c0_476 = arith.constant 0 : index
    %1146 = vector.load %arg5[%c1_474, %c0_475, %c0_476] : memref<2x32x96xbf16, #tpu.memory_space<vmem>>, vector<1x32x96xbf16>
    %1147 = vector.shape_cast %1146 : vector<1x32x96xbf16> to vector<32x96xbf16>
    %c1_477 = arith.constant 1 : index
    %c0_478 = arith.constant 0 : index
    %c0_479 = arith.constant 0 : index
    %1148 = vector.load %arg6[%c1_477, %c0_478, %c0_479] : memref<2x1x96xf32, #tpu.memory_space<vmem>>, vector<1x1x96xf32>
    %1149 = vector.shape_cast %1148 : vector<1x1x96xf32> to vector<1x96xf32>
    %c1_480 = arith.constant 1 : index
    %c0_481 = arith.constant 0 : index
    %c0_482 = arith.constant 0 : index
    %1150 = vector.load %arg7[%c1_480, %c0_481, %c0_482] : memref<2x32x32xbf16, #tpu.memory_space<vmem>>, vector<1x32x32xbf16>
    %1151 = vector.shape_cast %1150 : vector<1x32x32xbf16> to vector<32x32xbf16>
    %c1_483 = arith.constant 1 : index
    %c0_484 = arith.constant 0 : index
    %c0_485 = arith.constant 0 : index
    %1152 = vector.load %arg8[%c1_483, %c0_484, %c0_485] : memref<2x1x32xf32, #tpu.memory_space<vmem>>, vector<1x1x32xf32>
    %1153 = vector.shape_cast %1152 : vector<1x1x32xf32> to vector<1x32xf32>
    %1154 = arith.truncf %1145 : vector<12x32xf32> to vector<12x32xbf16>
    %cst_486 = arith.constant dense<0.000000e+00> : vector<12x96xf32>
    %1155 = tpu.matmul %1154, %1147, %cst_486 {dimension_numbers = #tpu.dot_dimension_numbers<[1], [0], [0], [1], [0, 0, 1, 1], [], []>} : vector<12x32xbf16>, vector<32x96xbf16>, vector<12x96xf32> -> vector<12x96xf32>
    %1156 = vector.broadcast %1149 : vector<1x96xf32> to vector<12x96xf32>
    %1157 = arith.addf %1155, %1156 : vector<12x96xf32>
    %1158 = vector.extract_strided_slice %1157 {offsets = [0, 0], sizes = [12, 32], strides = [1, 1]} : vector<12x96xf32> to vector<12x32xf32>
    %1159 = vector.extract_strided_slice %1157 {offsets = [0, 32], sizes = [12, 32], strides = [1, 1]} : vector<12x96xf32> to vector<12x32xf32>
    %1160 = vector.extract_strided_slice %1157 {offsets = [0, 64], sizes = [12, 32], strides = [1, 1]} : vector<12x96xf32> to vector<12x32xf32>
    %1161 = arith.truncf %1158 : vector<12x32xf32> to vector<12x32xbf16>
    %1162 = arith.truncf %1159 : vector<12x32xf32> to vector<12x32xbf16>
    %1163 = arith.truncf %1160 : vector<12x32xf32> to vector<12x32xbf16>
    %1164 = vector.extract_strided_slice %1161 {offsets = [0, 0], sizes = [12, 8], strides = [1, 1]} : vector<12x32xbf16> to vector<12x8xbf16>
    %1165 = vector.extract_strided_slice %1162 {offsets = [0, 0], sizes = [12, 8], strides = [1, 1]} : vector<12x32xbf16> to vector<12x8xbf16>
    %cst_487 = arith.constant dense<0.000000e+00> : vector<12x12xf32>
    %1166 = tpu.matmul %1164, %1165, %cst_487 {dimension_numbers = #tpu.dot_dimension_numbers<[1], [1], [0], [0], [0, 0, 1, 0], [], []>} : vector<12x8xbf16>, vector<12x8xbf16>, vector<12x12xf32> -> vector<12x12xf32>
    %1167 = vector.broadcast %978 : vector<1x12xf32> to vector<12x12xf32>
    %1168 = arith.addf %1166, %1167 : vector<12x12xf32>
    %cst_488 = arith.constant dense<0xFF800000> : vector<12xf32>
    %1169 = vector.multi_reduction <maximumf>, %1168, %cst_488 [1] : vector<12x12xf32> to vector<12xf32>
    %1170 = vector.shape_cast %1169 : vector<12xf32> to vector<12x1xf32>
    %1171 = vector.broadcast %1170 : vector<12x1xf32> to vector<12x12xf32>
    %1172 = arith.subf %1168, %1171 : vector<12x12xf32>
    %1173 = math.exp %1172 : vector<12x12xf32>
    %cst_489 = arith.constant dense<0.000000e+00> : vector<12xf32>
    %1174 = vector.multi_reduction <add>, %1173, %cst_489 [1] : vector<12x12xf32> to vector<12xf32>
    %1175 = vector.shape_cast %1174 : vector<12xf32> to vector<12x1xf32>
    %1176 = tpu.reciprocal %1175 {approx = true} : vector<12x1xf32> -> vector<12x1xf32>
    %1177 = vector.broadcast %1176 : vector<12x1xf32> to vector<12x12xf32>
    %1178 = arith.mulf %1173, %1177 : vector<12x12xf32>
    %1179 = arith.truncf %1178 : vector<12x12xf32> to vector<12x12xbf16>
    %1180 = vector.extract_strided_slice %1163 {offsets = [0, 0], sizes = [12, 8], strides = [1, 1]} : vector<12x32xbf16> to vector<12x8xbf16>
    %cst_490 = arith.constant dense<0.000000e+00> : vector<12x8xf32>
    %1181 = tpu.matmul %1179, %1180, %cst_490 {dimension_numbers = #tpu.dot_dimension_numbers<[1], [0], [0], [1], [0, 0, 1, 1], [], []>} : vector<12x12xbf16>, vector<12x8xbf16>, vector<12x8xf32> -> vector<12x8xf32>
    %1182 = vector.extract_strided_slice %1161 {offsets = [0, 8], sizes = [12, 8], strides = [1, 1]} : vector<12x32xbf16> to vector<12x8xbf16>
    %1183 = vector.extract_strided_slice %1162 {offsets = [0, 8], sizes = [12, 8], strides = [1, 1]} : vector<12x32xbf16> to vector<12x8xbf16>
    %cst_491 = arith.constant dense<0.000000e+00> : vector<12x12xf32>
    %1184 = tpu.matmul %1182, %1183, %cst_491 {dimension_numbers = #tpu.dot_dimension_numbers<[1], [1], [0], [0], [0, 0, 1, 0], [], []>} : vector<12x8xbf16>, vector<12x8xbf16>, vector<12x12xf32> -> vector<12x12xf32>
    %1185 = vector.broadcast %978 : vector<1x12xf32> to vector<12x12xf32>
    %1186 = arith.addf %1184, %1185 : vector<12x12xf32>
    %cst_492 = arith.constant dense<0xFF800000> : vector<12xf32>
    %1187 = vector.multi_reduction <maximumf>, %1186, %cst_492 [1] : vector<12x12xf32> to vector<12xf32>
    %1188 = vector.shape_cast %1187 : vector<12xf32> to vector<12x1xf32>
    %1189 = vector.broadcast %1188 : vector<12x1xf32> to vector<12x12xf32>
    %1190 = arith.subf %1186, %1189 : vector<12x12xf32>
    %1191 = math.exp %1190 : vector<12x12xf32>
    %cst_493 = arith.constant dense<0.000000e+00> : vector<12xf32>
    %1192 = vector.multi_reduction <add>, %1191, %cst_493 [1] : vector<12x12xf32> to vector<12xf32>
    %1193 = vector.shape_cast %1192 : vector<12xf32> to vector<12x1xf32>
    %1194 = tpu.reciprocal %1193 {approx = true} : vector<12x1xf32> -> vector<12x1xf32>
    %1195 = vector.broadcast %1194 : vector<12x1xf32> to vector<12x12xf32>
    %1196 = arith.mulf %1191, %1195 : vector<12x12xf32>
    %1197 = arith.truncf %1196 : vector<12x12xf32> to vector<12x12xbf16>
    %1198 = vector.extract_strided_slice %1163 {offsets = [0, 8], sizes = [12, 8], strides = [1, 1]} : vector<12x32xbf16> to vector<12x8xbf16>
    %cst_494 = arith.constant dense<0.000000e+00> : vector<12x8xf32>
    %1199 = tpu.matmul %1197, %1198, %cst_494 {dimension_numbers = #tpu.dot_dimension_numbers<[1], [0], [0], [1], [0, 0, 1, 1], [], []>} : vector<12x12xbf16>, vector<12x8xbf16>, vector<12x8xf32> -> vector<12x8xf32>
    %1200 = vector.extract_strided_slice %1161 {offsets = [0, 16], sizes = [12, 8], strides = [1, 1]} : vector<12x32xbf16> to vector<12x8xbf16>
    %1201 = vector.extract_strided_slice %1162 {offsets = [0, 16], sizes = [12, 8], strides = [1, 1]} : vector<12x32xbf16> to vector<12x8xbf16>
    %cst_495 = arith.constant dense<0.000000e+00> : vector<12x12xf32>
    %1202 = tpu.matmul %1200, %1201, %cst_495 {dimension_numbers = #tpu.dot_dimension_numbers<[1], [1], [0], [0], [0, 0, 1, 0], [], []>} : vector<12x8xbf16>, vector<12x8xbf16>, vector<12x12xf32> -> vector<12x12xf32>
    %1203 = vector.broadcast %978 : vector<1x12xf32> to vector<12x12xf32>
    %1204 = arith.addf %1202, %1203 : vector<12x12xf32>
    %cst_496 = arith.constant dense<0xFF800000> : vector<12xf32>
    %1205 = vector.multi_reduction <maximumf>, %1204, %cst_496 [1] : vector<12x12xf32> to vector<12xf32>
    %1206 = vector.shape_cast %1205 : vector<12xf32> to vector<12x1xf32>
    %1207 = vector.broadcast %1206 : vector<12x1xf32> to vector<12x12xf32>
    %1208 = arith.subf %1204, %1207 : vector<12x12xf32>
    %1209 = math.exp %1208 : vector<12x12xf32>
    %cst_497 = arith.constant dense<0.000000e+00> : vector<12xf32>
    %1210 = vector.multi_reduction <add>, %1209, %cst_497 [1] : vector<12x12xf32> to vector<12xf32>
    %1211 = vector.shape_cast %1210 : vector<12xf32> to vector<12x1xf32>
    %1212 = tpu.reciprocal %1211 {approx = true} : vector<12x1xf32> -> vector<12x1xf32>
    %1213 = vector.broadcast %1212 : vector<12x1xf32> to vector<12x12xf32>
    %1214 = arith.mulf %1209, %1213 : vector<12x12xf32>
    %1215 = arith.truncf %1214 : vector<12x12xf32> to vector<12x12xbf16>
    %1216 = vector.extract_strided_slice %1163 {offsets = [0, 16], sizes = [12, 8], strides = [1, 1]} : vector<12x32xbf16> to vector<12x8xbf16>
    %cst_498 = arith.constant dense<0.000000e+00> : vector<12x8xf32>
    %1217 = tpu.matmul %1215, %1216, %cst_498 {dimension_numbers = #tpu.dot_dimension_numbers<[1], [0], [0], [1], [0, 0, 1, 1], [], []>} : vector<12x12xbf16>, vector<12x8xbf16>, vector<12x8xf32> -> vector<12x8xf32>
    %1218 = vector.extract_strided_slice %1161 {offsets = [0, 24], sizes = [12, 8], strides = [1, 1]} : vector<12x32xbf16> to vector<12x8xbf16>
    %1219 = vector.extract_strided_slice %1162 {offsets = [0, 24], sizes = [12, 8], strides = [1, 1]} : vector<12x32xbf16> to vector<12x8xbf16>
    %cst_499 = arith.constant dense<0.000000e+00> : vector<12x12xf32>
    %1220 = tpu.matmul %1218, %1219, %cst_499 {dimension_numbers = #tpu.dot_dimension_numbers<[1], [1], [0], [0], [0, 0, 1, 0], [], []>} : vector<12x8xbf16>, vector<12x8xbf16>, vector<12x12xf32> -> vector<12x12xf32>
    %1221 = vector.broadcast %978 : vector<1x12xf32> to vector<12x12xf32>
    %1222 = arith.addf %1220, %1221 : vector<12x12xf32>
    %cst_500 = arith.constant dense<0xFF800000> : vector<12xf32>
    %1223 = vector.multi_reduction <maximumf>, %1222, %cst_500 [1] : vector<12x12xf32> to vector<12xf32>
    %1224 = vector.shape_cast %1223 : vector<12xf32> to vector<12x1xf32>
    %1225 = vector.broadcast %1224 : vector<12x1xf32> to vector<12x12xf32>
    %1226 = arith.subf %1222, %1225 : vector<12x12xf32>
    %1227 = math.exp %1226 : vector<12x12xf32>
    %cst_501 = arith.constant dense<0.000000e+00> : vector<12xf32>
    %1228 = vector.multi_reduction <add>, %1227, %cst_501 [1] : vector<12x12xf32> to vector<12xf32>
    %1229 = vector.shape_cast %1228 : vector<12xf32> to vector<12x1xf32>
    %1230 = tpu.reciprocal %1229 {approx = true} : vector<12x1xf32> -> vector<12x1xf32>
    %1231 = vector.broadcast %1230 : vector<12x1xf32> to vector<12x12xf32>
    %1232 = arith.mulf %1227, %1231 : vector<12x12xf32>
    %1233 = arith.truncf %1232 : vector<12x12xf32> to vector<12x12xbf16>
    %1234 = vector.extract_strided_slice %1163 {offsets = [0, 24], sizes = [12, 8], strides = [1, 1]} : vector<12x32xbf16> to vector<12x8xbf16>
    %cst_502 = arith.constant dense<0.000000e+00> : vector<12x8xf32>
    %1235 = tpu.matmul %1233, %1234, %cst_502 {dimension_numbers = #tpu.dot_dimension_numbers<[1], [0], [0], [1], [0, 0, 1, 1], [], []>} : vector<12x12xbf16>, vector<12x8xbf16>, vector<12x8xf32> -> vector<12x8xf32>
    %1236 = tpu.concatenate %1181, %1199, %1217, %1235 in 1 : vector<12x8xf32>, vector<12x8xf32>, vector<12x8xf32>, vector<12x8xf32> -> vector<12x32xf32>
    %1237 = arith.truncf %1236 : vector<12x32xf32> to vector<12x32xbf16>
    %cst_503 = arith.constant dense<0.000000e+00> : vector<12x32xf32>
    %1238 = tpu.matmul %1237, %1151, %cst_503 {dimension_numbers = #tpu.dot_dimension_numbers<[1], [0], [0], [1], [0, 0, 1, 1], [], []>} : vector<12x32xbf16>, vector<32x32xbf16>, vector<12x32xf32> -> vector<12x32xf32>
    %1239 = vector.broadcast %1153 : vector<1x32xf32> to vector<12x32xf32>
    %1240 = arith.addf %1238, %1239 : vector<12x32xf32>
    %1241 = arith.addf %1145, %1240 : vector<12x32xf32>
    %c1_504 = arith.constant 1 : index
    %c0_505 = arith.constant 0 : index
    %c0_506 = arith.constant 0 : index
    %1242 = vector.load %arg9[%c1_504, %c0_505, %c0_506] : memref<2x1x32xf32, #tpu.memory_space<vmem>>, vector<1x1x32xf32>
    %1243 = vector.shape_cast %1242 : vector<1x1x32xf32> to vector<1x32xf32>
    %c1_507 = arith.constant 1 : index
    %c0_508 = arith.constant 0 : index
    %c0_509 = arith.constant 0 : index
    %1244 = vector.load %arg10[%c1_507, %c0_508, %c0_509] : memref<2x1x32xf32, #tpu.memory_space<vmem>>, vector<1x1x32xf32>
    %1245 = vector.shape_cast %1244 : vector<1x1x32xf32> to vector<1x32xf32>
    %cst_510 = arith.constant dense<0.000000e+00> : vector<12xf32>
    %1246 = vector.multi_reduction <add>, %1241, %cst_510 [1] : vector<12x32xf32> to vector<12xf32>
    %1247 = vector.shape_cast %1246 : vector<12xf32> to vector<12x1xf32>
    %cst_511 = arith.constant 3.200000e+01 : f32
    %1248 = vector.broadcast %cst_511 : f32 to vector<12x1xf32>
    %1249 = arith.divf %1247, %1248 : vector<12x1xf32>
    %1250 = vector.broadcast %1249 : vector<12x1xf32> to vector<12x32xf32>
    %1251 = arith.subf %1241, %1250 : vector<12x32xf32>
    %1252 = arith.mulf %1251, %1251 : vector<12x32xf32>
    %cst_512 = arith.constant dense<0.000000e+00> : vector<12xf32>
    %1253 = vector.multi_reduction <add>, %1252, %cst_512 [1] : vector<12x32xf32> to vector<12xf32>
    %1254 = vector.shape_cast %1253 : vector<12xf32> to vector<12x1xf32>
    %cst_513 = arith.constant 3.200000e+01 : f32
    %1255 = vector.broadcast %cst_513 : f32 to vector<12x1xf32>
    %1256 = arith.divf %1254, %1255 : vector<12x1xf32>
    %1257 = vector.broadcast %1249 : vector<12x1xf32> to vector<12x32xf32>
    %1258 = arith.subf %1241, %1257 : vector<12x32xf32>
    %cst_514 = arith.constant 9.99999974E-6 : f32
    %1259 = vector.broadcast %cst_514 : f32 to vector<12x1xf32>
    %1260 = arith.addf %1256, %1259 : vector<12x1xf32>
    %1261 = math.rsqrt %1260 : vector<12x1xf32>
    %1262 = vector.broadcast %1261 : vector<12x1xf32> to vector<12x32xf32>
    %1263 = arith.mulf %1258, %1262 : vector<12x32xf32>
    %1264 = vector.broadcast %1243 : vector<1x32xf32> to vector<12x32xf32>
    %1265 = arith.mulf %1263, %1264 : vector<12x32xf32>
    %1266 = vector.broadcast %1245 : vector<1x32xf32> to vector<12x32xf32>
    %1267 = arith.addf %1265, %1266 : vector<12x32xf32>
    %c1_515 = arith.constant 1 : index
    %c0_516 = arith.constant 0 : index
    %c0_517 = arith.constant 0 : index
    %1268 = vector.load %arg11[%c1_515, %c0_516, %c0_517] : memref<2x32x128xbf16, #tpu.memory_space<vmem>>, vector<1x32x128xbf16>
    %1269 = vector.shape_cast %1268 : vector<1x32x128xbf16> to vector<32x128xbf16>
    %c1_518 = arith.constant 1 : index
    %c0_519 = arith.constant 0 : index
    %c0_520 = arith.constant 0 : index
    %1270 = vector.load %arg12[%c1_518, %c0_519, %c0_520] : memref<2x1x128xf32, #tpu.memory_space<vmem>>, vector<1x1x128xf32>
    %1271 = vector.shape_cast %1270 : vector<1x1x128xf32> to vector<1x128xf32>
    %c1_521 = arith.constant 1 : index
    %c0_522 = arith.constant 0 : index
    %c0_523 = arith.constant 0 : index
    %1272 = vector.load %arg13[%c1_521, %c0_522, %c0_523] : memref<2x128x32xbf16, #tpu.memory_space<vmem>>, vector<1x128x32xbf16>
    %1273 = vector.shape_cast %1272 : vector<1x128x32xbf16> to vector<128x32xbf16>
    %c1_524 = arith.constant 1 : index
    %c0_525 = arith.constant 0 : index
    %c0_526 = arith.constant 0 : index
    %1274 = vector.load %arg14[%c1_524, %c0_525, %c0_526] : memref<2x1x32xf32, #tpu.memory_space<vmem>>, vector<1x1x32xf32>
    %1275 = vector.shape_cast %1274 : vector<1x1x32xf32> to vector<1x32xf32>
    %1276 = arith.truncf %1267 : vector<12x32xf32> to vector<12x32xbf16>
    %cst_527 = arith.constant dense<0.000000e+00> : vector<12x128xf32>
    %1277 = tpu.matmul %1276, %1269, %cst_527 {dimension_numbers = #tpu.dot_dimension_numbers<[1], [0], [0], [1], [0, 0, 1, 1], [], []>} : vector<12x32xbf16>, vector<32x128xbf16>, vector<12x128xf32> -> vector<12x128xf32>
    %1278 = vector.broadcast %1271 : vector<1x128xf32> to vector<12x128xf32>
    %1279 = arith.addf %1277, %1278 : vector<12x128xf32>
    %cst_528 = arith.constant 0.000000e+00 : f32
    %1280 = vector.broadcast %cst_528 : f32 to vector<12x128xf32>
    %1281 = arith.maximumf %1279, %1280 : vector<12x128xf32>
    %1282 = arith.truncf %1281 : vector<12x128xf32> to vector<12x128xbf16>
    %cst_529 = arith.constant dense<0.000000e+00> : vector<12x32xf32>
    %1283 = tpu.matmul %1282, %1273, %cst_529 {dimension_numbers = #tpu.dot_dimension_numbers<[1], [0], [0], [1], [0, 0, 1, 1], [], []>} : vector<12x128xbf16>, vector<128x32xbf16>, vector<12x32xf32> -> vector<12x32xf32>
    %1284 = vector.broadcast %1275 : vector<1x32xf32> to vector<12x32xf32>
    %1285 = arith.addf %1283, %1284 : vector<12x32xf32>
    %1286 = arith.addf %1267, %1285 : vector<12x32xf32>
    %c1_530 = arith.constant 1 : index
    %c0_531 = arith.constant 0 : index
    %c0_532 = arith.constant 0 : index
    %1287 = vector.load %arg15[%c1_530, %c0_531, %c0_532] : memref<2x1x32xf32, #tpu.memory_space<vmem>>, vector<1x1x32xf32>
    %1288 = vector.shape_cast %1287 : vector<1x1x32xf32> to vector<1x32xf32>
    %c1_533 = arith.constant 1 : index
    %c0_534 = arith.constant 0 : index
    %c0_535 = arith.constant 0 : index
    %1289 = vector.load %arg16[%c1_533, %c0_534, %c0_535] : memref<2x1x32xf32, #tpu.memory_space<vmem>>, vector<1x1x32xf32>
    %1290 = vector.shape_cast %1289 : vector<1x1x32xf32> to vector<1x32xf32>
    %cst_536 = arith.constant dense<0.000000e+00> : vector<12xf32>
    %1291 = vector.multi_reduction <add>, %1286, %cst_536 [1] : vector<12x32xf32> to vector<12xf32>
    %1292 = vector.shape_cast %1291 : vector<12xf32> to vector<12x1xf32>
    %cst_537 = arith.constant 3.200000e+01 : f32
    %1293 = vector.broadcast %cst_537 : f32 to vector<12x1xf32>
    %1294 = arith.divf %1292, %1293 : vector<12x1xf32>
    %1295 = vector.broadcast %1294 : vector<12x1xf32> to vector<12x32xf32>
    %1296 = arith.subf %1286, %1295 : vector<12x32xf32>
    %1297 = arith.mulf %1296, %1296 : vector<12x32xf32>
    %cst_538 = arith.constant dense<0.000000e+00> : vector<12xf32>
    %1298 = vector.multi_reduction <add>, %1297, %cst_538 [1] : vector<12x32xf32> to vector<12xf32>
    %1299 = vector.shape_cast %1298 : vector<12xf32> to vector<12x1xf32>
    %cst_539 = arith.constant 3.200000e+01 : f32
    %1300 = vector.broadcast %cst_539 : f32 to vector<12x1xf32>
    %1301 = arith.divf %1299, %1300 : vector<12x1xf32>
    %1302 = vector.broadcast %1294 : vector<12x1xf32> to vector<12x32xf32>
    %1303 = arith.subf %1286, %1302 : vector<12x32xf32>
    %cst_540 = arith.constant 9.99999974E-6 : f32
    %1304 = vector.broadcast %cst_540 : f32 to vector<12x1xf32>
    %1305 = arith.addf %1301, %1304 : vector<12x1xf32>
    %1306 = math.rsqrt %1305 : vector<12x1xf32>
    %1307 = vector.broadcast %1306 : vector<12x1xf32> to vector<12x32xf32>
    %1308 = arith.mulf %1303, %1307 : vector<12x32xf32>
    %1309 = vector.broadcast %1288 : vector<1x32xf32> to vector<12x32xf32>
    %1310 = arith.mulf %1308, %1309 : vector<12x32xf32>
    %1311 = vector.broadcast %1290 : vector<1x32xf32> to vector<12x32xf32>
    %1312 = arith.addf %1310, %1311 : vector<12x32xf32>
    %c0_541 = arith.constant 0 : index
    %c0_542 = arith.constant 0 : index
    %1313 = vector.load %arg17[%c0_541, %c0_542] : memref<1x32xf32, #tpu.memory_space<vmem>>, vector<1x32xf32>
    %c0_543 = arith.constant 0 : index
    %c0_544 = arith.constant 0 : index
    %1314 = vector.load %arg18[%c0_543, %c0_544] : memref<1x32xf32, #tpu.memory_space<vmem>>, vector<1x32xf32>
    %cst_545 = arith.constant dense<0.000000e+00> : vector<12xf32>
    %1315 = vector.multi_reduction <add>, %1312, %cst_545 [1] : vector<12x32xf32> to vector<12xf32>
    %1316 = vector.shape_cast %1315 : vector<12xf32> to vector<12x1xf32>
    %cst_546 = arith.constant 3.200000e+01 : f32
    %1317 = vector.broadcast %cst_546 : f32 to vector<12x1xf32>
    %1318 = arith.divf %1316, %1317 : vector<12x1xf32>
    %1319 = vector.broadcast %1318 : vector<12x1xf32> to vector<12x32xf32>
    %1320 = arith.subf %1312, %1319 : vector<12x32xf32>
    %1321 = arith.mulf %1320, %1320 : vector<12x32xf32>
    %cst_547 = arith.constant dense<0.000000e+00> : vector<12xf32>
    %1322 = vector.multi_reduction <add>, %1321, %cst_547 [1] : vector<12x32xf32> to vector<12xf32>
    %1323 = vector.shape_cast %1322 : vector<12xf32> to vector<12x1xf32>
    %cst_548 = arith.constant 3.200000e+01 : f32
    %1324 = vector.broadcast %cst_548 : f32 to vector<12x1xf32>
    %1325 = arith.divf %1323, %1324 : vector<12x1xf32>
    %1326 = vector.broadcast %1318 : vector<12x1xf32> to vector<12x32xf32>
    %1327 = arith.subf %1312, %1326 : vector<12x32xf32>
    %cst_549 = arith.constant 9.99999974E-6 : f32
    %1328 = vector.broadcast %cst_549 : f32 to vector<12x1xf32>
    %1329 = arith.addf %1325, %1328 : vector<12x1xf32>
    %1330 = math.rsqrt %1329 : vector<12x1xf32>
    %1331 = vector.broadcast %1330 : vector<12x1xf32> to vector<12x32xf32>
    %1332 = arith.mulf %1327, %1331 : vector<12x32xf32>
    %1333 = vector.broadcast %1313 : vector<1x32xf32> to vector<12x32xf32>
    %1334 = arith.mulf %1332, %1333 : vector<12x32xf32>
    %1335 = vector.broadcast %1314 : vector<1x32xf32> to vector<12x32xf32>
    %1336 = arith.addf %1334, %1335 : vector<12x32xf32>
    %c1_550 = arith.constant 1 : index
    %c0_551 = arith.constant 0 : index
    %c0_552 = arith.constant 0 : index
    %1337 = vector.load %arg2[%c1_550, %c0_551, %c0_552] : memref<2x8x32xf32, #tpu.memory_space<vmem>>, vector<1x8x32xf32>
    %1338 = vector.shape_cast %1337 : vector<1x8x32xf32> to vector<8x32xf32>
    %c1_553 = arith.constant 1 : index
    %c0_554 = arith.constant 0 : index
    %c0_555 = arith.constant 0 : index
    %1339 = vector.load %arg4[%c1_553, %c0_554, %c0_555] : memref<2x1x8xf32, #tpu.memory_space<vmem>>, vector<1x1x8xf32>
    %1340 = vector.shape_cast %1339 : vector<1x1x8xf32> to vector<1x8xf32>
    %1341 = vector.broadcast %1340 : vector<1x8xf32> to vector<8x8xf32>
    %1342 = arith.addf %5, %1341 : vector<8x8xf32>
    %c0_556 = arith.constant 0 : index
    %c0_557 = arith.constant 0 : index
    %c0_558 = arith.constant 0 : index
    %1343 = vector.load %arg19[%c0_556, %c0_557, %c0_558] : memref<2x32x96xbf16, #tpu.memory_space<vmem>>, vector<1x32x96xbf16>
    %1344 = vector.shape_cast %1343 : vector<1x32x96xbf16> to vector<32x96xbf16>
    %c0_559 = arith.constant 0 : index
    %c0_560 = arith.constant 0 : index
    %c0_561 = arith.constant 0 : index
    %1345 = vector.load %arg20[%c0_559, %c0_560, %c0_561] : memref<2x1x96xf32, #tpu.memory_space<vmem>>, vector<1x1x96xf32>
    %1346 = vector.shape_cast %1345 : vector<1x1x96xf32> to vector<1x96xf32>
    %c0_562 = arith.constant 0 : index
    %c0_563 = arith.constant 0 : index
    %c0_564 = arith.constant 0 : index
    %1347 = vector.load %arg21[%c0_562, %c0_563, %c0_564] : memref<2x32x32xbf16, #tpu.memory_space<vmem>>, vector<1x32x32xbf16>
    %1348 = vector.shape_cast %1347 : vector<1x32x32xbf16> to vector<32x32xbf16>
    %c0_565 = arith.constant 0 : index
    %c0_566 = arith.constant 0 : index
    %c0_567 = arith.constant 0 : index
    %1349 = vector.load %arg22[%c0_565, %c0_566, %c0_567] : memref<2x1x32xf32, #tpu.memory_space<vmem>>, vector<1x1x32xf32>
    %1350 = vector.shape_cast %1349 : vector<1x1x32xf32> to vector<1x32xf32>
    %1351 = arith.truncf %1338 : vector<8x32xf32> to vector<8x32xbf16>
    %cst_568 = arith.constant dense<0.000000e+00> : vector<8x96xf32>
    %1352 = tpu.matmul %1351, %1344, %cst_568 {dimension_numbers = #tpu.dot_dimension_numbers<[1], [0], [0], [1], [0, 0, 1, 1], [], []>} : vector<8x32xbf16>, vector<32x96xbf16>, vector<8x96xf32> -> vector<8x96xf32>
    %1353 = vector.broadcast %1346 : vector<1x96xf32> to vector<8x96xf32>
    %1354 = arith.addf %1352, %1353 : vector<8x96xf32>
    %1355 = vector.extract_strided_slice %1354 {offsets = [0, 0], sizes = [8, 32], strides = [1, 1]} : vector<8x96xf32> to vector<8x32xf32>
    %1356 = vector.extract_strided_slice %1354 {offsets = [0, 32], sizes = [8, 32], strides = [1, 1]} : vector<8x96xf32> to vector<8x32xf32>
    %1357 = vector.extract_strided_slice %1354 {offsets = [0, 64], sizes = [8, 32], strides = [1, 1]} : vector<8x96xf32> to vector<8x32xf32>
    %1358 = arith.truncf %1355 : vector<8x32xf32> to vector<8x32xbf16>
    %1359 = arith.truncf %1356 : vector<8x32xf32> to vector<8x32xbf16>
    %1360 = arith.truncf %1357 : vector<8x32xf32> to vector<8x32xbf16>
    %1361 = vector.extract_strided_slice %1358 {offsets = [0, 0], sizes = [8, 8], strides = [1, 1]} : vector<8x32xbf16> to vector<8x8xbf16>
    %1362 = vector.extract_strided_slice %1359 {offsets = [0, 0], sizes = [8, 8], strides = [1, 1]} : vector<8x32xbf16> to vector<8x8xbf16>
    %cst_569 = arith.constant dense<0.000000e+00> : vector<8x8xf32>
    %1363 = tpu.matmul %1361, %1362, %cst_569 {dimension_numbers = #tpu.dot_dimension_numbers<[1], [1], [0], [0], [0, 0, 1, 0], [], []>} : vector<8x8xbf16>, vector<8x8xbf16>, vector<8x8xf32> -> vector<8x8xf32>
    %1364 = arith.addf %1363, %1342 : vector<8x8xf32>
    %cst_570 = arith.constant dense<0xFF800000> : vector<8xf32>
    %1365 = vector.multi_reduction <maximumf>, %1364, %cst_570 [1] : vector<8x8xf32> to vector<8xf32>
    %1366 = vector.shape_cast %1365 : vector<8xf32> to vector<8x1xf32>
    %1367 = vector.broadcast %1366 : vector<8x1xf32> to vector<8x8xf32>
    %1368 = arith.subf %1364, %1367 : vector<8x8xf32>
    %1369 = math.exp %1368 : vector<8x8xf32>
    %cst_571 = arith.constant dense<0.000000e+00> : vector<8xf32>
    %1370 = vector.multi_reduction <add>, %1369, %cst_571 [1] : vector<8x8xf32> to vector<8xf32>
    %1371 = vector.shape_cast %1370 : vector<8xf32> to vector<8x1xf32>
    %1372 = tpu.reciprocal %1371 {approx = true} : vector<8x1xf32> -> vector<8x1xf32>
    %1373 = vector.broadcast %1372 : vector<8x1xf32> to vector<8x8xf32>
    %1374 = arith.mulf %1369, %1373 : vector<8x8xf32>
    %1375 = arith.truncf %1374 : vector<8x8xf32> to vector<8x8xbf16>
    %1376 = vector.extract_strided_slice %1360 {offsets = [0, 0], sizes = [8, 8], strides = [1, 1]} : vector<8x32xbf16> to vector<8x8xbf16>
    %cst_572 = arith.constant dense<0.000000e+00> : vector<8x8xf32>
    %1377 = tpu.matmul %1375, %1376, %cst_572 {dimension_numbers = #tpu.dot_dimension_numbers<[1], [0], [0], [1], [0, 0, 1, 1], [], []>} : vector<8x8xbf16>, vector<8x8xbf16>, vector<8x8xf32> -> vector<8x8xf32>
    %1378 = vector.extract_strided_slice %1358 {offsets = [0, 8], sizes = [8, 8], strides = [1, 1]} : vector<8x32xbf16> to vector<8x8xbf16>
    %1379 = vector.extract_strided_slice %1359 {offsets = [0, 8], sizes = [8, 8], strides = [1, 1]} : vector<8x32xbf16> to vector<8x8xbf16>
    %cst_573 = arith.constant dense<0.000000e+00> : vector<8x8xf32>
    %1380 = tpu.matmul %1378, %1379, %cst_573 {dimension_numbers = #tpu.dot_dimension_numbers<[1], [1], [0], [0], [0, 0, 1, 0], [], []>} : vector<8x8xbf16>, vector<8x8xbf16>, vector<8x8xf32> -> vector<8x8xf32>
    %1381 = arith.addf %1380, %1342 : vector<8x8xf32>
    %cst_574 = arith.constant dense<0xFF800000> : vector<8xf32>
    %1382 = vector.multi_reduction <maximumf>, %1381, %cst_574 [1] : vector<8x8xf32> to vector<8xf32>
    %1383 = vector.shape_cast %1382 : vector<8xf32> to vector<8x1xf32>
    %1384 = vector.broadcast %1383 : vector<8x1xf32> to vector<8x8xf32>
    %1385 = arith.subf %1381, %1384 : vector<8x8xf32>
    %1386 = math.exp %1385 : vector<8x8xf32>
    %cst_575 = arith.constant dense<0.000000e+00> : vector<8xf32>
    %1387 = vector.multi_reduction <add>, %1386, %cst_575 [1] : vector<8x8xf32> to vector<8xf32>
    %1388 = vector.shape_cast %1387 : vector<8xf32> to vector<8x1xf32>
    %1389 = tpu.reciprocal %1388 {approx = true} : vector<8x1xf32> -> vector<8x1xf32>
    %1390 = vector.broadcast %1389 : vector<8x1xf32> to vector<8x8xf32>
    %1391 = arith.mulf %1386, %1390 : vector<8x8xf32>
    %1392 = arith.truncf %1391 : vector<8x8xf32> to vector<8x8xbf16>
    %1393 = vector.extract_strided_slice %1360 {offsets = [0, 8], sizes = [8, 8], strides = [1, 1]} : vector<8x32xbf16> to vector<8x8xbf16>
    %cst_576 = arith.constant dense<0.000000e+00> : vector<8x8xf32>
    %1394 = tpu.matmul %1392, %1393, %cst_576 {dimension_numbers = #tpu.dot_dimension_numbers<[1], [0], [0], [1], [0, 0, 1, 1], [], []>} : vector<8x8xbf16>, vector<8x8xbf16>, vector<8x8xf32> -> vector<8x8xf32>
    %1395 = vector.extract_strided_slice %1358 {offsets = [0, 16], sizes = [8, 8], strides = [1, 1]} : vector<8x32xbf16> to vector<8x8xbf16>
    %1396 = vector.extract_strided_slice %1359 {offsets = [0, 16], sizes = [8, 8], strides = [1, 1]} : vector<8x32xbf16> to vector<8x8xbf16>
    %cst_577 = arith.constant dense<0.000000e+00> : vector<8x8xf32>
    %1397 = tpu.matmul %1395, %1396, %cst_577 {dimension_numbers = #tpu.dot_dimension_numbers<[1], [1], [0], [0], [0, 0, 1, 0], [], []>} : vector<8x8xbf16>, vector<8x8xbf16>, vector<8x8xf32> -> vector<8x8xf32>
    %1398 = arith.addf %1397, %1342 : vector<8x8xf32>
    %cst_578 = arith.constant dense<0xFF800000> : vector<8xf32>
    %1399 = vector.multi_reduction <maximumf>, %1398, %cst_578 [1] : vector<8x8xf32> to vector<8xf32>
    %1400 = vector.shape_cast %1399 : vector<8xf32> to vector<8x1xf32>
    %1401 = vector.broadcast %1400 : vector<8x1xf32> to vector<8x8xf32>
    %1402 = arith.subf %1398, %1401 : vector<8x8xf32>
    %1403 = math.exp %1402 : vector<8x8xf32>
    %cst_579 = arith.constant dense<0.000000e+00> : vector<8xf32>
    %1404 = vector.multi_reduction <add>, %1403, %cst_579 [1] : vector<8x8xf32> to vector<8xf32>
    %1405 = vector.shape_cast %1404 : vector<8xf32> to vector<8x1xf32>
    %1406 = tpu.reciprocal %1405 {approx = true} : vector<8x1xf32> -> vector<8x1xf32>
    %1407 = vector.broadcast %1406 : vector<8x1xf32> to vector<8x8xf32>
    %1408 = arith.mulf %1403, %1407 : vector<8x8xf32>
    %1409 = arith.truncf %1408 : vector<8x8xf32> to vector<8x8xbf16>
    %1410 = vector.extract_strided_slice %1360 {offsets = [0, 16], sizes = [8, 8], strides = [1, 1]} : vector<8x32xbf16> to vector<8x8xbf16>
    %cst_580 = arith.constant dense<0.000000e+00> : vector<8x8xf32>
    %1411 = tpu.matmul %1409, %1410, %cst_580 {dimension_numbers = #tpu.dot_dimension_numbers<[1], [0], [0], [1], [0, 0, 1, 1], [], []>} : vector<8x8xbf16>, vector<8x8xbf16>, vector<8x8xf32> -> vector<8x8xf32>
    %1412 = vector.extract_strided_slice %1358 {offsets = [0, 24], sizes = [8, 8], strides = [1, 1]} : vector<8x32xbf16> to vector<8x8xbf16>
    %1413 = vector.extract_strided_slice %1359 {offsets = [0, 24], sizes = [8, 8], strides = [1, 1]} : vector<8x32xbf16> to vector<8x8xbf16>
    %cst_581 = arith.constant dense<0.000000e+00> : vector<8x8xf32>
    %1414 = tpu.matmul %1412, %1413, %cst_581 {dimension_numbers = #tpu.dot_dimension_numbers<[1], [1], [0], [0], [0, 0, 1, 0], [], []>} : vector<8x8xbf16>, vector<8x8xbf16>, vector<8x8xf32> -> vector<8x8xf32>
    %1415 = arith.addf %1414, %1342 : vector<8x8xf32>
    %cst_582 = arith.constant dense<0xFF800000> : vector<8xf32>
    %1416 = vector.multi_reduction <maximumf>, %1415, %cst_582 [1] : vector<8x8xf32> to vector<8xf32>
    %1417 = vector.shape_cast %1416 : vector<8xf32> to vector<8x1xf32>
    %1418 = vector.broadcast %1417 : vector<8x1xf32> to vector<8x8xf32>
    %1419 = arith.subf %1415, %1418 : vector<8x8xf32>
    %1420 = math.exp %1419 : vector<8x8xf32>
    %cst_583 = arith.constant dense<0.000000e+00> : vector<8xf32>
    %1421 = vector.multi_reduction <add>, %1420, %cst_583 [1] : vector<8x8xf32> to vector<8xf32>
    %1422 = vector.shape_cast %1421 : vector<8xf32> to vector<8x1xf32>
    %1423 = tpu.reciprocal %1422 {approx = true} : vector<8x1xf32> -> vector<8x1xf32>
    %1424 = vector.broadcast %1423 : vector<8x1xf32> to vector<8x8xf32>
    %1425 = arith.mulf %1420, %1424 : vector<8x8xf32>
    %1426 = arith.truncf %1425 : vector<8x8xf32> to vector<8x8xbf16>
    %1427 = vector.extract_strided_slice %1360 {offsets = [0, 24], sizes = [8, 8], strides = [1, 1]} : vector<8x32xbf16> to vector<8x8xbf16>
    %cst_584 = arith.constant dense<0.000000e+00> : vector<8x8xf32>
    %1428 = tpu.matmul %1426, %1427, %cst_584 {dimension_numbers = #tpu.dot_dimension_numbers<[1], [0], [0], [1], [0, 0, 1, 1], [], []>} : vector<8x8xbf16>, vector<8x8xbf16>, vector<8x8xf32> -> vector<8x8xf32>
    %1429 = tpu.concatenate %1377, %1394, %1411, %1428 in 1 : vector<8x8xf32>, vector<8x8xf32>, vector<8x8xf32>, vector<8x8xf32> -> vector<8x32xf32>
    %1430 = arith.truncf %1429 : vector<8x32xf32> to vector<8x32xbf16>
    %cst_585 = arith.constant dense<0.000000e+00> : vector<8x32xf32>
    %1431 = tpu.matmul %1430, %1348, %cst_585 {dimension_numbers = #tpu.dot_dimension_numbers<[1], [0], [0], [1], [0, 0, 1, 1], [], []>} : vector<8x32xbf16>, vector<32x32xbf16>, vector<8x32xf32> -> vector<8x32xf32>
    %1432 = vector.broadcast %1350 : vector<1x32xf32> to vector<8x32xf32>
    %1433 = arith.addf %1431, %1432 : vector<8x32xf32>
    %1434 = arith.addf %1338, %1433 : vector<8x32xf32>
    %c0_586 = arith.constant 0 : index
    %c0_587 = arith.constant 0 : index
    %c0_588 = arith.constant 0 : index
    %1435 = vector.load %arg23[%c0_586, %c0_587, %c0_588] : memref<2x1x32xf32, #tpu.memory_space<vmem>>, vector<1x1x32xf32>
    %1436 = vector.shape_cast %1435 : vector<1x1x32xf32> to vector<1x32xf32>
    %c0_589 = arith.constant 0 : index
    %c0_590 = arith.constant 0 : index
    %c0_591 = arith.constant 0 : index
    %1437 = vector.load %arg24[%c0_589, %c0_590, %c0_591] : memref<2x1x32xf32, #tpu.memory_space<vmem>>, vector<1x1x32xf32>
    %1438 = vector.shape_cast %1437 : vector<1x1x32xf32> to vector<1x32xf32>
    %cst_592 = arith.constant dense<0.000000e+00> : vector<8xf32>
    %1439 = vector.multi_reduction <add>, %1434, %cst_592 [1] : vector<8x32xf32> to vector<8xf32>
    %1440 = vector.shape_cast %1439 : vector<8xf32> to vector<8x1xf32>
    %cst_593 = arith.constant 3.200000e+01 : f32
    %1441 = vector.broadcast %cst_593 : f32 to vector<8x1xf32>
    %1442 = arith.divf %1440, %1441 : vector<8x1xf32>
    %1443 = vector.broadcast %1442 : vector<8x1xf32> to vector<8x32xf32>
    %1444 = arith.subf %1434, %1443 : vector<8x32xf32>
    %1445 = arith.mulf %1444, %1444 : vector<8x32xf32>
    %cst_594 = arith.constant dense<0.000000e+00> : vector<8xf32>
    %1446 = vector.multi_reduction <add>, %1445, %cst_594 [1] : vector<8x32xf32> to vector<8xf32>
    %1447 = vector.shape_cast %1446 : vector<8xf32> to vector<8x1xf32>
    %cst_595 = arith.constant 3.200000e+01 : f32
    %1448 = vector.broadcast %cst_595 : f32 to vector<8x1xf32>
    %1449 = arith.divf %1447, %1448 : vector<8x1xf32>
    %1450 = vector.broadcast %1442 : vector<8x1xf32> to vector<8x32xf32>
    %1451 = arith.subf %1434, %1450 : vector<8x32xf32>
    %cst_596 = arith.constant 9.99999974E-6 : f32
    %1452 = vector.broadcast %cst_596 : f32 to vector<8x1xf32>
    %1453 = arith.addf %1449, %1452 : vector<8x1xf32>
    %1454 = math.rsqrt %1453 : vector<8x1xf32>
    %1455 = vector.broadcast %1454 : vector<8x1xf32> to vector<8x32xf32>
    %1456 = arith.mulf %1451, %1455 : vector<8x32xf32>
    %1457 = vector.broadcast %1436 : vector<1x32xf32> to vector<8x32xf32>
    %1458 = arith.mulf %1456, %1457 : vector<8x32xf32>
    %1459 = vector.broadcast %1438 : vector<1x32xf32> to vector<8x32xf32>
    %1460 = arith.addf %1458, %1459 : vector<8x32xf32>
    %c0_597 = arith.constant 0 : index
    %c0_598 = arith.constant 0 : index
    %c0_599 = arith.constant 0 : index
    %1461 = vector.load %arg25[%c0_597, %c0_598, %c0_599] : memref<2x32x32xbf16, #tpu.memory_space<vmem>>, vector<1x32x32xbf16>
    %1462 = vector.shape_cast %1461 : vector<1x32x32xbf16> to vector<32x32xbf16>
    %c0_600 = arith.constant 0 : index
    %c0_601 = arith.constant 0 : index
    %c0_602 = arith.constant 0 : index
    %1463 = vector.load %arg26[%c0_600, %c0_601, %c0_602] : memref<2x1x32xf32, #tpu.memory_space<vmem>>, vector<1x1x32xf32>
    %1464 = vector.shape_cast %1463 : vector<1x1x32xf32> to vector<1x32xf32>
    %c0_603 = arith.constant 0 : index
    %c0_604 = arith.constant 0 : index
    %c0_605 = arith.constant 0 : index
    %1465 = vector.load %arg27[%c0_603, %c0_604, %c0_605] : memref<2x32x64xbf16, #tpu.memory_space<vmem>>, vector<1x32x64xbf16>
    %1466 = vector.shape_cast %1465 : vector<1x32x64xbf16> to vector<32x64xbf16>
    %c0_606 = arith.constant 0 : index
    %c0_607 = arith.constant 0 : index
    %c0_608 = arith.constant 0 : index
    %1467 = vector.load %arg28[%c0_606, %c0_607, %c0_608] : memref<2x1x64xf32, #tpu.memory_space<vmem>>, vector<1x1x64xf32>
    %1468 = vector.shape_cast %1467 : vector<1x1x64xf32> to vector<1x64xf32>
    %c0_609 = arith.constant 0 : index
    %c0_610 = arith.constant 0 : index
    %c0_611 = arith.constant 0 : index
    %1469 = vector.load %arg29[%c0_609, %c0_610, %c0_611] : memref<2x32x32xbf16, #tpu.memory_space<vmem>>, vector<1x32x32xbf16>
    %1470 = vector.shape_cast %1469 : vector<1x32x32xbf16> to vector<32x32xbf16>
    %c0_612 = arith.constant 0 : index
    %c0_613 = arith.constant 0 : index
    %c0_614 = arith.constant 0 : index
    %1471 = vector.load %arg30[%c0_612, %c0_613, %c0_614] : memref<2x1x32xf32, #tpu.memory_space<vmem>>, vector<1x1x32xf32>
    %1472 = vector.shape_cast %1471 : vector<1x1x32xf32> to vector<1x32xf32>
    %1473 = arith.truncf %1460 : vector<8x32xf32> to vector<8x32xbf16>
    %cst_615 = arith.constant dense<0.000000e+00> : vector<8x32xf32>
    %1474 = tpu.matmul %1473, %1462, %cst_615 {dimension_numbers = #tpu.dot_dimension_numbers<[1], [0], [0], [1], [0, 0, 1, 1], [], []>} : vector<8x32xbf16>, vector<32x32xbf16>, vector<8x32xf32> -> vector<8x32xf32>
    %1475 = vector.broadcast %1464 : vector<1x32xf32> to vector<8x32xf32>
    %1476 = arith.addf %1474, %1475 : vector<8x32xf32>
    %1477 = arith.truncf %1336 : vector<12x32xf32> to vector<12x32xbf16>
    %cst_616 = arith.constant dense<0.000000e+00> : vector<12x64xf32>
    %1478 = tpu.matmul %1477, %1466, %cst_616 {dimension_numbers = #tpu.dot_dimension_numbers<[1], [0], [0], [1], [0, 0, 1, 1], [], []>} : vector<12x32xbf16>, vector<32x64xbf16>, vector<12x64xf32> -> vector<12x64xf32>
    %1479 = vector.broadcast %1468 : vector<1x64xf32> to vector<12x64xf32>
    %1480 = arith.addf %1478, %1479 : vector<12x64xf32>
    %1481 = vector.extract_strided_slice %1480 {offsets = [0, 0], sizes = [12, 32], strides = [1, 1]} : vector<12x64xf32> to vector<12x32xf32>
    %1482 = vector.extract_strided_slice %1480 {offsets = [0, 32], sizes = [12, 32], strides = [1, 1]} : vector<12x64xf32> to vector<12x32xf32>
    %1483 = arith.truncf %1476 : vector<8x32xf32> to vector<8x32xbf16>
    %1484 = arith.truncf %1481 : vector<12x32xf32> to vector<12x32xbf16>
    %1485 = arith.truncf %1482 : vector<12x32xf32> to vector<12x32xbf16>
    %1486 = vector.extract_strided_slice %1483 {offsets = [0, 0], sizes = [8, 8], strides = [1, 1]} : vector<8x32xbf16> to vector<8x8xbf16>
    %1487 = vector.extract_strided_slice %1484 {offsets = [0, 0], sizes = [12, 8], strides = [1, 1]} : vector<12x32xbf16> to vector<12x8xbf16>
    %cst_617 = arith.constant dense<0.000000e+00> : vector<8x12xf32>
    %1488 = tpu.matmul %1486, %1487, %cst_617 {dimension_numbers = #tpu.dot_dimension_numbers<[1], [1], [0], [0], [0, 0, 1, 0], [], []>} : vector<8x8xbf16>, vector<12x8xbf16>, vector<8x12xf32> -> vector<8x12xf32>
    %cst_618 = arith.constant dense<0xFF800000> : vector<8xf32>
    %1489 = vector.multi_reduction <maximumf>, %1488, %cst_618 [1] : vector<8x12xf32> to vector<8xf32>
    %1490 = vector.shape_cast %1489 : vector<8xf32> to vector<8x1xf32>
    %1491 = vector.broadcast %1490 : vector<8x1xf32> to vector<8x12xf32>
    %1492 = arith.subf %1488, %1491 : vector<8x12xf32>
    %1493 = math.exp %1492 : vector<8x12xf32>
    %cst_619 = arith.constant dense<0.000000e+00> : vector<8xf32>
    %1494 = vector.multi_reduction <add>, %1493, %cst_619 [1] : vector<8x12xf32> to vector<8xf32>
    %1495 = vector.shape_cast %1494 : vector<8xf32> to vector<8x1xf32>
    %1496 = tpu.reciprocal %1495 {approx = true} : vector<8x1xf32> -> vector<8x1xf32>
    %1497 = vector.broadcast %1496 : vector<8x1xf32> to vector<8x12xf32>
    %1498 = arith.mulf %1493, %1497 : vector<8x12xf32>
    %1499 = arith.truncf %1498 : vector<8x12xf32> to vector<8x12xbf16>
    %1500 = vector.extract_strided_slice %1485 {offsets = [0, 0], sizes = [12, 8], strides = [1, 1]} : vector<12x32xbf16> to vector<12x8xbf16>
    %cst_620 = arith.constant dense<0.000000e+00> : vector<8x8xf32>
    %1501 = tpu.matmul %1499, %1500, %cst_620 {dimension_numbers = #tpu.dot_dimension_numbers<[1], [0], [0], [1], [0, 0, 1, 1], [], []>} : vector<8x12xbf16>, vector<12x8xbf16>, vector<8x8xf32> -> vector<8x8xf32>
    %1502 = vector.extract_strided_slice %1483 {offsets = [0, 8], sizes = [8, 8], strides = [1, 1]} : vector<8x32xbf16> to vector<8x8xbf16>
    %1503 = vector.extract_strided_slice %1484 {offsets = [0, 8], sizes = [12, 8], strides = [1, 1]} : vector<12x32xbf16> to vector<12x8xbf16>
    %cst_621 = arith.constant dense<0.000000e+00> : vector<8x12xf32>
    %1504 = tpu.matmul %1502, %1503, %cst_621 {dimension_numbers = #tpu.dot_dimension_numbers<[1], [1], [0], [0], [0, 0, 1, 0], [], []>} : vector<8x8xbf16>, vector<12x8xbf16>, vector<8x12xf32> -> vector<8x12xf32>
    %cst_622 = arith.constant dense<0xFF800000> : vector<8xf32>
    %1505 = vector.multi_reduction <maximumf>, %1504, %cst_622 [1] : vector<8x12xf32> to vector<8xf32>
    %1506 = vector.shape_cast %1505 : vector<8xf32> to vector<8x1xf32>
    %1507 = vector.broadcast %1506 : vector<8x1xf32> to vector<8x12xf32>
    %1508 = arith.subf %1504, %1507 : vector<8x12xf32>
    %1509 = math.exp %1508 : vector<8x12xf32>
    %cst_623 = arith.constant dense<0.000000e+00> : vector<8xf32>
    %1510 = vector.multi_reduction <add>, %1509, %cst_623 [1] : vector<8x12xf32> to vector<8xf32>
    %1511 = vector.shape_cast %1510 : vector<8xf32> to vector<8x1xf32>
    %1512 = tpu.reciprocal %1511 {approx = true} : vector<8x1xf32> -> vector<8x1xf32>
    %1513 = vector.broadcast %1512 : vector<8x1xf32> to vector<8x12xf32>
    %1514 = arith.mulf %1509, %1513 : vector<8x12xf32>
    %1515 = arith.truncf %1514 : vector<8x12xf32> to vector<8x12xbf16>
    %1516 = vector.extract_strided_slice %1485 {offsets = [0, 8], sizes = [12, 8], strides = [1, 1]} : vector<12x32xbf16> to vector<12x8xbf16>
    %cst_624 = arith.constant dense<0.000000e+00> : vector<8x8xf32>
    %1517 = tpu.matmul %1515, %1516, %cst_624 {dimension_numbers = #tpu.dot_dimension_numbers<[1], [0], [0], [1], [0, 0, 1, 1], [], []>} : vector<8x12xbf16>, vector<12x8xbf16>, vector<8x8xf32> -> vector<8x8xf32>
    %1518 = vector.extract_strided_slice %1483 {offsets = [0, 16], sizes = [8, 8], strides = [1, 1]} : vector<8x32xbf16> to vector<8x8xbf16>
    %1519 = vector.extract_strided_slice %1484 {offsets = [0, 16], sizes = [12, 8], strides = [1, 1]} : vector<12x32xbf16> to vector<12x8xbf16>
    %cst_625 = arith.constant dense<0.000000e+00> : vector<8x12xf32>
    %1520 = tpu.matmul %1518, %1519, %cst_625 {dimension_numbers = #tpu.dot_dimension_numbers<[1], [1], [0], [0], [0, 0, 1, 0], [], []>} : vector<8x8xbf16>, vector<12x8xbf16>, vector<8x12xf32> -> vector<8x12xf32>
    %cst_626 = arith.constant dense<0xFF800000> : vector<8xf32>
    %1521 = vector.multi_reduction <maximumf>, %1520, %cst_626 [1] : vector<8x12xf32> to vector<8xf32>
    %1522 = vector.shape_cast %1521 : vector<8xf32> to vector<8x1xf32>
    %1523 = vector.broadcast %1522 : vector<8x1xf32> to vector<8x12xf32>
    %1524 = arith.subf %1520, %1523 : vector<8x12xf32>
    %1525 = math.exp %1524 : vector<8x12xf32>
    %cst_627 = arith.constant dense<0.000000e+00> : vector<8xf32>
    %1526 = vector.multi_reduction <add>, %1525, %cst_627 [1] : vector<8x12xf32> to vector<8xf32>
    %1527 = vector.shape_cast %1526 : vector<8xf32> to vector<8x1xf32>
    %1528 = tpu.reciprocal %1527 {approx = true} : vector<8x1xf32> -> vector<8x1xf32>
    %1529 = vector.broadcast %1528 : vector<8x1xf32> to vector<8x12xf32>
    %1530 = arith.mulf %1525, %1529 : vector<8x12xf32>
    %1531 = arith.truncf %1530 : vector<8x12xf32> to vector<8x12xbf16>
    %1532 = vector.extract_strided_slice %1485 {offsets = [0, 16], sizes = [12, 8], strides = [1, 1]} : vector<12x32xbf16> to vector<12x8xbf16>
    %cst_628 = arith.constant dense<0.000000e+00> : vector<8x8xf32>
    %1533 = tpu.matmul %1531, %1532, %cst_628 {dimension_numbers = #tpu.dot_dimension_numbers<[1], [0], [0], [1], [0, 0, 1, 1], [], []>} : vector<8x12xbf16>, vector<12x8xbf16>, vector<8x8xf32> -> vector<8x8xf32>
    %1534 = vector.extract_strided_slice %1483 {offsets = [0, 24], sizes = [8, 8], strides = [1, 1]} : vector<8x32xbf16> to vector<8x8xbf16>
    %1535 = vector.extract_strided_slice %1484 {offsets = [0, 24], sizes = [12, 8], strides = [1, 1]} : vector<12x32xbf16> to vector<12x8xbf16>
    %cst_629 = arith.constant dense<0.000000e+00> : vector<8x12xf32>
    %1536 = tpu.matmul %1534, %1535, %cst_629 {dimension_numbers = #tpu.dot_dimension_numbers<[1], [1], [0], [0], [0, 0, 1, 0], [], []>} : vector<8x8xbf16>, vector<12x8xbf16>, vector<8x12xf32> -> vector<8x12xf32>
    %cst_630 = arith.constant dense<0xFF800000> : vector<8xf32>
    %1537 = vector.multi_reduction <maximumf>, %1536, %cst_630 [1] : vector<8x12xf32> to vector<8xf32>
    %1538 = vector.shape_cast %1537 : vector<8xf32> to vector<8x1xf32>
    %1539 = vector.broadcast %1538 : vector<8x1xf32> to vector<8x12xf32>
    %1540 = arith.subf %1536, %1539 : vector<8x12xf32>
    %1541 = math.exp %1540 : vector<8x12xf32>
    %cst_631 = arith.constant dense<0.000000e+00> : vector<8xf32>
    %1542 = vector.multi_reduction <add>, %1541, %cst_631 [1] : vector<8x12xf32> to vector<8xf32>
    %1543 = vector.shape_cast %1542 : vector<8xf32> to vector<8x1xf32>
    %1544 = tpu.reciprocal %1543 {approx = true} : vector<8x1xf32> -> vector<8x1xf32>
    %1545 = vector.broadcast %1544 : vector<8x1xf32> to vector<8x12xf32>
    %1546 = arith.mulf %1541, %1545 : vector<8x12xf32>
    %1547 = arith.truncf %1546 : vector<8x12xf32> to vector<8x12xbf16>
    %1548 = vector.extract_strided_slice %1485 {offsets = [0, 24], sizes = [12, 8], strides = [1, 1]} : vector<12x32xbf16> to vector<12x8xbf16>
    %cst_632 = arith.constant dense<0.000000e+00> : vector<8x8xf32>
    %1549 = tpu.matmul %1547, %1548, %cst_632 {dimension_numbers = #tpu.dot_dimension_numbers<[1], [0], [0], [1], [0, 0, 1, 1], [], []>} : vector<8x12xbf16>, vector<12x8xbf16>, vector<8x8xf32> -> vector<8x8xf32>
    %1550 = tpu.concatenate %1501, %1517, %1533, %1549 in 1 : vector<8x8xf32>, vector<8x8xf32>, vector<8x8xf32>, vector<8x8xf32> -> vector<8x32xf32>
    %1551 = arith.truncf %1550 : vector<8x32xf32> to vector<8x32xbf16>
    %cst_633 = arith.constant dense<0.000000e+00> : vector<8x32xf32>
    %1552 = tpu.matmul %1551, %1470, %cst_633 {dimension_numbers = #tpu.dot_dimension_numbers<[1], [0], [0], [1], [0, 0, 1, 1], [], []>} : vector<8x32xbf16>, vector<32x32xbf16>, vector<8x32xf32> -> vector<8x32xf32>
    %1553 = vector.broadcast %1472 : vector<1x32xf32> to vector<8x32xf32>
    %1554 = arith.addf %1552, %1553 : vector<8x32xf32>
    %1555 = arith.addf %1460, %1554 : vector<8x32xf32>
    %c0_634 = arith.constant 0 : index
    %c0_635 = arith.constant 0 : index
    %c0_636 = arith.constant 0 : index
    %1556 = vector.load %arg31[%c0_634, %c0_635, %c0_636] : memref<2x1x32xf32, #tpu.memory_space<vmem>>, vector<1x1x32xf32>
    %1557 = vector.shape_cast %1556 : vector<1x1x32xf32> to vector<1x32xf32>
    %c0_637 = arith.constant 0 : index
    %c0_638 = arith.constant 0 : index
    %c0_639 = arith.constant 0 : index
    %1558 = vector.load %arg32[%c0_637, %c0_638, %c0_639] : memref<2x1x32xf32, #tpu.memory_space<vmem>>, vector<1x1x32xf32>
    %1559 = vector.shape_cast %1558 : vector<1x1x32xf32> to vector<1x32xf32>
    %cst_640 = arith.constant dense<0.000000e+00> : vector<8xf32>
    %1560 = vector.multi_reduction <add>, %1555, %cst_640 [1] : vector<8x32xf32> to vector<8xf32>
    %1561 = vector.shape_cast %1560 : vector<8xf32> to vector<8x1xf32>
    %cst_641 = arith.constant 3.200000e+01 : f32
    %1562 = vector.broadcast %cst_641 : f32 to vector<8x1xf32>
    %1563 = arith.divf %1561, %1562 : vector<8x1xf32>
    %1564 = vector.broadcast %1563 : vector<8x1xf32> to vector<8x32xf32>
    %1565 = arith.subf %1555, %1564 : vector<8x32xf32>
    %1566 = arith.mulf %1565, %1565 : vector<8x32xf32>
    %cst_642 = arith.constant dense<0.000000e+00> : vector<8xf32>
    %1567 = vector.multi_reduction <add>, %1566, %cst_642 [1] : vector<8x32xf32> to vector<8xf32>
    %1568 = vector.shape_cast %1567 : vector<8xf32> to vector<8x1xf32>
    %cst_643 = arith.constant 3.200000e+01 : f32
    %1569 = vector.broadcast %cst_643 : f32 to vector<8x1xf32>
    %1570 = arith.divf %1568, %1569 : vector<8x1xf32>
    %1571 = vector.broadcast %1563 : vector<8x1xf32> to vector<8x32xf32>
    %1572 = arith.subf %1555, %1571 : vector<8x32xf32>
    %cst_644 = arith.constant 9.99999974E-6 : f32
    %1573 = vector.broadcast %cst_644 : f32 to vector<8x1xf32>
    %1574 = arith.addf %1570, %1573 : vector<8x1xf32>
    %1575 = math.rsqrt %1574 : vector<8x1xf32>
    %1576 = vector.broadcast %1575 : vector<8x1xf32> to vector<8x32xf32>
    %1577 = arith.mulf %1572, %1576 : vector<8x32xf32>
    %1578 = vector.broadcast %1557 : vector<1x32xf32> to vector<8x32xf32>
    %1579 = arith.mulf %1577, %1578 : vector<8x32xf32>
    %1580 = vector.broadcast %1559 : vector<1x32xf32> to vector<8x32xf32>
    %1581 = arith.addf %1579, %1580 : vector<8x32xf32>
    %c0_645 = arith.constant 0 : index
    %c0_646 = arith.constant 0 : index
    %c0_647 = arith.constant 0 : index
    %1582 = vector.load %arg33[%c0_645, %c0_646, %c0_647] : memref<2x32x128xbf16, #tpu.memory_space<vmem>>, vector<1x32x128xbf16>
    %1583 = vector.shape_cast %1582 : vector<1x32x128xbf16> to vector<32x128xbf16>
    %c0_648 = arith.constant 0 : index
    %c0_649 = arith.constant 0 : index
    %c0_650 = arith.constant 0 : index
    %1584 = vector.load %arg34[%c0_648, %c0_649, %c0_650] : memref<2x1x128xf32, #tpu.memory_space<vmem>>, vector<1x1x128xf32>
    %1585 = vector.shape_cast %1584 : vector<1x1x128xf32> to vector<1x128xf32>
    %c0_651 = arith.constant 0 : index
    %c0_652 = arith.constant 0 : index
    %c0_653 = arith.constant 0 : index
    %1586 = vector.load %arg35[%c0_651, %c0_652, %c0_653] : memref<2x128x32xbf16, #tpu.memory_space<vmem>>, vector<1x128x32xbf16>
    %1587 = vector.shape_cast %1586 : vector<1x128x32xbf16> to vector<128x32xbf16>
    %c0_654 = arith.constant 0 : index
    %c0_655 = arith.constant 0 : index
    %c0_656 = arith.constant 0 : index
    %1588 = vector.load %arg36[%c0_654, %c0_655, %c0_656] : memref<2x1x32xf32, #tpu.memory_space<vmem>>, vector<1x1x32xf32>
    %1589 = vector.shape_cast %1588 : vector<1x1x32xf32> to vector<1x32xf32>
    %1590 = arith.truncf %1581 : vector<8x32xf32> to vector<8x32xbf16>
    %cst_657 = arith.constant dense<0.000000e+00> : vector<8x128xf32>
    %1591 = tpu.matmul %1590, %1583, %cst_657 {dimension_numbers = #tpu.dot_dimension_numbers<[1], [0], [0], [1], [0, 0, 1, 1], [], []>} : vector<8x32xbf16>, vector<32x128xbf16>, vector<8x128xf32> -> vector<8x128xf32>
    %1592 = vector.broadcast %1585 : vector<1x128xf32> to vector<8x128xf32>
    %1593 = arith.addf %1591, %1592 : vector<8x128xf32>
    %cst_658 = arith.constant 0.000000e+00 : f32
    %1594 = vector.broadcast %cst_658 : f32 to vector<8x128xf32>
    %1595 = arith.maximumf %1593, %1594 : vector<8x128xf32>
    %1596 = arith.truncf %1595 : vector<8x128xf32> to vector<8x128xbf16>
    %cst_659 = arith.constant dense<0.000000e+00> : vector<8x32xf32>
    %1597 = tpu.matmul %1596, %1587, %cst_659 {dimension_numbers = #tpu.dot_dimension_numbers<[1], [0], [0], [1], [0, 0, 1, 1], [], []>} : vector<8x128xbf16>, vector<128x32xbf16>, vector<8x32xf32> -> vector<8x32xf32>
    %1598 = vector.broadcast %1589 : vector<1x32xf32> to vector<8x32xf32>
    %1599 = arith.addf %1597, %1598 : vector<8x32xf32>
    %1600 = arith.addf %1581, %1599 : vector<8x32xf32>
    %c0_660 = arith.constant 0 : index
    %c0_661 = arith.constant 0 : index
    %c0_662 = arith.constant 0 : index
    %1601 = vector.load %arg37[%c0_660, %c0_661, %c0_662] : memref<2x1x32xf32, #tpu.memory_space<vmem>>, vector<1x1x32xf32>
    %1602 = vector.shape_cast %1601 : vector<1x1x32xf32> to vector<1x32xf32>
    %c0_663 = arith.constant 0 : index
    %c0_664 = arith.constant 0 : index
    %c0_665 = arith.constant 0 : index
    %1603 = vector.load %arg38[%c0_663, %c0_664, %c0_665] : memref<2x1x32xf32, #tpu.memory_space<vmem>>, vector<1x1x32xf32>
    %1604 = vector.shape_cast %1603 : vector<1x1x32xf32> to vector<1x32xf32>
    %cst_666 = arith.constant dense<0.000000e+00> : vector<8xf32>
    %1605 = vector.multi_reduction <add>, %1600, %cst_666 [1] : vector<8x32xf32> to vector<8xf32>
    %1606 = vector.shape_cast %1605 : vector<8xf32> to vector<8x1xf32>
    %cst_667 = arith.constant 3.200000e+01 : f32
    %1607 = vector.broadcast %cst_667 : f32 to vector<8x1xf32>
    %1608 = arith.divf %1606, %1607 : vector<8x1xf32>
    %1609 = vector.broadcast %1608 : vector<8x1xf32> to vector<8x32xf32>
    %1610 = arith.subf %1600, %1609 : vector<8x32xf32>
    %1611 = arith.mulf %1610, %1610 : vector<8x32xf32>
    %cst_668 = arith.constant dense<0.000000e+00> : vector<8xf32>
    %1612 = vector.multi_reduction <add>, %1611, %cst_668 [1] : vector<8x32xf32> to vector<8xf32>
    %1613 = vector.shape_cast %1612 : vector<8xf32> to vector<8x1xf32>
    %cst_669 = arith.constant 3.200000e+01 : f32
    %1614 = vector.broadcast %cst_669 : f32 to vector<8x1xf32>
    %1615 = arith.divf %1613, %1614 : vector<8x1xf32>
    %1616 = vector.broadcast %1608 : vector<8x1xf32> to vector<8x32xf32>
    %1617 = arith.subf %1600, %1616 : vector<8x32xf32>
    %cst_670 = arith.constant 9.99999974E-6 : f32
    %1618 = vector.broadcast %cst_670 : f32 to vector<8x1xf32>
    %1619 = arith.addf %1615, %1618 : vector<8x1xf32>
    %1620 = math.rsqrt %1619 : vector<8x1xf32>
    %1621 = vector.broadcast %1620 : vector<8x1xf32> to vector<8x32xf32>
    %1622 = arith.mulf %1617, %1621 : vector<8x32xf32>
    %1623 = vector.broadcast %1602 : vector<1x32xf32> to vector<8x32xf32>
    %1624 = arith.mulf %1622, %1623 : vector<8x32xf32>
    %1625 = vector.broadcast %1604 : vector<1x32xf32> to vector<8x32xf32>
    %1626 = arith.addf %1624, %1625 : vector<8x32xf32>
    %c1_671 = arith.constant 1 : index
    %c0_672 = arith.constant 0 : index
    %c0_673 = arith.constant 0 : index
    %1627 = vector.load %arg19[%c1_671, %c0_672, %c0_673] : memref<2x32x96xbf16, #tpu.memory_space<vmem>>, vector<1x32x96xbf16>
    %1628 = vector.shape_cast %1627 : vector<1x32x96xbf16> to vector<32x96xbf16>
    %c1_674 = arith.constant 1 : index
    %c0_675 = arith.constant 0 : index
    %c0_676 = arith.constant 0 : index
    %1629 = vector.load %arg20[%c1_674, %c0_675, %c0_676] : memref<2x1x96xf32, #tpu.memory_space<vmem>>, vector<1x1x96xf32>
    %1630 = vector.shape_cast %1629 : vector<1x1x96xf32> to vector<1x96xf32>
    %c1_677 = arith.constant 1 : index
    %c0_678 = arith.constant 0 : index
    %c0_679 = arith.constant 0 : index
    %1631 = vector.load %arg21[%c1_677, %c0_678, %c0_679] : memref<2x32x32xbf16, #tpu.memory_space<vmem>>, vector<1x32x32xbf16>
    %1632 = vector.shape_cast %1631 : vector<1x32x32xbf16> to vector<32x32xbf16>
    %c1_680 = arith.constant 1 : index
    %c0_681 = arith.constant 0 : index
    %c0_682 = arith.constant 0 : index
    %1633 = vector.load %arg22[%c1_680, %c0_681, %c0_682] : memref<2x1x32xf32, #tpu.memory_space<vmem>>, vector<1x1x32xf32>
    %1634 = vector.shape_cast %1633 : vector<1x1x32xf32> to vector<1x32xf32>
    %1635 = arith.truncf %1626 : vector<8x32xf32> to vector<8x32xbf16>
    %cst_683 = arith.constant dense<0.000000e+00> : vector<8x96xf32>
    %1636 = tpu.matmul %1635, %1628, %cst_683 {dimension_numbers = #tpu.dot_dimension_numbers<[1], [0], [0], [1], [0, 0, 1, 1], [], []>} : vector<8x32xbf16>, vector<32x96xbf16>, vector<8x96xf32> -> vector<8x96xf32>
    %1637 = vector.broadcast %1630 : vector<1x96xf32> to vector<8x96xf32>
    %1638 = arith.addf %1636, %1637 : vector<8x96xf32>
    %1639 = vector.extract_strided_slice %1638 {offsets = [0, 0], sizes = [8, 32], strides = [1, 1]} : vector<8x96xf32> to vector<8x32xf32>
    %1640 = vector.extract_strided_slice %1638 {offsets = [0, 32], sizes = [8, 32], strides = [1, 1]} : vector<8x96xf32> to vector<8x32xf32>
    %1641 = vector.extract_strided_slice %1638 {offsets = [0, 64], sizes = [8, 32], strides = [1, 1]} : vector<8x96xf32> to vector<8x32xf32>
    %1642 = arith.truncf %1639 : vector<8x32xf32> to vector<8x32xbf16>
    %1643 = arith.truncf %1640 : vector<8x32xf32> to vector<8x32xbf16>
    %1644 = arith.truncf %1641 : vector<8x32xf32> to vector<8x32xbf16>
    %1645 = vector.extract_strided_slice %1642 {offsets = [0, 0], sizes = [8, 8], strides = [1, 1]} : vector<8x32xbf16> to vector<8x8xbf16>
    %1646 = vector.extract_strided_slice %1643 {offsets = [0, 0], sizes = [8, 8], strides = [1, 1]} : vector<8x32xbf16> to vector<8x8xbf16>
    %cst_684 = arith.constant dense<0.000000e+00> : vector<8x8xf32>
    %1647 = tpu.matmul %1645, %1646, %cst_684 {dimension_numbers = #tpu.dot_dimension_numbers<[1], [1], [0], [0], [0, 0, 1, 0], [], []>} : vector<8x8xbf16>, vector<8x8xbf16>, vector<8x8xf32> -> vector<8x8xf32>
    %1648 = arith.addf %1647, %1342 : vector<8x8xf32>
    %cst_685 = arith.constant dense<0xFF800000> : vector<8xf32>
    %1649 = vector.multi_reduction <maximumf>, %1648, %cst_685 [1] : vector<8x8xf32> to vector<8xf32>
    %1650 = vector.shape_cast %1649 : vector<8xf32> to vector<8x1xf32>
    %1651 = vector.broadcast %1650 : vector<8x1xf32> to vector<8x8xf32>
    %1652 = arith.subf %1648, %1651 : vector<8x8xf32>
    %1653 = math.exp %1652 : vector<8x8xf32>
    %cst_686 = arith.constant dense<0.000000e+00> : vector<8xf32>
    %1654 = vector.multi_reduction <add>, %1653, %cst_686 [1] : vector<8x8xf32> to vector<8xf32>
    %1655 = vector.shape_cast %1654 : vector<8xf32> to vector<8x1xf32>
    %1656 = tpu.reciprocal %1655 {approx = true} : vector<8x1xf32> -> vector<8x1xf32>
    %1657 = vector.broadcast %1656 : vector<8x1xf32> to vector<8x8xf32>
    %1658 = arith.mulf %1653, %1657 : vector<8x8xf32>
    %1659 = arith.truncf %1658 : vector<8x8xf32> to vector<8x8xbf16>
    %1660 = vector.extract_strided_slice %1644 {offsets = [0, 0], sizes = [8, 8], strides = [1, 1]} : vector<8x32xbf16> to vector<8x8xbf16>
    %cst_687 = arith.constant dense<0.000000e+00> : vector<8x8xf32>
    %1661 = tpu.matmul %1659, %1660, %cst_687 {dimension_numbers = #tpu.dot_dimension_numbers<[1], [0], [0], [1], [0, 0, 1, 1], [], []>} : vector<8x8xbf16>, vector<8x8xbf16>, vector<8x8xf32> -> vector<8x8xf32>
    %1662 = vector.extract_strided_slice %1642 {offsets = [0, 8], sizes = [8, 8], strides = [1, 1]} : vector<8x32xbf16> to vector<8x8xbf16>
    %1663 = vector.extract_strided_slice %1643 {offsets = [0, 8], sizes = [8, 8], strides = [1, 1]} : vector<8x32xbf16> to vector<8x8xbf16>
    %cst_688 = arith.constant dense<0.000000e+00> : vector<8x8xf32>
    %1664 = tpu.matmul %1662, %1663, %cst_688 {dimension_numbers = #tpu.dot_dimension_numbers<[1], [1], [0], [0], [0, 0, 1, 0], [], []>} : vector<8x8xbf16>, vector<8x8xbf16>, vector<8x8xf32> -> vector<8x8xf32>
    %1665 = arith.addf %1664, %1342 : vector<8x8xf32>
    %cst_689 = arith.constant dense<0xFF800000> : vector<8xf32>
    %1666 = vector.multi_reduction <maximumf>, %1665, %cst_689 [1] : vector<8x8xf32> to vector<8xf32>
    %1667 = vector.shape_cast %1666 : vector<8xf32> to vector<8x1xf32>
    %1668 = vector.broadcast %1667 : vector<8x1xf32> to vector<8x8xf32>
    %1669 = arith.subf %1665, %1668 : vector<8x8xf32>
    %1670 = math.exp %1669 : vector<8x8xf32>
    %cst_690 = arith.constant dense<0.000000e+00> : vector<8xf32>
    %1671 = vector.multi_reduction <add>, %1670, %cst_690 [1] : vector<8x8xf32> to vector<8xf32>
    %1672 = vector.shape_cast %1671 : vector<8xf32> to vector<8x1xf32>
    %1673 = tpu.reciprocal %1672 {approx = true} : vector<8x1xf32> -> vector<8x1xf32>
    %1674 = vector.broadcast %1673 : vector<8x1xf32> to vector<8x8xf32>
    %1675 = arith.mulf %1670, %1674 : vector<8x8xf32>
    %1676 = arith.truncf %1675 : vector<8x8xf32> to vector<8x8xbf16>
    %1677 = vector.extract_strided_slice %1644 {offsets = [0, 8], sizes = [8, 8], strides = [1, 1]} : vector<8x32xbf16> to vector<8x8xbf16>
    %cst_691 = arith.constant dense<0.000000e+00> : vector<8x8xf32>
    %1678 = tpu.matmul %1676, %1677, %cst_691 {dimension_numbers = #tpu.dot_dimension_numbers<[1], [0], [0], [1], [0, 0, 1, 1], [], []>} : vector<8x8xbf16>, vector<8x8xbf16>, vector<8x8xf32> -> vector<8x8xf32>
    %1679 = vector.extract_strided_slice %1642 {offsets = [0, 16], sizes = [8, 8], strides = [1, 1]} : vector<8x32xbf16> to vector<8x8xbf16>
    %1680 = vector.extract_strided_slice %1643 {offsets = [0, 16], sizes = [8, 8], strides = [1, 1]} : vector<8x32xbf16> to vector<8x8xbf16>
    %cst_692 = arith.constant dense<0.000000e+00> : vector<8x8xf32>
    %1681 = tpu.matmul %1679, %1680, %cst_692 {dimension_numbers = #tpu.dot_dimension_numbers<[1], [1], [0], [0], [0, 0, 1, 0], [], []>} : vector<8x8xbf16>, vector<8x8xbf16>, vector<8x8xf32> -> vector<8x8xf32>
    %1682 = arith.addf %1681, %1342 : vector<8x8xf32>
    %cst_693 = arith.constant dense<0xFF800000> : vector<8xf32>
    %1683 = vector.multi_reduction <maximumf>, %1682, %cst_693 [1] : vector<8x8xf32> to vector<8xf32>
    %1684 = vector.shape_cast %1683 : vector<8xf32> to vector<8x1xf32>
    %1685 = vector.broadcast %1684 : vector<8x1xf32> to vector<8x8xf32>
    %1686 = arith.subf %1682, %1685 : vector<8x8xf32>
    %1687 = math.exp %1686 : vector<8x8xf32>
    %cst_694 = arith.constant dense<0.000000e+00> : vector<8xf32>
    %1688 = vector.multi_reduction <add>, %1687, %cst_694 [1] : vector<8x8xf32> to vector<8xf32>
    %1689 = vector.shape_cast %1688 : vector<8xf32> to vector<8x1xf32>
    %1690 = tpu.reciprocal %1689 {approx = true} : vector<8x1xf32> -> vector<8x1xf32>
    %1691 = vector.broadcast %1690 : vector<8x1xf32> to vector<8x8xf32>
    %1692 = arith.mulf %1687, %1691 : vector<8x8xf32>
    %1693 = arith.truncf %1692 : vector<8x8xf32> to vector<8x8xbf16>
    %1694 = vector.extract_strided_slice %1644 {offsets = [0, 16], sizes = [8, 8], strides = [1, 1]} : vector<8x32xbf16> to vector<8x8xbf16>
    %cst_695 = arith.constant dense<0.000000e+00> : vector<8x8xf32>
    %1695 = tpu.matmul %1693, %1694, %cst_695 {dimension_numbers = #tpu.dot_dimension_numbers<[1], [0], [0], [1], [0, 0, 1, 1], [], []>} : vector<8x8xbf16>, vector<8x8xbf16>, vector<8x8xf32> -> vector<8x8xf32>
    %1696 = vector.extract_strided_slice %1642 {offsets = [0, 24], sizes = [8, 8], strides = [1, 1]} : vector<8x32xbf16> to vector<8x8xbf16>
    %1697 = vector.extract_strided_slice %1643 {offsets = [0, 24], sizes = [8, 8], strides = [1, 1]} : vector<8x32xbf16> to vector<8x8xbf16>
    %cst_696 = arith.constant dense<0.000000e+00> : vector<8x8xf32>
    %1698 = tpu.matmul %1696, %1697, %cst_696 {dimension_numbers = #tpu.dot_dimension_numbers<[1], [1], [0], [0], [0, 0, 1, 0], [], []>} : vector<8x8xbf16>, vector<8x8xbf16>, vector<8x8xf32> -> vector<8x8xf32>
    %1699 = arith.addf %1698, %1342 : vector<8x8xf32>
    %cst_697 = arith.constant dense<0xFF800000> : vector<8xf32>
    %1700 = vector.multi_reduction <maximumf>, %1699, %cst_697 [1] : vector<8x8xf32> to vector<8xf32>
    %1701 = vector.shape_cast %1700 : vector<8xf32> to vector<8x1xf32>
    %1702 = vector.broadcast %1701 : vector<8x1xf32> to vector<8x8xf32>
    %1703 = arith.subf %1699, %1702 : vector<8x8xf32>
    %1704 = math.exp %1703 : vector<8x8xf32>
    %cst_698 = arith.constant dense<0.000000e+00> : vector<8xf32>
    %1705 = vector.multi_reduction <add>, %1704, %cst_698 [1] : vector<8x8xf32> to vector<8xf32>
    %1706 = vector.shape_cast %1705 : vector<8xf32> to vector<8x1xf32>
    %1707 = tpu.reciprocal %1706 {approx = true} : vector<8x1xf32> -> vector<8x1xf32>
    %1708 = vector.broadcast %1707 : vector<8x1xf32> to vector<8x8xf32>
    %1709 = arith.mulf %1704, %1708 : vector<8x8xf32>
    %1710 = arith.truncf %1709 : vector<8x8xf32> to vector<8x8xbf16>
    %1711 = vector.extract_strided_slice %1644 {offsets = [0, 24], sizes = [8, 8], strides = [1, 1]} : vector<8x32xbf16> to vector<8x8xbf16>
    %cst_699 = arith.constant dense<0.000000e+00> : vector<8x8xf32>
    %1712 = tpu.matmul %1710, %1711, %cst_699 {dimension_numbers = #tpu.dot_dimension_numbers<[1], [0], [0], [1], [0, 0, 1, 1], [], []>} : vector<8x8xbf16>, vector<8x8xbf16>, vector<8x8xf32> -> vector<8x8xf32>
    %1713 = tpu.concatenate %1661, %1678, %1695, %1712 in 1 : vector<8x8xf32>, vector<8x8xf32>, vector<8x8xf32>, vector<8x8xf32> -> vector<8x32xf32>
    %1714 = arith.truncf %1713 : vector<8x32xf32> to vector<8x32xbf16>
    %cst_700 = arith.constant dense<0.000000e+00> : vector<8x32xf32>
    %1715 = tpu.matmul %1714, %1632, %cst_700 {dimension_numbers = #tpu.dot_dimension_numbers<[1], [0], [0], [1], [0, 0, 1, 1], [], []>} : vector<8x32xbf16>, vector<32x32xbf16>, vector<8x32xf32> -> vector<8x32xf32>
    %1716 = vector.broadcast %1634 : vector<1x32xf32> to vector<8x32xf32>
    %1717 = arith.addf %1715, %1716 : vector<8x32xf32>
    %1718 = arith.addf %1626, %1717 : vector<8x32xf32>
    %c1_701 = arith.constant 1 : index
    %c0_702 = arith.constant 0 : index
    %c0_703 = arith.constant 0 : index
    %1719 = vector.load %arg23[%c1_701, %c0_702, %c0_703] : memref<2x1x32xf32, #tpu.memory_space<vmem>>, vector<1x1x32xf32>
    %1720 = vector.shape_cast %1719 : vector<1x1x32xf32> to vector<1x32xf32>
    %c1_704 = arith.constant 1 : index
    %c0_705 = arith.constant 0 : index
    %c0_706 = arith.constant 0 : index
    %1721 = vector.load %arg24[%c1_704, %c0_705, %c0_706] : memref<2x1x32xf32, #tpu.memory_space<vmem>>, vector<1x1x32xf32>
    %1722 = vector.shape_cast %1721 : vector<1x1x32xf32> to vector<1x32xf32>
    %cst_707 = arith.constant dense<0.000000e+00> : vector<8xf32>
    %1723 = vector.multi_reduction <add>, %1718, %cst_707 [1] : vector<8x32xf32> to vector<8xf32>
    %1724 = vector.shape_cast %1723 : vector<8xf32> to vector<8x1xf32>
    %cst_708 = arith.constant 3.200000e+01 : f32
    %1725 = vector.broadcast %cst_708 : f32 to vector<8x1xf32>
    %1726 = arith.divf %1724, %1725 : vector<8x1xf32>
    %1727 = vector.broadcast %1726 : vector<8x1xf32> to vector<8x32xf32>
    %1728 = arith.subf %1718, %1727 : vector<8x32xf32>
    %1729 = arith.mulf %1728, %1728 : vector<8x32xf32>
    %cst_709 = arith.constant dense<0.000000e+00> : vector<8xf32>
    %1730 = vector.multi_reduction <add>, %1729, %cst_709 [1] : vector<8x32xf32> to vector<8xf32>
    %1731 = vector.shape_cast %1730 : vector<8xf32> to vector<8x1xf32>
    %cst_710 = arith.constant 3.200000e+01 : f32
    %1732 = vector.broadcast %cst_710 : f32 to vector<8x1xf32>
    %1733 = arith.divf %1731, %1732 : vector<8x1xf32>
    %1734 = vector.broadcast %1726 : vector<8x1xf32> to vector<8x32xf32>
    %1735 = arith.subf %1718, %1734 : vector<8x32xf32>
    %cst_711 = arith.constant 9.99999974E-6 : f32
    %1736 = vector.broadcast %cst_711 : f32 to vector<8x1xf32>
    %1737 = arith.addf %1733, %1736 : vector<8x1xf32>
    %1738 = math.rsqrt %1737 : vector<8x1xf32>
    %1739 = vector.broadcast %1738 : vector<8x1xf32> to vector<8x32xf32>
    %1740 = arith.mulf %1735, %1739 : vector<8x32xf32>
    %1741 = vector.broadcast %1720 : vector<1x32xf32> to vector<8x32xf32>
    %1742 = arith.mulf %1740, %1741 : vector<8x32xf32>
    %1743 = vector.broadcast %1722 : vector<1x32xf32> to vector<8x32xf32>
    %1744 = arith.addf %1742, %1743 : vector<8x32xf32>
    %c1_712 = arith.constant 1 : index
    %c0_713 = arith.constant 0 : index
    %c0_714 = arith.constant 0 : index
    %1745 = vector.load %arg25[%c1_712, %c0_713, %c0_714] : memref<2x32x32xbf16, #tpu.memory_space<vmem>>, vector<1x32x32xbf16>
    %1746 = vector.shape_cast %1745 : vector<1x32x32xbf16> to vector<32x32xbf16>
    %c1_715 = arith.constant 1 : index
    %c0_716 = arith.constant 0 : index
    %c0_717 = arith.constant 0 : index
    %1747 = vector.load %arg26[%c1_715, %c0_716, %c0_717] : memref<2x1x32xf32, #tpu.memory_space<vmem>>, vector<1x1x32xf32>
    %1748 = vector.shape_cast %1747 : vector<1x1x32xf32> to vector<1x32xf32>
    %c1_718 = arith.constant 1 : index
    %c0_719 = arith.constant 0 : index
    %c0_720 = arith.constant 0 : index
    %1749 = vector.load %arg27[%c1_718, %c0_719, %c0_720] : memref<2x32x64xbf16, #tpu.memory_space<vmem>>, vector<1x32x64xbf16>
    %1750 = vector.shape_cast %1749 : vector<1x32x64xbf16> to vector<32x64xbf16>
    %c1_721 = arith.constant 1 : index
    %c0_722 = arith.constant 0 : index
    %c0_723 = arith.constant 0 : index
    %1751 = vector.load %arg28[%c1_721, %c0_722, %c0_723] : memref<2x1x64xf32, #tpu.memory_space<vmem>>, vector<1x1x64xf32>
    %1752 = vector.shape_cast %1751 : vector<1x1x64xf32> to vector<1x64xf32>
    %c1_724 = arith.constant 1 : index
    %c0_725 = arith.constant 0 : index
    %c0_726 = arith.constant 0 : index
    %1753 = vector.load %arg29[%c1_724, %c0_725, %c0_726] : memref<2x32x32xbf16, #tpu.memory_space<vmem>>, vector<1x32x32xbf16>
    %1754 = vector.shape_cast %1753 : vector<1x32x32xbf16> to vector<32x32xbf16>
    %c1_727 = arith.constant 1 : index
    %c0_728 = arith.constant 0 : index
    %c0_729 = arith.constant 0 : index
    %1755 = vector.load %arg30[%c1_727, %c0_728, %c0_729] : memref<2x1x32xf32, #tpu.memory_space<vmem>>, vector<1x1x32xf32>
    %1756 = vector.shape_cast %1755 : vector<1x1x32xf32> to vector<1x32xf32>
    %1757 = arith.truncf %1744 : vector<8x32xf32> to vector<8x32xbf16>
    %cst_730 = arith.constant dense<0.000000e+00> : vector<8x32xf32>
    %1758 = tpu.matmul %1757, %1746, %cst_730 {dimension_numbers = #tpu.dot_dimension_numbers<[1], [0], [0], [1], [0, 0, 1, 1], [], []>} : vector<8x32xbf16>, vector<32x32xbf16>, vector<8x32xf32> -> vector<8x32xf32>
    %1759 = vector.broadcast %1748 : vector<1x32xf32> to vector<8x32xf32>
    %1760 = arith.addf %1758, %1759 : vector<8x32xf32>
    %1761 = arith.truncf %1336 : vector<12x32xf32> to vector<12x32xbf16>
    %cst_731 = arith.constant dense<0.000000e+00> : vector<12x64xf32>
    %1762 = tpu.matmul %1761, %1750, %cst_731 {dimension_numbers = #tpu.dot_dimension_numbers<[1], [0], [0], [1], [0, 0, 1, 1], [], []>} : vector<12x32xbf16>, vector<32x64xbf16>, vector<12x64xf32> -> vector<12x64xf32>
    %1763 = vector.broadcast %1752 : vector<1x64xf32> to vector<12x64xf32>
    %1764 = arith.addf %1762, %1763 : vector<12x64xf32>
    %1765 = vector.extract_strided_slice %1764 {offsets = [0, 0], sizes = [12, 32], strides = [1, 1]} : vector<12x64xf32> to vector<12x32xf32>
    %1766 = vector.extract_strided_slice %1764 {offsets = [0, 32], sizes = [12, 32], strides = [1, 1]} : vector<12x64xf32> to vector<12x32xf32>
    %1767 = arith.truncf %1760 : vector<8x32xf32> to vector<8x32xbf16>
    %1768 = arith.truncf %1765 : vector<12x32xf32> to vector<12x32xbf16>
    %1769 = arith.truncf %1766 : vector<12x32xf32> to vector<12x32xbf16>
    %1770 = vector.extract_strided_slice %1767 {offsets = [0, 0], sizes = [8, 8], strides = [1, 1]} : vector<8x32xbf16> to vector<8x8xbf16>
    %1771 = vector.extract_strided_slice %1768 {offsets = [0, 0], sizes = [12, 8], strides = [1, 1]} : vector<12x32xbf16> to vector<12x8xbf16>
    %cst_732 = arith.constant dense<0.000000e+00> : vector<8x12xf32>
    %1772 = tpu.matmul %1770, %1771, %cst_732 {dimension_numbers = #tpu.dot_dimension_numbers<[1], [1], [0], [0], [0, 0, 1, 0], [], []>} : vector<8x8xbf16>, vector<12x8xbf16>, vector<8x12xf32> -> vector<8x12xf32>
    %cst_733 = arith.constant dense<0xFF800000> : vector<8xf32>
    %1773 = vector.multi_reduction <maximumf>, %1772, %cst_733 [1] : vector<8x12xf32> to vector<8xf32>
    %1774 = vector.shape_cast %1773 : vector<8xf32> to vector<8x1xf32>
    %1775 = vector.broadcast %1774 : vector<8x1xf32> to vector<8x12xf32>
    %1776 = arith.subf %1772, %1775 : vector<8x12xf32>
    %1777 = math.exp %1776 : vector<8x12xf32>
    %cst_734 = arith.constant dense<0.000000e+00> : vector<8xf32>
    %1778 = vector.multi_reduction <add>, %1777, %cst_734 [1] : vector<8x12xf32> to vector<8xf32>
    %1779 = vector.shape_cast %1778 : vector<8xf32> to vector<8x1xf32>
    %1780 = tpu.reciprocal %1779 {approx = true} : vector<8x1xf32> -> vector<8x1xf32>
    %1781 = vector.broadcast %1780 : vector<8x1xf32> to vector<8x12xf32>
    %1782 = arith.mulf %1777, %1781 : vector<8x12xf32>
    %1783 = arith.truncf %1782 : vector<8x12xf32> to vector<8x12xbf16>
    %1784 = vector.extract_strided_slice %1769 {offsets = [0, 0], sizes = [12, 8], strides = [1, 1]} : vector<12x32xbf16> to vector<12x8xbf16>
    %cst_735 = arith.constant dense<0.000000e+00> : vector<8x8xf32>
    %1785 = tpu.matmul %1783, %1784, %cst_735 {dimension_numbers = #tpu.dot_dimension_numbers<[1], [0], [0], [1], [0, 0, 1, 1], [], []>} : vector<8x12xbf16>, vector<12x8xbf16>, vector<8x8xf32> -> vector<8x8xf32>
    %1786 = vector.extract_strided_slice %1767 {offsets = [0, 8], sizes = [8, 8], strides = [1, 1]} : vector<8x32xbf16> to vector<8x8xbf16>
    %1787 = vector.extract_strided_slice %1768 {offsets = [0, 8], sizes = [12, 8], strides = [1, 1]} : vector<12x32xbf16> to vector<12x8xbf16>
    %cst_736 = arith.constant dense<0.000000e+00> : vector<8x12xf32>
    %1788 = tpu.matmul %1786, %1787, %cst_736 {dimension_numbers = #tpu.dot_dimension_numbers<[1], [1], [0], [0], [0, 0, 1, 0], [], []>} : vector<8x8xbf16>, vector<12x8xbf16>, vector<8x12xf32> -> vector<8x12xf32>
    %cst_737 = arith.constant dense<0xFF800000> : vector<8xf32>
    %1789 = vector.multi_reduction <maximumf>, %1788, %cst_737 [1] : vector<8x12xf32> to vector<8xf32>
    %1790 = vector.shape_cast %1789 : vector<8xf32> to vector<8x1xf32>
    %1791 = vector.broadcast %1790 : vector<8x1xf32> to vector<8x12xf32>
    %1792 = arith.subf %1788, %1791 : vector<8x12xf32>
    %1793 = math.exp %1792 : vector<8x12xf32>
    %cst_738 = arith.constant dense<0.000000e+00> : vector<8xf32>
    %1794 = vector.multi_reduction <add>, %1793, %cst_738 [1] : vector<8x12xf32> to vector<8xf32>
    %1795 = vector.shape_cast %1794 : vector<8xf32> to vector<8x1xf32>
    %1796 = tpu.reciprocal %1795 {approx = true} : vector<8x1xf32> -> vector<8x1xf32>
    %1797 = vector.broadcast %1796 : vector<8x1xf32> to vector<8x12xf32>
    %1798 = arith.mulf %1793, %1797 : vector<8x12xf32>
    %1799 = arith.truncf %1798 : vector<8x12xf32> to vector<8x12xbf16>
    %1800 = vector.extract_strided_slice %1769 {offsets = [0, 8], sizes = [12, 8], strides = [1, 1]} : vector<12x32xbf16> to vector<12x8xbf16>
    %cst_739 = arith.constant dense<0.000000e+00> : vector<8x8xf32>
    %1801 = tpu.matmul %1799, %1800, %cst_739 {dimension_numbers = #tpu.dot_dimension_numbers<[1], [0], [0], [1], [0, 0, 1, 1], [], []>} : vector<8x12xbf16>, vector<12x8xbf16>, vector<8x8xf32> -> vector<8x8xf32>
    %1802 = vector.extract_strided_slice %1767 {offsets = [0, 16], sizes = [8, 8], strides = [1, 1]} : vector<8x32xbf16> to vector<8x8xbf16>
    %1803 = vector.extract_strided_slice %1768 {offsets = [0, 16], sizes = [12, 8], strides = [1, 1]} : vector<12x32xbf16> to vector<12x8xbf16>
    %cst_740 = arith.constant dense<0.000000e+00> : vector<8x12xf32>
    %1804 = tpu.matmul %1802, %1803, %cst_740 {dimension_numbers = #tpu.dot_dimension_numbers<[1], [1], [0], [0], [0, 0, 1, 0], [], []>} : vector<8x8xbf16>, vector<12x8xbf16>, vector<8x12xf32> -> vector<8x12xf32>
    %cst_741 = arith.constant dense<0xFF800000> : vector<8xf32>
    %1805 = vector.multi_reduction <maximumf>, %1804, %cst_741 [1] : vector<8x12xf32> to vector<8xf32>
    %1806 = vector.shape_cast %1805 : vector<8xf32> to vector<8x1xf32>
    %1807 = vector.broadcast %1806 : vector<8x1xf32> to vector<8x12xf32>
    %1808 = arith.subf %1804, %1807 : vector<8x12xf32>
    %1809 = math.exp %1808 : vector<8x12xf32>
    %cst_742 = arith.constant dense<0.000000e+00> : vector<8xf32>
    %1810 = vector.multi_reduction <add>, %1809, %cst_742 [1] : vector<8x12xf32> to vector<8xf32>
    %1811 = vector.shape_cast %1810 : vector<8xf32> to vector<8x1xf32>
    %1812 = tpu.reciprocal %1811 {approx = true} : vector<8x1xf32> -> vector<8x1xf32>
    %1813 = vector.broadcast %1812 : vector<8x1xf32> to vector<8x12xf32>
    %1814 = arith.mulf %1809, %1813 : vector<8x12xf32>
    %1815 = arith.truncf %1814 : vector<8x12xf32> to vector<8x12xbf16>
    %1816 = vector.extract_strided_slice %1769 {offsets = [0, 16], sizes = [12, 8], strides = [1, 1]} : vector<12x32xbf16> to vector<12x8xbf16>
    %cst_743 = arith.constant dense<0.000000e+00> : vector<8x8xf32>
    %1817 = tpu.matmul %1815, %1816, %cst_743 {dimension_numbers = #tpu.dot_dimension_numbers<[1], [0], [0], [1], [0, 0, 1, 1], [], []>} : vector<8x12xbf16>, vector<12x8xbf16>, vector<8x8xf32> -> vector<8x8xf32>
    %1818 = vector.extract_strided_slice %1767 {offsets = [0, 24], sizes = [8, 8], strides = [1, 1]} : vector<8x32xbf16> to vector<8x8xbf16>
    %1819 = vector.extract_strided_slice %1768 {offsets = [0, 24], sizes = [12, 8], strides = [1, 1]} : vector<12x32xbf16> to vector<12x8xbf16>
    %cst_744 = arith.constant dense<0.000000e+00> : vector<8x12xf32>
    %1820 = tpu.matmul %1818, %1819, %cst_744 {dimension_numbers = #tpu.dot_dimension_numbers<[1], [1], [0], [0], [0, 0, 1, 0], [], []>} : vector<8x8xbf16>, vector<12x8xbf16>, vector<8x12xf32> -> vector<8x12xf32>
    %cst_745 = arith.constant dense<0xFF800000> : vector<8xf32>
    %1821 = vector.multi_reduction <maximumf>, %1820, %cst_745 [1] : vector<8x12xf32> to vector<8xf32>
    %1822 = vector.shape_cast %1821 : vector<8xf32> to vector<8x1xf32>
    %1823 = vector.broadcast %1822 : vector<8x1xf32> to vector<8x12xf32>
    %1824 = arith.subf %1820, %1823 : vector<8x12xf32>
    %1825 = math.exp %1824 : vector<8x12xf32>
    %cst_746 = arith.constant dense<0.000000e+00> : vector<8xf32>
    %1826 = vector.multi_reduction <add>, %1825, %cst_746 [1] : vector<8x12xf32> to vector<8xf32>
    %1827 = vector.shape_cast %1826 : vector<8xf32> to vector<8x1xf32>
    %1828 = tpu.reciprocal %1827 {approx = true} : vector<8x1xf32> -> vector<8x1xf32>
    %1829 = vector.broadcast %1828 : vector<8x1xf32> to vector<8x12xf32>
    %1830 = arith.mulf %1825, %1829 : vector<8x12xf32>
    %1831 = arith.truncf %1830 : vector<8x12xf32> to vector<8x12xbf16>
    %1832 = vector.extract_strided_slice %1769 {offsets = [0, 24], sizes = [12, 8], strides = [1, 1]} : vector<12x32xbf16> to vector<12x8xbf16>
    %cst_747 = arith.constant dense<0.000000e+00> : vector<8x8xf32>
    %1833 = tpu.matmul %1831, %1832, %cst_747 {dimension_numbers = #tpu.dot_dimension_numbers<[1], [0], [0], [1], [0, 0, 1, 1], [], []>} : vector<8x12xbf16>, vector<12x8xbf16>, vector<8x8xf32> -> vector<8x8xf32>
    %1834 = tpu.concatenate %1785, %1801, %1817, %1833 in 1 : vector<8x8xf32>, vector<8x8xf32>, vector<8x8xf32>, vector<8x8xf32> -> vector<8x32xf32>
    %1835 = arith.truncf %1834 : vector<8x32xf32> to vector<8x32xbf16>
    %cst_748 = arith.constant dense<0.000000e+00> : vector<8x32xf32>
    %1836 = tpu.matmul %1835, %1754, %cst_748 {dimension_numbers = #tpu.dot_dimension_numbers<[1], [0], [0], [1], [0, 0, 1, 1], [], []>} : vector<8x32xbf16>, vector<32x32xbf16>, vector<8x32xf32> -> vector<8x32xf32>
    %1837 = vector.broadcast %1756 : vector<1x32xf32> to vector<8x32xf32>
    %1838 = arith.addf %1836, %1837 : vector<8x32xf32>
    %1839 = arith.addf %1744, %1838 : vector<8x32xf32>
    %c1_749 = arith.constant 1 : index
    %c0_750 = arith.constant 0 : index
    %c0_751 = arith.constant 0 : index
    %1840 = vector.load %arg31[%c1_749, %c0_750, %c0_751] : memref<2x1x32xf32, #tpu.memory_space<vmem>>, vector<1x1x32xf32>
    %1841 = vector.shape_cast %1840 : vector<1x1x32xf32> to vector<1x32xf32>
    %c1_752 = arith.constant 1 : index
    %c0_753 = arith.constant 0 : index
    %c0_754 = arith.constant 0 : index
    %1842 = vector.load %arg32[%c1_752, %c0_753, %c0_754] : memref<2x1x32xf32, #tpu.memory_space<vmem>>, vector<1x1x32xf32>
    %1843 = vector.shape_cast %1842 : vector<1x1x32xf32> to vector<1x32xf32>
    %cst_755 = arith.constant dense<0.000000e+00> : vector<8xf32>
    %1844 = vector.multi_reduction <add>, %1839, %cst_755 [1] : vector<8x32xf32> to vector<8xf32>
    %1845 = vector.shape_cast %1844 : vector<8xf32> to vector<8x1xf32>
    %cst_756 = arith.constant 3.200000e+01 : f32
    %1846 = vector.broadcast %cst_756 : f32 to vector<8x1xf32>
    %1847 = arith.divf %1845, %1846 : vector<8x1xf32>
    %1848 = vector.broadcast %1847 : vector<8x1xf32> to vector<8x32xf32>
    %1849 = arith.subf %1839, %1848 : vector<8x32xf32>
    %1850 = arith.mulf %1849, %1849 : vector<8x32xf32>
    %cst_757 = arith.constant dense<0.000000e+00> : vector<8xf32>
    %1851 = vector.multi_reduction <add>, %1850, %cst_757 [1] : vector<8x32xf32> to vector<8xf32>
    %1852 = vector.shape_cast %1851 : vector<8xf32> to vector<8x1xf32>
    %cst_758 = arith.constant 3.200000e+01 : f32
    %1853 = vector.broadcast %cst_758 : f32 to vector<8x1xf32>
    %1854 = arith.divf %1852, %1853 : vector<8x1xf32>
    %1855 = vector.broadcast %1847 : vector<8x1xf32> to vector<8x32xf32>
    %1856 = arith.subf %1839, %1855 : vector<8x32xf32>
    %cst_759 = arith.constant 9.99999974E-6 : f32
    %1857 = vector.broadcast %cst_759 : f32 to vector<8x1xf32>
    %1858 = arith.addf %1854, %1857 : vector<8x1xf32>
    %1859 = math.rsqrt %1858 : vector<8x1xf32>
    %1860 = vector.broadcast %1859 : vector<8x1xf32> to vector<8x32xf32>
    %1861 = arith.mulf %1856, %1860 : vector<8x32xf32>
    %1862 = vector.broadcast %1841 : vector<1x32xf32> to vector<8x32xf32>
    %1863 = arith.mulf %1861, %1862 : vector<8x32xf32>
    %1864 = vector.broadcast %1843 : vector<1x32xf32> to vector<8x32xf32>
    %1865 = arith.addf %1863, %1864 : vector<8x32xf32>
    %c1_760 = arith.constant 1 : index
    %c0_761 = arith.constant 0 : index
    %c0_762 = arith.constant 0 : index
    %1866 = vector.load %arg33[%c1_760, %c0_761, %c0_762] : memref<2x32x128xbf16, #tpu.memory_space<vmem>>, vector<1x32x128xbf16>
    %1867 = vector.shape_cast %1866 : vector<1x32x128xbf16> to vector<32x128xbf16>
    %c1_763 = arith.constant 1 : index
    %c0_764 = arith.constant 0 : index
    %c0_765 = arith.constant 0 : index
    %1868 = vector.load %arg34[%c1_763, %c0_764, %c0_765] : memref<2x1x128xf32, #tpu.memory_space<vmem>>, vector<1x1x128xf32>
    %1869 = vector.shape_cast %1868 : vector<1x1x128xf32> to vector<1x128xf32>
    %c1_766 = arith.constant 1 : index
    %c0_767 = arith.constant 0 : index
    %c0_768 = arith.constant 0 : index
    %1870 = vector.load %arg35[%c1_766, %c0_767, %c0_768] : memref<2x128x32xbf16, #tpu.memory_space<vmem>>, vector<1x128x32xbf16>
    %1871 = vector.shape_cast %1870 : vector<1x128x32xbf16> to vector<128x32xbf16>
    %c1_769 = arith.constant 1 : index
    %c0_770 = arith.constant 0 : index
    %c0_771 = arith.constant 0 : index
    %1872 = vector.load %arg36[%c1_769, %c0_770, %c0_771] : memref<2x1x32xf32, #tpu.memory_space<vmem>>, vector<1x1x32xf32>
    %1873 = vector.shape_cast %1872 : vector<1x1x32xf32> to vector<1x32xf32>
    %1874 = arith.truncf %1865 : vector<8x32xf32> to vector<8x32xbf16>
    %cst_772 = arith.constant dense<0.000000e+00> : vector<8x128xf32>
    %1875 = tpu.matmul %1874, %1867, %cst_772 {dimension_numbers = #tpu.dot_dimension_numbers<[1], [0], [0], [1], [0, 0, 1, 1], [], []>} : vector<8x32xbf16>, vector<32x128xbf16>, vector<8x128xf32> -> vector<8x128xf32>
    %1876 = vector.broadcast %1869 : vector<1x128xf32> to vector<8x128xf32>
    %1877 = arith.addf %1875, %1876 : vector<8x128xf32>
    %cst_773 = arith.constant 0.000000e+00 : f32
    %1878 = vector.broadcast %cst_773 : f32 to vector<8x128xf32>
    %1879 = arith.maximumf %1877, %1878 : vector<8x128xf32>
    %1880 = arith.truncf %1879 : vector<8x128xf32> to vector<8x128xbf16>
    %cst_774 = arith.constant dense<0.000000e+00> : vector<8x32xf32>
    %1881 = tpu.matmul %1880, %1871, %cst_774 {dimension_numbers = #tpu.dot_dimension_numbers<[1], [0], [0], [1], [0, 0, 1, 1], [], []>} : vector<8x128xbf16>, vector<128x32xbf16>, vector<8x32xf32> -> vector<8x32xf32>
    %1882 = vector.broadcast %1873 : vector<1x32xf32> to vector<8x32xf32>
    %1883 = arith.addf %1881, %1882 : vector<8x32xf32>
    %1884 = arith.addf %1865, %1883 : vector<8x32xf32>
    %c1_775 = arith.constant 1 : index
    %c0_776 = arith.constant 0 : index
    %c0_777 = arith.constant 0 : index
    %1885 = vector.load %arg37[%c1_775, %c0_776, %c0_777] : memref<2x1x32xf32, #tpu.memory_space<vmem>>, vector<1x1x32xf32>
    %1886 = vector.shape_cast %1885 : vector<1x1x32xf32> to vector<1x32xf32>
    %c1_778 = arith.constant 1 : index
    %c0_779 = arith.constant 0 : index
    %c0_780 = arith.constant 0 : index
    %1887 = vector.load %arg38[%c1_778, %c0_779, %c0_780] : memref<2x1x32xf32, #tpu.memory_space<vmem>>, vector<1x1x32xf32>
    %1888 = vector.shape_cast %1887 : vector<1x1x32xf32> to vector<1x32xf32>
    %cst_781 = arith.constant dense<0.000000e+00> : vector<8xf32>
    %1889 = vector.multi_reduction <add>, %1884, %cst_781 [1] : vector<8x32xf32> to vector<8xf32>
    %1890 = vector.shape_cast %1889 : vector<8xf32> to vector<8x1xf32>
    %cst_782 = arith.constant 3.200000e+01 : f32
    %1891 = vector.broadcast %cst_782 : f32 to vector<8x1xf32>
    %1892 = arith.divf %1890, %1891 : vector<8x1xf32>
    %1893 = vector.broadcast %1892 : vector<8x1xf32> to vector<8x32xf32>
    %1894 = arith.subf %1884, %1893 : vector<8x32xf32>
    %1895 = arith.mulf %1894, %1894 : vector<8x32xf32>
    %cst_783 = arith.constant dense<0.000000e+00> : vector<8xf32>
    %1896 = vector.multi_reduction <add>, %1895, %cst_783 [1] : vector<8x32xf32> to vector<8xf32>
    %1897 = vector.shape_cast %1896 : vector<8xf32> to vector<8x1xf32>
    %cst_784 = arith.constant 3.200000e+01 : f32
    %1898 = vector.broadcast %cst_784 : f32 to vector<8x1xf32>
    %1899 = arith.divf %1897, %1898 : vector<8x1xf32>
    %1900 = vector.broadcast %1892 : vector<8x1xf32> to vector<8x32xf32>
    %1901 = arith.subf %1884, %1900 : vector<8x32xf32>
    %cst_785 = arith.constant 9.99999974E-6 : f32
    %1902 = vector.broadcast %cst_785 : f32 to vector<8x1xf32>
    %1903 = arith.addf %1899, %1902 : vector<8x1xf32>
    %1904 = math.rsqrt %1903 : vector<8x1xf32>
    %1905 = vector.broadcast %1904 : vector<8x1xf32> to vector<8x32xf32>
    %1906 = arith.mulf %1901, %1905 : vector<8x32xf32>
    %1907 = vector.broadcast %1886 : vector<1x32xf32> to vector<8x32xf32>
    %1908 = arith.mulf %1906, %1907 : vector<8x32xf32>
    %1909 = vector.broadcast %1888 : vector<1x32xf32> to vector<8x32xf32>
    %1910 = arith.addf %1908, %1909 : vector<8x32xf32>
    %c0_786 = arith.constant 0 : index
    %c0_787 = arith.constant 0 : index
    %1911 = vector.load %arg39[%c0_786, %c0_787] : memref<1x32xf32, #tpu.memory_space<vmem>>, vector<1x32xf32>
    %c0_788 = arith.constant 0 : index
    %c0_789 = arith.constant 0 : index
    %1912 = vector.load %arg40[%c0_788, %c0_789] : memref<1x32xf32, #tpu.memory_space<vmem>>, vector<1x32xf32>
    %cst_790 = arith.constant dense<0.000000e+00> : vector<8xf32>
    %1913 = vector.multi_reduction <add>, %1910, %cst_790 [1] : vector<8x32xf32> to vector<8xf32>
    %1914 = vector.shape_cast %1913 : vector<8xf32> to vector<8x1xf32>
    %cst_791 = arith.constant 3.200000e+01 : f32
    %1915 = vector.broadcast %cst_791 : f32 to vector<8x1xf32>
    %1916 = arith.divf %1914, %1915 : vector<8x1xf32>
    %1917 = vector.broadcast %1916 : vector<8x1xf32> to vector<8x32xf32>
    %1918 = arith.subf %1910, %1917 : vector<8x32xf32>
    %1919 = arith.mulf %1918, %1918 : vector<8x32xf32>
    %cst_792 = arith.constant dense<0.000000e+00> : vector<8xf32>
    %1920 = vector.multi_reduction <add>, %1919, %cst_792 [1] : vector<8x32xf32> to vector<8xf32>
    %1921 = vector.shape_cast %1920 : vector<8xf32> to vector<8x1xf32>
    %cst_793 = arith.constant 3.200000e+01 : f32
    %1922 = vector.broadcast %cst_793 : f32 to vector<8x1xf32>
    %1923 = arith.divf %1921, %1922 : vector<8x1xf32>
    %1924 = vector.broadcast %1916 : vector<8x1xf32> to vector<8x32xf32>
    %1925 = arith.subf %1910, %1924 : vector<8x32xf32>
    %cst_794 = arith.constant 9.99999974E-6 : f32
    %1926 = vector.broadcast %cst_794 : f32 to vector<8x1xf32>
    %1927 = arith.addf %1923, %1926 : vector<8x1xf32>
    %1928 = math.rsqrt %1927 : vector<8x1xf32>
    %1929 = vector.broadcast %1928 : vector<8x1xf32> to vector<8x32xf32>
    %1930 = arith.mulf %1925, %1929 : vector<8x32xf32>
    %1931 = vector.broadcast %1911 : vector<1x32xf32> to vector<8x32xf32>
    %1932 = arith.mulf %1930, %1931 : vector<8x32xf32>
    %1933 = vector.broadcast %1912 : vector<1x32xf32> to vector<8x32xf32>
    %1934 = arith.addf %1932, %1933 : vector<8x32xf32>
    %1935 = arith.truncf %1934 : vector<8x32xf32> to vector<8x32xbf16>
    %c0_795 = arith.constant 0 : index
    %c0_796 = arith.constant 0 : index
    %1936 = vector.load %arg41[%c0_795, %c0_796] : memref<32x128xbf16, #tpu.memory_space<vmem>>, vector<32x128xbf16>
    %cst_797 = arith.constant dense<0.000000e+00> : vector<8x128xf32>
    %1937 = tpu.matmul %1935, %1936, %cst_797 {dimension_numbers = #tpu.dot_dimension_numbers<[1], [0], [0], [1], [0, 0, 1, 1], [], []>} : vector<8x32xbf16>, vector<32x128xbf16>, vector<8x128xf32> -> vector<8x128xf32>
    %c0_798 = arith.constant 0 : index
    %c0_799 = arith.constant 0 : index
    %1938 = vector.load %arg42[%c0_798, %c0_799] : memref<1x128xf32, #tpu.memory_space<vmem>>, vector<1x128xf32>
    %1939 = vector.broadcast %1938 : vector<1x128xf32> to vector<8x128xf32>
    %1940 = arith.addf %1937, %1939 : vector<8x128xf32>
    %c1_800 = arith.constant 1 : index
    %c0_801 = arith.constant 0 : index
    %c0_802 = arith.constant 0 : index
    %1941 = vector.load %arg43[%c1_800, %c0_801, %c0_802] : memref<2x8x128xf32, #tpu.memory_space<vmem>>, vector<1x8x128xf32>
    %1942 = vector.shape_cast %1941 : vector<1x8x128xf32> to vector<8x128xf32>
    %1943 = vector.shape_cast %1940 : vector<8x128xf32> to vector<1x8x128xf32>
    tpu.vector_store %arg43[%c1_800, %c0_801, %c0_802], %1943 {strides = array<i32>} : memref<2x8x128xf32, #tpu.memory_space<vmem>>, vector<1x8x128xf32>,
    return
  }
  func.func @transform_0(%arg0: i32) -> (i32, i32, i32) {
    %c0_i32 = arith.constant 0 : i32
    %c0_i32_0 = arith.constant 0 : i32
    %c0_i32_1 = arith.constant 0 : i32
    return %arg0, %c0_i32, %c0_i32_0 : i32, i32, i32
  }
  func.func @transform_1(%arg0: i32) -> (i32, i32, i32) {
    %c0_i32 = arith.constant 0 : i32
    %c0_i32_0 = arith.constant 0 : i32
    %c0_i32_1 = arith.constant 0 : i32
    return %arg0, %c0_i32, %c0_i32_0 : i32, i32, i32
  }
  func.func @transform_2(%arg0: i32) -> (i32, i32, i32) {
    %c0_i32 = arith.constant 0 : i32
    %c0_i32_0 = arith.constant 0 : i32
    %c0_i32_1 = arith.constant 0 : i32
    return %arg0, %c0_i32, %c0_i32_0 : i32, i32, i32
  }
  func.func @transform_3(%arg0: i32) -> (i32, i32, i32) {
    %c0_i32 = arith.constant 0 : i32
    %c0_i32_0 = arith.constant 0 : i32
    %c0_i32_1 = arith.constant 0 : i32
    return %arg0, %c0_i32, %c0_i32_0 : i32, i32, i32
  }
  func.func @transform_4(%arg0: i32) -> (i32, i32, i32) {
    %c0_i32 = arith.constant 0 : i32
    %c0_i32_0 = arith.constant 0 : i32
    %c0_i32_1 = arith.constant 0 : i32
    %c0_i32_2 = arith.constant 0 : i32
    return %c0_i32, %c0_i32_0, %c0_i32_1 : i32, i32, i32
  }
  func.func @transform_5(%arg0: i32) -> (i32, i32, i32) {
    %c0_i32 = arith.constant 0 : i32
    %c0_i32_0 = arith.constant 0 : i32
    %c0_i32_1 = arith.constant 0 : i32
    %c0_i32_2 = arith.constant 0 : i32
    return %c0_i32, %c0_i32_0, %c0_i32_1 : i32, i32, i32
  }
  func.func @transform_6(%arg0: i32) -> (i32, i32, i32) {
    %c0_i32 = arith.constant 0 : i32
    %c0_i32_0 = arith.constant 0 : i32
    %c0_i32_1 = arith.constant 0 : i32
    %c0_i32_2 = arith.constant 0 : i32
    return %c0_i32, %c0_i32_0, %c0_i32_1 : i32, i32, i32
  }
  func.func @transform_7(%arg0: i32) -> (i32, i32, i32) {
    %c0_i32 = arith.constant 0 : i32
    %c0_i32_0 = arith.constant 0 : i32
    %c0_i32_1 = arith.constant 0 : i32
    %c0_i32_2 = arith.constant 0 : i32
    return %c0_i32, %c0_i32_0, %c0_i32_1 : i32, i32, i32
  }
  func.func @transform_8(%arg0: i32) -> (i32, i32, i32) {
    %c0_i32 = arith.constant 0 : i32
    %c0_i32_0 = arith.constant 0 : i32
    %c0_i32_1 = arith.constant 0 : i32
    %c0_i32_2 = arith.constant 0 : i32
    return %c0_i32, %c0_i32_0, %c0_i32_1 : i32, i32, i32
  }
  func.func @transform_9(%arg0: i32) -> (i32, i32, i32) {
    %c0_i32 = arith.constant 0 : i32
    %c0_i32_0 = arith.constant 0 : i32
    %c0_i32_1 = arith.constant 0 : i32
    %c0_i32_2 = arith.constant 0 : i32
    return %c0_i32, %c0_i32_0, %c0_i32_1 : i32, i32, i32
  }
  func.func @transform_10(%arg0: i32) -> (i32, i32, i32) {
    %c0_i32 = arith.constant 0 : i32
    %c0_i32_0 = arith.constant 0 : i32
    %c0_i32_1 = arith.constant 0 : i32
    %c0_i32_2 = arith.constant 0 : i32
    return %c0_i32, %c0_i32_0, %c0_i32_1 : i32, i32, i32
  }
  func.func @transform_11(%arg0: i32) -> (i32, i32, i32) {
    %c0_i32 = arith.constant 0 : i32
    %c0_i32_0 = arith.constant 0 : i32
    %c0_i32_1 = arith.constant 0 : i32
    %c0_i32_2 = arith.constant 0 : i32
    return %c0_i32, %c0_i32_0, %c0_i32_1 : i32, i32, i32
  }
  func.func @transform_12(%arg0: i32) -> (i32, i32, i32) {
    %c0_i32 = arith.constant 0 : i32
    %c0_i32_0 = arith.constant 0 : i32
    %c0_i32_1 = arith.constant 0 : i32
    %c0_i32_2 = arith.constant 0 : i32
    return %c0_i32, %c0_i32_0, %c0_i32_1 : i32, i32, i32
  }
  func.func @transform_13(%arg0: i32) -> (i32, i32, i32) {
    %c0_i32 = arith.constant 0 : i32
    %c0_i32_0 = arith.constant 0 : i32
    %c0_i32_1 = arith.constant 0 : i32
    %c0_i32_2 = arith.constant 0 : i32
    return %c0_i32, %c0_i32_0, %c0_i32_1 : i32, i32, i32
  }
  func.func @transform_14(%arg0: i32) -> (i32, i32, i32) {
    %c0_i32 = arith.constant 0 : i32
    %c0_i32_0 = arith.constant 0 : i32
    %c0_i32_1 = arith.constant 0 : i32
    %c0_i32_2 = arith.constant 0 : i32
    return %c0_i32, %c0_i32_0, %c0_i32_1 : i32, i32, i32
  }
  func.func @transform_15(%arg0: i32) -> (i32, i32, i32) {
    %c0_i32 = arith.constant 0 : i32
    %c0_i32_0 = arith.constant 0 : i32
    %c0_i32_1 = arith.constant 0 : i32
    %c0_i32_2 = arith.constant 0 : i32
    return %c0_i32, %c0_i32_0, %c0_i32_1 : i32, i32, i32
  }
  func.func @transform_16(%arg0: i32) -> (i32, i32) {
    %c0_i32 = arith.constant 0 : i32
    %c0_i32_0 = arith.constant 0 : i32
    %c0_i32_1 = arith.constant 0 : i32
    return %c0_i32, %c0_i32_0 : i32, i32
  }
  func.func @transform_17(%arg0: i32) -> (i32, i32) {
    %c0_i32 = arith.constant 0 : i32
    %c0_i32_0 = arith.constant 0 : i32
    %c0_i32_1 = arith.constant 0 : i32
    return %c0_i32, %c0_i32_0 : i32, i32
  }
  func.func @transform_18(%arg0: i32) -> (i32, i32, i32) {
    %c0_i32 = arith.constant 0 : i32
    %c0_i32_0 = arith.constant 0 : i32
    %c0_i32_1 = arith.constant 0 : i32
    %c0_i32_2 = arith.constant 0 : i32
    return %c0_i32, %c0_i32_0, %c0_i32_1 : i32, i32, i32
  }
  func.func @transform_19(%arg0: i32) -> (i32, i32, i32) {
    %c0_i32 = arith.constant 0 : i32
    %c0_i32_0 = arith.constant 0 : i32
    %c0_i32_1 = arith.constant 0 : i32
    %c0_i32_2 = arith.constant 0 : i32
    return %c0_i32, %c0_i32_0, %c0_i32_1 : i32, i32, i32
  }
  func.func @transform_20(%arg0: i32) -> (i32, i32, i32) {
    %c0_i32 = arith.constant 0 : i32
    %c0_i32_0 = arith.constant 0 : i32
    %c0_i32_1 = arith.constant 0 : i32
    %c0_i32_2 = arith.constant 0 : i32
    return %c0_i32, %c0_i32_0, %c0_i32_1 : i32, i32, i32
  }
  func.func @transform_21(%arg0: i32) -> (i32, i32, i32) {
    %c0_i32 = arith.constant 0 : i32
    %c0_i32_0 = arith.constant 0 : i32
    %c0_i32_1 = arith.constant 0 : i32
    %c0_i32_2 = arith.constant 0 : i32
    return %c0_i32, %c0_i32_0, %c0_i32_1 : i32, i32, i32
  }
  func.func @transform_22(%arg0: i32) -> (i32, i32, i32) {
    %c0_i32 = arith.constant 0 : i32
    %c0_i32_0 = arith.constant 0 : i32
    %c0_i32_1 = arith.constant 0 : i32
    %c0_i32_2 = arith.constant 0 : i32
    return %c0_i32, %c0_i32_0, %c0_i32_1 : i32, i32, i32
  }
  func.func @transform_23(%arg0: i32) -> (i32, i32, i32) {
    %c0_i32 = arith.constant 0 : i32
    %c0_i32_0 = arith.constant 0 : i32
    %c0_i32_1 = arith.constant 0 : i32
    %c0_i32_2 = arith.constant 0 : i32
    return %c0_i32, %c0_i32_0, %c0_i32_1 : i32, i32, i32
  }
  func.func @transform_24(%arg0: i32) -> (i32, i32, i32) {
    %c0_i32 = arith.constant 0 : i32
    %c0_i32_0 = arith.constant 0 : i32
    %c0_i32_1 = arith.constant 0 : i32
    %c0_i32_2 = arith.constant 0 : i32
    return %c0_i32, %c0_i32_0, %c0_i32_1 : i32, i32, i32
  }
  func.func @transform_25(%arg0: i32) -> (i32, i32, i32) {
    %c0_i32 = arith.constant 0 : i32
    %c0_i32_0 = arith.constant 0 : i32
    %c0_i32_1 = arith.constant 0 : i32
    %c0_i32_2 = arith.constant 0 : i32
    return %c0_i32, %c0_i32_0, %c0_i32_1 : i32, i32, i32
  }
  func.func @transform_26(%arg0: i32) -> (i32, i32, i32) {
    %c0_i32 = arith.constant 0 : i32
    %c0_i32_0 = arith.constant 0 : i32
    %c0_i32_1 = arith.constant 0 : i32
    %c0_i32_2 = arith.constant 0 : i32
    return %c0_i32, %c0_i32_0, %c0_i32_1 : i32, i32, i32
  }
  func.func @transform_27(%arg0: i32) -> (i32, i32, i32) {
    %c0_i32 = arith.constant 0 : i32
    %c0_i32_0 = arith.constant 0 : i32
    %c0_i32_1 = arith.constant 0 : i32
    %c0_i32_2 = arith.constant 0 : i32
    return %c0_i32, %c0_i32_0, %c0_i32_1 : i32, i32, i32
  }
  func.func @transform_28(%arg0: i32) -> (i32, i32, i32) {
    %c0_i32 = arith.constant 0 : i32
    %c0_i32_0 = arith.constant 0 : i32
    %c0_i32_1 = arith.constant 0 : i32
    %c0_i32_2 = arith.constant 0 : i32
    return %c0_i32, %c0_i32_0, %c0_i32_1 : i32, i32, i32
  }
  func.func @transform_29(%arg0: i32) -> (i32, i32, i32) {
    %c0_i32 = arith.constant 0 : i32
    %c0_i32_0 = arith.constant 0 : i32
    %c0_i32_1 = arith.constant 0 : i32
    %c0_i32_2 = arith.constant 0 : i32
    return %c0_i32, %c0_i32_0, %c0_i32_1 : i32, i32, i32
  }
  func.func @transform_30(%arg0: i32) -> (i32, i32, i32) {
    %c0_i32 = arith.constant 0 : i32
    %c0_i32_0 = arith.constant 0 : i32
    %c0_i32_1 = arith.constant 0 : i32
    %c0_i32_2 = arith.constant 0 : i32
    return %c0_i32, %c0_i32_0, %c0_i32_1 : i32, i32, i32
  }
  func.func @transform_31(%arg0: i32) -> (i32, i32, i32) {
    %c0_i32 = arith.constant 0 : i32
    %c0_i32_0 = arith.constant 0 : i32
    %c0_i32_1 = arith.constant 0 : i32
    %c0_i32_2 = arith.constant 0 : i32
    return %c0_i32, %c0_i32_0, %c0_i32_1 : i32, i32, i32
  }
  func.func @transform_32(%arg0: i32) -> (i32, i32, i32) {
    %c0_i32 = arith.constant 0 : i32
    %c0_i32_0 = arith.constant 0 : i32
    %c0_i32_1 = arith.constant 0 : i32
    %c0_i32_2 = arith.constant 0 : i32
    return %c0_i32, %c0_i32_0, %c0_i32_1 : i32, i32, i32
  }
  func.func @transform_33(%arg0: i32) -> (i32, i32, i32) {
    %c0_i32 = arith.constant 0 : i32
    %c0_i32_0 = arith.constant 0 : i32
    %c0_i32_1 = arith.constant 0 : i32
    %c0_i32_2 = arith.constant 0 : i32
    return %c0_i32, %c0_i32_0, %c0_i32_1 : i32, i32, i32
  }
  func.func @transform_34(%arg0: i32) -> (i32, i32, i32) {
    %c0_i32 = arith.constant 0 : i32
    %c0_i32_0 = arith.constant 0 : i32
    %c0_i32_1 = arith.constant 0 : i32
    %c0_i32_2 = arith.constant 0 : i32
    return %c0_i32, %c0_i32_0, %c0_i32_1 : i32, i32, i32
  }
  func.func @transform_35(%arg0: i32) -> (i32, i32, i32) {
    %c0_i32 = arith.constant 0 : i32
    %c0_i32_0 = arith.constant 0 : i32
    %c0_i32_1 = arith.constant 0 : i32
    %c0_i32_2 = arith.constant 0 : i32
    return %c0_i32, %c0_i32_0, %c0_i32_1 : i32, i32, i32
  }
  func.func @transform_36(%arg0: i32) -> (i32, i32, i32) {
    %c0_i32 = arith.constant 0 : i32
    %c0_i32_0 = arith.constant 0 : i32
    %c0_i32_1 = arith.constant 0 : i32
    %c0_i32_2 = arith.constant 0 : i32
    return %c0_i32, %c0_i32_0, %c0_i32_1 : i32, i32, i32
  }
  func.func @transform_37(%arg0: i32) -> (i32, i32, i32) {
    %c0_i32 = arith.constant 0 : i32
    %c0_i32_0 = arith.constant 0 : i32
    %c0_i32_1 = arith.constant 0 : i32
    %c0_i32_2 = arith.constant 0 : i32
    return %c0_i32, %c0_i32_0, %c0_i32_1 : i32, i32, i32
  }
  func.func @transform_38(%arg0: i32) -> (i32, i32) {
    %c0_i32 = arith.constant 0 : i32
    %c0_i32_0 = arith.constant 0 : i32
    %c0_i32_1 = arith.constant 0 : i32
    return %c0_i32, %c0_i32_0 : i32, i32
  }
  func.func @transform_39(%arg0: i32) -> (i32, i32) {
    %c0_i32 = arith.constant 0 : i32
    %c0_i32_0 = arith.constant 0 : i32
    %c0_i32_1 = arith.constant 0 : i32
    return %c0_i32, %c0_i32_0 : i32, i32
  }
  func.func @transform_40(%arg0: i32) -> (i32, i32) {
    %c0_i32 = arith.constant 0 : i32
    %c0_i32_0 = arith.constant 0 : i32
    %c0_i32_1 = arith.constant 0 : i32
    return %c0_i32, %c0_i32_0 : i32, i32
  }
  func.func @transform_41(%arg0: i32) -> (i32, i32) {
    %c0_i32 = arith.constant 0 : i32
    %c0_i32_0 = arith.constant 0 : i32
    %c0_i32_1 = arith.constant 0 : i32
    return %c0_i32, %c0_i32_0 : i32, i32
  }
  func.func @transform_42(%arg0: i32) -> (i32, i32, i32) {
    %c0_i32 = arith.constant 0 : i32
    %c0_i32_0 = arith.constant 0 : i32
    %c0_i32_1 = arith.constant 0 : i32
    return %arg0, %c0_i32, %c0_i32_0 : i32, i32, i32
  }
}

</mosaic_0001>

<llo_original>
// kernel: transformer_forward.1
$region0: #{transformer_forward.1}
  #allocation0 [shape = 'u32[]', space=smem, size = 0x4, offset = 0x4, fixed_abs, tag = 'smem constant byte address 0x4 - core index']
  #allocation1 [shape = 'u32[72,128]{1,0:T(1,128)}', space=vmem, size = 0x9000, scoped, tag = 'internal scratch']
  %s0 = inlined_call_operand.smem [shape: u32[43], index: -1, kind: input, shape index: {}]
  %s1 = sld [smem:[%s0]]
  %s2 = scalar_lea.smem %s0, 1
  %s3 = sld [smem:[%s2]]
  %s4 = scalar_lea.smem %s0, 2
  %s5 = sld [smem:[%s4]]
  %s6 = scalar_lea.smem %s0, 3
  %s7 = sld [smem:[%s6]]
  %s8 = scalar_lea.smem %s0, 4
  %s9 = sld [smem:[%s8]]
  %s10 = scalar_lea.smem %s0, 5
  %s11 = sld [smem:[%s10]]
  %s12 = scalar_lea.smem %s0, 6
  %s13 = sld [smem:[%s12]]
  %s14 = scalar_lea.smem %s0, 7
  %s15 = sld [smem:[%s14]]
  %s16 = scalar_lea.smem %s0, 8
  %s17 = sld [smem:[%s16]]
  %s18 = scalar_lea.smem %s0, 9
  %s19 = sld [smem:[%s18]]
  %s20 = scalar_lea.smem %s0, 10
  %s21 = sld [smem:[%s20]]
  %s22 = scalar_lea.smem %s0, 11
  %s23 = sld [smem:[%s22]]
  %s24 = scalar_lea.smem %s0, 12
  %s25 = sld [smem:[%s24]]
  %s26 = scalar_lea.smem %s0, 13
  %s27 = sld [smem:[%s26]]
  %s28 = scalar_lea.smem %s0, 14
  %s29 = sld [smem:[%s28]]
  %s30 = scalar_lea.smem %s0, 15
  %s31 = sld [smem:[%s30]]
  %s32 = scalar_lea.smem %s0, 16
  %s33 = sld [smem:[%s32]]
  %s34 = scalar_lea.smem %s0, 17
  %s35 = sld [smem:[%s34]]
  %s36 = scalar_lea.smem %s0, 18
  %s37 = sld [smem:[%s36]]
  %s38 = scalar_lea.smem %s0, 19
  %s39 = sld [smem:[%s38]]
  %s40 = scalar_lea.smem %s0, 20
  %s41 = sld [smem:[%s40]]
  %s42 = scalar_lea.smem %s0, 21
  %s43 = sld [smem:[%s42]]
  %s44 = scalar_lea.smem %s0, 22
  %s45 = sld [smem:[%s44]]
  %s46 = scalar_lea.smem %s0, 23
  %s47 = sld [smem:[%s46]]
  %s48 = scalar_lea.smem %s0, 24
  %s49 = sld [smem:[%s48]]
  %s50 = scalar_lea.smem %s0, 25
  %s51 = sld [smem:[%s50]]
  %s52 = scalar_lea.smem %s0, 26
  %s53 = sld [smem:[%s52]]
  %s54 = scalar_lea.smem %s0, 27
  %s55 = sld [smem:[%s54]]
  %s56 = scalar_lea.smem %s0, 28
  %s57 = sld [smem:[%s56]]
  %s58 = scalar_lea.smem %s0, 29
  %s59 = sld [smem:[%s58]]
  %s60 = scalar_lea.smem %s0, 30
  %s61 = sld [smem:[%s60]]
  %s62 = scalar_lea.smem %s0, 31
  %s63 = sld [smem:[%s62]]
  %s64 = scalar_lea.smem %s0, 32
  %s65 = sld [smem:[%s64]]
  %s66 = scalar_lea.smem %s0, 33
  %s67 = sld [smem:[%s66]]
  %s68 = scalar_lea.smem %s0, 34
  %s69 = sld [smem:[%s68]]
  %s70 = scalar_lea.smem %s0, 35
  %s71 = sld [smem:[%s70]]
  %s72 = scalar_lea.smem %s0, 36
  %s73 = sld [smem:[%s72]]
  %s74 = scalar_lea.smem %s0, 37
  %s75 = sld [smem:[%s74]]
  %s76 = scalar_lea.smem %s0, 38
  %s77 = sld [smem:[%s76]]
  %s78 = scalar_lea.smem %s0, 39
  %s79 = sld [smem:[%s78]]
  %s80 = scalar_lea.smem %s0, 40
  %s81 = sld [smem:[%s80]]
  %s82 = scalar_lea.smem %s0, 41
  %s83 = sld [smem:[%s82]]
  %s84 = scalar_lea.smem %s0, 42
  %s85 = sld [smem:[%s84]]
  %s86 = sld [smem:[#allocation0]]
  $region178: #{transformer_forward.1} parent=0
    _
  %s88 = ssub.s32 1, %s86
  %s89 = scalar_select 0, %s88, %s86
  $region1: #{transformer_forward.1} parent=0
    #allocation2 [shape = 'u8[8192]{0}', space=vmem, size = 0x2000, scoped, tag = 'output window, operand 0, single buffered']
    #allocation3 [shape = 's32[1]{0}', space=sflag, size = 0x4, scoped, tag = 'scoped memory for transformer_forward.1']
    %90 = vsyncpa [#allocation3], 0
    // Predicated region
    $region2: #{transformer_forward.1} parent=1 // pred_check
      _
    $region3: #{transformer_forward.1} parent=1 // pred_check_branch
      %92 = sbr.rel (0) target = $region5
    $region4: #{transformer_forward.1} parent=1 // pred_region
      _
    $region5: #{transformer_forward.1} parent=1 // pred_fallthru
      _
    // Predicated region
    $region6: #{transformer_forward.1} parent=1 // pred_check
      _
    $region7: #{transformer_forward.1} parent=1 // pred_check_branch
      %94 = sbr.rel (0) target = $region9
    $region8: #{transformer_forward.1} parent=1 // pred_region
      _
    $region9: #{transformer_forward.1} parent=1 // pred_fallthru
      _
    // Predicated region
    $region10: #{transformer_forward.1} parent=1 // pred_check
      _
    $region11: #{transformer_forward.1} parent=1 // pred_check_branch
      %96 = sbr.rel (0) target = $region13
    $region12: #{transformer_forward.1} parent=1 // pred_region
      _
    $region13: #{transformer_forward.1} parent=1 // pred_fallthru
      _
    // Predicated region
    $region14: #{transformer_forward.1} parent=1 // pred_check
      _
    $region15: #{transformer_forward.1} parent=1 // pred_check_branch
      %98 = sbr.rel (0) target = $region17
    $region16: #{transformer_forward.1} parent=1 // pred_region
      _
    $region17: #{transformer_forward.1} parent=1 // pred_fallthru
      _
    // Predicated region
    $region18: #{transformer_forward.1} parent=1 // pred_check
      _
    $region19: #{transformer_forward.1} parent=1 // pred_check_branch
      %100 = sbr.rel (0) target = $region21
    $region20: #{transformer_forward.1} parent=1 // pred_region
      _
    $region21: #{transformer_forward.1} parent=1 // pred_fallthru
      _
    // Predicated region
    $region22: #{transformer_forward.1} parent=1 // pred_check
      _
    $region23: #{transformer_forward.1} parent=1 // pred_check_branch
      %102 = sbr.rel (0) target = $region25
    $region24: #{transformer_forward.1} parent=1 // pred_region
      _
    $region25: #{transformer_forward.1} parent=1 // pred_fallthru
      _
    // Predicated region
    $region26: #{transformer_forward.1} parent=1 // pred_check
      _
    $region27: #{transformer_forward.1} parent=1 // pred_check_branch
      %104 = sbr.rel (0) target = $region29
    $region28: #{transformer_forward.1} parent=1 // pred_region
      _
    $region29: #{transformer_forward.1} parent=1 // pred_fallthru
      _
    // Predicated region
    $region30: #{transformer_forward.1} parent=1 // pred_check
      _
    $region31: #{transformer_forward.1} parent=1 // pred_check_branch
      %106 = sbr.rel (0) target = $region33
    $region32: #{transformer_forward.1} parent=1 // pred_region
      _
    $region33: #{transformer_forward.1} parent=1 // pred_fallthru
      _
    // Predicated region
    $region34: #{transformer_forward.1} parent=1 // pred_check
      _
    $region35: #{transformer_forward.1} parent=1 // pred_check_branch
      %108 = sbr.rel (0) target = $region37
    $region36: #{transformer_forward.1} parent=1 // pred_region
      _
    $region37: #{transformer_forward.1} parent=1 // pred_fallthru
      _
    // Predicated region
    $region38: #{transformer_forward.1} parent=1 // pred_check
      _
    $region39: #{transformer_forward.1} parent=1 // pred_check_branch
      %110 = sbr.rel (0) target = $region41
    $region40: #{transformer_forward.1} parent=1 // pred_region
      _
    $region41: #{transformer_forward.1} parent=1 // pred_fallthru
      _
    // Predicated region
    $region42: #{transformer_forward.1} parent=1 // pred_check
      _
    $region43: #{transformer_forward.1} parent=1 // pred_check_branch
      %112 = sbr.rel (0) target = $region45
    $region44: #{transformer_forward.1} parent=1 // pred_region
      _
    $region45: #{transformer_forward.1} parent=1 // pred_fallthru
      _
    // Predicated region
    $region46: #{transformer_forward.1} parent=1 // pred_check
      _
    $region47: #{transformer_forward.1} parent=1 // pred_check_branch
      %114 = sbr.rel (0) target = $region49
    $region48: #{transformer_forward.1} parent=1 // pred_region
      _
    $region49: #{transformer_forward.1} parent=1 // pred_fallthru
      _
    // Predicated region
    $region50: #{transformer_forward.1} parent=1 // pred_check
      _
    $region51: #{transformer_forward.1} parent=1 // pred_check_branch
      %116 = sbr.rel (0) target = $region53
    $region52: #{transformer_forward.1} parent=1 // pred_region
      _
    $region53: #{transformer_forward.1} parent=1 // pred_fallthru
      _
    // Predicated region
    $region54: #{transformer_forward.1} parent=1 // pred_check
      _
    $region55: #{transformer_forward.1} parent=1 // pred_check_branch
      %118 = sbr.rel (0) target = $region57
    $region56: #{transformer_forward.1} parent=1 // pred_region
      _
    $region57: #{transformer_forward.1} parent=1 // pred_fallthru
      _
    // Predicated region
    $region58: #{transformer_forward.1} parent=1 // pred_check
      _
    $region59: #{transformer_forward.1} parent=1 // pred_check_branch
      %120 = sbr.rel (0) target = $region61
    $region60: #{transformer_forward.1} parent=1 // pred_region
      _
    $region61: #{transformer_forward.1} parent=1 // pred_fallthru
      _
    // Predicated region
    $region62: #{transformer_forward.1} parent=1 // pred_check
      _
    $region63: #{transformer_forward.1} parent=1 // pred_check_branch
      %122 = sbr.rel (0) target = $region65
    $region64: #{transformer_forward.1} parent=1 // pred_region
      _
    $region65: #{transformer_forward.1} parent=1 // pred_fallthru
      _
    // Predicated region
    $region66: #{transformer_forward.1} parent=1 // pred_check
      _
    $region67: #{transformer_forward.1} parent=1 // pred_check_branch
      %124 = sbr.rel (0) target = $region69
    $region68: #{transformer_forward.1} parent=1 // pred_region
      _
    $region69: #{transformer_forward.1} parent=1 // pred_fallthru
      _
    // Predicated region
    $region70: #{transformer_forward.1} parent=1 // pred_check
      _
    $region71: #{transformer_forward.1} parent=1 // pred_check_branch
      %126 = sbr.rel (0) target = $region73
    $region72: #{transformer_forward.1} parent=1 // pred_region
      _
    $region73: #{transformer_forward.1} parent=1 // pred_fallthru
      _
    // Predicated region
    $region74: #{transformer_forward.1} parent=1 // pred_check
      _
    $region75: #{transformer_forward.1} parent=1 // pred_check_branch
      %128 = sbr.rel (0) target = $region77
    $region76: #{transformer_forward.1} parent=1 // pred_region
      _
    $region77: #{transformer_forward.1} parent=1 // pred_fallthru
      _
    // Predicated region
    $region78: #{transformer_forward.1} parent=1 // pred_check
      _
    $region79: #{transformer_forward.1} parent=1 // pred_check_branch
      %130 = sbr.rel (0) target = $region81
    $region80: #{transformer_forward.1} parent=1 // pred_region
      _
    $region81: #{transformer_forward.1} parent=1 // pred_fallthru
      _
    // Predicated region
    $region82: #{transformer_forward.1} parent=1 // pred_check
      _
    $region83: #{transformer_forward.1} parent=1 // pred_check_branch
      %132 = sbr.rel (0) target = $region85
    $region84: #{transformer_forward.1} parent=1 // pred_region
      _
    $region85: #{transformer_forward.1} parent=1 // pred_fallthru
      _
    // Predicated region
    $region86: #{transformer_forward.1} parent=1 // pred_check
      _
    $region87: #{transformer_forward.1} parent=1 // pred_check_branch
      %134 = sbr.rel (0) target = $region89
    $region88: #{transformer_forward.1} parent=1 // pred_region
      _
    $region89: #{transformer_forward.1} parent=1 // pred_fallthru
      _
    // Predicated region
    $region90: #{transformer_forward.1} parent=1 // pred_check
      _
    $region91: #{transformer_forward.1} parent=1 // pred_check_branch
      %136 = sbr.rel (0) target = $region93
    $region92: #{transformer_forward.1} parent=1 // pred_region
      _
    $region93: #{transformer_forward.1} parent=1 // pred_fallthru
      _
    // Predicated region
    $region94: #{transformer_forward.1} parent=1 // pred_check
      _
    $region95: #{transformer_forward.1} parent=1 // pred_check_branch
      %138 = sbr.rel (0) target = $region97
    $region96: #{transformer_forward.1} parent=1 // pred_region
      _
    $region97: #{transformer_forward.1} parent=1 // pred_fallthru
      _
    // Predicated region
    $region98: #{transformer_forward.1} parent=1 // pred_check
      _
    $region99: #{transformer_forward.1} parent=1 // pred_check_branch
      %140 = sbr.rel (0) target = $region101
    $region100: #{transformer_forward.1} parent=1 // pred_region
      _
    $region101: #{transformer_forward.1} parent=1 // pred_fallthru
      _
    // Predicated region
    $region102: #{transformer_forward.1} parent=1 // pred_check
      _
    $region103: #{transformer_forward.1} parent=1 // pred_check_branch
      %142 = sbr.rel (0) target = $region105
    $region104: #{transformer_forward.1} parent=1 // pred_region
      _
    $region105: #{transformer_forward.1} parent=1 // pred_fallthru
      _
    // Predicated region
    $region106: #{transformer_forward.1} parent=1 // pred_check
      _
    $region107: #{transformer_forward.1} parent=1 // pred_check_branch
      %144 = sbr.rel (0) target = $region109
    $region108: #{transformer_forward.1} parent=1 // pred_region
      _
    $region109: #{transformer_forward.1} parent=1 // pred_fallthru
      _
    // Predicated region
    $region110: #{transformer_forward.1} parent=1 // pred_check
      _
    $region111: #{transformer_forward.1} parent=1 // pred_check_branch
      %146 = sbr.rel (0) target = $region113
    $region112: #{transformer_forward.1} parent=1 // pred_region
      _
    $region113: #{transformer_forward.1} parent=1 // pred_fallthru
      _
    // Predicated region
    $region114: #{transformer_forward.1} parent=1 // pred_check
      _
    $region115: #{transformer_forward.1} parent=1 // pred_check_branch
      %148 = sbr.rel (0) target = $region117
    $region116: #{transformer_forward.1} parent=1 // pred_region
      _
    $region117: #{transformer_forward.1} parent=1 // pred_fallthru
      _
    // Predicated region
    $region118: #{transformer_forward.1} parent=1 // pred_check
      _
    $region119: #{transformer_forward.1} parent=1 // pred_check_branch
      %150 = sbr.rel (0) target = $region121
    $region120: #{transformer_forward.1} parent=1 // pred_region
      _
    $region121: #{transformer_forward.1} parent=1 // pred_fallthru
      _
    // Predicated region
    $region122: #{transformer_forward.1} parent=1 // pred_check
      _
    $region123: #{transformer_forward.1} parent=1 // pred_check_branch
      %152 = sbr.rel (0) target = $region125
    $region124: #{transformer_forward.1} parent=1 // pred_region
      _
    $region125: #{transformer_forward.1} parent=1 // pred_fallthru
      _
    // Predicated region
    $region126: #{transformer_forward.1} parent=1 // pred_check
      _
    $region127: #{transformer_forward.1} parent=1 // pred_check_branch
      %154 = sbr.rel (0) target = $region129
    $region128: #{transformer_forward.1} parent=1 // pred_region
      _
    $region129: #{transformer_forward.1} parent=1 // pred_fallthru
      _
    // Predicated region
    $region130: #{transformer_forward.1} parent=1 // pred_check
      _
    $region131: #{transformer_forward.1} parent=1 // pred_check_branch
      %156 = sbr.rel (0) target = $region133
    $region132: #{transformer_forward.1} parent=1 // pred_region
      _
    $region133: #{transformer_forward.1} parent=1 // pred_fallthru
      _
    // Predicated region
    $region134: #{transformer_forward.1} parent=1 // pred_check
      _
    $region135: #{transformer_forward.1} parent=1 // pred_check_branch
      %158 = sbr.rel (0) target = $region137
    $region136: #{transformer_forward.1} parent=1 // pred_region
      _
    $region137: #{transformer_forward.1} parent=1 // pred_fallthru
      _
    // Predicated region
    $region138: #{transformer_forward.1} parent=1 // pred_check
      _
    $region139: #{transformer_forward.1} parent=1 // pred_check_branch
      %160 = sbr.rel (0) target = $region141
    $region140: #{transformer_forward.1} parent=1 // pred_region
      _
    $region141: #{transformer_forward.1} parent=1 // pred_fallthru
      _
    // Predicated region
    $region142: #{transformer_forward.1} parent=1 // pred_check
      _
    $region143: #{transformer_forward.1} parent=1 // pred_check_branch
      %162 = sbr.rel (0) target = $region145
    $region144: #{transformer_forward.1} parent=1 // pred_region
      _
    $region145: #{transformer_forward.1} parent=1 // pred_fallthru
      _
    // Predicated region
    $region146: #{transformer_forward.1} parent=1 // pred_check
      _
    $region147: #{transformer_forward.1} parent=1 // pred_check_branch
      %164 = sbr.rel (0) target = $region149
    $region148: #{transformer_forward.1} parent=1 // pred_region
      _
    $region149: #{transformer_forward.1} parent=1 // pred_fallthru
      _
    // Predicated region
    $region150: #{transformer_forward.1} parent=1 // pred_check
      _
    $region151: #{transformer_forward.1} parent=1 // pred_check_branch
      %166 = sbr.rel (0) target = $region153
    $region152: #{transformer_forward.1} parent=1 // pred_region
      _
    $region153: #{transformer_forward.1} parent=1 // pred_fallthru
      _
    // Predicated region
    $region154: #{transformer_forward.1} parent=1 // pred_check
      _
    $region155: #{transformer_forward.1} parent=1 // pred_check_branch
      %168 = sbr.rel (0) target = $region157
    $region156: #{transformer_forward.1} parent=1 // pred_region
      _
    $region157: #{transformer_forward.1} parent=1 // pred_fallthru
      _
    // Predicated region
    $region158: #{transformer_forward.1} parent=1 // pred_check
      _
    $region159: #{transformer_forward.1} parent=1 // pred_check_branch
      %170 = sbr.rel (0) target = $region161
    $region160: #{transformer_forward.1} parent=1 // pred_region
      _
    $region161: #{transformer_forward.1} parent=1 // pred_fallthru
      _
    // Predicated region
    $region162: #{transformer_forward.1} parent=1 // pred_check
      _
    $region163: #{transformer_forward.1} parent=1 // pred_check_branch
      %172 = sbr.rel (0) target = $region165
    $region164: #{transformer_forward.1} parent=1 // pred_region
      _
    $region165: #{transformer_forward.1} parent=1 // pred_fallthru
      _
    // Predicated region
    $region166: #{transformer_forward.1} parent=1 // pred_check
      _
    $region167: #{transformer_forward.1} parent=1 // pred_check_branch
      %174 = sbr.rel (0) target = $region169
    $region168: #{transformer_forward.1} parent=1 // pred_region
      _
    $region169: #{transformer_forward.1} parent=1 // pred_fallthru
      _
    %v176 = vlaneseq
    %v177 = vshrl.u32 %v176, 7
    %v178 = vlaneseq
    %v179 = vand.u32 %v178, 127
    %vm180 = vcmp.gt.s32.totalorder %v179, %v177
    %v181 = vsel %vm180, -1e+30, 0.0
    %v182 = vld [vmem:[%s1] sm:$0xff]
    %v183 = vld [vmem:[%s1 + $0x8] sm:$0xf]
    %v184 = vld [vmem:[%s5] sm:$0x1]
    %v185 = vld [vmem:[%s9] sm:$0xf]
    %v186 = vld [vmem:[%s9 + $0x4] sm:$0xf]
    %v187 = vld [vmem:[%s9 + $0x8] sm:$0xf]
    %v188 = vld [vmem:[%s9 + $0xc] sm:$0xf]
    %v189 = vld [vmem:[%s11] sm:$0x1]
    %v190 = vld [vmem:[%s13] sm:$0xf]
    %v191 = vld [vmem:[%s13 + $0x4] sm:$0xf]
    %v192 = vld [vmem:[%s13 + $0x8] sm:$0xf]
    %v193 = vld [vmem:[%s13 + $0xc] sm:$0xf]
    %v194 = vld [vmem:[%s15] sm:$0x1]
    %v195 = vpack.c.bf16 %v183, %v182
    %v197 = vperm.slane %v189, 0
    %v203 = vunpack.c.l.b16 %v185
    %v204 = vunpack.c.l.b16 %v186
    %v205 = vunpack.c.l.b16 %v187
    %v206 = vunpack.c.l.b16 %v188
    %v207 = vpack.c.b16 %v204, %v203
    %v208 = vpack.c.b16 %v206, %v205
    %vm211 = vcmask 261120
    %v213 = vsel %vm211, %v195, 0
    %215 = vmatpush.bf16.msra.mxu0 0
    %216 = vmatpush.bf16.msra.mxu0 0
    %217 = vmatpush.bf16.msra.mxu0 0
    %218 = vmatpush.bf16.msra.mxu0 0
    %219 = vmatpush.bf16.msra.mxu0 0
    %220 = vmatpush.bf16.msra.mxu0 0
    %221 = vmatpush.bf16.msra.mxu0 %v208
    %222 = vmatpush.bf16.msra.mxu0 %v207
    %223 = vmatmul.bf16.gmra.mxu0 %v213
    %v224 = vpop.f32.mrf.mxu0
    %v225 = vadd.f32 %v197, %v224
    %v226 = vpop.f32.mrf.mxu0
    %v227 = vadd.f32 %v197, %v226
    %228 = vdwg.mxu0
    %v229 = vpack.c.bf16 %v225, %v225
    %v230 = vpack.c.bf16 %v227, %v227
    %v232 = vperm.slane %v184, 0
    %v236 = vunpack.c.l.b16 %v229
    %v237 = vunpack.c.l.b16 %v230
    %v238 = vpack.c.b16 %v237, %v236
    %239 = vrot.lane.b32.xlu0 %v238, 96
    %v240 = vpop.permute.xlu0 %239
    %vm241 = vcmask 64512
    %v243 = vsel %vm241, %v238, 0
    %v246 = vsel %vm241, %v240, 0
    %248 = vmatpush.bf16.xpose.msra.mxu0 0
    %249 = vmatpush.bf16.xpose.msra.mxu0 0
    %250 = vmatpush.bf16.xpose.msra.mxu0 0
    %251 = vmatpush.bf16.xpose.msra.mxu0 0
    %252 = vmatpush.bf16.xpose.msra.mxu0 0
    %253 = vmatpush.bf16.xpose.msra.mxu0 0
    %254 = vmatpush.bf16.xpose.msra.mxu0 0
    %255 = vmatpush.bf16.xpose.msra.mxu0 %v246
    %256 = vmatmul.bf16.gmra.mxu0 %v243
    %v257 = vpop.f32.mrf.mxu0
    %v258 = vadd.f32 %v232, %v257
    %v259 = vpop.f32.mrf.mxu0
    %v260 = vadd.f32 %v232, %v259
    %261 = vdwg.mxu0
    %vm262 = vcmask 97280
    %v263 = vsel %vm262, %v258, -inf
    %264 = vmax.xlane.f32.xlu0 %v263
    %v265 = vpop.xlane.xlu0 %264
    %vm266 = vcmask 93184
    %v267 = vsel %vm266, %v260, -inf
    %268 = vmax.xlane.f32.xlu0 %v267
    %v269 = vpop.xlane.xlu0 %268
    %v270 = vsub.f32 %v258, %v265
    %v271 = vsub.f32 %v260, %v269
    %v272 = vmul.f32 %v270, 1.442695
    %v273 = vpow.pop %v272
    %v274 = vmul.f32 %v271, 1.442695
    %v275 = vpow.pop %v274
    %v276 = vsel %vm262, %v273, 0.0
    %277 = vadd.xlane.f32.xlu0 %v276
    %v278 = vpop.xlane.xlu0 %277
    %v279 = vsel %vm266, %v275, 0.0
    %280 = vadd.xlane.f32.xlu0 %v279
    %v281 = vpop.xlane.xlu0 %280
    %v282 = vrcp.pop %v278
    %v283 = vrcp.pop %v281
    %v284 = vmul.f32 %v273, %v282
    %v285 = vmul.f32 %v275, %v283
    %v286 = vpack.c.bf16 %v285, %v284
    %287 = vrot.lane.b32.xlu0 %v238, 64
    %v288 = vpop.permute.xlu0 %287
    %v290 = vsel %vm262, %v286, 0
    %vm292 = vcmask 1045504
    %v294 = vsel %vm292, %v288, 0
    %296 = vmatpush.bf16.msra.mxu0 0
    %297 = vmatpush.bf16.msra.mxu0 0
    %298 = vmatpush.bf16.msra.mxu0 0
    %299 = vmatpush.bf16.msra.mxu0 0
    %300 = vmatpush.bf16.msra.mxu0 0
    %301 = vmatpush.bf16.msra.mxu0 0
    %302 = vmatpush.bf16.msra.mxu0 0
    %303 = vmatpush.bf16.msra.mxu0 %v294
    %304 = vmatmul.bf16.gmra.mxu0 %v290
    %v305 = vpop.f32.mrf.mxu0
    %v306 = vadd.f32 0.0, %v305
    %v307 = vpop.f32.mrf.mxu0
    %v308 = vadd.f32 0.0, %v307
    %309 = vdwg.mxu0
    %310 = vrot.lane.b32.xlu0 %v238, 120
    %v311 = vpop.permute.xlu0 %310
    %312 = vrot.lane.b32.xlu0 %v238, 88
    %v313 = vpop.permute.xlu0 %312
    %v315 = vsel %vm241, %v311, 0
    %v318 = vsel %vm241, %v313, 0
    %320 = vmatpush.bf16.xpose.msra.mxu0 0
    %321 = vmatpush.bf16.xpose.msra.mxu0 0
    %322 = vmatpush.bf16.xpose.msra.mxu0 0
    %323 = vmatpush.bf16.xpose.msra.mxu0 0
    %324 = vmatpush.bf16.xpose.msra.mxu0 0
    %325 = vmatpush.bf16.xpose.msra.mxu0 0
    %326 = vmatpush.bf16.xpose.msra.mxu0 0
    %327 = vmatpush.bf16.xpose.msra.mxu0 %v318
    %328 = vmatmul.bf16.gmra.mxu0 %v315
    %v329 = vpop.f32.mrf.mxu0
    %v330 = vadd.f32 %v232, %v329
    %v331 = vpop.f32.mrf.mxu0
    %v332 = vadd.f32 %v232, %v331
    %333 = vdwg.mxu0
    %v334 = vsel %vm262, %v330, -inf
    %335 = vmax.xlane.f32.xlu0 %v334
    %v336 = vpop.xlane.xlu0 %335
    %v337 = vsel %vm266, %v332, -inf
    %338 = vmax.xlane.f32.xlu0 %v337
    %v339 = vpop.xlane.xlu0 %338
    %v340 = vsub.f32 %v330, %v336
    %v341 = vsub.f32 %v332, %v339
    %v342 = vmul.f32 %v340, 1.442695
    %v343 = vpow.pop %v342
    %v344 = vmul.f32 %v341, 1.442695
    %v345 = vpow.pop %v344
    %v346 = vsel %vm262, %v343, 0.0
    %347 = vadd.xlane.f32.xlu0 %v346
    %v348 = vpop.xlane.xlu0 %347
    %v349 = vsel %vm266, %v345, 0.0
    %350 = vadd.xlane.f32.xlu0 %v349
    %v351 = vpop.xlane.xlu0 %350
    %v352 = vrcp.pop %v348
    %v353 = vrcp.pop %v351
    %v354 = vmul.f32 %v343, %v352
    %v355 = vmul.f32 %v345, %v353
    %v356 = vpack.c.bf16 %v355, %v354
    %357 = vrot.lane.b32.xlu0 %v238, 56
    %v358 = vpop.permute.xlu0 %357
    %v360 = vsel %vm262, %v356, 0
    %v363 = vsel %vm292, %v358, 0
    %365 = vmatpush.bf16.msra.mxu0 0
    %366 = vmatpush.bf16.msra.mxu0 0
    %367 = vmatpush.bf16.msra.mxu0 0
    %368 = vmatpush.bf16.msra.mxu0 0
    %369 = vmatpush.bf16.msra.mxu0 0
    %370 = vmatpush.bf16.msra.mxu0 0
    %371 = vmatpush.bf16.msra.mxu0 0
    %372 = vmatpush.bf16.msra.mxu0 %v363
    %373 = vmatmul.bf16.gmra.mxu0 %v360
    %v374 = vpop.f32.mrf.mxu0
    %v375 = vadd.f32 0.0, %v374
    %v376 = vpop.f32.mrf.mxu0
    %v377 = vadd.f32 0.0, %v376
    %378 = vdwg.mxu0
    %379 = vrot.lane.b32.xlu0 %v238, 112
    %v380 = vpop.permute.xlu0 %379
    %381 = vrot.lane.b32.xlu0 %v238, 80
    %v382 = vpop.permute.xlu0 %381
    %v384 = vsel %vm241, %v380, 0
    %v387 = vsel %vm241, %v382, 0
    %389 = vmatpush.bf16.xpose.msra.mxu0 0
    %390 = vmatpush.bf16.xpose.msra.mxu0 0
    %391 = vmatpush.bf16.xpose.msra.mxu0 0
    %392 = vmatpush.bf16.xpose.msra.mxu0 0
    %393 = vmatpush.bf16.xpose.msra.mxu0 0
    %394 = vmatpush.bf16.xpose.msra.mxu0 0
    %395 = vmatpush.bf16.xpose.msra.mxu0 0
    %396 = vmatpush.bf16.xpose.msra.mxu0 %v387
    %397 = vmatmul.bf16.gmra.mxu0 %v384
    %v398 = vpop.f32.mrf.mxu0
    %v399 = vadd.f32 %v232, %v398
    %v400 = vpop.f32.mrf.mxu0
    %v401 = vadd.f32 %v232, %v400
    %402 = vdwg.mxu0
    %v403 = vsel %vm262, %v399, -inf
    %404 = vmax.xlane.f32.xlu0 %v403
    %v405 = vpop.xlane.xlu0 %404
    %v406 = vsel %vm266, %v401, -inf
    %407 = vmax.xlane.f32.xlu0 %v406
    %v408 = vpop.xlane.xlu0 %407
    %v409 = vsub.f32 %v399, %v405
    %v410 = vsub.f32 %v401, %v408
    %v411 = vmul.f32 %v409, 1.442695
    %v412 = vpow.pop %v411
    %v413 = vmul.f32 %v410, 1.442695
    %v414 = vpow.pop %v413
    %v415 = vsel %vm262, %v412, 0.0
    %416 = vadd.xlane.f32.xlu0 %v415
    %v417 = vpop.xlane.xlu0 %416
    %v418 = vsel %vm266, %v414, 0.0
    %419 = vadd.xlane.f32.xlu0 %v418
    %v420 = vpop.xlane.xlu0 %419
    %v421 = vrcp.pop %v417
    %v422 = vrcp.pop %v420
    %v423 = vmul.f32 %v412, %v421
    %v424 = vmul.f32 %v414, %v422
    %v425 = vpack.c.bf16 %v424, %v423
    %426 = vrot.lane.b32.xlu0 %v238, 48
    %v427 = vpop.permute.xlu0 %426
    %v429 = vsel %vm262, %v425, 0
    %v432 = vsel %vm292, %v427, 0
    %434 = vmatpush.bf16.msra.mxu0 0
    %435 = vmatpush.bf16.msra.mxu0 0
    %436 = vmatpush.bf16.msra.mxu0 0
    %437 = vmatpush.bf16.msra.mxu0 0
    %438 = vmatpush.bf16.msra.mxu0 0
    %439 = vmatpush.bf16.msra.mxu0 0
    %440 = vmatpush.bf16.msra.mxu0 0
    %441 = vmatpush.bf16.msra.mxu0 %v432
    %442 = vmatmul.bf16.gmra.mxu0 %v429
    %v443 = vpop.f32.mrf.mxu0
    %v444 = vadd.f32 0.0, %v443
    %v445 = vpop.f32.mrf.mxu0
    %v446 = vadd.f32 0.0, %v445
    %447 = vdwg.mxu0
    %448 = vrot.lane.b32.xlu0 %v238, 104
    %v449 = vpop.permute.xlu0 %448
    %450 = vrot.lane.b32.xlu0 %v238, 72
    %v451 = vpop.permute.xlu0 %450
    %v453 = vsel %vm241, %v449, 0
    %v456 = vsel %vm241, %v451, 0
    %458 = vmatpush.bf16.xpose.msra.mxu0 0
    %459 = vmatpush.bf16.xpose.msra.mxu0 0
    %460 = vmatpush.bf16.xpose.msra.mxu0 0
    %461 = vmatpush.bf16.xpose.msra.mxu0 0
    %462 = vmatpush.bf16.xpose.msra.mxu0 0
    %463 = vmatpush.bf16.xpose.msra.mxu0 0
    %464 = vmatpush.bf16.xpose.msra.mxu0 0
    %465 = vmatpush.bf16.xpose.msra.mxu0 %v456
    %466 = vmatmul.bf16.gmra.mxu0 %v453
    %v467 = vpop.f32.mrf.mxu0
    %v468 = vadd.f32 %v232, %v467
    %v469 = vpop.f32.mrf.mxu0
    %v470 = vadd.f32 %v232, %v469
    %471 = vdwg.mxu0
    %v472 = vsel %vm262, %v468, -inf
    %473 = vmax.xlane.f32.xlu0 %v472
    %v474 = vpop.xlane.xlu0 %473
    %v475 = vsel %vm266, %v470, -inf
    %476 = vmax.xlane.f32.xlu0 %v475
    %v477 = vpop.xlane.xlu0 %476
    %v478 = vsub.f32 %v468, %v474
    %v479 = vsub.f32 %v470, %v477
    %v480 = vmul.f32 %v478, 1.442695
    %v481 = vpow.pop %v480
    %v482 = vmul.f32 %v479, 1.442695
    %v483 = vpow.pop %v482
    %v484 = vsel %vm262, %v481, 0.0
    %485 = vadd.xlane.f32.xlu0 %v484
    %v486 = vpop.xlane.xlu0 %485
    %v487 = vsel %vm266, %v483, 0.0
    %488 = vadd.xlane.f32.xlu0 %v487
    %v489 = vpop.xlane.xlu0 %488
    %v490 = vrcp.pop %v486
    %v491 = vrcp.pop %v489
    %v492 = vmul.f32 %v481, %v490
    %v493 = vmul.f32 %v483, %v491
    %v494 = vpack.c.bf16 %v493, %v492
    %495 = vrot.lane.b32.xlu0 %v238, 40
    %v496 = vpop.permute.xlu0 %495
    %v498 = vsel %vm262, %v494, 0
    %v501 = vsel %vm292, %v496, 0
    %503 = vmatpush.bf16.msra.mxu0 0
    %504 = vmatpush.bf16.msra.mxu0 0
    %505 = vmatpush.bf16.msra.mxu0 0
    %506 = vmatpush.bf16.msra.mxu0 0
    %507 = vmatpush.bf16.msra.mxu0 0
    %508 = vmatpush.bf16.msra.mxu0 0
    %509 = vmatpush.bf16.msra.mxu0 0
    %510 = vmatpush.bf16.msra.mxu0 %v501
    %511 = vmatmul.bf16.gmra.mxu0 %v498
    %v512 = vpop.f32.mrf.mxu0
    %v513 = vadd.f32 0.0, %v512
    %v514 = vpop.f32.mrf.mxu0
    %v515 = vadd.f32 0.0, %v514
    %516 = vdwg.mxu0
    %519 = vrot.lane.b32.xlu0 %v375, 8
    %v520 = vpop.permute.xlu0 %519
    %521 = vrot.lane.b32.xlu0 %v377, 8
    %v522 = vpop.permute.xlu0 %521
    %527 = vrot.lane.b32.xlu0 %v444, 16
    %v528 = vpop.permute.xlu0 %527
    %529 = vrot.lane.b32.xlu0 %v446, 16
    %v530 = vpop.permute.xlu0 %529
    %535 = vrot.lane.b32.xlu0 %v513, 24
    %v536 = vpop.permute.xlu0 %535
    %537 = vrot.lane.b32.xlu0 %v515, 24
    %v538 = vpop.permute.xlu0 %537
    %v541 = vsel %vm241, %v306, %v520
    %v542 = vsel %vm241, %v308, %v522
    %vm543 = vcmask 130048
    %v544 = vsel %vm543, %v541, %v528
    %v545 = vsel %vm543, %v542, %v530
    %vm546 = vcmask 195584
    %v547 = vsel %vm546, %v544, %v536
    %v548 = vsel %vm546, %v545, %v538
    %v549 = vpack.c.bf16 %v548, %v547
    %v551 = vperm.slane %v194, 0
    %v557 = vunpack.c.l.b16 %v190
    %v558 = vunpack.c.l.b16 %v191
    %v559 = vunpack.c.l.b16 %v192
    %v560 = vunpack.c.l.b16 %v193
    %v561 = vpack.c.b16 %v558, %v557
    %v562 = vpack.c.b16 %v560, %v559
    %v566 = vsel %vm211, %v549, 0
    %568 = vmatpush.bf16.msra.mxu0 0
    %569 = vmatpush.bf16.msra.mxu0 0
    %570 = vmatpush.bf16.msra.mxu0 0
    %571 = vmatpush.bf16.msra.mxu0 0
    %572 = vmatpush.bf16.msra.mxu0 0
    %573 = vmatpush.bf16.msra.mxu0 0
    %574 = vmatpush.bf16.msra.mxu0 %v562
    %575 = vmatpush.bf16.msra.mxu0 %v561
    %576 = vmatmul.bf16.gmra.mxu0 %v566
    %v577 = vpop.f32.mrf.mxu0
    %v578 = vadd.f32 %v551, %v577
    %v579 = vpop.f32.mrf.mxu0
    %v580 = vadd.f32 %v551, %v579
    %581 = vdwg.mxu0
    %v582 = vadd.f32 %v182, %v578
    %v583 = vadd.f32 %v183, %v580
    %v584 = vld [vmem:[%s17] sm:$0x1]
    %v585 = vld [vmem:[%s19] sm:$0x1]
    %v586 = vsel %vm211, %v582, 0.0
    %587 = vadd.xlane.f32.xlu0 %v586
    %v588 = vpop.xlane.xlu0 %587
    %vm589 = vcmask 257024
    %v590 = vsel %vm589, %v583, 0.0
    %591 = vadd.xlane.f32.xlu0 %v590
    %v592 = vpop.xlane.xlu0 %591
    %v593 = vrcp.pop 32.0
    %v594 = vmul.f32 32.0, %v593
    %v595 = vsub.f32 1.0, %v594
    %v596 = vmul.f32 %v593, %v595
    %v597 = vadd.f32 %v593, %v596
    %vm598 = vweird.f32 %v593
    %v599 = vsel %vm598, %v593, %v597
    %v600 = vmul.f32 %v588, %v599
    %v601 = vmul.f32 %v592, %v599
    %v602 = vsub.f32 %v582, %v600
    %v603 = vsub.f32 %v583, %v601
    %v604 = vmul.f32 %v602, %v602
    %v605 = vmul.f32 %v603, %v603
    %v606 = vsel %vm211, %v604, 0.0
    %607 = vadd.xlane.f32.xlu0 %v606
    %v608 = vpop.xlane.xlu0 %607
    %v609 = vsel %vm589, %v605, 0.0
    %610 = vadd.xlane.f32.xlu0 %v609
    %v611 = vpop.xlane.xlu0 %610
    %v612 = vmul.f32 %v608, %v599
    %v613 = vmul.f32 %v611, %v599
    %v614 = vadd.f32 %v612, 1e-05
    %v615 = vadd.f32 %v613, 1e-05
    %v616 = vrsqrt.pop %v614
    %v617 = vmul.f32 %v616, %v614
    %v618 = vmul.f32 %v617, %v616
    %v619 = vmul.f32 0.5, %v618
    %v620 = vsub.f32 1.5, %v619
    %v621 = vmul.f32 %v616, %v620
    %vm622 = vweird.f32 %v614
    %vm623 = vweird.f32 %v616
    %vm624 = vmor %vm622, %vm623
    %v625 = vsel %vm624, %v616, %v621
    %v626 = vrsqrt.pop %v615
    %v627 = vmul.f32 %v626, %v615
    %v628 = vmul.f32 %v627, %v626
    %v629 = vmul.f32 0.5, %v628
    %v630 = vsub.f32 1.5, %v629
    %v631 = vmul.f32 %v626, %v630
    %vm632 = vweird.f32 %v615
    %vm633 = vweird.f32 %v626
    %vm634 = vmor %vm632, %vm633
    %v635 = vsel %vm634, %v626, %v631
    %v636 = vmul.f32 %v602, %v625
    %v637 = vmul.f32 %v603, %v635
    %v639 = vperm.slane %v584, 0
    %v641 = vmul.f32 %v636, %v639
    %v642 = vmul.f32 %v637, %v639
    %v644 = vperm.slane %v585, 0
    %v646 = vadd.f32 %v641, %v644
    %v647 = vadd.f32 %v642, %v644
    %v648 = vld [vmem:[%s21] sm:$0xf]
    %v649 = vld [vmem:[%s21 + $0x4] sm:$0xf]
    %v650 = vld [vmem:[%s21 + $0x8] sm:$0xf]
    %v651 = vld [vmem:[%s21 + $0xc] sm:$0xf]
    %v652 = vld [vmem:[%s23] sm:$0x1]
    %v653 = vld [vmem:[%s25] sm:$0xf]
    %v654 = vld [vmem:[%s25 + $0x4] sm:$0xf]
    %v655 = vld [vmem:[%s25 + $0x8] sm:$0xf]
    %v656 = vld [vmem:[%s25 + $0xc] sm:$0xf]
    %v657 = vld [vmem:[%s25 + $0x10] sm:$0xf]
    %v658 = vld [vmem:[%s25 + $0x14] sm:$0xf]
    %v659 = vld [vmem:[%s25 + $0x18] sm:$0xf]
    %v660 = vld [vmem:[%s25 + $0x1c] sm:$0xf]
    %v661 = vld [vmem:[%s25 + $0x20] sm:$0xf]
    %v662 = vld [vmem:[%s25 + $0x24] sm:$0xf]
    %v663 = vld [vmem:[%s25 + $0x28] sm:$0xf]
    %v664 = vld [vmem:[%s25 + $0x2c] sm:$0xf]
    %v665 = vld [vmem:[%s25 + $0x30] sm:$0xf]
    %v666 = vld [vmem:[%s25 + $0x34] sm:$0xf]
    %v667 = vld [vmem:[%s25 + $0x38] sm:$0xf]
    %v668 = vld [vmem:[%s25 + $0x3c] sm:$0xf]
    %v669 = vld [vmem:[%s27] sm:$0x1]
    %v670 = vpack.c.bf16 %v647, %v646
    %v672 = vperm.slane %v652, 0
    %v678 = vunpack.c.l.b16 %v648
    %v679 = vunpack.c.l.b16 %v649
    %v680 = vunpack.c.l.b16 %v650
    %v681 = vunpack.c.l.b16 %v651
    %v682 = vpack.c.b16 %v679, %v678
    %v683 = vpack.c.b16 %v681, %v680
    %v687 = vsel %vm211, %v670, 0
    %689 = vmatpush.bf16.msra.mxu0 0
    %690 = vmatpush.bf16.msra.mxu0 0
    %691 = vmatpush.bf16.msra.mxu0 0
    %692 = vmatpush.bf16.msra.mxu0 0
    %693 = vmatpush.bf16.msra.mxu0 0
    %694 = vmatpush.bf16.msra.mxu0 0
    %695 = vmatpush.bf16.msra.mxu0 %v683
    %696 = vmatpush.bf16.msra.mxu0 %v682
    %697 = vmatmul.bf16.gmra.mxu0 %v687
    %v698 = vpop.f32.mrf.mxu0
    %v699 = vadd.f32 %v672, %v698
    %v700 = vpop.f32.mrf.mxu0
    %v701 = vadd.f32 %v672, %v700
    %702 = vdwg.mxu0
    %v703 = vmax.f32 %v699, 0.0
    %v704 = vmax.f32 %v701, 0.0
    %v705 = vpack.c.bf16 %v704, %v703
    %v707 = vperm.slane %v669, 0
    %v725 = vunpack.c.l.b16 %v653
    %v726 = vunpack.c.l.b16 %v654
    %v727 = vunpack.c.l.b16 %v655
    %v728 = vunpack.c.l.b16 %v656
    %v729 = vunpack.c.l.b16 %v657
    %v730 = vunpack.c.l.b16 %v658
    %v731 = vunpack.c.l.b16 %v659
    %v732 = vunpack.c.l.b16 %v660
    %v733 = vunpack.c.l.b16 %v661
    %v734 = vunpack.c.l.b16 %v662
    %v735 = vunpack.c.l.b16 %v663
    %v736 = vunpack.c.l.b16 %v664
    %v737 = vunpack.c.l.b16 %v665
    %v738 = vunpack.c.l.b16 %v666
    %v739 = vunpack.c.l.b16 %v667
    %v740 = vunpack.c.l.b16 %v668
    %v741 = vpack.c.b16 %v726, %v725
    %v742 = vpack.c.b16 %v728, %v727
    %v743 = vpack.c.b16 %v730, %v729
    %v744 = vpack.c.b16 %v732, %v731
    %v745 = vpack.c.b16 %v734, %v733
    %v746 = vpack.c.b16 %v736, %v735
    %v747 = vpack.c.b16 %v738, %v737
    %v748 = vpack.c.b16 %v740, %v739
    %757 = vmatpush.bf16.msra.mxu0 %v748
    %758 = vmatpush.bf16.msra.mxu0 %v747
    %759 = vmatpush.bf16.msra.mxu0 %v746
    %760 = vmatpush.bf16.msra.mxu0 %v745
    %761 = vmatpush.bf16.msra.mxu0 %v744
    %762 = vmatpush.bf16.msra.mxu0 %v743
    %763 = vmatpush.bf16.msra.mxu0 %v742
    %764 = vmatpush.bf16.msra.mxu0 %v741
    %765 = vmatmul.bf16.gmra.mxu0 %v705
    %v766 = vpop.f32.mrf.mxu0
    %v767 = vadd.f32 %v707, %v766
    %v768 = vpop.f32.mrf.mxu0
    %v769 = vadd.f32 %v707, %v768
    %770 = vdwg.mxu0
    %v771 = vadd.f32 %v646, %v767
    %v772 = vadd.f32 %v647, %v769
    %v773 = vld [vmem:[%s29] sm:$0x1]
    %v774 = vld [vmem:[%s31] sm:$0x1]
    %v775 = vsel %vm211, %v771, 0.0
    %776 = vadd.xlane.f32.xlu0 %v775
    %v777 = vpop.xlane.xlu0 %776
    %v778 = vsel %vm589, %v772, 0.0
    %779 = vadd.xlane.f32.xlu0 %v778
    %v780 = vpop.xlane.xlu0 %779
    %v781 = vmul.f32 %v777, %v599
    %v782 = vmul.f32 %v780, %v599
    %v783 = vsub.f32 %v771, %v781
    %v784 = vsub.f32 %v772, %v782
    %v785 = vmul.f32 %v783, %v783
    %v786 = vmul.f32 %v784, %v784
    %v787 = vsel %vm211, %v785, 0.0
    %788 = vadd.xlane.f32.xlu0 %v787
    %v789 = vpop.xlane.xlu0 %788
    %v790 = vsel %vm589, %v786, 0.0
    %791 = vadd.xlane.f32.xlu0 %v790
    %v792 = vpop.xlane.xlu0 %791
    %v793 = vmul.f32 %v789, %v599
    %v794 = vmul.f32 %v792, %v599
    %v795 = vadd.f32 %v793, 1e-05
    %v796 = vadd.f32 %v794, 1e-05
    %v797 = vrsqrt.pop %v795
    %v798 = vmul.f32 %v797, %v795
    %v799 = vmul.f32 %v798, %v797
    %v800 = vmul.f32 0.5, %v799
    %v801 = vsub.f32 1.5, %v800
    %v802 = vmul.f32 %v797, %v801
    %vm803 = vweird.f32 %v795
    %vm804 = vweird.f32 %v797
    %vm805 = vmor %vm803, %vm804
    %v806 = vsel %vm805, %v797, %v802
    %v807 = vrsqrt.pop %v796
    %v808 = vmul.f32 %v807, %v796
    %v809 = vmul.f32 %v808, %v807
    %v810 = vmul.f32 0.5, %v809
    %v811 = vsub.f32 1.5, %v810
    %v812 = vmul.f32 %v807, %v811
    %vm813 = vweird.f32 %v796
    %vm814 = vweird.f32 %v807
    %vm815 = vmor %vm813, %vm814
    %v816 = vsel %vm815, %v807, %v812
    %v817 = vmul.f32 %v783, %v806
    %v818 = vmul.f32 %v784, %v816
    %v820 = vperm.slane %v773, 0
    %v822 = vmul.f32 %v817, %v820
    %v823 = vmul.f32 %v818, %v820
    %v825 = vperm.slane %v774, 0
    %v827 = vadd.f32 %v822, %v825
    %v828 = vadd.f32 %v823, %v825
    %s829 = scalar_lea.vmem %s9, 16
    %v830 = vld [vmem:[%s829] sm:$0xf]
    %v831 = vld [vmem:[%s829 + $0x4] sm:$0xf]
    %v832 = vld [vmem:[%s829 + $0x8] sm:$0xf]
    %v833 = vld [vmem:[%s829 + $0xc] sm:$0xf]
    %s834 = scalar_lea.vmem %s11, 1
    %v835 = vld [vmem:[%s834] sm:$0x1]
    %s836 = scalar_lea.vmem %s13, 16
    %v837 = vld [vmem:[%s836] sm:$0xf]
    %v838 = vld [vmem:[%s836 + $0x4] sm:$0xf]
    %v839 = vld [vmem:[%s836 + $0x8] sm:$0xf]
    %v840 = vld [vmem:[%s836 + $0xc] sm:$0xf]
    %s841 = scalar_lea.vmem %s15, 1
    %v842 = vld [vmem:[%s841] sm:$0x1]
    %v843 = vpack.c.bf16 %v828, %v827
    %v845 = vperm.slane %v835, 0
    %v851 = vunpack.c.l.b16 %v830
    %v852 = vunpack.c.l.b16 %v831
    %v853 = vunpack.c.l.b16 %v832
    %v854 = vunpack.c.l.b16 %v833
    %v855 = vpack.c.b16 %v852, %v851
    %v856 = vpack.c.b16 %v854, %v853
    %v860 = vsel %vm211, %v843, 0
    %862 = vmatpush.bf16.msra.mxu0 0
    %863 = vmatpush.bf16.msra.mxu0 0
    %864 = vmatpush.bf16.msra.mxu0 0
    %865 = vmatpush.bf16.msra.mxu0 0
    %866 = vmatpush.bf16.msra.mxu0 0
    %867 = vmatpush.bf16.msra.mxu0 0
    %868 = vmatpush.bf16.msra.mxu0 %v856
    %869 = vmatpush.bf16.msra.mxu0 %v855
    %870 = vmatmul.bf16.gmra.mxu0 %v860
    %v871 = vpop.f32.mrf.mxu0
    %v872 = vadd.f32 %v845, %v871
    %v873 = vpop.f32.mrf.mxu0
    %v874 = vadd.f32 %v845, %v873
    %875 = vdwg.mxu0
    %v876 = vpack.c.bf16 %v872, %v872
    %v877 = vpack.c.bf16 %v874, %v874
    %v880 = vunpack.c.l.b16 %v876
    %v881 = vunpack.c.l.b16 %v877
    %v882 = vpack.c.b16 %v881, %v880
    %883 = vrot.lane.b32.xlu0 %v882, 96
    %v884 = vpop.permute.xlu0 %883
    %v886 = vsel %vm241, %v882, 0
    %v889 = vsel %vm241, %v884, 0
    %891 = vmatpush.bf16.xpose.msra.mxu0 0
    %892 = vmatpush.bf16.xpose.msra.mxu0 0
    %893 = vmatpush.bf16.xpose.msra.mxu0 0
    %894 = vmatpush.bf16.xpose.msra.mxu0 0
    %895 = vmatpush.bf16.xpose.msra.mxu0 0
    %896 = vmatpush.bf16.xpose.msra.mxu0 0
    %897 = vmatpush.bf16.xpose.msra.mxu0 0
    %898 = vmatpush.bf16.xpose.msra.mxu0 %v889
    %899 = vmatmul.bf16.gmra.mxu0 %v886
    %v900 = vpop.f32.mrf.mxu0
    %v901 = vadd.f32 %v232, %v900
    %v902 = vpop.f32.mrf.mxu0
    %v903 = vadd.f32 %v232, %v902
    %904 = vdwg.mxu0
    %v905 = vsel %vm262, %v901, -inf
    %906 = vmax.xlane.f32.xlu0 %v905
    %v907 = vpop.xlane.xlu0 %906
    %v908 = vsel %vm266, %v903, -inf
    %909 = vmax.xlane.f32.xlu0 %v908
    %v910 = vpop.xlane.xlu0 %909
    %v911 = vsub.f32 %v901, %v907
    %v912 = vsub.f32 %v903, %v910
    %v913 = vmul.f32 %v911, 1.442695
    %v914 = vpow.pop %v913
    %v915 = vmul.f32 %v912, 1.442695
    %v916 = vpow.pop %v915
    %v917 = vsel %vm262, %v914, 0.0
    %918 = vadd.xlane.f32.xlu0 %v917
    %v919 = vpop.xlane.xlu0 %918
    %v920 = vsel %vm266, %v916, 0.0
    %921 = vadd.xlane.f32.xlu0 %v920
    %v922 = vpop.xlane.xlu0 %921
    %v923 = vrcp.pop %v919
    %v924 = vrcp.pop %v922
    %v925 = vmul.f32 %v914, %v923
    %v926 = vmul.f32 %v916, %v924
    %v927 = vpack.c.bf16 %v926, %v925
    %928 = vrot.lane.b32.xlu0 %v882, 64
    %v929 = vpop.permute.xlu0 %928
    %v931 = vsel %vm262, %v927, 0
    %v934 = vsel %vm292, %v929, 0
    %936 = vmatpush.bf16.msra.mxu0 0
    %937 = vmatpush.bf16.msra.mxu0 0
    %938 = vmatpush.bf16.msra.mxu0 0
    %939 = vmatpush.bf16.msra.mxu0 0
    %940 = vmatpush.bf16.msra.mxu0 0
    %941 = vmatpush.bf16.msra.mxu0 0
    %942 = vmatpush.bf16.msra.mxu0 0
    %943 = vmatpush.bf16.msra.mxu0 %v934
    %944 = vmatmul.bf16.gmra.mxu0 %v931
    %v945 = vpop.f32.mrf.mxu0
    %v946 = vadd.f32 0.0, %v945
    %v947 = vpop.f32.mrf.mxu0
    %v948 = vadd.f32 0.0, %v947
    %949 = vdwg.mxu0
    %950 = vrot.lane.b32.xlu0 %v882, 120
    %v951 = vpop.permute.xlu0 %950
    %952 = vrot.lane.b32.xlu0 %v882, 88
    %v953 = vpop.permute.xlu0 %952
    %v955 = vsel %vm241, %v951, 0
    %v958 = vsel %vm241, %v953, 0
    %960 = vmatpush.bf16.xpose.msra.mxu0 0
    %961 = vmatpush.bf16.xpose.msra.mxu0 0
    %962 = vmatpush.bf16.xpose.msra.mxu0 0
    %963 = vmatpush.bf16.xpose.msra.mxu0 0
    %964 = vmatpush.bf16.xpose.msra.mxu0 0
    %965 = vmatpush.bf16.xpose.msra.mxu0 0
    %966 = vmatpush.bf16.xpose.msra.mxu0 0
    %967 = vmatpush.bf16.xpose.msra.mxu0 %v958
    %968 = vmatmul.bf16.gmra.mxu0 %v955
    %v969 = vpop.f32.mrf.mxu0
    %v970 = vadd.f32 %v232, %v969
    %v971 = vpop.f32.mrf.mxu0
    %v972 = vadd.f32 %v232, %v971
    %973 = vdwg.mxu0
    %v974 = vsel %vm262, %v970, -inf
    %975 = vmax.xlane.f32.xlu0 %v974
    %v976 = vpop.xlane.xlu0 %975
    %v977 = vsel %vm266, %v972, -inf
    %978 = vmax.xlane.f32.xlu0 %v977
    %v979 = vpop.xlane.xlu0 %978
    %v980 = vsub.f32 %v970, %v976
    %v981 = vsub.f32 %v972, %v979
    %v982 = vmul.f32 %v980, 1.442695
    %v983 = vpow.pop %v982
    %v984 = vmul.f32 %v981, 1.442695
    %v985 = vpow.pop %v984
    %v986 = vsel %vm262, %v983, 0.0
    %987 = vadd.xlane.f32.xlu0 %v986
    %v988 = vpop.xlane.xlu0 %987
    %v989 = vsel %vm266, %v985, 0.0
    %990 = vadd.xlane.f32.xlu0 %v989
    %v991 = vpop.xlane.xlu0 %990
    %v992 = vrcp.pop %v988
    %v993 = vrcp.pop %v991
    %v994 = vmul.f32 %v983, %v992
    %v995 = vmul.f32 %v985, %v993
    %v996 = vpack.c.bf16 %v995, %v994
    %997 = vrot.lane.b32.xlu0 %v882, 56
    %v998 = vpop.permute.xlu0 %997
    %v1000 = vsel %vm262, %v996, 0
    %v1003 = vsel %vm292, %v998, 0
    %1005 = vmatpush.bf16.msra.mxu0 0
    %1006 = vmatpush.bf16.msra.mxu0 0
    %1007 = vmatpush.bf16.msra.mxu0 0
    %1008 = vmatpush.bf16.msra.mxu0 0
    %1009 = vmatpush.bf16.msra.mxu0 0
    %1010 = vmatpush.bf16.msra.mxu0 0
    %1011 = vmatpush.bf16.msra.mxu0 0
    %1012 = vmatpush.bf16.msra.mxu0 %v1003
    %1013 = vmatmul.bf16.gmra.mxu0 %v1000
    %v1014 = vpop.f32.mrf.mxu0
    %v1015 = vadd.f32 0.0, %v1014
    %v1016 = vpop.f32.mrf.mxu0
    %v1017 = vadd.f32 0.0, %v1016
    %1018 = vdwg.mxu0
    %1019 = vrot.lane.b32.xlu0 %v882, 112
    %v1020 = vpop.permute.xlu0 %1019
    %1021 = vrot.lane.b32.xlu0 %v882, 80
    %v1022 = vpop.permute.xlu0 %1021
    %v1024 = vsel %vm241, %v1020, 0
    %v1027 = vsel %vm241, %v1022, 0
    %1029 = vmatpush.bf16.xpose.msra.mxu0 0
    %1030 = vmatpush.bf16.xpose.msra.mxu0 0
    %1031 = vmatpush.bf16.xpose.msra.mxu0 0
    %1032 = vmatpush.bf16.xpose.msra.mxu0 0
    %1033 = vmatpush.bf16.xpose.msra.mxu0 0
    %1034 = vmatpush.bf16.xpose.msra.mxu0 0
    %1035 = vmatpush.bf16.xpose.msra.mxu0 0
    %1036 = vmatpush.bf16.xpose.msra.mxu0 %v1027
    %1037 = vmatmul.bf16.gmra.mxu0 %v1024
    %v1038 = vpop.f32.mrf.mxu0
    %v1039 = vadd.f32 %v232, %v1038
    %v1040 = vpop.f32.mrf.mxu0
    %v1041 = vadd.f32 %v232, %v1040
    %1042 = vdwg.mxu0
    %v1043 = vsel %vm262, %v1039, -inf
    %1044 = vmax.xlane.f32.xlu0 %v1043
    %v1045 = vpop.xlane.xlu0 %1044
    %v1046 = vsel %vm266, %v1041, -inf
    %1047 = vmax.xlane.f32.xlu0 %v1046
    %v1048 = vpop.xlane.xlu0 %1047
    %v1049 = vsub.f32 %v1039, %v1045
    %v1050 = vsub.f32 %v1041, %v1048
    %v1051 = vmul.f32 %v1049, 1.442695
    %v1052 = vpow.pop %v1051
    %v1053 = vmul.f32 %v1050, 1.442695
    %v1054 = vpow.pop %v1053
    %v1055 = vsel %vm262, %v1052, 0.0
    %1056 = vadd.xlane.f32.xlu0 %v1055
    %v1057 = vpop.xlane.xlu0 %1056
    %v1058 = vsel %vm266, %v1054, 0.0
    %1059 = vadd.xlane.f32.xlu0 %v1058
    %v1060 = vpop.xlane.xlu0 %1059
    %v1061 = vrcp.pop %v1057
    %v1062 = vrcp.pop %v1060
    %v1063 = vmul.f32 %v1052, %v1061
    %v1064 = vmul.f32 %v1054, %v1062
    %v1065 = vpack.c.bf16 %v1064, %v1063
    %1066 = vrot.lane.b32.xlu0 %v882, 48
    %v1067 = vpop.permute.xlu0 %1066
    %v1069 = vsel %vm262, %v1065, 0
    %v1072 = vsel %vm292, %v1067, 0
    %1074 = vmatpush.bf16.msra.mxu0 0
    %1075 = vmatpush.bf16.msra.mxu0 0
    %1076 = vmatpush.bf16.msra.mxu0 0
    %1077 = vmatpush.bf16.msra.mxu0 0
    %1078 = vmatpush.bf16.msra.mxu0 0
    %1079 = vmatpush.bf16.msra.mxu0 0
    %1080 = vmatpush.bf16.msra.mxu0 0
    %1081 = vmatpush.bf16.msra.mxu0 %v1072
    %1082 = vmatmul.bf16.gmra.mxu0 %v1069
    %v1083 = vpop.f32.mrf.mxu0
    %v1084 = vadd.f32 0.0, %v1083
    %v1085 = vpop.f32.mrf.mxu0
    %v1086 = vadd.f32 0.0, %v1085
    %1087 = vdwg.mxu0
    %1088 = vrot.lane.b32.xlu0 %v882, 104
    %v1089 = vpop.permute.xlu0 %1088
    %1090 = vrot.lane.b32.xlu0 %v882, 72
    %v1091 = vpop.permute.xlu0 %1090
    %v1093 = vsel %vm241, %v1089, 0
    %v1096 = vsel %vm241, %v1091, 0
    %1098 = vmatpush.bf16.xpose.msra.mxu0 0
    %1099 = vmatpush.bf16.xpose.msra.mxu0 0
    %1100 = vmatpush.bf16.xpose.msra.mxu0 0
    %1101 = vmatpush.bf16.xpose.msra.mxu0 0
    %1102 = vmatpush.bf16.xpose.msra.mxu0 0
    %1103 = vmatpush.bf16.xpose.msra.mxu0 0
    %1104 = vmatpush.bf16.xpose.msra.mxu0 0
    %1105 = vmatpush.bf16.xpose.msra.mxu0 %v1096
    %1106 = vmatmul.bf16.gmra.mxu0 %v1093
    %v1107 = vpop.f32.mrf.mxu0
    %v1108 = vadd.f32 %v232, %v1107
    %v1109 = vpop.f32.mrf.mxu0
    %v1110 = vadd.f32 %v232, %v1109
    %1111 = vdwg.mxu0
    %v1112 = vsel %vm262, %v1108, -inf
    %1113 = vmax.xlane.f32.xlu0 %v1112
    %v1114 = vpop.xlane.xlu0 %1113
    %v1115 = vsel %vm266, %v1110, -inf
    %1116 = vmax.xlane.f32.xlu0 %v1115
    %v1117 = vpop.xlane.xlu0 %1116
    %v1118 = vsub.f32 %v1108, %v1114
    %v1119 = vsub.f32 %v1110, %v1117
    %v1120 = vmul.f32 %v1118, 1.442695
    %v1121 = vpow.pop %v1120
    %v1122 = vmul.f32 %v1119, 1.442695
    %v1123 = vpow.pop %v1122
    %v1124 = vsel %vm262, %v1121, 0.0
    %1125 = vadd.xlane.f32.xlu0 %v1124
    %v1126 = vpop.xlane.xlu0 %1125
    %v1127 = vsel %vm266, %v1123, 0.0
    %1128 = vadd.xlane.f32.xlu0 %v1127
    %v1129 = vpop.xlane.xlu0 %1128
    %v1130 = vrcp.pop %v1126
    %v1131 = vrcp.pop %v1129
    %v1132 = vmul.f32 %v1121, %v1130
    %v1133 = vmul.f32 %v1123, %v1131
    %v1134 = vpack.c.bf16 %v1133, %v1132
    %1135 = vrot.lane.b32.xlu0 %v882, 40
    %v1136 = vpop.permute.xlu0 %1135
    %v1138 = vsel %vm262, %v1134, 0
    %v1141 = vsel %vm292, %v1136, 0
    %1143 = vmatpush.bf16.msra.mxu0 0
    %1144 = vmatpush.bf16.msra.mxu0 0
    %1145 = vmatpush.bf16.msra.mxu0 0
    %1146 = vmatpush.bf16.msra.mxu0 0
    %1147 = vmatpush.bf16.msra.mxu0 0
    %1148 = vmatpush.bf16.msra.mxu0 0
    %1149 = vmatpush.bf16.msra.mxu0 0
    %1150 = vmatpush.bf16.msra.mxu0 %v1141
    %1151 = vmatmul.bf16.gmra.mxu0 %v1138
    %v1152 = vpop.f32.mrf.mxu0
    %v1153 = vadd.f32 0.0, %v1152
    %v1154 = vpop.f32.mrf.mxu0
    %v1155 = vadd.f32 0.0, %v1154
    %1156 = vdwg.mxu0
    %1159 = vrot.lane.b32.xlu0 %v1015, 8
    %v1160 = vpop.permute.xlu0 %1159
    %1161 = vrot.lane.b32.xlu0 %v1017, 8
    %v1162 = vpop.permute.xlu0 %1161
    %1167 = vrot.lane.b32.xlu0 %v1084, 16
    %v1168 = vpop.permute.xlu0 %1167
    %1169 = vrot.lane.b32.xlu0 %v1086, 16
    %v1170 = vpop.permute.xlu0 %1169
    %1175 = vrot.lane.b32.xlu0 %v1153, 24
    %v1176 = vpop.permute.xlu0 %1175
    %1177 = vrot.lane.b32.xlu0 %v1155, 24
    %v1178 = vpop.permute.xlu0 %1177
    %v1181 = vsel %vm241, %v946, %v1160
    %v1182 = vsel %vm241, %v948, %v1162
    %v1183 = vsel %vm543, %v1181, %v1168
    %v1184 = vsel %vm543, %v1182, %v1170
    %v1185 = vsel %vm546, %v1183, %v1176
    %v1186 = vsel %vm546, %v1184, %v1178
    %v1187 = vpack.c.bf16 %v1186, %v1185
    %v1189 = vperm.slane %v842, 0
    %v1195 = vunpack.c.l.b16 %v837
    %v1196 = vunpack.c.l.b16 %v838
    %v1197 = vunpack.c.l.b16 %v839
    %v1198 = vunpack.c.l.b16 %v840
    %v1199 = vpack.c.b16 %v1196, %v1195
    %v1200 = vpack.c.b16 %v1198, %v1197
    %v1204 = vsel %vm211, %v1187, 0
    %1206 = vmatpush.bf16.msra.mxu0 0
    %1207 = vmatpush.bf16.msra.mxu0 0
    %1208 = vmatpush.bf16.msra.mxu0 0
    %1209 = vmatpush.bf16.msra.mxu0 0
    %1210 = vmatpush.bf16.msra.mxu0 0
    %1211 = vmatpush.bf16.msra.mxu0 0
    %1212 = vmatpush.bf16.msra.mxu0 %v1200
    %1213 = vmatpush.bf16.msra.mxu0 %v1199
    %1214 = vmatmul.bf16.gmra.mxu0 %v1204
    %v1215 = vpop.f32.mrf.mxu0
    %v1216 = vadd.f32 %v1189, %v1215
    %v1217 = vpop.f32.mrf.mxu0
    %v1218 = vadd.f32 %v1189, %v1217
    %1219 = vdwg.mxu0
    %v1220 = vadd.f32 %v827, %v1216
    %v1221 = vadd.f32 %v828, %v1218
    %s1222 = scalar_lea.vmem %s17, 1
    %v1223 = vld [vmem:[%s1222] sm:$0x1]
    %s1224 = scalar_lea.vmem %s19, 1
    %v1225 = vld [vmem:[%s1224] sm:$0x1]
    %v1226 = vsel %vm211, %v1220, 0.0
    %1227 = vadd.xlane.f32.xlu0 %v1226
    %v1228 = vpop.xlane.xlu0 %1227
    %v1229 = vsel %vm589, %v1221, 0.0
    %1230 = vadd.xlane.f32.xlu0 %v1229
    %v1231 = vpop.xlane.xlu0 %1230
    %v1232 = vmul.f32 %v1228, %v599
    %v1233 = vmul.f32 %v1231, %v599
    %v1234 = vsub.f32 %v1220, %v1232
    %v1235 = vsub.f32 %v1221, %v1233
    %v1236 = vmul.f32 %v1234, %v1234
    %v1237 = vmul.f32 %v1235, %v1235
    %v1238 = vsel %vm211, %v1236, 0.0
    %1239 = vadd.xlane.f32.xlu0 %v1238
    %v1240 = vpop.xlane.xlu0 %1239
    %v1241 = vsel %vm589, %v1237, 0.0
    %1242 = vadd.xlane.f32.xlu0 %v1241
    %v1243 = vpop.xlane.xlu0 %1242
    %v1244 = vmul.f32 %v1240, %v599
    %v1245 = vmul.f32 %v1243, %v599
    %v1246 = vadd.f32 %v1244, 1e-05
    %v1247 = vadd.f32 %v1245, 1e-05
    %v1248 = vrsqrt.pop %v1246
    %v1249 = vmul.f32 %v1248, %v1246
    %v1250 = vmul.f32 %v1249, %v1248
    %v1251 = vmul.f32 0.5, %v1250
    %v1252 = vsub.f32 1.5, %v1251
    %v1253 = vmul.f32 %v1248, %v1252
    %vm1254 = vweird.f32 %v1246
    %vm1255 = vweird.f32 %v1248
    %vm1256 = vmor %vm1254, %vm1255
    %v1257 = vsel %vm1256, %v1248, %v1253
    %v1258 = vrsqrt.pop %v1247
    %v1259 = vmul.f32 %v1258, %v1247
    %v1260 = vmul.f32 %v1259, %v1258
    %v1261 = vmul.f32 0.5, %v1260
    %v1262 = vsub.f32 1.5, %v1261
    %v1263 = vmul.f32 %v1258, %v1262
    %vm1264 = vweird.f32 %v1247
    %vm1265 = vweird.f32 %v1258
    %vm1266 = vmor %vm1264, %vm1265
    %v1267 = vsel %vm1266, %v1258, %v1263
    %v1268 = vmul.f32 %v1234, %v1257
    %v1269 = vmul.f32 %v1235, %v1267
    %v1271 = vperm.slane %v1223, 0
    %v1273 = vmul.f32 %v1268, %v1271
    %v1274 = vmul.f32 %v1269, %v1271
    %v1276 = vperm.slane %v1225, 0
    %v1278 = vadd.f32 %v1273, %v1276
    %v1279 = vadd.f32 %v1274, %v1276
    %s1280 = scalar_lea.vmem %s21, 16
    %v1281 = vld [vmem:[%s1280] sm:$0xf]
    %v1282 = vld [vmem:[%s1280 + $0x4] sm:$0xf]
    %v1283 = vld [vmem:[%s1280 + $0x8] sm:$0xf]
    %v1284 = vld [vmem:[%s1280 + $0xc] sm:$0xf]
    %s1285 = scalar_lea.vmem %s23, 1
    %v1286 = vld [vmem:[%s1285] sm:$0x1]
    %s1287 = scalar_lea.vmem %s25, 64
    %v1288 = vld [vmem:[%s1287] sm:$0xf]
    %v1289 = vld [vmem:[%s1287 + $0x4] sm:$0xf]
    %v1290 = vld [vmem:[%s1287 + $0x8] sm:$0xf]
    %v1291 = vld [vmem:[%s1287 + $0xc] sm:$0xf]
    %v1292 = vld [vmem:[%s1287 + $0x10] sm:$0xf]
    %v1293 = vld [vmem:[%s1287 + $0x14] sm:$0xf]
    %v1294 = vld [vmem:[%s1287 + $0x18] sm:$0xf]
    %v1295 = vld [vmem:[%s1287 + $0x1c] sm:$0xf]
    %v1296 = vld [vmem:[%s1287 + $0x20] sm:$0xf]
    %v1297 = vld [vmem:[%s1287 + $0x24] sm:$0xf]
    %v1298 = vld [vmem:[%s1287 + $0x28] sm:$0xf]
    %v1299 = vld [vmem:[%s1287 + $0x2c] sm:$0xf]
    %v1300 = vld [vmem:[%s1287 + $0x30] sm:$0xf]
    %v1301 = vld [vmem:[%s1287 + $0x34] sm:$0xf]
    %v1302 = vld [vmem:[%s1287 + $0x38] sm:$0xf]
    %v1303 = vld [vmem:[%s1287 + $0x3c] sm:$0xf]
    %s1304 = scalar_lea.vmem %s27, 1
    %v1305 = vld [vmem:[%s1304] sm:$0x1]
    %v1306 = vpack.c.bf16 %v1279, %v1278
    %v1308 = vperm.slane %v1286, 0
    %v1314 = vunpack.c.l.b16 %v1281
    %v1315 = vunpack.c.l.b16 %v1282
    %v1316 = vunpack.c.l.b16 %v1283
    %v1317 = vunpack.c.l.b16 %v1284
    %v1318 = vpack.c.b16 %v1315, %v1314
    %v1319 = vpack.c.b16 %v1317, %v1316
    %v1323 = vsel %vm211, %v1306, 0
    %1325 = vmatpush.bf16.msra.mxu0 0
    %1326 = vmatpush.bf16.msra.mxu0 0
    %1327 = vmatpush.bf16.msra.mxu0 0
    %1328 = vmatpush.bf16.msra.mxu0 0
    %1329 = vmatpush.bf16.msra.mxu0 0
    %1330 = vmatpush.bf16.msra.mxu0 0
    %1331 = vmatpush.bf16.msra.mxu0 %v1319
    %1332 = vmatpush.bf16.msra.mxu0 %v1318
    %1333 = vmatmul.bf16.gmra.mxu0 %v1323
    %v1334 = vpop.f32.mrf.mxu0
    %v1335 = vadd.f32 %v1308, %v1334
    %v1336 = vpop.f32.mrf.mxu0
    %v1337 = vadd.f32 %v1308, %v1336
    %1338 = vdwg.mxu0
    %v1339 = vmax.f32 %v1335, 0.0
    %v1340 = vmax.f32 %v1337, 0.0
    %v1341 = vpack.c.bf16 %v1340, %v1339
    %v1343 = vperm.slane %v1305, 0
    %v1361 = vunpack.c.l.b16 %v1288
    %v1362 = vunpack.c.l.b16 %v1289
    %v1363 = vunpack.c.l.b16 %v1290
    %v1364 = vunpack.c.l.b16 %v1291
    %v1365 = vunpack.c.l.b16 %v1292
    %v1366 = vunpack.c.l.b16 %v1293
    %v1367 = vunpack.c.l.b16 %v1294
    %v1368 = vunpack.c.l.b16 %v1295
    %v1369 = vunpack.c.l.b16 %v1296
    %v1370 = vunpack.c.l.b16 %v1297
    %v1371 = vunpack.c.l.b16 %v1298
    %v1372 = vunpack.c.l.b16 %v1299
    %v1373 = vunpack.c.l.b16 %v1300
    %v1374 = vunpack.c.l.b16 %v1301
    %v1375 = vunpack.c.l.b16 %v1302
    %v1376 = vunpack.c.l.b16 %v1303
    %v1377 = vpack.c.b16 %v1362, %v1361
    %v1378 = vpack.c.b16 %v1364, %v1363
    %v1379 = vpack.c.b16 %v1366, %v1365
    %v1380 = vpack.c.b16 %v1368, %v1367
    %v1381 = vpack.c.b16 %v1370, %v1369
    %v1382 = vpack.c.b16 %v1372, %v1371
    %v1383 = vpack.c.b16 %v1374, %v1373
    %v1384 = vpack.c.b16 %v1376, %v1375
    %1393 = vmatpush.bf16.msra.mxu0 %v1384
    %1394 = vmatpush.bf16.msra.mxu0 %v1383
    %1395 = vmatpush.bf16.msra.mxu0 %v1382
    %1396 = vmatpush.bf16.msra.mxu0 %v1381
    %1397 = vmatpush.bf16.msra.mxu0 %v1380
    %1398 = vmatpush.bf16.msra.mxu0 %v1379
    %1399 = vmatpush.bf16.msra.mxu0 %v1378
    %1400 = vmatpush.bf16.msra.mxu0 %v1377
    %1401 = vmatmul.bf16.gmra.mxu0 %v1341
    %v1402 = vpop.f32.mrf.mxu0
    %v1403 = vadd.f32 %v1343, %v1402
    %v1404 = vpop.f32.mrf.mxu0
    %v1405 = vadd.f32 %v1343, %v1404
    %1406 = vdwg.mxu0
    %v1407 = vadd.f32 %v1278, %v1403
    %v1408 = vadd.f32 %v1279, %v1405
    %s1409 = scalar_lea.vmem %s29, 1
    %v1410 = vld [vmem:[%s1409] sm:$0x1]
    %s1411 = scalar_lea.vmem %s31, 1
    %v1412 = vld [vmem:[%s1411] sm:$0x1]
    %v1413 = vsel %vm211, %v1407, 0.0
    %1414 = vadd.xlane.f32.xlu0 %v1413
    %v1415 = vpop.xlane.xlu0 %1414
    %v1416 = vsel %vm589, %v1408, 0.0
    %1417 = vadd.xlane.f32.xlu0 %v1416
    %v1418 = vpop.xlane.xlu0 %1417
    %v1419 = vmul.f32 %v1415, %v599
    %v1420 = vmul.f32 %v1418, %v599
    %v1421 = vsub.f32 %v1407, %v1419
    %v1422 = vsub.f32 %v1408, %v1420
    %v1423 = vmul.f32 %v1421, %v1421
    %v1424 = vmul.f32 %v1422, %v1422
    %v1425 = vsel %vm211, %v1423, 0.0
    %1426 = vadd.xlane.f32.xlu0 %v1425
    %v1427 = vpop.xlane.xlu0 %1426
    %v1428 = vsel %vm589, %v1424, 0.0
    %1429 = vadd.xlane.f32.xlu0 %v1428
    %v1430 = vpop.xlane.xlu0 %1429
    %v1431 = vmul.f32 %v1427, %v599
    %v1432 = vmul.f32 %v1430, %v599
    %v1433 = vadd.f32 %v1431, 1e-05
    %v1434 = vadd.f32 %v1432, 1e-05
    %v1435 = vrsqrt.pop %v1433
    %v1436 = vmul.f32 %v1435, %v1433
    %v1437 = vmul.f32 %v1436, %v1435
    %v1438 = vmul.f32 0.5, %v1437
    %v1439 = vsub.f32 1.5, %v1438
    %v1440 = vmul.f32 %v1435, %v1439
    %vm1441 = vweird.f32 %v1433
    %vm1442 = vweird.f32 %v1435
    %vm1443 = vmor %vm1441, %vm1442
    %v1444 = vsel %vm1443, %v1435, %v1440
    %v1445 = vrsqrt.pop %v1434
    %v1446 = vmul.f32 %v1445, %v1434
    %v1447 = vmul.f32 %v1446, %v1445
    %v1448 = vmul.f32 0.5, %v1447
    %v1449 = vsub.f32 1.5, %v1448
    %v1450 = vmul.f32 %v1445, %v1449
    %vm1451 = vweird.f32 %v1434
    %vm1452 = vweird.f32 %v1445
    %vm1453 = vmor %vm1451, %vm1452
    %v1454 = vsel %vm1453, %v1445, %v1450
    %v1455 = vmul.f32 %v1421, %v1444
    %v1456 = vmul.f32 %v1422, %v1454
    %v1458 = vperm.slane %v1410, 0
    %v1460 = vmul.f32 %v1455, %v1458
    %v1461 = vmul.f32 %v1456, %v1458
    %v1463 = vperm.slane %v1412, 0
    %v1465 = vadd.f32 %v1460, %v1463
    %v1466 = vadd.f32 %v1461, %v1463
    %v1467 = vld [vmem:[%s33] sm:$0x1]
    %v1468 = vld [vmem:[%s35] sm:$0x1]
    %v1469 = vsel %vm211, %v1465, 0.0
    %1470 = vadd.xlane.f32.xlu0 %v1469
    %v1471 = vpop.xlane.xlu0 %1470
    %v1472 = vsel %vm589, %v1466, 0.0
    %1473 = vadd.xlane.f32.xlu0 %v1472
    %v1474 = vpop.xlane.xlu0 %1473
    %v1475 = vmul.f32 %v1471, %v599
    %v1476 = vmul.f32 %v1474, %v599
    %v1477 = vsub.f32 %v1465, %v1475
    %v1478 = vsub.f32 %v1466, %v1476
    %v1479 = vmul.f32 %v1477, %v1477
    %v1480 = vmul.f32 %v1478, %v1478
    %v1481 = vsel %vm211, %v1479, 0.0
    %1482 = vadd.xlane.f32.xlu0 %v1481
    %v1483 = vpop.xlane.xlu0 %1482
    %v1484 = vsel %vm589, %v1480, 0.0
    %1485 = vadd.xlane.f32.xlu0 %v1484
    %v1486 = vpop.xlane.xlu0 %1485
    %v1487 = vmul.f32 %v1483, %v599
    %v1488 = vmul.f32 %v1486, %v599
    %v1489 = vadd.f32 %v1487, 1e-05
    %v1490 = vadd.f32 %v1488, 1e-05
    %v1491 = vrsqrt.pop %v1489
    %v1492 = vmul.f32 %v1491, %v1489
    %v1493 = vmul.f32 %v1492, %v1491
    %v1494 = vmul.f32 0.5, %v1493
    %v1495 = vsub.f32 1.5, %v1494
    %v1496 = vmul.f32 %v1491, %v1495
    %vm1497 = vweird.f32 %v1489
    %vm1498 = vweird.f32 %v1491
    %vm1499 = vmor %vm1497, %vm1498
    %v1500 = vsel %vm1499, %v1491, %v1496
    %v1501 = vrsqrt.pop %v1490
    %v1502 = vmul.f32 %v1501, %v1490
    %v1503 = vmul.f32 %v1502, %v1501
    %v1504 = vmul.f32 0.5, %v1503
    %v1505 = vsub.f32 1.5, %v1504
    %v1506 = vmul.f32 %v1501, %v1505
    %vm1507 = vweird.f32 %v1490
    %vm1508 = vweird.f32 %v1501
    %vm1509 = vmor %vm1507, %vm1508
    %v1510 = vsel %vm1509, %v1501, %v1506
    %v1511 = vmul.f32 %v1477, %v1500
    %v1512 = vmul.f32 %v1478, %v1510
    %v1514 = vperm.slane %v1467, 0
    %v1516 = vmul.f32 %v1511, %v1514
    %v1517 = vmul.f32 %v1512, %v1514
    %v1519 = vperm.slane %v1468, 0
    %v1521 = vadd.f32 %v1516, %v1519
    %v1522 = vadd.f32 %v1517, %v1519
    %v1523 = vld [vmem:[%s3] sm:$0xff]
    %v1524 = vld [vmem:[%s7] sm:$0x1]
    %v1526 = vperm.slane %v1524, 0
    %v1528 = vadd.f32 %v181, %v1526
    %v1529 = vld [vmem:[%s37] sm:$0xf]
    %v1530 = vld [vmem:[%s37 + $0x4] sm:$0xf]
    %v1531 = vld [vmem:[%s37 + $0x8] sm:$0xf]
    %v1532 = vld [vmem:[%s37 + $0xc] sm:$0xf]
    %v1533 = vld [vmem:[%s39] sm:$0x1]
    %v1534 = vld [vmem:[%s41] sm:$0xf]
    %v1535 = vld [vmem:[%s41 + $0x4] sm:$0xf]
    %v1536 = vld [vmem:[%s41 + $0x8] sm:$0xf]
    %v1537 = vld [vmem:[%s41 + $0xc] sm:$0xf]
    %v1538 = vld [vmem:[%s43] sm:$0x1]
    %v1539 = vpack.c.bf16 %v1523, %v1523
    %v1541 = vperm.slane %v1533, 0
    %v1547 = vunpack.c.l.b16 %v1529
    %v1548 = vunpack.c.l.b16 %v1530
    %v1549 = vunpack.c.l.b16 %v1531
    %v1550 = vunpack.c.l.b16 %v1532
    %v1551 = vpack.c.b16 %v1548, %v1547
    %v1552 = vpack.c.b16 %v1550, %v1549
    %v1556 = vsel %vm211, %v1539, 0
    %1558 = vmatpush.bf16.msra.mxu0 0
    %1559 = vmatpush.bf16.msra.mxu0 0
    %1560 = vmatpush.bf16.msra.mxu0 0
    %1561 = vmatpush.bf16.msra.mxu0 0
    %1562 = vmatpush.bf16.msra.mxu0 0
    %1563 = vmatpush.bf16.msra.mxu0 0
    %1564 = vmatpush.bf16.msra.mxu0 %v1552
    %1565 = vmatpush.bf16.msra.mxu0 %v1551
    %1566 = vmatmul.bf16.gmra.mxu0 %v1556
    %v1567 = vpop.f32.mrf.mxu0
    %v1568 = vadd.f32 %v1541, %v1567
    %v1569 = vpop.f32.mrf.mxu0
    %1570 = vdwg.mxu0
    %v1571 = vpack.c.bf16 %v1568, %v1568
    %v1573 = vunpack.c.l.b16 %v1571
    %v1574 = vpack.c.b16 %v1573, %v1573
    %1575 = vrot.lane.b32.xlu0 %v1574, 96
    %v1576 = vpop.permute.xlu0 %1575
    %v1578 = vsel %vm241, %v1571, 0
    %v1581 = vsel %vm241, %v1576, 0
    %1583 = vmatpush.bf16.xpose.msra.mxu0 0
    %1584 = vmatpush.bf16.xpose.msra.mxu0 0
    %1585 = vmatpush.bf16.xpose.msra.mxu0 0
    %1586 = vmatpush.bf16.xpose.msra.mxu0 0
    %1587 = vmatpush.bf16.xpose.msra.mxu0 0
    %1588 = vmatpush.bf16.xpose.msra.mxu0 0
    %1589 = vmatpush.bf16.xpose.msra.mxu0 0
    %1590 = vmatpush.bf16.xpose.msra.mxu0 %v1581
    %1591 = vmatmul.bf16.gmra.mxu0 %v1578
    %v1592 = vpop.f32.mrf.mxu0
    %v1593 = vadd.f32 %v1528, %v1592
    %v1594 = vpop.f32.mrf.mxu0
    %1595 = vdwg.mxu0
    %v1596 = vsel %vm241, %v1593, -inf
    %1597 = vmax.xlane.f32.xlu0 %v1596
    %v1598 = vpop.xlane.xlu0 %1597
    %v1599 = vsub.f32 %v1593, %v1598
    %v1600 = vmul.f32 %v1599, 1.442695
    %v1601 = vpow.pop %v1600
    %v1602 = vsel %vm241, %v1601, 0.0
    %1603 = vadd.xlane.f32.xlu0 %v1602
    %v1604 = vpop.xlane.xlu0 %1603
    %v1605 = vrcp.pop %v1604
    %v1606 = vmul.f32 %v1601, %v1605
    %v1607 = vpack.c.bf16 %v1606, %v1606
    %1608 = vrot.lane.b32.xlu0 %v1574, 64
    %v1609 = vpop.permute.xlu0 %1608
    %v1611 = vsel %vm241, %v1607, 0
    %vm1613 = vcmask 1043456
    %v1615 = vsel %vm1613, %v1609, 0
    %1617 = vmatpush.bf16.msra.mxu0 0
    %1618 = vmatpush.bf16.msra.mxu0 0
    %1619 = vmatpush.bf16.msra.mxu0 0
    %1620 = vmatpush.bf16.msra.mxu0 0
    %1621 = vmatpush.bf16.msra.mxu0 0
    %1622 = vmatpush.bf16.msra.mxu0 0
    %1623 = vmatpush.bf16.msra.mxu0 0
    %1624 = vmatpush.bf16.msra.mxu0 %v1615
    %1625 = vmatmul.bf16.gmra.mxu0 %v1611
    %v1626 = vpop.f32.mrf.mxu0
    %v1627 = vadd.f32 0.0, %v1626
    %v1628 = vpop.f32.mrf.mxu0
    %1629 = vdwg.mxu0
    %1630 = vrot.lane.b32.xlu0 %v1574, 120
    %v1631 = vpop.permute.xlu0 %1630
    %1632 = vrot.lane.b32.xlu0 %v1574, 88
    %v1633 = vpop.permute.xlu0 %1632
    %v1635 = vsel %vm241, %v1631, 0
    %v1638 = vsel %vm241, %v1633, 0
    %1640 = vmatpush.bf16.xpose.msra.mxu0 0
    %1641 = vmatpush.bf16.xpose.msra.mxu0 0
    %1642 = vmatpush.bf16.xpose.msra.mxu0 0
    %1643 = vmatpush.bf16.xpose.msra.mxu0 0
    %1644 = vmatpush.bf16.xpose.msra.mxu0 0
    %1645 = vmatpush.bf16.xpose.msra.mxu0 0
    %1646 = vmatpush.bf16.xpose.msra.mxu0 0
    %1647 = vmatpush.bf16.xpose.msra.mxu0 %v1638
    %1648 = vmatmul.bf16.gmra.mxu0 %v1635
    %v1649 = vpop.f32.mrf.mxu0
    %v1650 = vadd.f32 %v1528, %v1649
    %v1651 = vpop.f32.mrf.mxu0
    %1652 = vdwg.mxu0
    %v1653 = vsel %vm241, %v1650, -inf
    %1654 = vmax.xlane.f32.xlu0 %v1653
    %v1655 = vpop.xlane.xlu0 %1654
    %v1656 = vsub.f32 %v1650, %v1655
    %v1657 = vmul.f32 %v1656, 1.442695
    %v1658 = vpow.pop %v1657
    %v1659 = vsel %vm241, %v1658, 0.0
    %1660 = vadd.xlane.f32.xlu0 %v1659
    %v1661 = vpop.xlane.xlu0 %1660
    %v1662 = vrcp.pop %v1661
    %v1663 = vmul.f32 %v1658, %v1662
    %v1664 = vpack.c.bf16 %v1663, %v1663
    %1665 = vrot.lane.b32.xlu0 %v1574, 56
    %v1666 = vpop.permute.xlu0 %1665
    %v1668 = vsel %vm241, %v1664, 0
    %v1671 = vsel %vm1613, %v1666, 0
    %1673 = vmatpush.bf16.msra.mxu0 0
    %1674 = vmatpush.bf16.msra.mxu0 0
    %1675 = vmatpush.bf16.msra.mxu0 0
    %1676 = vmatpush.bf16.msra.mxu0 0
    %1677 = vmatpush.bf16.msra.mxu0 0
    %1678 = vmatpush.bf16.msra.mxu0 0
    %1679 = vmatpush.bf16.msra.mxu0 0
    %1680 = vmatpush.bf16.msra.mxu0 %v1671
    %1681 = vmatmul.bf16.gmra.mxu0 %v1668
    %v1682 = vpop.f32.mrf.mxu0
    %v1683 = vadd.f32 0.0, %v1682
    %v1684 = vpop.f32.mrf.mxu0
    %1685 = vdwg.mxu0
    %1686 = vrot.lane.b32.xlu0 %v1574, 112
    %v1687 = vpop.permute.xlu0 %1686
    %1688 = vrot.lane.b32.xlu0 %v1574, 80
    %v1689 = vpop.permute.xlu0 %1688
    %v1691 = vsel %vm241, %v1687, 0
    %v1694 = vsel %vm241, %v1689, 0
    %1696 = vmatpush.bf16.xpose.msra.mxu0 0
    %1697 = vmatpush.bf16.xpose.msra.mxu0 0
    %1698 = vmatpush.bf16.xpose.msra.mxu0 0
    %1699 = vmatpush.bf16.xpose.msra.mxu0 0
    %1700 = vmatpush.bf16.xpose.msra.mxu0 0
    %1701 = vmatpush.bf16.xpose.msra.mxu0 0
    %1702 = vmatpush.bf16.xpose.msra.mxu0 0
    %1703 = vmatpush.bf16.xpose.msra.mxu0 %v1694
    %1704 = vmatmul.bf16.gmra.mxu0 %v1691
    %v1705 = vpop.f32.mrf.mxu0
    %v1706 = vadd.f32 %v1528, %v1705
    %v1707 = vpop.f32.mrf.mxu0
    %1708 = vdwg.mxu0
    %v1709 = vsel %vm241, %v1706, -inf
    %1710 = vmax.xlane.f32.xlu0 %v1709
    %v1711 = vpop.xlane.xlu0 %1710
    %v1712 = vsub.f32 %v1706, %v1711
    %v1713 = vmul.f32 %v1712, 1.442695
    %v1714 = vpow.pop %v1713
    %v1715 = vsel %vm241, %v1714, 0.0
    %1716 = vadd.xlane.f32.xlu0 %v1715
    %v1717 = vpop.xlane.xlu0 %1716
    %v1718 = vrcp.pop %v1717
    %v1719 = vmul.f32 %v1714, %v1718
    %v1720 = vpack.c.bf16 %v1719, %v1719
    %1721 = vrot.lane.b32.xlu0 %v1574, 48
    %v1722 = vpop.permute.xlu0 %1721
    %v1724 = vsel %vm241, %v1720, 0
    %v1727 = vsel %vm1613, %v1722, 0
    %1729 = vmatpush.bf16.msra.mxu0 0
    %1730 = vmatpush.bf16.msra.mxu0 0
    %1731 = vmatpush.bf16.msra.mxu0 0
    %1732 = vmatpush.bf16.msra.mxu0 0
    %1733 = vmatpush.bf16.msra.mxu0 0
    %1734 = vmatpush.bf16.msra.mxu0 0
    %1735 = vmatpush.bf16.msra.mxu0 0
    %1736 = vmatpush.bf16.msra.mxu0 %v1727
    %1737 = vmatmul.bf16.gmra.mxu0 %v1724
    %v1738 = vpop.f32.mrf.mxu0
    %v1739 = vadd.f32 0.0, %v1738
    %v1740 = vpop.f32.mrf.mxu0
    %1741 = vdwg.mxu0
    %1742 = vrot.lane.b32.xlu0 %v1574, 104
    %v1743 = vpop.permute.xlu0 %1742
    %1744 = vrot.lane.b32.xlu0 %v1574, 72
    %v1745 = vpop.permute.xlu0 %1744
    %v1747 = vsel %vm241, %v1743, 0
    %v1750 = vsel %vm241, %v1745, 0
    %1752 = vmatpush.bf16.xpose.msra.mxu0 0
    %1753 = vmatpush.bf16.xpose.msra.mxu0 0
    %1754 = vmatpush.bf16.xpose.msra.mxu0 0
    %1755 = vmatpush.bf16.xpose.msra.mxu0 0
    %1756 = vmatpush.bf16.xpose.msra.mxu0 0
    %1757 = vmatpush.bf16.xpose.msra.mxu0 0
    %1758 = vmatpush.bf16.xpose.msra.mxu0 0
    %1759 = vmatpush.bf16.xpose.msra.mxu0 %v1750
    %1760 = vmatmul.bf16.gmra.mxu0 %v1747
    %v1761 = vpop.f32.mrf.mxu0
    %v1762 = vadd.f32 %v1528, %v1761
    %v1763 = vpop.f32.mrf.mxu0
    %1764 = vdwg.mxu0
    %v1765 = vsel %vm241, %v1762, -inf
    %1766 = vmax.xlane.f32.xlu0 %v1765
    %v1767 = vpop.xlane.xlu0 %1766
    %v1768 = vsub.f32 %v1762, %v1767
    %v1769 = vmul.f32 %v1768, 1.442695
    %v1770 = vpow.pop %v1769
    %v1771 = vsel %vm241, %v1770, 0.0
    %1772 = vadd.xlane.f32.xlu0 %v1771
    %v1773 = vpop.xlane.xlu0 %1772
    %v1774 = vrcp.pop %v1773
    %v1775 = vmul.f32 %v1770, %v1774
    %v1776 = vpack.c.bf16 %v1775, %v1775
    %1777 = vrot.lane.b32.xlu0 %v1574, 40
    %v1778 = vpop.permute.xlu0 %1777
    %v1780 = vsel %vm241, %v1776, 0
    %v1783 = vsel %vm1613, %v1778, 0
    %1785 = vmatpush.bf16.msra.mxu0 0
    %1786 = vmatpush.bf16.msra.mxu0 0
    %1787 = vmatpush.bf16.msra.mxu0 0
    %1788 = vmatpush.bf16.msra.mxu0 0
    %1789 = vmatpush.bf16.msra.mxu0 0
    %1790 = vmatpush.bf16.msra.mxu0 0
    %1791 = vmatpush.bf16.msra.mxu0 0
    %1792 = vmatpush.bf16.msra.mxu0 %v1783
    %1793 = vmatmul.bf16.gmra.mxu0 %v1780
    %v1794 = vpop.f32.mrf.mxu0
    %v1795 = vadd.f32 0.0, %v1794
    %v1796 = vpop.f32.mrf.mxu0
    %1797 = vdwg.mxu0
    %1799 = vrot.lane.b32.xlu0 %v1683, 8
    %v1800 = vpop.permute.xlu0 %1799
    %1803 = vrot.lane.b32.xlu0 %v1739, 16
    %v1804 = vpop.permute.xlu0 %1803
    %1807 = vrot.lane.b32.xlu0 %v1795, 24
    %v1808 = vpop.permute.xlu0 %1807
    %v1810 = vsel %vm241, %v1627, %v1800
    %v1811 = vsel %vm543, %v1810, %v1804
    %v1812 = vsel %vm546, %v1811, %v1808
    %v1813 = vpack.c.bf16 %v1812, %v1812
    %v1815 = vperm.slane %v1538, 0
    %v1821 = vunpack.c.l.b16 %v1534
    %v1822 = vunpack.c.l.b16 %v1535
    %v1823 = vunpack.c.l.b16 %v1536
    %v1824 = vunpack.c.l.b16 %v1537
    %v1825 = vpack.c.b16 %v1822, %v1821
    %v1826 = vpack.c.b16 %v1824, %v1823
    %v1830 = vsel %vm211, %v1813, 0
    %1832 = vmatpush.bf16.msra.mxu0 0
    %1833 = vmatpush.bf16.msra.mxu0 0
    %1834 = vmatpush.bf16.msra.mxu0 0
    %1835 = vmatpush.bf16.msra.mxu0 0
    %1836 = vmatpush.bf16.msra.mxu0 0
    %1837 = vmatpush.bf16.msra.mxu0 0
    %1838 = vmatpush.bf16.msra.mxu0 %v1826
    %1839 = vmatpush.bf16.msra.mxu0 %v1825
    %1840 = vmatmul.bf16.gmra.mxu0 %v1830
    %v1841 = vpop.f32.mrf.mxu0
    %v1842 = vadd.f32 %v1815, %v1841
    %v1843 = vpop.f32.mrf.mxu0
    %1844 = vdwg.mxu0
    %v1845 = vadd.f32 %v1523, %v1842
    %v1846 = vld [vmem:[%s45] sm:$0x1]
    %v1847 = vld [vmem:[%s47] sm:$0x1]
    %v1848 = vsel %vm211, %v1845, 0.0
    %1849 = vadd.xlane.f32.xlu0 %v1848
    %v1850 = vpop.xlane.xlu0 %1849
    %v1851 = vmul.f32 %v1850, %v599
    %v1852 = vsub.f32 %v1845, %v1851
    %v1853 = vmul.f32 %v1852, %v1852
    %v1854 = vsel %vm211, %v1853, 0.0
    %1855 = vadd.xlane.f32.xlu0 %v1854
    %v1856 = vpop.xlane.xlu0 %1855
    %v1857 = vmul.f32 %v1856, %v599
    %v1858 = vadd.f32 %v1857, 1e-05
    %v1859 = vrsqrt.pop %v1858
    %v1860 = vmul.f32 %v1859, %v1858
    %v1861 = vmul.f32 %v1860, %v1859
    %v1862 = vmul.f32 0.5, %v1861
    %v1863 = vsub.f32 1.5, %v1862
    %v1864 = vmul.f32 %v1859, %v1863
    %vm1865 = vweird.f32 %v1858
    %vm1866 = vweird.f32 %v1859
    %vm1867 = vmor %vm1865, %vm1866
    %v1868 = vsel %vm1867, %v1859, %v1864
    %v1869 = vmul.f32 %v1852, %v1868
    %v1871 = vperm.slane %v1846, 0
    %v1873 = vmul.f32 %v1869, %v1871
    %v1875 = vperm.slane %v1847, 0
    %v1877 = vadd.f32 %v1873, %v1875
    %v1878 = vld [vmem:[%s49] sm:$0xf]
    %v1879 = vld [vmem:[%s49 + $0x4] sm:$0xf]
    %v1880 = vld [vmem:[%s49 + $0x8] sm:$0xf]
    %v1881 = vld [vmem:[%s49 + $0xc] sm:$0xf]
    %v1882 = vld [vmem:[%s51] sm:$0x1]
    %v1883 = vld [vmem:[%s53] sm:$0xf]
    %v1884 = vld [vmem:[%s53 + $0x4] sm:$0xf]
    %v1885 = vld [vmem:[%s53 + $0x8] sm:$0xf]
    %v1886 = vld [vmem:[%s53 + $0xc] sm:$0xf]
    %v1887 = vld [vmem:[%s55] sm:$0x1]
    %v1888 = vld [vmem:[%s57] sm:$0xf]
    %v1889 = vld [vmem:[%s57 + $0x4] sm:$0xf]
    %v1890 = vld [vmem:[%s57 + $0x8] sm:$0xf]
    %v1891 = vld [vmem:[%s57 + $0xc] sm:$0xf]
    %v1892 = vld [vmem:[%s59] sm:$0x1]
    %v1893 = vpack.c.bf16 %v1877, %v1877
    %v1895 = vperm.slane %v1882, 0
    %v1901 = vunpack.c.l.b16 %v1878
    %v1902 = vunpack.c.l.b16 %v1879
    %v1903 = vunpack.c.l.b16 %v1880
    %v1904 = vunpack.c.l.b16 %v1881
    %v1905 = vpack.c.b16 %v1902, %v1901
    %v1906 = vpack.c.b16 %v1904, %v1903
    %v1910 = vsel %vm211, %v1893, 0
    %1912 = vmatpush.bf16.msra.mxu0 0
    %1913 = vmatpush.bf16.msra.mxu0 0
    %1914 = vmatpush.bf16.msra.mxu0 0
    %1915 = vmatpush.bf16.msra.mxu0 0
    %1916 = vmatpush.bf16.msra.mxu0 0
    %1917 = vmatpush.bf16.msra.mxu0 0
    %1918 = vmatpush.bf16.msra.mxu0 %v1906
    %1919 = vmatpush.bf16.msra.mxu0 %v1905
    %1920 = vmatmul.bf16.gmra.mxu0 %v1910
    %v1921 = vpop.f32.mrf.mxu0
    %v1922 = vadd.f32 %v1895, %v1921
    %v1923 = vpop.f32.mrf.mxu0
    %1924 = vdwg.mxu0
    %v1925 = vpack.c.bf16 %v1522, %v1521
    %v1927 = vperm.slane %v1887, 0
    %v1933 = vunpack.c.l.b16 %v1883
    %v1934 = vunpack.c.l.b16 %v1884
    %v1935 = vunpack.c.l.b16 %v1885
    %v1936 = vunpack.c.l.b16 %v1886
    %v1937 = vpack.c.b16 %v1934, %v1933
    %v1938 = vpack.c.b16 %v1936, %v1935
    %v1942 = vsel %vm211, %v1925, 0
    %1944 = vmatpush.bf16.msra.mxu0 0
    %1945 = vmatpush.bf16.msra.mxu0 0
    %1946 = vmatpush.bf16.msra.mxu0 0
    %1947 = vmatpush.bf16.msra.mxu0 0
    %1948 = vmatpush.bf16.msra.mxu0 0
    %1949 = vmatpush.bf16.msra.mxu0 0
    %1950 = vmatpush.bf16.msra.mxu0 %v1938
    %1951 = vmatpush.bf16.msra.mxu0 %v1937
    %1952 = vmatmul.bf16.gmra.mxu0 %v1942
    %v1953 = vpop.f32.mrf.mxu0
    %v1954 = vadd.f32 %v1927, %v1953
    %v1955 = vpop.f32.mrf.mxu0
    %v1956 = vadd.f32 %v1927, %v1955
    %1957 = vdwg.mxu0
    %v1958 = vpack.c.bf16 %v1922, %v1922
    %v1959 = vpack.c.bf16 %v1954, %v1954
    %v1960 = vpack.c.bf16 %v1956, %v1956
    %v1963 = vunpack.c.l.b16 %v1959
    %v1964 = vunpack.c.l.b16 %v1960
    %v1965 = vpack.c.b16 %v1964, %v1963
    %v1967 = vsel %vm241, %v1958, 0
    %v1970 = vsel %vm241, %v1965, 0
    %1972 = vmatpush.bf16.xpose.msra.mxu0 0
    %1973 = vmatpush.bf16.xpose.msra.mxu0 0
    %1974 = vmatpush.bf16.xpose.msra.mxu0 0
    %1975 = vmatpush.bf16.xpose.msra.mxu0 0
    %1976 = vmatpush.bf16.xpose.msra.mxu0 0
    %1977 = vmatpush.bf16.xpose.msra.mxu0 0
    %1978 = vmatpush.bf16.xpose.msra.mxu0 0
    %1979 = vmatpush.bf16.xpose.msra.mxu0 %v1970
    %1980 = vmatmul.bf16.gmra.mxu0 %v1967
    %v1981 = vpop.f32.mrf.mxu0
    %v1982 = vadd.f32 0.0, %v1981
    %v1983 = vpop.f32.mrf.mxu0
    %1984 = vdwg.mxu0
    %v1985 = vsel %vm262, %v1982, -inf
    %1986 = vmax.xlane.f32.xlu0 %v1985
    %v1987 = vpop.xlane.xlu0 %1986
    %v1988 = vsub.f32 %v1982, %v1987
    %v1989 = vmul.f32 %v1988, 1.442695
    %v1990 = vpow.pop %v1989
    %v1991 = vsel %vm262, %v1990, 0.0
    %1992 = vadd.xlane.f32.xlu0 %v1991
    %v1993 = vpop.xlane.xlu0 %1992
    %v1994 = vrcp.pop %v1993
    %v1995 = vmul.f32 %v1990, %v1994
    %v1996 = vpack.c.bf16 %v1995, %v1995
    %1997 = vrot.lane.b32.xlu0 %v1965, 96
    %v1998 = vpop.permute.xlu0 %1997
    %v2000 = vsel %vm262, %v1996, 0
    %v2003 = vsel %vm292, %v1998, 0
    %2005 = vmatpush.bf16.msra.mxu0 0
    %2006 = vmatpush.bf16.msra.mxu0 0
    %2007 = vmatpush.bf16.msra.mxu0 0
    %2008 = vmatpush.bf16.msra.mxu0 0
    %2009 = vmatpush.bf16.msra.mxu0 0
    %2010 = vmatpush.bf16.msra.mxu0 0
    %2011 = vmatpush.bf16.msra.mxu0 0
    %2012 = vmatpush.bf16.msra.mxu0 %v2003
    %2013 = vmatmul.bf16.gmra.mxu0 %v2000
    %v2014 = vpop.f32.mrf.mxu0
    %v2015 = vadd.f32 0.0, %v2014
    %v2016 = vpop.f32.mrf.mxu0
    %2017 = vdwg.mxu0
    %v2019 = vunpack.c.l.b16 %v1958
    %v2020 = vpack.c.b16 %v2019, %v2019
    %2021 = vrot.lane.b32.xlu0 %v2020, 120
    %v2022 = vpop.permute.xlu0 %2021
    %2023 = vrot.lane.b32.xlu0 %v1965, 120
    %v2024 = vpop.permute.xlu0 %2023
    %v2026 = vsel %vm241, %v2022, 0
    %v2029 = vsel %vm241, %v2024, 0
    %2031 = vmatpush.bf16.xpose.msra.mxu0 0
    %2032 = vmatpush.bf16.xpose.msra.mxu0 0
    %2033 = vmatpush.bf16.xpose.msra.mxu0 0
    %2034 = vmatpush.bf16.xpose.msra.mxu0 0
    %2035 = vmatpush.bf16.xpose.msra.mxu0 0
    %2036 = vmatpush.bf16.xpose.msra.mxu0 0
    %2037 = vmatpush.bf16.xpose.msra.mxu0 0
    %2038 = vmatpush.bf16.xpose.msra.mxu0 %v2029
    %2039 = vmatmul.bf16.gmra.mxu0 %v2026
    %v2040 = vpop.f32.mrf.mxu0
    %v2041 = vadd.f32 0.0, %v2040
    %v2042 = vpop.f32.mrf.mxu0
    %2043 = vdwg.mxu0
    %v2044 = vsel %vm262, %v2041, -inf
    %2045 = vmax.xlane.f32.xlu0 %v2044
    %v2046 = vpop.xlane.xlu0 %2045
    %v2047 = vsub.f32 %v2041, %v2046
    %v2048 = vmul.f32 %v2047, 1.442695
    %v2049 = vpow.pop %v2048
    %v2050 = vsel %vm262, %v2049, 0.0
    %2051 = vadd.xlane.f32.xlu0 %v2050
    %v2052 = vpop.xlane.xlu0 %2051
    %v2053 = vrcp.pop %v2052
    %v2054 = vmul.f32 %v2049, %v2053
    %v2055 = vpack.c.bf16 %v2054, %v2054
    %2056 = vrot.lane.b32.xlu0 %v1965, 88
    %v2057 = vpop.permute.xlu0 %2056
    %v2059 = vsel %vm262, %v2055, 0
    %v2062 = vsel %vm292, %v2057, 0
    %2064 = vmatpush.bf16.msra.mxu0 0
    %2065 = vmatpush.bf16.msra.mxu0 0
    %2066 = vmatpush.bf16.msra.mxu0 0
    %2067 = vmatpush.bf16.msra.mxu0 0
    %2068 = vmatpush.bf16.msra.mxu0 0
    %2069 = vmatpush.bf16.msra.mxu0 0
    %2070 = vmatpush.bf16.msra.mxu0 0
    %2071 = vmatpush.bf16.msra.mxu0 %v2062
    %2072 = vmatmul.bf16.gmra.mxu0 %v2059
    %v2073 = vpop.f32.mrf.mxu0
    %v2074 = vadd.f32 0.0, %v2073
    %v2075 = vpop.f32.mrf.mxu0
    %2076 = vdwg.mxu0
    %2077 = vrot.lane.b32.xlu0 %v2020, 112
    %v2078 = vpop.permute.xlu0 %2077
    %2079 = vrot.lane.b32.xlu0 %v1965, 112
    %v2080 = vpop.permute.xlu0 %2079
    %v2082 = vsel %vm241, %v2078, 0
    %v2085 = vsel %vm241, %v2080, 0
    %2087 = vmatpush.bf16.xpose.msra.mxu0 0
    %2088 = vmatpush.bf16.xpose.msra.mxu0 0
    %2089 = vmatpush.bf16.xpose.msra.mxu0 0
    %2090 = vmatpush.bf16.xpose.msra.mxu0 0
    %2091 = vmatpush.bf16.xpose.msra.mxu0 0
    %2092 = vmatpush.bf16.xpose.msra.mxu0 0
    %2093 = vmatpush.bf16.xpose.msra.mxu0 0
    %2094 = vmatpush.bf16.xpose.msra.mxu0 %v2085
    %2095 = vmatmul.bf16.gmra.mxu0 %v2082
    %v2096 = vpop.f32.mrf.mxu0
    %v2097 = vadd.f32 0.0, %v2096
    %v2098 = vpop.f32.mrf.mxu0
    %2099 = vdwg.mxu0
    %v2100 = vsel %vm262, %v2097, -inf
    %2101 = vmax.xlane.f32.xlu0 %v2100
    %v2102 = vpop.xlane.xlu0 %2101
    %v2103 = vsub.f32 %v2097, %v2102
    %v2104 = vmul.f32 %v2103, 1.442695
    %v2105 = vpow.pop %v2104
    %v2106 = vsel %vm262, %v2105, 0.0
    %2107 = vadd.xlane.f32.xlu0 %v2106
    %v2108 = vpop.xlane.xlu0 %2107
    %v2109 = vrcp.pop %v2108
    %v2110 = vmul.f32 %v2105, %v2109
    %v2111 = vpack.c.bf16 %v2110, %v2110
    %2112 = vrot.lane.b32.xlu0 %v1965, 80
    %v2113 = vpop.permute.xlu0 %2112
    %v2115 = vsel %vm262, %v2111, 0
    %v2118 = vsel %vm292, %v2113, 0
    %2120 = vmatpush.bf16.msra.mxu0 0
    %2121 = vmatpush.bf16.msra.mxu0 0
    %2122 = vmatpush.bf16.msra.mxu0 0
    %2123 = vmatpush.bf16.msra.mxu0 0
    %2124 = vmatpush.bf16.msra.mxu0 0
    %2125 = vmatpush.bf16.msra.mxu0 0
    %2126 = vmatpush.bf16.msra.mxu0 0
    %2127 = vmatpush.bf16.msra.mxu0 %v2118
    %2128 = vmatmul.bf16.gmra.mxu0 %v2115
    %v2129 = vpop.f32.mrf.mxu0
    %v2130 = vadd.f32 0.0, %v2129
    %v2131 = vpop.f32.mrf.mxu0
    %2132 = vdwg.mxu0
    %2133 = vrot.lane.b32.xlu0 %v2020, 104
    %v2134 = vpop.permute.xlu0 %2133
    %2135 = vrot.lane.b32.xlu0 %v1965, 104
    %v2136 = vpop.permute.xlu0 %2135
    %v2138 = vsel %vm241, %v2134, 0
    %v2141 = vsel %vm241, %v2136, 0
    %2143 = vmatpush.bf16.xpose.msra.mxu0 0
    %2144 = vmatpush.bf16.xpose.msra.mxu0 0
    %2145 = vmatpush.bf16.xpose.msra.mxu0 0
    %2146 = vmatpush.bf16.xpose.msra.mxu0 0
    %2147 = vmatpush.bf16.xpose.msra.mxu0 0
    %2148 = vmatpush.bf16.xpose.msra.mxu0 0
    %2149 = vmatpush.bf16.xpose.msra.mxu0 0
    %2150 = vmatpush.bf16.xpose.msra.mxu0 %v2141
    %2151 = vmatmul.bf16.gmra.mxu0 %v2138
    %v2152 = vpop.f32.mrf.mxu0
    %v2153 = vadd.f32 0.0, %v2152
    %v2154 = vpop.f32.mrf.mxu0
    %2155 = vdwg.mxu0
    %v2156 = vsel %vm262, %v2153, -inf
    %2157 = vmax.xlane.f32.xlu0 %v2156
    %v2158 = vpop.xlane.xlu0 %2157
    %v2159 = vsub.f32 %v2153, %v2158
    %v2160 = vmul.f32 %v2159, 1.442695
    %v2161 = vpow.pop %v2160
    %v2162 = vsel %vm262, %v2161, 0.0
    %2163 = vadd.xlane.f32.xlu0 %v2162
    %v2164 = vpop.xlane.xlu0 %2163
    %v2165 = vrcp.pop %v2164
    %v2166 = vmul.f32 %v2161, %v2165
    %v2167 = vpack.c.bf16 %v2166, %v2166
    %2168 = vrot.lane.b32.xlu0 %v1965, 72
    %v2169 = vpop.permute.xlu0 %2168
    %v2171 = vsel %vm262, %v2167, 0
    %v2174 = vsel %vm292, %v2169, 0
    %2176 = vmatpush.bf16.msra.mxu0 0
    %2177 = vmatpush.bf16.msra.mxu0 0
    %2178 = vmatpush.bf16.msra.mxu0 0
    %2179 = vmatpush.bf16.msra.mxu0 0
    %2180 = vmatpush.bf16.msra.mxu0 0
    %2181 = vmatpush.bf16.msra.mxu0 0
    %2182 = vmatpush.bf16.msra.mxu0 0
    %2183 = vmatpush.bf16.msra.mxu0 %v2174
    %2184 = vmatmul.bf16.gmra.mxu0 %v2171
    %v2185 = vpop.f32.mrf.mxu0
    %v2186 = vadd.f32 0.0, %v2185
    %v2187 = vpop.f32.mrf.mxu0
    %2188 = vdwg.mxu0
    %2190 = vrot.lane.b32.xlu0 %v2074, 8
    %v2191 = vpop.permute.xlu0 %2190
    %2194 = vrot.lane.b32.xlu0 %v2130, 16
    %v2195 = vpop.permute.xlu0 %2194
    %2198 = vrot.lane.b32.xlu0 %v2186, 24
    %v2199 = vpop.permute.xlu0 %2198
    %v2201 = vsel %vm241, %v2015, %v2191
    %v2202 = vsel %vm543, %v2201, %v2195
    %v2203 = vsel %vm546, %v2202, %v2199
    %v2204 = vpack.c.bf16 %v2203, %v2203
    %v2206 = vperm.slane %v1892, 0
    %v2212 = vunpack.c.l.b16 %v1888
    %v2213 = vunpack.c.l.b16 %v1889
    %v2214 = vunpack.c.l.b16 %v1890
    %v2215 = vunpack.c.l.b16 %v1891
    %v2216 = vpack.c.b16 %v2213, %v2212
    %v2217 = vpack.c.b16 %v2215, %v2214
    %v2221 = vsel %vm211, %v2204, 0
    %2223 = vmatpush.bf16.msra.mxu0 0
    %2224 = vmatpush.bf16.msra.mxu0 0
    %2225 = vmatpush.bf16.msra.mxu0 0
    %2226 = vmatpush.bf16.msra.mxu0 0
    %2227 = vmatpush.bf16.msra.mxu0 0
    %2228 = vmatpush.bf16.msra.mxu0 0
    %2229 = vmatpush.bf16.msra.mxu0 %v2217
    %2230 = vmatpush.bf16.msra.mxu0 %v2216
    %2231 = vmatmul.bf16.gmra.mxu0 %v2221
    %v2232 = vpop.f32.mrf.mxu0
    %v2233 = vadd.f32 %v2206, %v2232
    %v2234 = vpop.f32.mrf.mxu0
    %2235 = vdwg.mxu0
    %v2236 = vadd.f32 %v1877, %v2233
    %v2237 = vld [vmem:[%s61] sm:$0x1]
    %v2238 = vld [vmem:[%s63] sm:$0x1]
    %v2239 = vsel %vm211, %v2236, 0.0
    %2240 = vadd.xlane.f32.xlu0 %v2239
    %v2241 = vpop.xlane.xlu0 %2240
    %v2242 = vmul.f32 %v2241, %v599
    %v2243 = vsub.f32 %v2236, %v2242
    %v2244 = vmul.f32 %v2243, %v2243
    %v2245 = vsel %vm211, %v2244, 0.0
    %2246 = vadd.xlane.f32.xlu0 %v2245
    %v2247 = vpop.xlane.xlu0 %2246
    %v2248 = vmul.f32 %v2247, %v599
    %v2249 = vadd.f32 %v2248, 1e-05
    %v2250 = vrsqrt.pop %v2249
    %v2251 = vmul.f32 %v2250, %v2249
    %v2252 = vmul.f32 %v2251, %v2250
    %v2253 = vmul.f32 0.5, %v2252
    %v2254 = vsub.f32 1.5, %v2253
    %v2255 = vmul.f32 %v2250, %v2254
    %vm2256 = vweird.f32 %v2249
    %vm2257 = vweird.f32 %v2250
    %vm2258 = vmor %vm2256, %vm2257
    %v2259 = vsel %vm2258, %v2250, %v2255
    %v2260 = vmul.f32 %v2243, %v2259
    %v2262 = vperm.slane %v2237, 0
    %v2264 = vmul.f32 %v2260, %v2262
    %v2266 = vperm.slane %v2238, 0
    %v2268 = vadd.f32 %v2264, %v2266
    %v2269 = vld [vmem:[%s65] sm:$0xf]
    %v2270 = vld [vmem:[%s65 + $0x4] sm:$0xf]
    %v2271 = vld [vmem:[%s65 + $0x8] sm:$0xf]
    %v2272 = vld [vmem:[%s65 + $0xc] sm:$0xf]
    %v2273 = vld [vmem:[%s67] sm:$0x1]
    %v2274 = vld [vmem:[%s69] sm:$0xf]
    %v2275 = vld [vmem:[%s69 + $0x4] sm:$0xf]
    %v2276 = vld [vmem:[%s69 + $0x8] sm:$0xf]
    %v2277 = vld [vmem:[%s69 + $0xc] sm:$0xf]
    %v2278 = vld [vmem:[%s69 + $0x10] sm:$0xf]
    %v2279 = vld [vmem:[%s69 + $0x14] sm:$0xf]
    %v2280 = vld [vmem:[%s69 + $0x18] sm:$0xf]
    %v2281 = vld [vmem:[%s69 + $0x1c] sm:$0xf]
    %v2282 = vld [vmem:[%s69 + $0x20] sm:$0xf]
    %v2283 = vld [vmem:[%s69 + $0x24] sm:$0xf]
    %v2284 = vld [vmem:[%s69 + $0x28] sm:$0xf]
    %v2285 = vld [vmem:[%s69 + $0x2c] sm:$0xf]
    %v2286 = vld [vmem:[%s69 + $0x30] sm:$0xf]
    %v2287 = vld [vmem:[%s69 + $0x34] sm:$0xf]
    %v2288 = vld [vmem:[%s69 + $0x38] sm:$0xf]
    %v2289 = vld [vmem:[%s69 + $0x3c] sm:$0xf]
    %v2290 = vld [vmem:[%s71] sm:$0x1]
    %v2291 = vpack.c.bf16 %v2268, %v2268
    %v2293 = vperm.slane %v2273, 0
    %v2299 = vunpack.c.l.b16 %v2269
    %v2300 = vunpack.c.l.b16 %v2270
    %v2301 = vunpack.c.l.b16 %v2271
    %v2302 = vunpack.c.l.b16 %v2272
    %v2303 = vpack.c.b16 %v2300, %v2299
    %v2304 = vpack.c.b16 %v2302, %v2301
    %v2308 = vsel %vm211, %v2291, 0
    %2310 = vmatpush.bf16.msra.mxu0 0
    %2311 = vmatpush.bf16.msra.mxu0 0
    %2312 = vmatpush.bf16.msra.mxu0 0
    %2313 = vmatpush.bf16.msra.mxu0 0
    %2314 = vmatpush.bf16.msra.mxu0 0
    %2315 = vmatpush.bf16.msra.mxu0 0
    %2316 = vmatpush.bf16.msra.mxu0 %v2304
    %2317 = vmatpush.bf16.msra.mxu0 %v2303
    %2318 = vmatmul.bf16.gmra.mxu0 %v2308
    %v2319 = vpop.f32.mrf.mxu0
    %v2320 = vadd.f32 %v2293, %v2319
    %v2321 = vpop.f32.mrf.mxu0
    %2322 = vdwg.mxu0
    %v2323 = vmax.f32 %v2320, 0.0
    %v2324 = vpack.c.bf16 %v2323, %v2323
    %v2326 = vperm.slane %v2290, 0
    %v2344 = vunpack.c.l.b16 %v2274
    %v2345 = vunpack.c.l.b16 %v2275
    %v2346 = vunpack.c.l.b16 %v2276
    %v2347 = vunpack.c.l.b16 %v2277
    %v2348 = vunpack.c.l.b16 %v2278
    %v2349 = vunpack.c.l.b16 %v2279
    %v2350 = vunpack.c.l.b16 %v2280
    %v2351 = vunpack.c.l.b16 %v2281
    %v2352 = vunpack.c.l.b16 %v2282
    %v2353 = vunpack.c.l.b16 %v2283
    %v2354 = vunpack.c.l.b16 %v2284
    %v2355 = vunpack.c.l.b16 %v2285
    %v2356 = vunpack.c.l.b16 %v2286
    %v2357 = vunpack.c.l.b16 %v2287
    %v2358 = vunpack.c.l.b16 %v2288
    %v2359 = vunpack.c.l.b16 %v2289
    %v2360 = vpack.c.b16 %v2345, %v2344
    %v2361 = vpack.c.b16 %v2347, %v2346
    %v2362 = vpack.c.b16 %v2349, %v2348
    %v2363 = vpack.c.b16 %v2351, %v2350
    %v2364 = vpack.c.b16 %v2353, %v2352
    %v2365 = vpack.c.b16 %v2355, %v2354
    %v2366 = vpack.c.b16 %v2357, %v2356
    %v2367 = vpack.c.b16 %v2359, %v2358
    %2376 = vmatpush.bf16.msra.mxu0 %v2367
    %2377 = vmatpush.bf16.msra.mxu0 %v2366
    %2378 = vmatpush.bf16.msra.mxu0 %v2365
    %2379 = vmatpush.bf16.msra.mxu0 %v2364
    %2380 = vmatpush.bf16.msra.mxu0 %v2363
    %2381 = vmatpush.bf16.msra.mxu0 %v2362
    %2382 = vmatpush.bf16.msra.mxu0 %v2361
    %2383 = vmatpush.bf16.msra.mxu0 %v2360
    %2384 = vmatmul.bf16.gmra.mxu0 %v2324
    %v2385 = vpop.f32.mrf.mxu0
    %v2386 = vadd.f32 %v2326, %v2385
    %v2387 = vpop.f32.mrf.mxu0
    %2388 = vdwg.mxu0
    %v2389 = vadd.f32 %v2268, %v2386
    %v2390 = vld [vmem:[%s73] sm:$0x1]
    %v2391 = vld [vmem:[%s75] sm:$0x1]
    %v2392 = vsel %vm211, %v2389, 0.0
    %2393 = vadd.xlane.f32.xlu0 %v2392
    %v2394 = vpop.xlane.xlu0 %2393
    %v2395 = vmul.f32 %v2394, %v599
    %v2396 = vsub.f32 %v2389, %v2395
    %v2397 = vmul.f32 %v2396, %v2396
    %v2398 = vsel %vm211, %v2397, 0.0
    %2399 = vadd.xlane.f32.xlu0 %v2398
    %v2400 = vpop.xlane.xlu0 %2399
    %v2401 = vmul.f32 %v2400, %v599
    %v2402 = vadd.f32 %v2401, 1e-05
    %v2403 = vrsqrt.pop %v2402
    %v2404 = vmul.f32 %v2403, %v2402
    %v2405 = vmul.f32 %v2404, %v2403
    %v2406 = vmul.f32 0.5, %v2405
    %v2407 = vsub.f32 1.5, %v2406
    %v2408 = vmul.f32 %v2403, %v2407
    %vm2409 = vweird.f32 %v2402
    %vm2410 = vweird.f32 %v2403
    %vm2411 = vmor %vm2409, %vm2410
    %v2412 = vsel %vm2411, %v2403, %v2408
    %v2413 = vmul.f32 %v2396, %v2412
    %v2415 = vperm.slane %v2390, 0
    %v2417 = vmul.f32 %v2413, %v2415
    %v2419 = vperm.slane %v2391, 0
    %v2421 = vadd.f32 %v2417, %v2419
    %s2422 = scalar_lea.vmem %s37, 16
    %v2423 = vld [vmem:[%s2422] sm:$0xf]
    %v2424 = vld [vmem:[%s2422 + $0x4] sm:$0xf]
    %v2425 = vld [vmem:[%s2422 + $0x8] sm:$0xf]
    %v2426 = vld [vmem:[%s2422 + $0xc] sm:$0xf]
    %s2427 = scalar_lea.vmem %s39, 1
    %v2428 = vld [vmem:[%s2427] sm:$0x1]
    %s2429 = scalar_lea.vmem %s41, 16
    %v2430 = vld [vmem:[%s2429] sm:$0xf]
    %v2431 = vld [vmem:[%s2429 + $0x4] sm:$0xf]
    %v2432 = vld [vmem:[%s2429 + $0x8] sm:$0xf]
    %v2433 = vld [vmem:[%s2429 + $0xc] sm:$0xf]
    %s2434 = scalar_lea.vmem %s43, 1
    %v2435 = vld [vmem:[%s2434] sm:$0x1]
    %v2436 = vpack.c.bf16 %v2421, %v2421
    %v2438 = vperm.slane %v2428, 0
    %v2444 = vunpack.c.l.b16 %v2423
    %v2445 = vunpack.c.l.b16 %v2424
    %v2446 = vunpack.c.l.b16 %v2425
    %v2447 = vunpack.c.l.b16 %v2426
    %v2448 = vpack.c.b16 %v2445, %v2444
    %v2449 = vpack.c.b16 %v2447, %v2446
    %v2453 = vsel %vm211, %v2436, 0
    %2455 = vmatpush.bf16.msra.mxu0 0
    %2456 = vmatpush.bf16.msra.mxu0 0
    %2457 = vmatpush.bf16.msra.mxu0 0
    %2458 = vmatpush.bf16.msra.mxu0 0
    %2459 = vmatpush.bf16.msra.mxu0 0
    %2460 = vmatpush.bf16.msra.mxu0 0
    %2461 = vmatpush.bf16.msra.mxu0 %v2449
    %2462 = vmatpush.bf16.msra.mxu0 %v2448
    %2463 = vmatmul.bf16.gmra.mxu0 %v2453
    %v2464 = vpop.f32.mrf.mxu0
    %v2465 = vadd.f32 %v2438, %v2464
    %v2466 = vpop.f32.mrf.mxu0
    %2467 = vdwg.mxu0
    %v2468 = vpack.c.bf16 %v2465, %v2465
    %v2470 = vunpack.c.l.b16 %v2468
    %v2471 = vpack.c.b16 %v2470, %v2470
    %2472 = vrot.lane.b32.xlu0 %v2471, 96
    %v2473 = vpop.permute.xlu0 %2472
    %v2475 = vsel %vm241, %v2468, 0
    %v2478 = vsel %vm241, %v2473, 0
    %2480 = vmatpush.bf16.xpose.msra.mxu0 0
    %2481 = vmatpush.bf16.xpose.msra.mxu0 0
    %2482 = vmatpush.bf16.xpose.msra.mxu0 0
    %2483 = vmatpush.bf16.xpose.msra.mxu0 0
    %2484 = vmatpush.bf16.xpose.msra.mxu0 0
    %2485 = vmatpush.bf16.xpose.msra.mxu0 0
    %2486 = vmatpush.bf16.xpose.msra.mxu0 0
    %2487 = vmatpush.bf16.xpose.msra.mxu0 %v2478
    %2488 = vmatmul.bf16.gmra.mxu0 %v2475
    %v2489 = vpop.f32.mrf.mxu0
    %v2490 = vadd.f32 %v1528, %v2489
    %v2491 = vpop.f32.mrf.mxu0
    %2492 = vdwg.mxu0
    %v2493 = vsel %vm241, %v2490, -inf
    %2494 = vmax.xlane.f32.xlu0 %v2493
    %v2495 = vpop.xlane.xlu0 %2494
    %v2496 = vsub.f32 %v2490, %v2495
    %v2497 = vmul.f32 %v2496, 1.442695
    %v2498 = vpow.pop %v2497
    %v2499 = vsel %vm241, %v2498, 0.0
    %2500 = vadd.xlane.f32.xlu0 %v2499
    %v2501 = vpop.xlane.xlu0 %2500
    %v2502 = vrcp.pop %v2501
    %v2503 = vmul.f32 %v2498, %v2502
    %v2504 = vpack.c.bf16 %v2503, %v2503
    %2505 = vrot.lane.b32.xlu0 %v2471, 64
    %v2506 = vpop.permute.xlu0 %2505
    %v2508 = vsel %vm241, %v2504, 0
    %v2511 = vsel %vm1613, %v2506, 0
    %2513 = vmatpush.bf16.msra.mxu0 0
    %2514 = vmatpush.bf16.msra.mxu0 0
    %2515 = vmatpush.bf16.msra.mxu0 0
    %2516 = vmatpush.bf16.msra.mxu0 0
    %2517 = vmatpush.bf16.msra.mxu0 0
    %2518 = vmatpush.bf16.msra.mxu0 0
    %2519 = vmatpush.bf16.msra.mxu0 0
    %2520 = vmatpush.bf16.msra.mxu0 %v2511
    %2521 = vmatmul.bf16.gmra.mxu0 %v2508
    %v2522 = vpop.f32.mrf.mxu0
    %v2523 = vadd.f32 0.0, %v2522
    %v2524 = vpop.f32.mrf.mxu0
    %2525 = vdwg.mxu0
    %2526 = vrot.lane.b32.xlu0 %v2471, 120
    %v2527 = vpop.permute.xlu0 %2526
    %2528 = vrot.lane.b32.xlu0 %v2471, 88
    %v2529 = vpop.permute.xlu0 %2528
    %v2531 = vsel %vm241, %v2527, 0
    %v2534 = vsel %vm241, %v2529, 0
    %2536 = vmatpush.bf16.xpose.msra.mxu0 0
    %2537 = vmatpush.bf16.xpose.msra.mxu0 0
    %2538 = vmatpush.bf16.xpose.msra.mxu0 0
    %2539 = vmatpush.bf16.xpose.msra.mxu0 0
    %2540 = vmatpush.bf16.xpose.msra.mxu0 0
    %2541 = vmatpush.bf16.xpose.msra.mxu0 0
    %2542 = vmatpush.bf16.xpose.msra.mxu0 0
    %2543 = vmatpush.bf16.xpose.msra.mxu0 %v2534
    %2544 = vmatmul.bf16.gmra.mxu0 %v2531
    %v2545 = vpop.f32.mrf.mxu0
    %v2546 = vadd.f32 %v1528, %v2545
    %v2547 = vpop.f32.mrf.mxu0
    %2548 = vdwg.mxu0
    %v2549 = vsel %vm241, %v2546, -inf
    %2550 = vmax.xlane.f32.xlu0 %v2549
    %v2551 = vpop.xlane.xlu0 %2550
    %v2552 = vsub.f32 %v2546, %v2551
    %v2553 = vmul.f32 %v2552, 1.442695
    %v2554 = vpow.pop %v2553
    %v2555 = vsel %vm241, %v2554, 0.0
    %2556 = vadd.xlane.f32.xlu0 %v2555
    %v2557 = vpop.xlane.xlu0 %2556
    %v2558 = vrcp.pop %v2557
    %v2559 = vmul.f32 %v2554, %v2558
    %v2560 = vpack.c.bf16 %v2559, %v2559
    %2561 = vrot.lane.b32.xlu0 %v2471, 56
    %v2562 = vpop.permute.xlu0 %2561
    %v2564 = vsel %vm241, %v2560, 0
    %v2567 = vsel %vm1613, %v2562, 0
    %2569 = vmatpush.bf16.msra.mxu0 0
    %2570 = vmatpush.bf16.msra.mxu0 0
    %2571 = vmatpush.bf16.msra.mxu0 0
    %2572 = vmatpush.bf16.msra.mxu0 0
    %2573 = vmatpush.bf16.msra.mxu0 0
    %2574 = vmatpush.bf16.msra.mxu0 0
    %2575 = vmatpush.bf16.msra.mxu0 0
    %2576 = vmatpush.bf16.msra.mxu0 %v2567
    %2577 = vmatmul.bf16.gmra.mxu0 %v2564
    %v2578 = vpop.f32.mrf.mxu0
    %v2579 = vadd.f32 0.0, %v2578
    %v2580 = vpop.f32.mrf.mxu0
    %2581 = vdwg.mxu0
    %2582 = vrot.lane.b32.xlu0 %v2471, 112
    %v2583 = vpop.permute.xlu0 %2582
    %2584 = vrot.lane.b32.xlu0 %v2471, 80
    %v2585 = vpop.permute.xlu0 %2584
    %v2587 = vsel %vm241, %v2583, 0
    %v2590 = vsel %vm241, %v2585, 0
    %2592 = vmatpush.bf16.xpose.msra.mxu0 0
    %2593 = vmatpush.bf16.xpose.msra.mxu0 0
    %2594 = vmatpush.bf16.xpose.msra.mxu0 0
    %2595 = vmatpush.bf16.xpose.msra.mxu0 0
    %2596 = vmatpush.bf16.xpose.msra.mxu0 0
    %2597 = vmatpush.bf16.xpose.msra.mxu0 0
    %2598 = vmatpush.bf16.xpose.msra.mxu0 0
    %2599 = vmatpush.bf16.xpose.msra.mxu0 %v2590
    %2600 = vmatmul.bf16.gmra.mxu0 %v2587
    %v2601 = vpop.f32.mrf.mxu0
    %v2602 = vadd.f32 %v1528, %v2601
    %v2603 = vpop.f32.mrf.mxu0
    %2604 = vdwg.mxu0
    %v2605 = vsel %vm241, %v2602, -inf
    %2606 = vmax.xlane.f32.xlu0 %v2605
    %v2607 = vpop.xlane.xlu0 %2606
    %v2608 = vsub.f32 %v2602, %v2607
    %v2609 = vmul.f32 %v2608, 1.442695
    %v2610 = vpow.pop %v2609
    %v2611 = vsel %vm241, %v2610, 0.0
    %2612 = vadd.xlane.f32.xlu0 %v2611
    %v2613 = vpop.xlane.xlu0 %2612
    %v2614 = vrcp.pop %v2613
    %v2615 = vmul.f32 %v2610, %v2614
    %v2616 = vpack.c.bf16 %v2615, %v2615
    %2617 = vrot.lane.b32.xlu0 %v2471, 48
    %v2618 = vpop.permute.xlu0 %2617
    %v2620 = vsel %vm241, %v2616, 0
    %v2623 = vsel %vm1613, %v2618, 0
    %2625 = vmatpush.bf16.msra.mxu0 0
    %2626 = vmatpush.bf16.msra.mxu0 0
    %2627 = vmatpush.bf16.msra.mxu0 0
    %2628 = vmatpush.bf16.msra.mxu0 0
    %2629 = vmatpush.bf16.msra.mxu0 0
    %2630 = vmatpush.bf16.msra.mxu0 0
    %2631 = vmatpush.bf16.msra.mxu0 0
    %2632 = vmatpush.bf16.msra.mxu0 %v2623
    %2633 = vmatmul.bf16.gmra.mxu0 %v2620
    %v2634 = vpop.f32.mrf.mxu0
    %v2635 = vadd.f32 0.0, %v2634
    %v2636 = vpop.f32.mrf.mxu0
    %2637 = vdwg.mxu0
    %2638 = vrot.lane.b32.xlu0 %v2471, 104
    %v2639 = vpop.permute.xlu0 %2638
    %2640 = vrot.lane.b32.xlu0 %v2471, 72
    %v2641 = vpop.permute.xlu0 %2640
    %v2643 = vsel %vm241, %v2639, 0
    %v2646 = vsel %vm241, %v2641, 0
    %2648 = vmatpush.bf16.xpose.msra.mxu0 0
    %2649 = vmatpush.bf16.xpose.msra.mxu0 0
    %2650 = vmatpush.bf16.xpose.msra.mxu0 0
    %2651 = vmatpush.bf16.xpose.msra.mxu0 0
    %2652 = vmatpush.bf16.xpose.msra.mxu0 0
    %2653 = vmatpush.bf16.xpose.msra.mxu0 0
    %2654 = vmatpush.bf16.xpose.msra.mxu0 0
    %2655 = vmatpush.bf16.xpose.msra.mxu0 %v2646
    %2656 = vmatmul.bf16.gmra.mxu0 %v2643
    %v2657 = vpop.f32.mrf.mxu0
    %v2658 = vadd.f32 %v1528, %v2657
    %v2659 = vpop.f32.mrf.mxu0
    %2660 = vdwg.mxu0
    %v2661 = vsel %vm241, %v2658, -inf
    %2662 = vmax.xlane.f32.xlu0 %v2661
    %v2663 = vpop.xlane.xlu0 %2662
    %v2664 = vsub.f32 %v2658, %v2663
    %v2665 = vmul.f32 %v2664, 1.442695
    %v2666 = vpow.pop %v2665
    %v2667 = vsel %vm241, %v2666, 0.0
    %2668 = vadd.xlane.f32.xlu0 %v2667
    %v2669 = vpop.xlane.xlu0 %2668
    %v2670 = vrcp.pop %v2669
    %v2671 = vmul.f32 %v2666, %v2670
    %v2672 = vpack.c.bf16 %v2671, %v2671
    %2673 = vrot.lane.b32.xlu0 %v2471, 40
    %v2674 = vpop.permute.xlu0 %2673
    %v2676 = vsel %vm241, %v2672, 0
    %v2679 = vsel %vm1613, %v2674, 0
    %2681 = vmatpush.bf16.msra.mxu0 0
    %2682 = vmatpush.bf16.msra.mxu0 0
    %2683 = vmatpush.bf16.msra.mxu0 0
    %2684 = vmatpush.bf16.msra.mxu0 0
    %2685 = vmatpush.bf16.msra.mxu0 0
    %2686 = vmatpush.bf16.msra.mxu0 0
    %2687 = vmatpush.bf16.msra.mxu0 0
    %2688 = vmatpush.bf16.msra.mxu0 %v2679
    %2689 = vmatmul.bf16.gmra.mxu0 %v2676
    %v2690 = vpop.f32.mrf.mxu0
    %v2691 = vadd.f32 0.0, %v2690
    %v2692 = vpop.f32.mrf.mxu0
    %2693 = vdwg.mxu0
    %2695 = vrot.lane.b32.xlu0 %v2579, 8
    %v2696 = vpop.permute.xlu0 %2695
    %2699 = vrot.lane.b32.xlu0 %v2635, 16
    %v2700 = vpop.permute.xlu0 %2699
    %2703 = vrot.lane.b32.xlu0 %v2691, 24
    %v2704 = vpop.permute.xlu0 %2703
    %v2706 = vsel %vm241, %v2523, %v2696
    %v2707 = vsel %vm543, %v2706, %v2700
    %v2708 = vsel %vm546, %v2707, %v2704
    %v2709 = vpack.c.bf16 %v2708, %v2708
    %v2711 = vperm.slane %v2435, 0
    %v2717 = vunpack.c.l.b16 %v2430
    %v2718 = vunpack.c.l.b16 %v2431
    %v2719 = vunpack.c.l.b16 %v2432
    %v2720 = vunpack.c.l.b16 %v2433
    %v2721 = vpack.c.b16 %v2718, %v2717
    %v2722 = vpack.c.b16 %v2720, %v2719
    %v2726 = vsel %vm211, %v2709, 0
    %2728 = vmatpush.bf16.msra.mxu0 0
    %2729 = vmatpush.bf16.msra.mxu0 0
    %2730 = vmatpush.bf16.msra.mxu0 0
    %2731 = vmatpush.bf16.msra.mxu0 0
    %2732 = vmatpush.bf16.msra.mxu0 0
    %2733 = vmatpush.bf16.msra.mxu0 0
    %2734 = vmatpush.bf16.msra.mxu0 %v2722
    %2735 = vmatpush.bf16.msra.mxu0 %v2721
    %2736 = vmatmul.bf16.gmra.mxu0 %v2726
    %v2737 = vpop.f32.mrf.mxu0
    %v2738 = vadd.f32 %v2711, %v2737
    %v2739 = vpop.f32.mrf.mxu0
    %2740 = vdwg.mxu0
    %v2741 = vadd.f32 %v2421, %v2738
    %s2742 = scalar_lea.vmem %s45, 1
    %v2743 = vld [vmem:[%s2742] sm:$0x1]
    %s2744 = scalar_lea.vmem %s47, 1
    %v2745 = vld [vmem:[%s2744] sm:$0x1]
    %v2746 = vsel %vm211, %v2741, 0.0
    %2747 = vadd.xlane.f32.xlu0 %v2746
    %v2748 = vpop.xlane.xlu0 %2747
    %v2749 = vmul.f32 %v2748, %v599
    %v2750 = vsub.f32 %v2741, %v2749
    %v2751 = vmul.f32 %v2750, %v2750
    %v2752 = vsel %vm211, %v2751, 0.0
    %2753 = vadd.xlane.f32.xlu0 %v2752
    %v2754 = vpop.xlane.xlu0 %2753
    %v2755 = vmul.f32 %v2754, %v599
    %v2756 = vadd.f32 %v2755, 1e-05
    %v2757 = vrsqrt.pop %v2756
    %v2758 = vmul.f32 %v2757, %v2756
    %v2759 = vmul.f32 %v2758, %v2757
    %v2760 = vmul.f32 0.5, %v2759
    %v2761 = vsub.f32 1.5, %v2760
    %v2762 = vmul.f32 %v2757, %v2761
    %vm2763 = vweird.f32 %v2756
    %vm2764 = vweird.f32 %v2757
    %vm2765 = vmor %vm2763, %vm2764
    %v2766 = vsel %vm2765, %v2757, %v2762
    %v2767 = vmul.f32 %v2750, %v2766
    %v2769 = vperm.slane %v2743, 0
    %v2771 = vmul.f32 %v2767, %v2769
    %v2773 = vperm.slane %v2745, 0
    %v2775 = vadd.f32 %v2771, %v2773
    %s2776 = scalar_lea.vmem %s49, 16
    %v2777 = vld [vmem:[%s2776] sm:$0xf]
    %v2778 = vld [vmem:[%s2776 + $0x4] sm:$0xf]
    %v2779 = vld [vmem:[%s2776 + $0x8] sm:$0xf]
    %v2780 = vld [vmem:[%s2776 + $0xc] sm:$0xf]
    %s2781 = scalar_lea.vmem %s51, 1
    %v2782 = vld [vmem:[%s2781] sm:$0x1]
    %s2783 = scalar_lea.vmem %s53, 16
    %v2784 = vld [vmem:[%s2783] sm:$0xf]
    %v2785 = vld [vmem:[%s2783 + $0x4] sm:$0xf]
    %v2786 = vld [vmem:[%s2783 + $0x8] sm:$0xf]
    %v2787 = vld [vmem:[%s2783 + $0xc] sm:$0xf]
    %s2788 = scalar_lea.vmem %s55, 1
    %v2789 = vld [vmem:[%s2788] sm:$0x1]
    %s2790 = scalar_lea.vmem %s57, 16
    %v2791 = vld [vmem:[%s2790] sm:$0xf]
    %v2792 = vld [vmem:[%s2790 + $0x4] sm:$0xf]
    %v2793 = vld [vmem:[%s2790 + $0x8] sm:$0xf]
    %v2794 = vld [vmem:[%s2790 + $0xc] sm:$0xf]
    %s2795 = scalar_lea.vmem %s59, 1
    %v2796 = vld [vmem:[%s2795] sm:$0x1]
    %v2797 = vpack.c.bf16 %v2775, %v2775
    %v2799 = vperm.slane %v2782, 0
    %v2805 = vunpack.c.l.b16 %v2777
    %v2806 = vunpack.c.l.b16 %v2778
    %v2807 = vunpack.c.l.b16 %v2779
    %v2808 = vunpack.c.l.b16 %v2780
    %v2809 = vpack.c.b16 %v2806, %v2805
    %v2810 = vpack.c.b16 %v2808, %v2807
    %v2814 = vsel %vm211, %v2797, 0
    %2816 = vmatpush.bf16.msra.mxu0 0
    %2817 = vmatpush.bf16.msra.mxu0 0
    %2818 = vmatpush.bf16.msra.mxu0 0
    %2819 = vmatpush.bf16.msra.mxu0 0
    %2820 = vmatpush.bf16.msra.mxu0 0
    %2821 = vmatpush.bf16.msra.mxu0 0
    %2822 = vmatpush.bf16.msra.mxu0 %v2810
    %2823 = vmatpush.bf16.msra.mxu0 %v2809
    %2824 = vmatmul.bf16.gmra.mxu0 %v2814
    %v2825 = vpop.f32.mrf.mxu0
    %v2826 = vadd.f32 %v2799, %v2825
    %v2827 = vpop.f32.mrf.mxu0
    %2828 = vdwg.mxu0
    %v2830 = vperm.slane %v2789, 0
    %v2836 = vunpack.c.l.b16 %v2784
    %v2837 = vunpack.c.l.b16 %v2785
    %v2838 = vunpack.c.l.b16 %v2786
    %v2839 = vunpack.c.l.b16 %v2787
    %v2840 = vpack.c.b16 %v2837, %v2836
    %v2841 = vpack.c.b16 %v2839, %v2838
    %2844 = vmatpush.bf16.msra.mxu0 0
    %2845 = vmatpush.bf16.msra.mxu0 0
    %2846 = vmatpush.bf16.msra.mxu0 0
    %2847 = vmatpush.bf16.msra.mxu0 0
    %2848 = vmatpush.bf16.msra.mxu0 0
    %2849 = vmatpush.bf16.msra.mxu0 0
    %2850 = vmatpush.bf16.msra.mxu0 %v2841
    %2851 = vmatpush.bf16.msra.mxu0 %v2840
    %2852 = vmatmul.bf16.gmra.mxu0 %v1942
    %v2853 = vpop.f32.mrf.mxu0
    %v2854 = vadd.f32 %v2830, %v2853
    %v2855 = vpop.f32.mrf.mxu0
    %v2856 = vadd.f32 %v2830, %v2855
    %2857 = vdwg.mxu0
    %v2858 = vpack.c.bf16 %v2826, %v2826
    %v2859 = vpack.c.bf16 %v2854, %v2854
    %v2860 = vpack.c.bf16 %v2856, %v2856
    %v2863 = vunpack.c.l.b16 %v2859
    %v2864 = vunpack.c.l.b16 %v2860
    %v2865 = vpack.c.b16 %v2864, %v2863
    %v2867 = vsel %vm241, %v2858, 0
    %v2870 = vsel %vm241, %v2865, 0
    %2872 = vmatpush.bf16.xpose.msra.mxu0 0
    %2873 = vmatpush.bf16.xpose.msra.mxu0 0
    %2874 = vmatpush.bf16.xpose.msra.mxu0 0
    %2875 = vmatpush.bf16.xpose.msra.mxu0 0
    %2876 = vmatpush.bf16.xpose.msra.mxu0 0
    %2877 = vmatpush.bf16.xpose.msra.mxu0 0
    %2878 = vmatpush.bf16.xpose.msra.mxu0 0
    %2879 = vmatpush.bf16.xpose.msra.mxu0 %v2870
    %2880 = vmatmul.bf16.gmra.mxu0 %v2867
    %v2881 = vpop.f32.mrf.mxu0
    %v2882 = vadd.f32 0.0, %v2881
    %v2883 = vpop.f32.mrf.mxu0
    %2884 = vdwg.mxu0
    %v2885 = vsel %vm262, %v2882, -inf
    %2886 = vmax.xlane.f32.xlu0 %v2885
    %v2887 = vpop.xlane.xlu0 %2886
    %v2888 = vsub.f32 %v2882, %v2887
    %v2889 = vmul.f32 %v2888, 1.442695
    %v2890 = vpow.pop %v2889
    %v2891 = vsel %vm262, %v2890, 0.0
    %2892 = vadd.xlane.f32.xlu0 %v2891
    %v2893 = vpop.xlane.xlu0 %2892
    %v2894 = vrcp.pop %v2893
    %v2895 = vmul.f32 %v2890, %v2894
    %v2896 = vpack.c.bf16 %v2895, %v2895
    %2897 = vrot.lane.b32.xlu0 %v2865, 96
    %v2898 = vpop.permute.xlu0 %2897
    %v2900 = vsel %vm262, %v2896, 0
    %v2903 = vsel %vm292, %v2898, 0
    %2905 = vmatpush.bf16.msra.mxu0 0
    %2906 = vmatpush.bf16.msra.mxu0 0
    %2907 = vmatpush.bf16.msra.mxu0 0
    %2908 = vmatpush.bf16.msra.mxu0 0
    %2909 = vmatpush.bf16.msra.mxu0 0
    %2910 = vmatpush.bf16.msra.mxu0 0
    %2911 = vmatpush.bf16.msra.mxu0 0
    %2912 = vmatpush.bf16.msra.mxu0 %v2903
    %2913 = vmatmul.bf16.gmra.mxu0 %v2900
    %v2914 = vpop.f32.mrf.mxu0
    %v2915 = vadd.f32 0.0, %v2914
    %v2916 = vpop.f32.mrf.mxu0
    %2917 = vdwg.mxu0
    %v2919 = vunpack.c.l.b16 %v2858
    %v2920 = vpack.c.b16 %v2919, %v2919
    %2921 = vrot.lane.b32.xlu0 %v2920, 120
    %v2922 = vpop.permute.xlu0 %2921
    %2923 = vrot.lane.b32.xlu0 %v2865, 120
    %v2924 = vpop.permute.xlu0 %2923
    %v2926 = vsel %vm241, %v2922, 0
    %v2929 = vsel %vm241, %v2924, 0
    %2931 = vmatpush.bf16.xpose.msra.mxu0 0
    %2932 = vmatpush.bf16.xpose.msra.mxu0 0
    %2933 = vmatpush.bf16.xpose.msra.mxu0 0
    %2934 = vmatpush.bf16.xpose.msra.mxu0 0
    %2935 = vmatpush.bf16.xpose.msra.mxu0 0
    %2936 = vmatpush.bf16.xpose.msra.mxu0 0
    %2937 = vmatpush.bf16.xpose.msra.mxu0 0
    %2938 = vmatpush.bf16.xpose.msra.mxu0 %v2929
    %2939 = vmatmul.bf16.gmra.mxu0 %v2926
    %v2940 = vpop.f32.mrf.mxu0
    %v2941 = vadd.f32 0.0, %v2940
    %v2942 = vpop.f32.mrf.mxu0
    %2943 = vdwg.mxu0
    %v2944 = vsel %vm262, %v2941, -inf
    %2945 = vmax.xlane.f32.xlu0 %v2944
    %v2946 = vpop.xlane.xlu0 %2945
    %v2947 = vsub.f32 %v2941, %v2946
    %v2948 = vmul.f32 %v2947, 1.442695
    %v2949 = vpow.pop %v2948
    %v2950 = vsel %vm262, %v2949, 0.0
    %2951 = vadd.xlane.f32.xlu0 %v2950
    %v2952 = vpop.xlane.xlu0 %2951
    %v2953 = vrcp.pop %v2952
    %v2954 = vmul.f32 %v2949, %v2953
    %v2955 = vpack.c.bf16 %v2954, %v2954
    %2956 = vrot.lane.b32.xlu0 %v2865, 88
    %v2957 = vpop.permute.xlu0 %2956
    %v2959 = vsel %vm262, %v2955, 0
    %v2962 = vsel %vm292, %v2957, 0
    %2964 = vmatpush.bf16.msra.mxu0 0
    %2965 = vmatpush.bf16.msra.mxu0 0
    %2966 = vmatpush.bf16.msra.mxu0 0
    %2967 = vmatpush.bf16.msra.mxu0 0
    %2968 = vmatpush.bf16.msra.mxu0 0
    %2969 = vmatpush.bf16.msra.mxu0 0
    %2970 = vmatpush.bf16.msra.mxu0 0
    %2971 = vmatpush.bf16.msra.mxu0 %v2962
    %2972 = vmatmul.bf16.gmra.mxu0 %v2959
    %v2973 = vpop.f32.mrf.mxu0
    %v2974 = vadd.f32 0.0, %v2973
    %v2975 = vpop.f32.mrf.mxu0
    %2976 = vdwg.mxu0
    %2977 = vrot.lane.b32.xlu0 %v2920, 112
    %v2978 = vpop.permute.xlu0 %2977
    %2979 = vrot.lane.b32.xlu0 %v2865, 112
    %v2980 = vpop.permute.xlu0 %2979
    %v2982 = vsel %vm241, %v2978, 0
    %v2985 = vsel %vm241, %v2980, 0
    %2987 = vmatpush.bf16.xpose.msra.mxu0 0
    %2988 = vmatpush.bf16.xpose.msra.mxu0 0
    %2989 = vmatpush.bf16.xpose.msra.mxu0 0
    %2990 = vmatpush.bf16.xpose.msra.mxu0 0
    %2991 = vmatpush.bf16.xpose.msra.mxu0 0
    %2992 = vmatpush.bf16.xpose.msra.mxu0 0
    %2993 = vmatpush.bf16.xpose.msra.mxu0 0
    %2994 = vmatpush.bf16.xpose.msra.mxu0 %v2985
    %2995 = vmatmul.bf16.gmra.mxu0 %v2982
    %v2996 = vpop.f32.mrf.mxu0
    %v2997 = vadd.f32 0.0, %v2996
    %v2998 = vpop.f32.mrf.mxu0
    %2999 = vdwg.mxu0
    %v3000 = vsel %vm262, %v2997, -inf
    %3001 = vmax.xlane.f32.xlu0 %v3000
    %v3002 = vpop.xlane.xlu0 %3001
    %v3003 = vsub.f32 %v2997, %v3002
    %v3004 = vmul.f32 %v3003, 1.442695
    %v3005 = vpow.pop %v3004
    %v3006 = vsel %vm262, %v3005, 0.0
    %3007 = vadd.xlane.f32.xlu0 %v3006
    %v3008 = vpop.xlane.xlu0 %3007
    %v3009 = vrcp.pop %v3008
    %v3010 = vmul.f32 %v3005, %v3009
    %v3011 = vpack.c.bf16 %v3010, %v3010
    %3012 = vrot.lane.b32.xlu0 %v2865, 80
    %v3013 = vpop.permute.xlu0 %3012
    %v3015 = vsel %vm262, %v3011, 0
    %v3018 = vsel %vm292, %v3013, 0
    %3020 = vmatpush.bf16.msra.mxu0 0
    %3021 = vmatpush.bf16.msra.mxu0 0
    %3022 = vmatpush.bf16.msra.mxu0 0
    %3023 = vmatpush.bf16.msra.mxu0 0
    %3024 = vmatpush.bf16.msra.mxu0 0
    %3025 = vmatpush.bf16.msra.mxu0 0
    %3026 = vmatpush.bf16.msra.mxu0 0
    %3027 = vmatpush.bf16.msra.mxu0 %v3018
    %3028 = vmatmul.bf16.gmra.mxu0 %v3015
    %v3029 = vpop.f32.mrf.mxu0
    %v3030 = vadd.f32 0.0, %v3029
    %v3031 = vpop.f32.mrf.mxu0
    %3032 = vdwg.mxu0
    %3033 = vrot.lane.b32.xlu0 %v2920, 104
    %v3034 = vpop.permute.xlu0 %3033
    %3035 = vrot.lane.b32.xlu0 %v2865, 104
    %v3036 = vpop.permute.xlu0 %3035
    %v3038 = vsel %vm241, %v3034, 0
    %v3041 = vsel %vm241, %v3036, 0
    %3043 = vmatpush.bf16.xpose.msra.mxu0 0
    %3044 = vmatpush.bf16.xpose.msra.mxu0 0
    %3045 = vmatpush.bf16.xpose.msra.mxu0 0
    %3046 = vmatpush.bf16.xpose.msra.mxu0 0
    %3047 = vmatpush.bf16.xpose.msra.mxu0 0
    %3048 = vmatpush.bf16.xpose.msra.mxu0 0
    %3049 = vmatpush.bf16.xpose.msra.mxu0 0
    %3050 = vmatpush.bf16.xpose.msra.mxu0 %v3041
    %3051 = vmatmul.bf16.gmra.mxu0 %v3038
    %v3052 = vpop.f32.mrf.mxu0
    %v3053 = vadd.f32 0.0, %v3052
    %v3054 = vpop.f32.mrf.mxu0
    %3055 = vdwg.mxu0
    %v3056 = vsel %vm262, %v3053, -inf
    %3057 = vmax.xlane.f32.xlu0 %v3056
    %v3058 = vpop.xlane.xlu0 %3057
    %v3059 = vsub.f32 %v3053, %v3058
    %v3060 = vmul.f32 %v3059, 1.442695
    %v3061 = vpow.pop %v3060
    %v3062 = vsel %vm262, %v3061, 0.0
    %3063 = vadd.xlane.f32.xlu0 %v3062
    %v3064 = vpop.xlane.xlu0 %3063
    %v3065 = vrcp.pop %v3064
    %v3066 = vmul.f32 %v3061, %v3065
    %v3067 = vpack.c.bf16 %v3066, %v3066
    %3068 = vrot.lane.b32.xlu0 %v2865, 72
    %v3069 = vpop.permute.xlu0 %3068
    %v3071 = vsel %vm262, %v3067, 0
    %v3074 = vsel %vm292, %v3069, 0
    %3076 = vmatpush.bf16.msra.mxu0 0
    %3077 = vmatpush.bf16.msra.mxu0 0
    %3078 = vmatpush.bf16.msra.mxu0 0
    %3079 = vmatpush.bf16.msra.mxu0 0
    %3080 = vmatpush.bf16.msra.mxu0 0
    %3081 = vmatpush.bf16.msra.mxu0 0
    %3082 = vmatpush.bf16.msra.mxu0 0
    %3083 = vmatpush.bf16.msra.mxu0 %v3074
    %3084 = vmatmul.bf16.gmra.mxu0 %v3071
    %v3085 = vpop.f32.mrf.mxu0
    %v3086 = vadd.f32 0.0, %v3085
    %v3087 = vpop.f32.mrf.mxu0
    %3088 = vdwg.mxu0
    %3090 = vrot.lane.b32.xlu0 %v2974, 8
    %v3091 = vpop.permute.xlu0 %3090
    %3094 = vrot.lane.b32.xlu0 %v3030, 16
    %v3095 = vpop.permute.xlu0 %3094
    %3098 = vrot.lane.b32.xlu0 %v3086, 24
    %v3099 = vpop.permute.xlu0 %3098
    %v3101 = vsel %vm241, %v2915, %v3091
    %v3102 = vsel %vm543, %v3101, %v3095
    %v3103 = vsel %vm546, %v3102, %v3099
    %v3104 = vpack.c.bf16 %v3103, %v3103
    %v3106 = vperm.slane %v2796, 0
    %v3112 = vunpack.c.l.b16 %v2791
    %v3113 = vunpack.c.l.b16 %v2792
    %v3114 = vunpack.c.l.b16 %v2793
    %v3115 = vunpack.c.l.b16 %v2794
    %v3116 = vpack.c.b16 %v3113, %v3112
    %v3117 = vpack.c.b16 %v3115, %v3114
    %v3121 = vsel %vm211, %v3104, 0
    %3123 = vmatpush.bf16.msra.mxu0 0
    %3124 = vmatpush.bf16.msra.mxu0 0
    %3125 = vmatpush.bf16.msra.mxu0 0
    %3126 = vmatpush.bf16.msra.mxu0 0
    %3127 = vmatpush.bf16.msra.mxu0 0
    %3128 = vmatpush.bf16.msra.mxu0 0
    %3129 = vmatpush.bf16.msra.mxu0 %v3117
    %3130 = vmatpush.bf16.msra.mxu0 %v3116
    %3131 = vmatmul.bf16.gmra.mxu0 %v3121
    %v3132 = vpop.f32.mrf.mxu0
    %v3133 = vadd.f32 %v3106, %v3132
    %v3134 = vpop.f32.mrf.mxu0
    %3135 = vdwg.mxu0
    %v3136 = vadd.f32 %v2775, %v3133
    %s3137 = scalar_lea.vmem %s61, 1
    %v3138 = vld [vmem:[%s3137] sm:$0x1]
    %s3139 = scalar_lea.vmem %s63, 1
    %v3140 = vld [vmem:[%s3139] sm:$0x1]
    %v3141 = vsel %vm211, %v3136, 0.0
    %3142 = vadd.xlane.f32.xlu0 %v3141
    %v3143 = vpop.xlane.xlu0 %3142
    %v3144 = vmul.f32 %v3143, %v599
    %v3145 = vsub.f32 %v3136, %v3144
    %v3146 = vmul.f32 %v3145, %v3145
    %v3147 = vsel %vm211, %v3146, 0.0
    %3148 = vadd.xlane.f32.xlu0 %v3147
    %v3149 = vpop.xlane.xlu0 %3148
    %v3150 = vmul.f32 %v3149, %v599
    %v3151 = vadd.f32 %v3150, 1e-05
    %v3152 = vrsqrt.pop %v3151
    %v3153 = vmul.f32 %v3152, %v3151
    %v3154 = vmul.f32 %v3153, %v3152
    %v3155 = vmul.f32 0.5, %v3154
    %v3156 = vsub.f32 1.5, %v3155
    %v3157 = vmul.f32 %v3152, %v3156
    %vm3158 = vweird.f32 %v3151
    %vm3159 = vweird.f32 %v3152
    %vm3160 = vmor %vm3158, %vm3159
    %v3161 = vsel %vm3160, %v3152, %v3157
    %v3162 = vmul.f32 %v3145, %v3161
    %v3164 = vperm.slane %v3138, 0
    %v3166 = vmul.f32 %v3162, %v3164
    %v3168 = vperm.slane %v3140, 0
    %v3170 = vadd.f32 %v3166, %v3168
    %s3171 = scalar_lea.vmem %s65, 16
    %v3172 = vld [vmem:[%s3171] sm:$0xf]
    %v3173 = vld [vmem:[%s3171 + $0x4] sm:$0xf]
    %v3174 = vld [vmem:[%s3171 + $0x8] sm:$0xf]
    %v3175 = vld [vmem:[%s3171 + $0xc] sm:$0xf]
    %s3176 = scalar_lea.vmem %s67, 1
    %v3177 = vld [vmem:[%s3176] sm:$0x1]
    %s3178 = scalar_lea.vmem %s69, 64
    %v3179 = vld [vmem:[%s3178] sm:$0xf]
    %v3180 = vld [vmem:[%s3178 + $0x4] sm:$0xf]
    %v3181 = vld [vmem:[%s3178 + $0x8] sm:$0xf]
    %v3182 = vld [vmem:[%s3178 + $0xc] sm:$0xf]
    %v3183 = vld [vmem:[%s3178 + $0x10] sm:$0xf]
    %v3184 = vld [vmem:[%s3178 + $0x14] sm:$0xf]
    %v3185 = vld [vmem:[%s3178 + $0x18] sm:$0xf]
    %v3186 = vld [vmem:[%s3178 + $0x1c] sm:$0xf]
    %v3187 = vld [vmem:[%s3178 + $0x20] sm:$0xf]
    %v3188 = vld [vmem:[%s3178 + $0x24] sm:$0xf]
    %v3189 = vld [vmem:[%s3178 + $0x28] sm:$0xf]
    %v3190 = vld [vmem:[%s3178 + $0x2c] sm:$0xf]
    %v3191 = vld [vmem:[%s3178 + $0x30] sm:$0xf]
    %v3192 = vld [vmem:[%s3178 + $0x34] sm:$0xf]
    %v3193 = vld [vmem:[%s3178 + $0x38] sm:$0xf]
    %v3194 = vld [vmem:[%s3178 + $0x3c] sm:$0xf]
    %s3195 = scalar_lea.vmem %s71, 1
    %v3196 = vld [vmem:[%s3195] sm:$0x1]
    %v3197 = vpack.c.bf16 %v3170, %v3170
    %v3199 = vperm.slane %v3177, 0
    %v3205 = vunpack.c.l.b16 %v3172
    %v3206 = vunpack.c.l.b16 %v3173
    %v3207 = vunpack.c.l.b16 %v3174
    %v3208 = vunpack.c.l.b16 %v3175
    %v3209 = vpack.c.b16 %v3206, %v3205
    %v3210 = vpack.c.b16 %v3208, %v3207
    %v3214 = vsel %vm211, %v3197, 0
    %3216 = vmatpush.bf16.msra.mxu0 0
    %3217 = vmatpush.bf16.msra.mxu0 0
    %3218 = vmatpush.bf16.msra.mxu0 0
    %3219 = vmatpush.bf16.msra.mxu0 0
    %3220 = vmatpush.bf16.msra.mxu0 0
    %3221 = vmatpush.bf16.msra.mxu0 0
    %3222 = vmatpush.bf16.msra.mxu0 %v3210
    %3223 = vmatpush.bf16.msra.mxu0 %v3209
    %3224 = vmatmul.bf16.gmra.mxu0 %v3214
    %v3225 = vpop.f32.mrf.mxu0
    %v3226 = vadd.f32 %v3199, %v3225
    %v3227 = vpop.f32.mrf.mxu0
    %3228 = vdwg.mxu0
    %v3229 = vmax.f32 %v3226, 0.0
    %v3230 = vpack.c.bf16 %v3229, %v3229
    %v3232 = vperm.slane %v3196, 0
    %v3250 = vunpack.c.l.b16 %v3179
    %v3251 = vunpack.c.l.b16 %v3180
    %v3252 = vunpack.c.l.b16 %v3181
    %v3253 = vunpack.c.l.b16 %v3182
    %v3254 = vunpack.c.l.b16 %v3183
    %v3255 = vunpack.c.l.b16 %v3184
    %v3256 = vunpack.c.l.b16 %v3185
    %v3257 = vunpack.c.l.b16 %v3186
    %v3258 = vunpack.c.l.b16 %v3187
    %v3259 = vunpack.c.l.b16 %v3188
    %v3260 = vunpack.c.l.b16 %v3189
    %v3261 = vunpack.c.l.b16 %v3190
    %v3262 = vunpack.c.l.b16 %v3191
    %v3263 = vunpack.c.l.b16 %v3192
    %v3264 = vunpack.c.l.b16 %v3193
    %v3265 = vunpack.c.l.b16 %v3194
    %v3266 = vpack.c.b16 %v3251, %v3250
    %v3267 = vpack.c.b16 %v3253, %v3252
    %v3268 = vpack.c.b16 %v3255, %v3254
    %v3269 = vpack.c.b16 %v3257, %v3256
    %v3270 = vpack.c.b16 %v3259, %v3258
    %v3271 = vpack.c.b16 %v3261, %v3260
    %v3272 = vpack.c.b16 %v3263, %v3262
    %v3273 = vpack.c.b16 %v3265, %v3264
    %3282 = vmatpush.bf16.msra.mxu0 %v3273
    %3283 = vmatpush.bf16.msra.mxu0 %v3272
    %3284 = vmatpush.bf16.msra.mxu0 %v3271
    %3285 = vmatpush.bf16.msra.mxu0 %v3270
    %3286 = vmatpush.bf16.msra.mxu0 %v3269
    %3287 = vmatpush.bf16.msra.mxu0 %v3268
    %3288 = vmatpush.bf16.msra.mxu0 %v3267
    %3289 = vmatpush.bf16.msra.mxu0 %v3266
    %3290 = vmatmul.bf16.gmra.mxu0 %v3230
    %v3291 = vpop.f32.mrf.mxu0
    %v3292 = vadd.f32 %v3232, %v3291
    %v3293 = vpop.f32.mrf.mxu0
    %3294 = vdwg.mxu0
    %v3295 = vadd.f32 %v3170, %v3292
    %s3296 = scalar_lea.vmem %s73, 1
    %v3297 = vld [vmem:[%s3296] sm:$0x1]
    %s3298 = scalar_lea.vmem %s75, 1
    %v3299 = vld [vmem:[%s3298] sm:$0x1]
    %v3300 = vsel %vm211, %v3295, 0.0
    %3301 = vadd.xlane.f32.xlu0 %v3300
    %v3302 = vpop.xlane.xlu0 %3301
    %v3303 = vmul.f32 %v3302, %v599
    %v3304 = vsub.f32 %v3295, %v3303
    %v3305 = vmul.f32 %v3304, %v3304
    %v3306 = vsel %vm211, %v3305, 0.0
    %3307 = vadd.xlane.f32.xlu0 %v3306
    %v3308 = vpop.xlane.xlu0 %3307
    %v3309 = vmul.f32 %v3308, %v599
    %v3310 = vadd.f32 %v3309, 1e-05
    %v3311 = vrsqrt.pop %v3310
    %v3312 = vmul.f32 %v3311, %v3310
    %v3313 = vmul.f32 %v3312, %v3311
    %v3314 = vmul.f32 0.5, %v3313
    %v3315 = vsub.f32 1.5, %v3314
    %v3316 = vmul.f32 %v3311, %v3315
    %vm3317 = vweird.f32 %v3310
    %vm3318 = vweird.f32 %v3311
    %vm3319 = vmor %vm3317, %vm3318
    %v3320 = vsel %vm3319, %v3311, %v3316
    %v3321 = vmul.f32 %v3304, %v3320
    %v3323 = vperm.slane %v3297, 0
    %v3325 = vmul.f32 %v3321, %v3323
    %v3327 = vperm.slane %v3299, 0
    %v3329 = vadd.f32 %v3325, %v3327
    %v3330 = vld [vmem:[%s77] sm:$0x1]
    %v3331 = vld [vmem:[%s79] sm:$0x1]
    %v3332 = vsel %vm211, %v3329, 0.0
    %3333 = vadd.xlane.f32.xlu0 %v3332
    %v3334 = vpop.xlane.xlu0 %3333
    %v3335 = vmul.f32 %v3334, %v599
    %v3336 = vsub.f32 %v3329, %v3335
    %v3337 = vmul.f32 %v3336, %v3336
    %v3338 = vsel %vm211, %v3337, 0.0
    %3339 = vadd.xlane.f32.xlu0 %v3338
    %v3340 = vpop.xlane.xlu0 %3339
    %v3341 = vmul.f32 %v3340, %v599
    %v3342 = vadd.f32 %v3341, 1e-05
    %v3343 = vrsqrt.pop %v3342
    %v3344 = vmul.f32 %v3343, %v3342
    %v3345 = vmul.f32 %v3344, %v3343
    %v3346 = vmul.f32 0.5, %v3345
    %v3347 = vsub.f32 1.5, %v3346
    %v3348 = vmul.f32 %v3343, %v3347
    %vm3349 = vweird.f32 %v3342
    %vm3350 = vweird.f32 %v3343
    %vm3351 = vmor %vm3349, %vm3350
    %v3352 = vsel %vm3351, %v3343, %v3348
    %v3353 = vmul.f32 %v3336, %v3352
    %v3355 = vperm.slane %v3330, 0
    %v3357 = vmul.f32 %v3353, %v3355
    %v3359 = vperm.slane %v3331, 0
    %v3361 = vadd.f32 %v3357, %v3359
    %v3362 = vpack.c.bf16 %v3361, %v3361
    %v3363 = vld [vmem:[%s81] sm:$0xf]
    %v3364 = vld [vmem:[%s81 + $0x4] sm:$0xf]
    %v3365 = vld [vmem:[%s81 + $0x8] sm:$0xf]
    %v3366 = vld [vmem:[%s81 + $0xc] sm:$0xf]
    %v3367 = vld [vmem:[%s83] sm:$0x1]
    %v3369 = vperm.slane %v3367, 0
    %v3375 = vunpack.c.l.b16 %v3363
    %v3376 = vunpack.c.l.b16 %v3364
    %v3377 = vunpack.c.l.b16 %v3365
    %v3378 = vunpack.c.l.b16 %v3366
    %v3379 = vpack.c.b16 %v3376, %v3375
    %v3380 = vpack.c.b16 %v3378, %v3377
    %v3384 = vsel %vm211, %v3362, 0
    %3386 = vmatpush.bf16.msra.mxu0 0
    %3387 = vmatpush.bf16.msra.mxu0 0
    %3388 = vmatpush.bf16.msra.mxu0 0
    %3389 = vmatpush.bf16.msra.mxu0 0
    %3390 = vmatpush.bf16.msra.mxu0 0
    %3391 = vmatpush.bf16.msra.mxu0 0
    %3392 = vmatpush.bf16.msra.mxu0 %v3380
    %3393 = vmatpush.bf16.msra.mxu0 %v3379
    %3394 = vmatmul.bf16.gmra.mxu0 %v3384
    %v3395 = vpop.f32.mrf.mxu0
    %v3396 = vadd.f32 %v3369, %v3395
    %v3397 = vpop.f32.mrf.mxu0
    %3398 = vdwg.mxu0
    %3399 = vst [vmem:[#allocation2] sm:$0xff] %v3396
    %s3400 = scalar_lea.vmem %s1, 16
    %v3401 = vld [vmem:[%s3400] sm:$0xff]
    %v3402 = vld [vmem:[%s3400 + $0x8] sm:$0xf]
    %s3403 = scalar_lea.vmem %s5, 1
    %v3404 = vld [vmem:[%s3403] sm:$0x1]
    %v3405 = vld [vmem:[%s9] sm:$0xf]
    %v3406 = vld [vmem:[%s9 + $0x4] sm:$0xf]
    %v3407 = vld [vmem:[%s9 + $0x8] sm:$0xf]
    %v3408 = vld [vmem:[%s9 + $0xc] sm:$0xf]
    %v3409 = vld [vmem:[%s11] sm:$0x1]
    %v3410 = vld [vmem:[%s13] sm:$0xf]
    %v3411 = vld [vmem:[%s13 + $0x4] sm:$0xf]
    %v3412 = vld [vmem:[%s13 + $0x8] sm:$0xf]
    %v3413 = vld [vmem:[%s13 + $0xc] sm:$0xf]
    %v3414 = vld [vmem:[%s15] sm:$0x1]
    %v3415 = vpack.c.bf16 %v3402, %v3401
    %v3417 = vperm.slane %v3409, 0
    %v3423 = vunpack.c.l.b16 %v3405
    %v3424 = vunpack.c.l.b16 %v3406
    %v3425 = vunpack.c.l.b16 %v3407
    %v3426 = vunpack.c.l.b16 %v3408
    %v3427 = vpack.c.b16 %v3424, %v3423
    %v3428 = vpack.c.b16 %v3426, %v3425
    %v3432 = vsel %vm211, %v3415, 0
    %3434 = vmatpush.bf16.msra.mxu0 0
    %3435 = vmatpush.bf16.msra.mxu0 0
    %3436 = vmatpush.bf16.msra.mxu0 0
    %3437 = vmatpush.bf16.msra.mxu0 0
    %3438 = vmatpush.bf16.msra.mxu0 0
    %3439 = vmatpush.bf16.msra.mxu0 0
    %3440 = vmatpush.bf16.msra.mxu0 %v3428
    %3441 = vmatpush.bf16.msra.mxu0 %v3427
    %3442 = vmatmul.bf16.gmra.mxu0 %v3432
    %v3443 = vpop.f32.mrf.mxu0
    %v3444 = vadd.f32 %v3417, %v3443
    %v3445 = vpop.f32.mrf.mxu0
    %v3446 = vadd.f32 %v3417, %v3445
    %3447 = vdwg.mxu0
    %v3448 = vpack.c.bf16 %v3444, %v3444
    %v3449 = vpack.c.bf16 %v3446, %v3446
    %v3451 = vperm.slane %v3404, 0
    %v3455 = vunpack.c.l.b16 %v3448
    %v3456 = vunpack.c.l.b16 %v3449
    %v3457 = vpack.c.b16 %v3456, %v3455
    %3458 = vrot.lane.b32.xlu0 %v3457, 96
    %v3459 = vpop.permute.xlu0 %3458
    %v3461 = vsel %vm241, %v3457, 0
    %v3464 = vsel %vm241, %v3459, 0
    %3466 = vmatpush.bf16.xpose.msra.mxu0 0
    %3467 = vmatpush.bf16.xpose.msra.mxu0 0
    %3468 = vmatpush.bf16.xpose.msra.mxu0 0
    %3469 = vmatpush.bf16.xpose.msra.mxu0 0
    %3470 = vmatpush.bf16.xpose.msra.mxu0 0
    %3471 = vmatpush.bf16.xpose.msra.mxu0 0
    %3472 = vmatpush.bf16.xpose.msra.mxu0 0
    %3473 = vmatpush.bf16.xpose.msra.mxu0 %v3464
    %3474 = vmatmul.bf16.gmra.mxu0 %v3461
    %v3475 = vpop.f32.mrf.mxu0
    %v3476 = vadd.f32 %v3451, %v3475
    %v3477 = vpop.f32.mrf.mxu0
    %v3478 = vadd.f32 %v3451, %v3477
    %3479 = vdwg.mxu0
    %v3480 = vsel %vm262, %v3476, -inf
    %3481 = vmax.xlane.f32.xlu0 %v3480
    %v3482 = vpop.xlane.xlu0 %3481
    %v3483 = vsel %vm266, %v3478, -inf
    %3484 = vmax.xlane.f32.xlu0 %v3483
    %v3485 = vpop.xlane.xlu0 %3484
    %v3486 = vsub.f32 %v3476, %v3482
    %v3487 = vsub.f32 %v3478, %v3485
    %v3488 = vmul.f32 %v3486, 1.442695
    %v3489 = vpow.pop %v3488
    %v3490 = vmul.f32 %v3487, 1.442695
    %v3491 = vpow.pop %v3490
    %v3492 = vsel %vm262, %v3489, 0.0
    %3493 = vadd.xlane.f32.xlu0 %v3492
    %v3494 = vpop.xlane.xlu0 %3493
    %v3495 = vsel %vm266, %v3491, 0.0
    %3496 = vadd.xlane.f32.xlu0 %v3495
    %v3497 = vpop.xlane.xlu0 %3496
    %v3498 = vrcp.pop %v3494
    %v3499 = vrcp.pop %v3497
    %v3500 = vmul.f32 %v3489, %v3498
    %v3501 = vmul.f32 %v3491, %v3499
    %v3502 = vpack.c.bf16 %v3501, %v3500
    %3503 = vrot.lane.b32.xlu0 %v3457, 64
    %v3504 = vpop.permute.xlu0 %3503
    %v3506 = vsel %vm262, %v3502, 0
    %v3509 = vsel %vm292, %v3504, 0
    %3511 = vmatpush.bf16.msra.mxu0 0
    %3512 = vmatpush.bf16.msra.mxu0 0
    %3513 = vmatpush.bf16.msra.mxu0 0
    %3514 = vmatpush.bf16.msra.mxu0 0
    %3515 = vmatpush.bf16.msra.mxu0 0
    %3516 = vmatpush.bf16.msra.mxu0 0
    %3517 = vmatpush.bf16.msra.mxu0 0
    %3518 = vmatpush.bf16.msra.mxu0 %v3509
    %3519 = vmatmul.bf16.gmra.mxu0 %v3506
    %v3520 = vpop.f32.mrf.mxu0
    %v3521 = vadd.f32 0.0, %v3520
    %v3522 = vpop.f32.mrf.mxu0
    %v3523 = vadd.f32 0.0, %v3522
    %3524 = vdwg.mxu0
    %3525 = vrot.lane.b32.xlu0 %v3457, 120
    %v3526 = vpop.permute.xlu0 %3525
    %3527 = vrot.lane.b32.xlu0 %v3457, 88
    %v3528 = vpop.permute.xlu0 %3527
    %v3530 = vsel %vm241, %v3526, 0
    %v3533 = vsel %vm241, %v3528, 0
    %3535 = vmatpush.bf16.xpose.msra.mxu0 0
    %3536 = vmatpush.bf16.xpose.msra.mxu0 0
    %3537 = vmatpush.bf16.xpose.msra.mxu0 0
    %3538 = vmatpush.bf16.xpose.msra.mxu0 0
    %3539 = vmatpush.bf16.xpose.msra.mxu0 0
    %3540 = vmatpush.bf16.xpose.msra.mxu0 0
    %3541 = vmatpush.bf16.xpose.msra.mxu0 0
    %3542 = vmatpush.bf16.xpose.msra.mxu0 %v3533
    %3543 = vmatmul.bf16.gmra.mxu0 %v3530
    %v3544 = vpop.f32.mrf.mxu0
    %v3545 = vadd.f32 %v3451, %v3544
    %v3546 = vpop.f32.mrf.mxu0
    %v3547 = vadd.f32 %v3451, %v3546
    %3548 = vdwg.mxu0
    %v3549 = vsel %vm262, %v3545, -inf
    %3550 = vmax.xlane.f32.xlu0 %v3549
    %v3551 = vpop.xlane.xlu0 %3550
    %v3552 = vsel %vm266, %v3547, -inf
    %3553 = vmax.xlane.f32.xlu0 %v3552
    %v3554 = vpop.xlane.xlu0 %3553
    %v3555 = vsub.f32 %v3545, %v3551
    %v3556 = vsub.f32 %v3547, %v3554
    %v3557 = vmul.f32 %v3555, 1.442695
    %v3558 = vpow.pop %v3557
    %v3559 = vmul.f32 %v3556, 1.442695
    %v3560 = vpow.pop %v3559
    %v3561 = vsel %vm262, %v3558, 0.0
    %3562 = vadd.xlane.f32.xlu0 %v3561
    %v3563 = vpop.xlane.xlu0 %3562
    %v3564 = vsel %vm266, %v3560, 0.0
    %3565 = vadd.xlane.f32.xlu0 %v3564
    %v3566 = vpop.xlane.xlu0 %3565
    %v3567 = vrcp.pop %v3563
    %v3568 = vrcp.pop %v3566
    %v3569 = vmul.f32 %v3558, %v3567
    %v3570 = vmul.f32 %v3560, %v3568
    %v3571 = vpack.c.bf16 %v3570, %v3569
    %3572 = vrot.lane.b32.xlu0 %v3457, 56
    %v3573 = vpop.permute.xlu0 %3572
    %v3575 = vsel %vm262, %v3571, 0
    %v3578 = vsel %vm292, %v3573, 0
    %3580 = vmatpush.bf16.msra.mxu0 0
    %3581 = vmatpush.bf16.msra.mxu0 0
    %3582 = vmatpush.bf16.msra.mxu0 0
    %3583 = vmatpush.bf16.msra.mxu0 0
    %3584 = vmatpush.bf16.msra.mxu0 0
    %3585 = vmatpush.bf16.msra.mxu0 0
    %3586 = vmatpush.bf16.msra.mxu0 0
    %3587 = vmatpush.bf16.msra.mxu0 %v3578
    %3588 = vmatmul.bf16.gmra.mxu0 %v3575
    %v3589 = vpop.f32.mrf.mxu0
    %v3590 = vadd.f32 0.0, %v3589
    %v3591 = vpop.f32.mrf.mxu0
    %v3592 = vadd.f32 0.0, %v3591
    %3593 = vdwg.mxu0
    %3594 = vrot.lane.b32.xlu0 %v3457, 112
    %v3595 = vpop.permute.xlu0 %3594
    %3596 = vrot.lane.b32.xlu0 %v3457, 80
    %v3597 = vpop.permute.xlu0 %3596
    %v3599 = vsel %vm241, %v3595, 0
    %v3602 = vsel %vm241, %v3597, 0
    %3604 = vmatpush.bf16.xpose.msra.mxu0 0
    %3605 = vmatpush.bf16.xpose.msra.mxu0 0
    %3606 = vmatpush.bf16.xpose.msra.mxu0 0
    %3607 = vmatpush.bf16.xpose.msra.mxu0 0
    %3608 = vmatpush.bf16.xpose.msra.mxu0 0
    %3609 = vmatpush.bf16.xpose.msra.mxu0 0
    %3610 = vmatpush.bf16.xpose.msra.mxu0 0
    %3611 = vmatpush.bf16.xpose.msra.mxu0 %v3602
    %3612 = vmatmul.bf16.gmra.mxu0 %v3599
    %v3613 = vpop.f32.mrf.mxu0
    %v3614 = vadd.f32 %v3451, %v3613
    %v3615 = vpop.f32.mrf.mxu0
    %v3616 = vadd.f32 %v3451, %v3615
    %3617 = vdwg.mxu0
    %v3618 = vsel %vm262, %v3614, -inf
    %3619 = vmax.xlane.f32.xlu0 %v3618
    %v3620 = vpop.xlane.xlu0 %3619
    %v3621 = vsel %vm266, %v3616, -inf
    %3622 = vmax.xlane.f32.xlu0 %v3621
    %v3623 = vpop.xlane.xlu0 %3622
    %v3624 = vsub.f32 %v3614, %v3620
    %v3625 = vsub.f32 %v3616, %v3623
    %v3626 = vmul.f32 %v3624, 1.442695
    %v3627 = vpow.pop %v3626
    %v3628 = vmul.f32 %v3625, 1.442695
    %v3629 = vpow.pop %v3628
    %v3630 = vsel %vm262, %v3627, 0.0
    %3631 = vadd.xlane.f32.xlu0 %v3630
    %v3632 = vpop.xlane.xlu0 %3631
    %v3633 = vsel %vm266, %v3629, 0.0
    %3634 = vadd.xlane.f32.xlu0 %v3633
    %v3635 = vpop.xlane.xlu0 %3634
    %v3636 = vrcp.pop %v3632
    %v3637 = vrcp.pop %v3635
    %v3638 = vmul.f32 %v3627, %v3636
    %v3639 = vmul.f32 %v3629, %v3637
    %v3640 = vpack.c.bf16 %v3639, %v3638
    %3641 = vrot.lane.b32.xlu0 %v3457, 48
    %v3642 = vpop.permute.xlu0 %3641
    %v3644 = vsel %vm262, %v3640, 0
    %v3647 = vsel %vm292, %v3642, 0
    %3649 = vmatpush.bf16.msra.mxu0 0
    %3650 = vmatpush.bf16.msra.mxu0 0
    %3651 = vmatpush.bf16.msra.mxu0 0
    %3652 = vmatpush.bf16.msra.mxu0 0
    %3653 = vmatpush.bf16.msra.mxu0 0
    %3654 = vmatpush.bf16.msra.mxu0 0
    %3655 = vmatpush.bf16.msra.mxu0 0
    %3656 = vmatpush.bf16.msra.mxu0 %v3647
    %3657 = vmatmul.bf16.gmra.mxu0 %v3644
    %v3658 = vpop.f32.mrf.mxu0
    %v3659 = vadd.f32 0.0, %v3658
    %v3660 = vpop.f32.mrf.mxu0
    %v3661 = vadd.f32 0.0, %v3660
    %3662 = vdwg.mxu0
    %3663 = vrot.lane.b32.xlu0 %v3457, 104
    %v3664 = vpop.permute.xlu0 %3663
    %3665 = vrot.lane.b32.xlu0 %v3457, 72
    %v3666 = vpop.permute.xlu0 %3665
    %v3668 = vsel %vm241, %v3664, 0
    %v3671 = vsel %vm241, %v3666, 0
    %3673 = vmatpush.bf16.xpose.msra.mxu0 0
    %3674 = vmatpush.bf16.xpose.msra.mxu0 0
    %3675 = vmatpush.bf16.xpose.msra.mxu0 0
    %3676 = vmatpush.bf16.xpose.msra.mxu0 0
    %3677 = vmatpush.bf16.xpose.msra.mxu0 0
    %3678 = vmatpush.bf16.xpose.msra.mxu0 0
    %3679 = vmatpush.bf16.xpose.msra.mxu0 0
    %3680 = vmatpush.bf16.xpose.msra.mxu0 %v3671
    %3681 = vmatmul.bf16.gmra.mxu0 %v3668
    %v3682 = vpop.f32.mrf.mxu0
    %v3683 = vadd.f32 %v3451, %v3682
    %v3684 = vpop.f32.mrf.mxu0
    %v3685 = vadd.f32 %v3451, %v3684
    %3686 = vdwg.mxu0
    %v3687 = vsel %vm262, %v3683, -inf
    %3688 = vmax.xlane.f32.xlu0 %v3687
    %v3689 = vpop.xlane.xlu0 %3688
    %v3690 = vsel %vm266, %v3685, -inf
    %3691 = vmax.xlane.f32.xlu0 %v3690
    %v3692 = vpop.xlane.xlu0 %3691
    %v3693 = vsub.f32 %v3683, %v3689
    %v3694 = vsub.f32 %v3685, %v3692
    %v3695 = vmul.f32 %v3693, 1.442695
    %v3696 = vpow.pop %v3695
    %v3697 = vmul.f32 %v3694, 1.442695
    %v3698 = vpow.pop %v3697
    %v3699 = vsel %vm262, %v3696, 0.0
    %3700 = vadd.xlane.f32.xlu0 %v3699
    %v3701 = vpop.xlane.xlu0 %3700
    %v3702 = vsel %vm266, %v3698, 0.0
    %3703 = vadd.xlane.f32.xlu0 %v3702
    %v3704 = vpop.xlane.xlu0 %3703
    %v3705 = vrcp.pop %v3701
    %v3706 = vrcp.pop %v3704
    %v3707 = vmul.f32 %v3696, %v3705
    %v3708 = vmul.f32 %v3698, %v3706
    %v3709 = vpack.c.bf16 %v3708, %v3707
    %3710 = vrot.lane.b32.xlu0 %v3457, 40
    %v3711 = vpop.permute.xlu0 %3710
    %v3713 = vsel %vm262, %v3709, 0
    %v3716 = vsel %vm292, %v3711, 0
    %3718 = vmatpush.bf16.msra.mxu0 0
    %3719 = vmatpush.bf16.msra.mxu0 0
    %3720 = vmatpush.bf16.msra.mxu0 0
    %3721 = vmatpush.bf16.msra.mxu0 0
    %3722 = vmatpush.bf16.msra.mxu0 0
    %3723 = vmatpush.bf16.msra.mxu0 0
    %3724 = vmatpush.bf16.msra.mxu0 0
    %3725 = vmatpush.bf16.msra.mxu0 %v3716
    %3726 = vmatmul.bf16.gmra.mxu0 %v3713
    %v3727 = vpop.f32.mrf.mxu0
    %v3728 = vadd.f32 0.0, %v3727
    %v3729 = vpop.f32.mrf.mxu0
    %v3730 = vadd.f32 0.0, %v3729
    %3731 = vdwg.mxu0
    %3734 = vrot.lane.b32.xlu0 %v3590, 8
    %v3735 = vpop.permute.xlu0 %3734
    %3736 = vrot.lane.b32.xlu0 %v3592, 8
    %v3737 = vpop.permute.xlu0 %3736
    %3742 = vrot.lane.b32.xlu0 %v3659, 16
    %v3743 = vpop.permute.xlu0 %3742
    %3744 = vrot.lane.b32.xlu0 %v3661, 16
    %v3745 = vpop.permute.xlu0 %3744
    %3750 = vrot.lane.b32.xlu0 %v3728, 24
    %v3751 = vpop.permute.xlu0 %3750
    %3752 = vrot.lane.b32.xlu0 %v3730, 24
    %v3753 = vpop.permute.xlu0 %3752
    %v3756 = vsel %vm241, %v3521, %v3735
    %v3757 = vsel %vm241, %v3523, %v3737
    %v3758 = vsel %vm543, %v3756, %v3743
    %v3759 = vsel %vm543, %v3757, %v3745
    %v3760 = vsel %vm546, %v3758, %v3751
    %v3761 = vsel %vm546, %v3759, %v3753
    %v3762 = vpack.c.bf16 %v3761, %v3760
    %v3764 = vperm.slane %v3414, 0
    %v3770 = vunpack.c.l.b16 %v3410
    %v3771 = vunpack.c.l.b16 %v3411
    %v3772 = vunpack.c.l.b16 %v3412
    %v3773 = vunpack.c.l.b16 %v3413
    %v3774 = vpack.c.b16 %v3771, %v3770
    %v3775 = vpack.c.b16 %v3773, %v3772
    %v3779 = vsel %vm211, %v3762, 0
    %3781 = vmatpush.bf16.msra.mxu0 0
    %3782 = vmatpush.bf16.msra.mxu0 0
    %3783 = vmatpush.bf16.msra.mxu0 0
    %3784 = vmatpush.bf16.msra.mxu0 0
    %3785 = vmatpush.bf16.msra.mxu0 0
    %3786 = vmatpush.bf16.msra.mxu0 0
    %3787 = vmatpush.bf16.msra.mxu0 %v3775
    %3788 = vmatpush.bf16.msra.mxu0 %v3774
    %3789 = vmatmul.bf16.gmra.mxu0 %v3779
    %v3790 = vpop.f32.mrf.mxu0
    %v3791 = vadd.f32 %v3764, %v3790
    %v3792 = vpop.f32.mrf.mxu0
    %v3793 = vadd.f32 %v3764, %v3792
    %3794 = vdwg.mxu0
    %v3795 = vadd.f32 %v3401, %v3791
    %v3796 = vadd.f32 %v3402, %v3793
    %v3797 = vld [vmem:[%s17] sm:$0x1]
    %v3798 = vld [vmem:[%s19] sm:$0x1]
    %v3799 = vsel %vm211, %v3795, 0.0
    %3800 = vadd.xlane.f32.xlu0 %v3799
    %v3801 = vpop.xlane.xlu0 %3800
    %v3802 = vsel %vm589, %v3796, 0.0
    %3803 = vadd.xlane.f32.xlu0 %v3802
    %v3804 = vpop.xlane.xlu0 %3803
    %v3805 = vmul.f32 %v3801, %v599
    %v3806 = vmul.f32 %v3804, %v599
    %v3807 = vsub.f32 %v3795, %v3805
    %v3808 = vsub.f32 %v3796, %v3806
    %v3809 = vmul.f32 %v3807, %v3807
    %v3810 = vmul.f32 %v3808, %v3808
    %v3811 = vsel %vm211, %v3809, 0.0
    %3812 = vadd.xlane.f32.xlu0 %v3811
    %v3813 = vpop.xlane.xlu0 %3812
    %v3814 = vsel %vm589, %v3810, 0.0
    %3815 = vadd.xlane.f32.xlu0 %v3814
    %v3816 = vpop.xlane.xlu0 %3815
    %v3817 = vmul.f32 %v3813, %v599
    %v3818 = vmul.f32 %v3816, %v599
    %v3819 = vadd.f32 %v3817, 1e-05
    %v3820 = vadd.f32 %v3818, 1e-05
    %v3821 = vrsqrt.pop %v3819
    %v3822 = vmul.f32 %v3821, %v3819
    %v3823 = vmul.f32 %v3822, %v3821
    %v3824 = vmul.f32 0.5, %v3823
    %v3825 = vsub.f32 1.5, %v3824
    %v3826 = vmul.f32 %v3821, %v3825
    %vm3827 = vweird.f32 %v3819
    %vm3828 = vweird.f32 %v3821
    %vm3829 = vmor %vm3827, %vm3828
    %v3830 = vsel %vm3829, %v3821, %v3826
    %v3831 = vrsqrt.pop %v3820
    %v3832 = vmul.f32 %v3831, %v3820
    %v3833 = vmul.f32 %v3832, %v3831
    %v3834 = vmul.f32 0.5, %v3833
    %v3835 = vsub.f32 1.5, %v3834
    %v3836 = vmul.f32 %v3831, %v3835
    %vm3837 = vweird.f32 %v3820
    %vm3838 = vweird.f32 %v3831
    %vm3839 = vmor %vm3837, %vm3838
    %v3840 = vsel %vm3839, %v3831, %v3836
    %v3841 = vmul.f32 %v3807, %v3830
    %v3842 = vmul.f32 %v3808, %v3840
    %v3844 = vperm.slane %v3797, 0
    %v3846 = vmul.f32 %v3841, %v3844
    %v3847 = vmul.f32 %v3842, %v3844
    %v3849 = vperm.slane %v3798, 0
    %v3851 = vadd.f32 %v3846, %v3849
    %v3852 = vadd.f32 %v3847, %v3849
    %v3853 = vld [vmem:[%s21] sm:$0xf]
    %v3854 = vld [vmem:[%s21 + $0x4] sm:$0xf]
    %v3855 = vld [vmem:[%s21 + $0x8] sm:$0xf]
    %v3856 = vld [vmem:[%s21 + $0xc] sm:$0xf]
    %v3857 = vld [vmem:[%s23] sm:$0x1]
    %v3858 = vld [vmem:[%s25] sm:$0xf]
    %v3859 = vld [vmem:[%s25 + $0x4] sm:$0xf]
    %v3860 = vld [vmem:[%s25 + $0x8] sm:$0xf]
    %v3861 = vld [vmem:[%s25 + $0xc] sm:$0xf]
    %v3862 = vld [vmem:[%s25 + $0x10] sm:$0xf]
    %v3863 = vld [vmem:[%s25 + $0x14] sm:$0xf]
    %v3864 = vld [vmem:[%s25 + $0x18] sm:$0xf]
    %v3865 = vld [vmem:[%s25 + $0x1c] sm:$0xf]
    %v3866 = vld [vmem:[%s25 + $0x20] sm:$0xf]
    %v3867 = vld [vmem:[%s25 + $0x24] sm:$0xf]
    %v3868 = vld [vmem:[%s25 + $0x28] sm:$0xf]
    %v3869 = vld [vmem:[%s25 + $0x2c] sm:$0xf]
    %v3870 = vld [vmem:[%s25 + $0x30] sm:$0xf]
    %v3871 = vld [vmem:[%s25 + $0x34] sm:$0xf]
    %v3872 = vld [vmem:[%s25 + $0x38] sm:$0xf]
    %v3873 = vld [vmem:[%s25 + $0x3c] sm:$0xf]
    %v3874 = vld [vmem:[%s27] sm:$0x1]
    %v3875 = vpack.c.bf16 %v3852, %v3851
    %v3877 = vperm.slane %v3857, 0
    %v3883 = vunpack.c.l.b16 %v3853
    %v3884 = vunpack.c.l.b16 %v3854
    %v3885 = vunpack.c.l.b16 %v3855
    %v3886 = vunpack.c.l.b16 %v3856
    %v3887 = vpack.c.b16 %v3884, %v3883
    %v3888 = vpack.c.b16 %v3886, %v3885
    %v3892 = vsel %vm211, %v3875, 0
    %3894 = vmatpush.bf16.msra.mxu0 0
    %3895 = vmatpush.bf16.msra.mxu0 0
    %3896 = vmatpush.bf16.msra.mxu0 0
    %3897 = vmatpush.bf16.msra.mxu0 0
    %3898 = vmatpush.bf16.msra.mxu0 0
    %3899 = vmatpush.bf16.msra.mxu0 0
    %3900 = vmatpush.bf16.msra.mxu0 %v3888
    %3901 = vmatpush.bf16.msra.mxu0 %v3887
    %3902 = vmatmul.bf16.gmra.mxu0 %v3892
    %v3903 = vpop.f32.mrf.mxu0
    %v3904 = vadd.f32 %v3877, %v3903
    %v3905 = vpop.f32.mrf.mxu0
    %v3906 = vadd.f32 %v3877, %v3905
    %3907 = vdwg.mxu0
    %v3908 = vmax.f32 %v3904, 0.0
    %v3909 = vmax.f32 %v3906, 0.0
    %v3910 = vpack.c.bf16 %v3909, %v3908
    %v3912 = vperm.slane %v3874, 0
    %v3930 = vunpack.c.l.b16 %v3858
    %v3931 = vunpack.c.l.b16 %v3859
    %v3932 = vunpack.c.l.b16 %v3860
    %v3933 = vunpack.c.l.b16 %v3861
    %v3934 = vunpack.c.l.b16 %v3862
    %v3935 = vunpack.c.l.b16 %v3863
    %v3936 = vunpack.c.l.b16 %v3864
    %v3937 = vunpack.c.l.b16 %v3865
    %v3938 = vunpack.c.l.b16 %v3866
    %v3939 = vunpack.c.l.b16 %v3867
    %v3940 = vunpack.c.l.b16 %v3868
    %v3941 = vunpack.c.l.b16 %v3869
    %v3942 = vunpack.c.l.b16 %v3870
    %v3943 = vunpack.c.l.b16 %v3871
    %v3944 = vunpack.c.l.b16 %v3872
    %v3945 = vunpack.c.l.b16 %v3873
    %v3946 = vpack.c.b16 %v3931, %v3930
    %v3947 = vpack.c.b16 %v3933, %v3932
    %v3948 = vpack.c.b16 %v3935, %v3934
    %v3949 = vpack.c.b16 %v3937, %v3936
    %v3950 = vpack.c.b16 %v3939, %v3938
    %v3951 = vpack.c.b16 %v3941, %v3940
    %v3952 = vpack.c.b16 %v3943, %v3942
    %v3953 = vpack.c.b16 %v3945, %v3944
    %3962 = vmatpush.bf16.msra.mxu0 %v3953
    %3963 = vmatpush.bf16.msra.mxu0 %v3952
    %3964 = vmatpush.bf16.msra.mxu0 %v3951
    %3965 = vmatpush.bf16.msra.mxu0 %v3950
    %3966 = vmatpush.bf16.msra.mxu0 %v3949
    %3967 = vmatpush.bf16.msra.mxu0 %v3948
    %3968 = vmatpush.bf16.msra.mxu0 %v3947
    %3969 = vmatpush.bf16.msra.mxu0 %v3946
    %3970 = vmatmul.bf16.gmra.mxu0 %v3910
    %v3971 = vpop.f32.mrf.mxu0
    %v3972 = vadd.f32 %v3912, %v3971
    %v3973 = vpop.f32.mrf.mxu0
    %v3974 = vadd.f32 %v3912, %v3973
    %3975 = vdwg.mxu0
    %v3976 = vadd.f32 %v3851, %v3972
    %v3977 = vadd.f32 %v3852, %v3974
    %v3978 = vld [vmem:[%s29] sm:$0x1]
    %v3979 = vld [vmem:[%s31] sm:$0x1]
    %v3980 = vsel %vm211, %v3976, 0.0
    %3981 = vadd.xlane.f32.xlu0 %v3980
    %v3982 = vpop.xlane.xlu0 %3981
    %v3983 = vsel %vm589, %v3977, 0.0
    %3984 = vadd.xlane.f32.xlu0 %v3983
    %v3985 = vpop.xlane.xlu0 %3984
    %v3986 = vmul.f32 %v3982, %v599
    %v3987 = vmul.f32 %v3985, %v599
    %v3988 = vsub.f32 %v3976, %v3986
    %v3989 = vsub.f32 %v3977, %v3987
    %v3990 = vmul.f32 %v3988, %v3988
    %v3991 = vmul.f32 %v3989, %v3989
    %v3992 = vsel %vm211, %v3990, 0.0
    %3993 = vadd.xlane.f32.xlu0 %v3992
    %v3994 = vpop.xlane.xlu0 %3993
    %v3995 = vsel %vm589, %v3991, 0.0
    %3996 = vadd.xlane.f32.xlu0 %v3995
    %v3997 = vpop.xlane.xlu0 %3996
    %v3998 = vmul.f32 %v3994, %v599
    %v3999 = vmul.f32 %v3997, %v599
    %v4000 = vadd.f32 %v3998, 1e-05
    %v4001 = vadd.f32 %v3999, 1e-05
    %v4002 = vrsqrt.pop %v4000
    %v4003 = vmul.f32 %v4002, %v4000
    %v4004 = vmul.f32 %v4003, %v4002
    %v4005 = vmul.f32 0.5, %v4004
    %v4006 = vsub.f32 1.5, %v4005
    %v4007 = vmul.f32 %v4002, %v4006
    %vm4008 = vweird.f32 %v4000
    %vm4009 = vweird.f32 %v4002
    %vm4010 = vmor %vm4008, %vm4009
    %v4011 = vsel %vm4010, %v4002, %v4007
    %v4012 = vrsqrt.pop %v4001
    %v4013 = vmul.f32 %v4012, %v4001
    %v4014 = vmul.f32 %v4013, %v4012
    %v4015 = vmul.f32 0.5, %v4014
    %v4016 = vsub.f32 1.5, %v4015
    %v4017 = vmul.f32 %v4012, %v4016
    %vm4018 = vweird.f32 %v4001
    %vm4019 = vweird.f32 %v4012
    %vm4020 = vmor %vm4018, %vm4019
    %v4021 = vsel %vm4020, %v4012, %v4017
    %v4022 = vmul.f32 %v3988, %v4011
    %v4023 = vmul.f32 %v3989, %v4021
    %v4025 = vperm.slane %v3978, 0
    %v4027 = vmul.f32 %v4022, %v4025
    %v4028 = vmul.f32 %v4023, %v4025
    %v4030 = vperm.slane %v3979, 0
    %v4032 = vadd.f32 %v4027, %v4030
    %v4033 = vadd.f32 %v4028, %v4030
    %v4034 = vld [vmem:[%s829] sm:$0xf]
    %v4035 = vld [vmem:[%s829 + $0x4] sm:$0xf]
    %v4036 = vld [vmem:[%s829 + $0x8] sm:$0xf]
    %v4037 = vld [vmem:[%s829 + $0xc] sm:$0xf]
    %v4038 = vld [vmem:[%s834] sm:$0x1]
    %v4039 = vld [vmem:[%s836] sm:$0xf]
    %v4040 = vld [vmem:[%s836 + $0x4] sm:$0xf]
    %v4041 = vld [vmem:[%s836 + $0x8] sm:$0xf]
    %v4042 = vld [vmem:[%s836 + $0xc] sm:$0xf]
    %v4043 = vld [vmem:[%s841] sm:$0x1]
    %v4044 = vpack.c.bf16 %v4033, %v4032
    %v4046 = vperm.slane %v4038, 0
    %v4052 = vunpack.c.l.b16 %v4034
    %v4053 = vunpack.c.l.b16 %v4035
    %v4054 = vunpack.c.l.b16 %v4036
    %v4055 = vunpack.c.l.b16 %v4037
    %v4056 = vpack.c.b16 %v4053, %v4052
    %v4057 = vpack.c.b16 %v4055, %v4054
    %v4061 = vsel %vm211, %v4044, 0
    %4063 = vmatpush.bf16.msra.mxu0 0
    %4064 = vmatpush.bf16.msra.mxu0 0
    %4065 = vmatpush.bf16.msra.mxu0 0
    %4066 = vmatpush.bf16.msra.mxu0 0
    %4067 = vmatpush.bf16.msra.mxu0 0
    %4068 = vmatpush.bf16.msra.mxu0 0
    %4069 = vmatpush.bf16.msra.mxu0 %v4057
    %4070 = vmatpush.bf16.msra.mxu0 %v4056
    %4071 = vmatmul.bf16.gmra.mxu0 %v4061
    %v4072 = vpop.f32.mrf.mxu0
    %v4073 = vadd.f32 %v4046, %v4072
    %v4074 = vpop.f32.mrf.mxu0
    %v4075 = vadd.f32 %v4046, %v4074
    %4076 = vdwg.mxu0
    %v4077 = vpack.c.bf16 %v4073, %v4073
    %v4078 = vpack.c.bf16 %v4075, %v4075
    %v4081 = vunpack.c.l.b16 %v4077
    %v4082 = vunpack.c.l.b16 %v4078
    %v4083 = vpack.c.b16 %v4082, %v4081
    %4084 = vrot.lane.b32.xlu0 %v4083, 96
    %v4085 = vpop.permute.xlu0 %4084
    %v4087 = vsel %vm241, %v4083, 0
    %v4090 = vsel %vm241, %v4085, 0
    %4092 = vmatpush.bf16.xpose.msra.mxu0 0
    %4093 = vmatpush.bf16.xpose.msra.mxu0 0
    %4094 = vmatpush.bf16.xpose.msra.mxu0 0
    %4095 = vmatpush.bf16.xpose.msra.mxu0 0
    %4096 = vmatpush.bf16.xpose.msra.mxu0 0
    %4097 = vmatpush.bf16.xpose.msra.mxu0 0
    %4098 = vmatpush.bf16.xpose.msra.mxu0 0
    %4099 = vmatpush.bf16.xpose.msra.mxu0 %v4090
    %4100 = vmatmul.bf16.gmra.mxu0 %v4087
    %v4101 = vpop.f32.mrf.mxu0
    %v4102 = vadd.f32 %v3451, %v4101
    %v4103 = vpop.f32.mrf.mxu0
    %v4104 = vadd.f32 %v3451, %v4103
    %4105 = vdwg.mxu0
    %v4106 = vsel %vm262, %v4102, -inf
    %4107 = vmax.xlane.f32.xlu0 %v4106
    %v4108 = vpop.xlane.xlu0 %4107
    %v4109 = vsel %vm266, %v4104, -inf
    %4110 = vmax.xlane.f32.xlu0 %v4109
    %v4111 = vpop.xlane.xlu0 %4110
    %v4112 = vsub.f32 %v4102, %v4108
    %v4113 = vsub.f32 %v4104, %v4111
    %v4114 = vmul.f32 %v4112, 1.442695
    %v4115 = vpow.pop %v4114
    %v4116 = vmul.f32 %v4113, 1.442695
    %v4117 = vpow.pop %v4116
    %v4118 = vsel %vm262, %v4115, 0.0
    %4119 = vadd.xlane.f32.xlu0 %v4118
    %v4120 = vpop.xlane.xlu0 %4119
    %v4121 = vsel %vm266, %v4117, 0.0
    %4122 = vadd.xlane.f32.xlu0 %v4121
    %v4123 = vpop.xlane.xlu0 %4122
    %v4124 = vrcp.pop %v4120
    %v4125 = vrcp.pop %v4123
    %v4126 = vmul.f32 %v4115, %v4124
    %v4127 = vmul.f32 %v4117, %v4125
    %v4128 = vpack.c.bf16 %v4127, %v4126
    %4129 = vrot.lane.b32.xlu0 %v4083, 64
    %v4130 = vpop.permute.xlu0 %4129
    %v4132 = vsel %vm262, %v4128, 0
    %v4135 = vsel %vm292, %v4130, 0
    %4137 = vmatpush.bf16.msra.mxu0 0
    %4138 = vmatpush.bf16.msra.mxu0 0
    %4139 = vmatpush.bf16.msra.mxu0 0
    %4140 = vmatpush.bf16.msra.mxu0 0
    %4141 = vmatpush.bf16.msra.mxu0 0
    %4142 = vmatpush.bf16.msra.mxu0 0
    %4143 = vmatpush.bf16.msra.mxu0 0
    %4144 = vmatpush.bf16.msra.mxu0 %v4135
    %4145 = vmatmul.bf16.gmra.mxu0 %v4132
    %v4146 = vpop.f32.mrf.mxu0
    %v4147 = vadd.f32 0.0, %v4146
    %v4148 = vpop.f32.mrf.mxu0
    %v4149 = vadd.f32 0.0, %v4148
    %4150 = vdwg.mxu0
    %4151 = vrot.lane.b32.xlu0 %v4083, 120
    %v4152 = vpop.permute.xlu0 %4151
    %4153 = vrot.lane.b32.xlu0 %v4083, 88
    %v4154 = vpop.permute.xlu0 %4153
    %v4156 = vsel %vm241, %v4152, 0
    %v4159 = vsel %vm241, %v4154, 0
    %4161 = vmatpush.bf16.xpose.msra.mxu0 0
    %4162 = vmatpush.bf16.xpose.msra.mxu0 0
    %4163 = vmatpush.bf16.xpose.msra.mxu0 0
    %4164 = vmatpush.bf16.xpose.msra.mxu0 0
    %4165 = vmatpush.bf16.xpose.msra.mxu0 0
    %4166 = vmatpush.bf16.xpose.msra.mxu0 0
    %4167 = vmatpush.bf16.xpose.msra.mxu0 0
    %4168 = vmatpush.bf16.xpose.msra.mxu0 %v4159
    %4169 = vmatmul.bf16.gmra.mxu0 %v4156
    %v4170 = vpop.f32.mrf.mxu0
    %v4171 = vadd.f32 %v3451, %v4170
    %v4172 = vpop.f32.mrf.mxu0
    %v4173 = vadd.f32 %v3451, %v4172
    %4174 = vdwg.mxu0
    %v4175 = vsel %vm262, %v4171, -inf
    %4176 = vmax.xlane.f32.xlu0 %v4175
    %v4177 = vpop.xlane.xlu0 %4176
    %v4178 = vsel %vm266, %v4173, -inf
    %4179 = vmax.xlane.f32.xlu0 %v4178
    %v4180 = vpop.xlane.xlu0 %4179
    %v4181 = vsub.f32 %v4171, %v4177
    %v4182 = vsub.f32 %v4173, %v4180
    %v4183 = vmul.f32 %v4181, 1.442695
    %v4184 = vpow.pop %v4183
    %v4185 = vmul.f32 %v4182, 1.442695
    %v4186 = vpow.pop %v4185
    %v4187 = vsel %vm262, %v4184, 0.0
    %4188 = vadd.xlane.f32.xlu0 %v4187
    %v4189 = vpop.xlane.xlu0 %4188
    %v4190 = vsel %vm266, %v4186, 0.0
    %4191 = vadd.xlane.f32.xlu0 %v4190
    %v4192 = vpop.xlane.xlu0 %4191
    %v4193 = vrcp.pop %v4189
    %v4194 = vrcp.pop %v4192
    %v4195 = vmul.f32 %v4184, %v4193
    %v4196 = vmul.f32 %v4186, %v4194
    %v4197 = vpack.c.bf16 %v4196, %v4195
    %4198 = vrot.lane.b32.xlu0 %v4083, 56
    %v4199 = vpop.permute.xlu0 %4198
    %v4201 = vsel %vm262, %v4197, 0
    %v4204 = vsel %vm292, %v4199, 0
    %4206 = vmatpush.bf16.msra.mxu0 0
    %4207 = vmatpush.bf16.msra.mxu0 0
    %4208 = vmatpush.bf16.msra.mxu0 0
    %4209 = vmatpush.bf16.msra.mxu0 0
    %4210 = vmatpush.bf16.msra.mxu0 0
    %4211 = vmatpush.bf16.msra.mxu0 0
    %4212 = vmatpush.bf16.msra.mxu0 0
    %4213 = vmatpush.bf16.msra.mxu0 %v4204
    %4214 = vmatmul.bf16.gmra.mxu0 %v4201
    %v4215 = vpop.f32.mrf.mxu0
    %v4216 = vadd.f32 0.0, %v4215
    %v4217 = vpop.f32.mrf.mxu0
    %v4218 = vadd.f32 0.0, %v4217
    %4219 = vdwg.mxu0
    %4220 = vrot.lane.b32.xlu0 %v4083, 112
    %v4221 = vpop.permute.xlu0 %4220
    %4222 = vrot.lane.b32.xlu0 %v4083, 80
    %v4223 = vpop.permute.xlu0 %4222
    %v4225 = vsel %vm241, %v4221, 0
    %v4228 = vsel %vm241, %v4223, 0
    %4230 = vmatpush.bf16.xpose.msra.mxu0 0
    %4231 = vmatpush.bf16.xpose.msra.mxu0 0
    %4232 = vmatpush.bf16.xpose.msra.mxu0 0
    %4233 = vmatpush.bf16.xpose.msra.mxu0 0
    %4234 = vmatpush.bf16.xpose.msra.mxu0 0
    %4235 = vmatpush.bf16.xpose.msra.mxu0 0
    %4236 = vmatpush.bf16.xpose.msra.mxu0 0
    %4237 = vmatpush.bf16.xpose.msra.mxu0 %v4228
    %4238 = vmatmul.bf16.gmra.mxu0 %v4225
    %v4239 = vpop.f32.mrf.mxu0
    %v4240 = vadd.f32 %v3451, %v4239
    %v4241 = vpop.f32.mrf.mxu0
    %v4242 = vadd.f32 %v3451, %v4241
    %4243 = vdwg.mxu0
    %v4244 = vsel %vm262, %v4240, -inf
    %4245 = vmax.xlane.f32.xlu0 %v4244
    %v4246 = vpop.xlane.xlu0 %4245
    %v4247 = vsel %vm266, %v4242, -inf
    %4248 = vmax.xlane.f32.xlu0 %v4247
    %v4249 = vpop.xlane.xlu0 %4248
    %v4250 = vsub.f32 %v4240, %v4246
    %v4251 = vsub.f32 %v4242, %v4249
    %v4252 = vmul.f32 %v4250, 1.442695
    %v4253 = vpow.pop %v4252
    %v4254 = vmul.f32 %v4251, 1.442695
    %v4255 = vpow.pop %v4254
    %v4256 = vsel %vm262, %v4253, 0.0
    %4257 = vadd.xlane.f32.xlu0 %v4256
    %v4258 = vpop.xlane.xlu0 %4257
    %v4259 = vsel %vm266, %v4255, 0.0
    %4260 = vadd.xlane.f32.xlu0 %v4259
    %v4261 = vpop.xlane.xlu0 %4260
    %v4262 = vrcp.pop %v4258
    %v4263 = vrcp.pop %v4261
    %v4264 = vmul.f32 %v4253, %v4262
    %v4265 = vmul.f32 %v4255, %v4263
    %v4266 = vpack.c.bf16 %v4265, %v4264
    %4267 = vrot.lane.b32.xlu0 %v4083, 48
    %v4268 = vpop.permute.xlu0 %4267
    %v4270 = vsel %vm262, %v4266, 0
    %v4273 = vsel %vm292, %v4268, 0
    %4275 = vmatpush.bf16.msra.mxu0 0
    %4276 = vmatpush.bf16.msra.mxu0 0
    %4277 = vmatpush.bf16.msra.mxu0 0
    %4278 = vmatpush.bf16.msra.mxu0 0
    %4279 = vmatpush.bf16.msra.mxu0 0
    %4280 = vmatpush.bf16.msra.mxu0 0
    %4281 = vmatpush.bf16.msra.mxu0 0
    %4282 = vmatpush.bf16.msra.mxu0 %v4273
    %4283 = vmatmul.bf16.gmra.mxu0 %v4270
    %v4284 = vpop.f32.mrf.mxu0
    %v4285 = vadd.f32 0.0, %v4284
    %v4286 = vpop.f32.mrf.mxu0
    %v4287 = vadd.f32 0.0, %v4286
    %4288 = vdwg.mxu0
    %4289 = vrot.lane.b32.xlu0 %v4083, 104
    %v4290 = vpop.permute.xlu0 %4289
    %4291 = vrot.lane.b32.xlu0 %v4083, 72
    %v4292 = vpop.permute.xlu0 %4291
    %v4294 = vsel %vm241, %v4290, 0
    %v4297 = vsel %vm241, %v4292, 0
    %4299 = vmatpush.bf16.xpose.msra.mxu0 0
    %4300 = vmatpush.bf16.xpose.msra.mxu0 0
    %4301 = vmatpush.bf16.xpose.msra.mxu0 0
    %4302 = vmatpush.bf16.xpose.msra.mxu0 0
    %4303 = vmatpush.bf16.xpose.msra.mxu0 0
    %4304 = vmatpush.bf16.xpose.msra.mxu0 0
    %4305 = vmatpush.bf16.xpose.msra.mxu0 0
    %4306 = vmatpush.bf16.xpose.msra.mxu0 %v4297
    %4307 = vmatmul.bf16.gmra.mxu0 %v4294
    %v4308 = vpop.f32.mrf.mxu0
    %v4309 = vadd.f32 %v3451, %v4308
    %v4310 = vpop.f32.mrf.mxu0
    %v4311 = vadd.f32 %v3451, %v4310
    %4312 = vdwg.mxu0
    %v4313 = vsel %vm262, %v4309, -inf
    %4314 = vmax.xlane.f32.xlu0 %v4313
    %v4315 = vpop.xlane.xlu0 %4314
    %v4316 = vsel %vm266, %v4311, -inf
    %4317 = vmax.xlane.f32.xlu0 %v4316
    %v4318 = vpop.xlane.xlu0 %4317
    %v4319 = vsub.f32 %v4309, %v4315
    %v4320 = vsub.f32 %v4311, %v4318
    %v4321 = vmul.f32 %v4319, 1.442695
    %v4322 = vpow.pop %v4321
    %v4323 = vmul.f32 %v4320, 1.442695
    %v4324 = vpow.pop %v4323
    %v4325 = vsel %vm262, %v4322, 0.0
    %4326 = vadd.xlane.f32.xlu0 %v4325
    %v4327 = vpop.xlane.xlu0 %4326
    %v4328 = vsel %vm266, %v4324, 0.0
    %4329 = vadd.xlane.f32.xlu0 %v4328
    %v4330 = vpop.xlane.xlu0 %4329
    %v4331 = vrcp.pop %v4327
    %v4332 = vrcp.pop %v4330
    %v4333 = vmul.f32 %v4322, %v4331
    %v4334 = vmul.f32 %v4324, %v4332
    %v4335 = vpack.c.bf16 %v4334, %v4333
    %4336 = vrot.lane.b32.xlu0 %v4083, 40
    %v4337 = vpop.permute.xlu0 %4336
    %v4339 = vsel %vm262, %v4335, 0
    %v4342 = vsel %vm292, %v4337, 0
    %4344 = vmatpush.bf16.msra.mxu0 0
    %4345 = vmatpush.bf16.msra.mxu0 0
    %4346 = vmatpush.bf16.msra.mxu0 0
    %4347 = vmatpush.bf16.msra.mxu0 0
    %4348 = vmatpush.bf16.msra.mxu0 0
    %4349 = vmatpush.bf16.msra.mxu0 0
    %4350 = vmatpush.bf16.msra.mxu0 0
    %4351 = vmatpush.bf16.msra.mxu0 %v4342
    %4352 = vmatmul.bf16.gmra.mxu0 %v4339
    %v4353 = vpop.f32.mrf.mxu0
    %v4354 = vadd.f32 0.0, %v4353
    %v4355 = vpop.f32.mrf.mxu0
    %v4356 = vadd.f32 0.0, %v4355
    %4357 = vdwg.mxu0
    %4360 = vrot.lane.b32.xlu0 %v4216, 8
    %v4361 = vpop.permute.xlu0 %4360
    %4362 = vrot.lane.b32.xlu0 %v4218, 8
    %v4363 = vpop.permute.xlu0 %4362
    %4368 = vrot.lane.b32.xlu0 %v4285, 16
    %v4369 = vpop.permute.xlu0 %4368
    %4370 = vrot.lane.b32.xlu0 %v4287, 16
    %v4371 = vpop.permute.xlu0 %4370
    %4376 = vrot.lane.b32.xlu0 %v4354, 24
    %v4377 = vpop.permute.xlu0 %4376
    %4378 = vrot.lane.b32.xlu0 %v4356, 24
    %v4379 = vpop.permute.xlu0 %4378
    %v4382 = vsel %vm241, %v4147, %v4361
    %v4383 = vsel %vm241, %v4149, %v4363
    %v4384 = vsel %vm543, %v4382, %v4369
    %v4385 = vsel %vm543, %v4383, %v4371
    %v4386 = vsel %vm546, %v4384, %v4377
    %v4387 = vsel %vm546, %v4385, %v4379
    %v4388 = vpack.c.bf16 %v4387, %v4386
    %v4390 = vperm.slane %v4043, 0
    %v4396 = vunpack.c.l.b16 %v4039
    %v4397 = vunpack.c.l.b16 %v4040
    %v4398 = vunpack.c.l.b16 %v4041
    %v4399 = vunpack.c.l.b16 %v4042
    %v4400 = vpack.c.b16 %v4397, %v4396
    %v4401 = vpack.c.b16 %v4399, %v4398
    %v4405 = vsel %vm211, %v4388, 0
    %4407 = vmatpush.bf16.msra.mxu0 0
    %4408 = vmatpush.bf16.msra.mxu0 0
    %4409 = vmatpush.bf16.msra.mxu0 0
    %4410 = vmatpush.bf16.msra.mxu0 0
    %4411 = vmatpush.bf16.msra.mxu0 0
    %4412 = vmatpush.bf16.msra.mxu0 0
    %4413 = vmatpush.bf16.msra.mxu0 %v4401
    %4414 = vmatpush.bf16.msra.mxu0 %v4400
    %4415 = vmatmul.bf16.gmra.mxu0 %v4405
    %v4416 = vpop.f32.mrf.mxu0
    %v4417 = vadd.f32 %v4390, %v4416
    %v4418 = vpop.f32.mrf.mxu0
    %v4419 = vadd.f32 %v4390, %v4418
    %4420 = vdwg.mxu0
    %v4421 = vadd.f32 %v4032, %v4417
    %v4422 = vadd.f32 %v4033, %v4419
    %v4423 = vld [vmem:[%s1222] sm:$0x1]
    %v4424 = vld [vmem:[%s1224] sm:$0x1]
    %v4425 = vsel %vm211, %v4421, 0.0
    %4426 = vadd.xlane.f32.xlu0 %v4425
    %v4427 = vpop.xlane.xlu0 %4426
    %v4428 = vsel %vm589, %v4422, 0.0
    %4429 = vadd.xlane.f32.xlu0 %v4428
    %v4430 = vpop.xlane.xlu0 %4429
    %v4431 = vmul.f32 %v4427, %v599
    %v4432 = vmul.f32 %v4430, %v599
    %v4433 = vsub.f32 %v4421, %v4431
    %v4434 = vsub.f32 %v4422, %v4432
    %v4435 = vmul.f32 %v4433, %v4433
    %v4436 = vmul.f32 %v4434, %v4434
    %v4437 = vsel %vm211, %v4435, 0.0
    %4438 = vadd.xlane.f32.xlu0 %v4437
    %v4439 = vpop.xlane.xlu0 %4438
    %v4440 = vsel %vm589, %v4436, 0.0
    %4441 = vadd.xlane.f32.xlu0 %v4440
    %v4442 = vpop.xlane.xlu0 %4441
    %v4443 = vmul.f32 %v4439, %v599
    %v4444 = vmul.f32 %v4442, %v599
    %v4445 = vadd.f32 %v4443, 1e-05
    %v4446 = vadd.f32 %v4444, 1e-05
    %v4447 = vrsqrt.pop %v4445
    %v4448 = vmul.f32 %v4447, %v4445
    %v4449 = vmul.f32 %v4448, %v4447
    %v4450 = vmul.f32 0.5, %v4449
    %v4451 = vsub.f32 1.5, %v4450
    %v4452 = vmul.f32 %v4447, %v4451
    %vm4453 = vweird.f32 %v4445
    %vm4454 = vweird.f32 %v4447
    %vm4455 = vmor %vm4453, %vm4454
    %v4456 = vsel %vm4455, %v4447, %v4452
    %v4457 = vrsqrt.pop %v4446
    %v4458 = vmul.f32 %v4457, %v4446
    %v4459 = vmul.f32 %v4458, %v4457
    %v4460 = vmul.f32 0.5, %v4459
    %v4461 = vsub.f32 1.5, %v4460
    %v4462 = vmul.f32 %v4457, %v4461
    %vm4463 = vweird.f32 %v4446
    %vm4464 = vweird.f32 %v4457
    %vm4465 = vmor %vm4463, %vm4464
    %v4466 = vsel %vm4465, %v4457, %v4462
    %v4467 = vmul.f32 %v4433, %v4456
    %v4468 = vmul.f32 %v4434, %v4466
    %v4470 = vperm.slane %v4423, 0
    %v4472 = vmul.f32 %v4467, %v4470
    %v4473 = vmul.f32 %v4468, %v4470
    %v4475 = vperm.slane %v4424, 0
    %v4477 = vadd.f32 %v4472, %v4475
    %v4478 = vadd.f32 %v4473, %v4475
    %v4479 = vld [vmem:[%s1280] sm:$0xf]
    %v4480 = vld [vmem:[%s1280 + $0x4] sm:$0xf]
    %v4481 = vld [vmem:[%s1280 + $0x8] sm:$0xf]
    %v4482 = vld [vmem:[%s1280 + $0xc] sm:$0xf]
    %v4483 = vld [vmem:[%s1285] sm:$0x1]
    %v4484 = vld [vmem:[%s1287] sm:$0xf]
    %v4485 = vld [vmem:[%s1287 + $0x4] sm:$0xf]
    %v4486 = vld [vmem:[%s1287 + $0x8] sm:$0xf]
    %v4487 = vld [vmem:[%s1287 + $0xc] sm:$0xf]
    %v4488 = vld [vmem:[%s1287 + $0x10] sm:$0xf]
    %v4489 = vld [vmem:[%s1287 + $0x14] sm:$0xf]
    %v4490 = vld [vmem:[%s1287 + $0x18] sm:$0xf]
    %v4491 = vld [vmem:[%s1287 + $0x1c] sm:$0xf]
    %v4492 = vld [vmem:[%s1287 + $0x20] sm:$0xf]
    %v4493 = vld [vmem:[%s1287 + $0x24] sm:$0xf]
    %v4494 = vld [vmem:[%s1287 + $0x28] sm:$0xf]
    %v4495 = vld [vmem:[%s1287 + $0x2c] sm:$0xf]
    %v4496 = vld [vmem:[%s1287 + $0x30] sm:$0xf]
    %v4497 = vld [vmem:[%s1287 + $0x34] sm:$0xf]
    %v4498 = vld [vmem:[%s1287 + $0x38] sm:$0xf]
    %v4499 = vld [vmem:[%s1287 + $0x3c] sm:$0xf]
    %v4500 = vld [vmem:[%s1304] sm:$0x1]
    %v4501 = vpack.c.bf16 %v4478, %v4477
    %v4503 = vperm.slane %v4483, 0
    %v4509 = vunpack.c.l.b16 %v4479
    %v4510 = vunpack.c.l.b16 %v4480
    %v4511 = vunpack.c.l.b16 %v4481
    %v4512 = vunpack.c.l.b16 %v4482
    %v4513 = vpack.c.b16 %v4510, %v4509
    %v4514 = vpack.c.b16 %v4512, %v4511
    %v4518 = vsel %vm211, %v4501, 0
    %4520 = vmatpush.bf16.msra.mxu0 0
    %4521 = vmatpush.bf16.msra.mxu0 0
    %4522 = vmatpush.bf16.msra.mxu0 0
    %4523 = vmatpush.bf16.msra.mxu0 0
    %4524 = vmatpush.bf16.msra.mxu0 0
    %4525 = vmatpush.bf16.msra.mxu0 0
    %4526 = vmatpush.bf16.msra.mxu0 %v4514
    %4527 = vmatpush.bf16.msra.mxu0 %v4513
    %4528 = vmatmul.bf16.gmra.mxu0 %v4518
    %v4529 = vpop.f32.mrf.mxu0
    %v4530 = vadd.f32 %v4503, %v4529
    %v4531 = vpop.f32.mrf.mxu0
    %v4532 = vadd.f32 %v4503, %v4531
    %4533 = vdwg.mxu0
    %v4534 = vmax.f32 %v4530, 0.0
    %v4535 = vmax.f32 %v4532, 0.0
    %v4536 = vpack.c.bf16 %v4535, %v4534
    %v4538 = vperm.slane %v4500, 0
    %v4556 = vunpack.c.l.b16 %v4484
    %v4557 = vunpack.c.l.b16 %v4485
    %v4558 = vunpack.c.l.b16 %v4486
    %v4559 = vunpack.c.l.b16 %v4487
    %v4560 = vunpack.c.l.b16 %v4488
    %v4561 = vunpack.c.l.b16 %v4489
    %v4562 = vunpack.c.l.b16 %v4490
    %v4563 = vunpack.c.l.b16 %v4491
    %v4564 = vunpack.c.l.b16 %v4492
    %v4565 = vunpack.c.l.b16 %v4493
    %v4566 = vunpack.c.l.b16 %v4494
    %v4567 = vunpack.c.l.b16 %v4495
    %v4568 = vunpack.c.l.b16 %v4496
    %v4569 = vunpack.c.l.b16 %v4497
    %v4570 = vunpack.c.l.b16 %v4498
    %v4571 = vunpack.c.l.b16 %v4499
    %v4572 = vpack.c.b16 %v4557, %v4556
    %v4573 = vpack.c.b16 %v4559, %v4558
    %v4574 = vpack.c.b16 %v4561, %v4560
    %v4575 = vpack.c.b16 %v4563, %v4562
    %v4576 = vpack.c.b16 %v4565, %v4564
    %v4577 = vpack.c.b16 %v4567, %v4566
    %v4578 = vpack.c.b16 %v4569, %v4568
    %v4579 = vpack.c.b16 %v4571, %v4570
    %4588 = vmatpush.bf16.msra.mxu0 %v4579
    %4589 = vmatpush.bf16.msra.mxu0 %v4578
    %4590 = vmatpush.bf16.msra.mxu0 %v4577
    %4591 = vmatpush.bf16.msra.mxu0 %v4576
    %4592 = vmatpush.bf16.msra.mxu0 %v4575
    %4593 = vmatpush.bf16.msra.mxu0 %v4574
    %4594 = vmatpush.bf16.msra.mxu0 %v4573
    %4595 = vmatpush.bf16.msra.mxu0 %v4572
    %4596 = vmatmul.bf16.gmra.mxu0 %v4536
    %v4597 = vpop.f32.mrf.mxu0
    %v4598 = vadd.f32 %v4538, %v4597
    %v4599 = vpop.f32.mrf.mxu0
    %v4600 = vadd.f32 %v4538, %v4599
    %4601 = vdwg.mxu0
    %v4602 = vadd.f32 %v4477, %v4598
    %v4603 = vadd.f32 %v4478, %v4600
    %v4604 = vld [vmem:[%s1409] sm:$0x1]
    %v4605 = vld [vmem:[%s1411] sm:$0x1]
    %v4606 = vsel %vm211, %v4602, 0.0
    %4607 = vadd.xlane.f32.xlu0 %v4606
    %v4608 = vpop.xlane.xlu0 %4607
    %v4609 = vsel %vm589, %v4603, 0.0
    %4610 = vadd.xlane.f32.xlu0 %v4609
    %v4611 = vpop.xlane.xlu0 %4610
    %v4612 = vmul.f32 %v4608, %v599
    %v4613 = vmul.f32 %v4611, %v599
    %v4614 = vsub.f32 %v4602, %v4612
    %v4615 = vsub.f32 %v4603, %v4613
    %v4616 = vmul.f32 %v4614, %v4614
    %v4617 = vmul.f32 %v4615, %v4615
    %v4618 = vsel %vm211, %v4616, 0.0
    %4619 = vadd.xlane.f32.xlu0 %v4618
    %v4620 = vpop.xlane.xlu0 %4619
    %v4621 = vsel %vm589, %v4617, 0.0
    %4622 = vadd.xlane.f32.xlu0 %v4621
    %v4623 = vpop.xlane.xlu0 %4622
    %v4624 = vmul.f32 %v4620, %v599
    %v4625 = vmul.f32 %v4623, %v599
    %v4626 = vadd.f32 %v4624, 1e-05
    %v4627 = vadd.f32 %v4625, 1e-05
    %v4628 = vrsqrt.pop %v4626
    %v4629 = vmul.f32 %v4628, %v4626
    %v4630 = vmul.f32 %v4629, %v4628
    %v4631 = vmul.f32 0.5, %v4630
    %v4632 = vsub.f32 1.5, %v4631
    %v4633 = vmul.f32 %v4628, %v4632
    %vm4634 = vweird.f32 %v4626
    %vm4635 = vweird.f32 %v4628
    %vm4636 = vmor %vm4634, %vm4635
    %v4637 = vsel %vm4636, %v4628, %v4633
    %v4638 = vrsqrt.pop %v4627
    %v4639 = vmul.f32 %v4638, %v4627
    %v4640 = vmul.f32 %v4639, %v4638
    %v4641 = vmul.f32 0.5, %v4640
    %v4642 = vsub.f32 1.5, %v4641
    %v4643 = vmul.f32 %v4638, %v4642
    %vm4644 = vweird.f32 %v4627
    %vm4645 = vweird.f32 %v4638
    %vm4646 = vmor %vm4644, %vm4645
    %v4647 = vsel %vm4646, %v4638, %v4643
    %v4648 = vmul.f32 %v4614, %v4637
    %v4649 = vmul.f32 %v4615, %v4647
    %v4651 = vperm.slane %v4604, 0
    %v4653 = vmul.f32 %v4648, %v4651
    %v4654 = vmul.f32 %v4649, %v4651
    %v4656 = vperm.slane %v4605, 0
    %v4658 = vadd.f32 %v4653, %v4656
    %v4659 = vadd.f32 %v4654, %v4656
    %v4660 = vld [vmem:[%s33] sm:$0x1]
    %v4661 = vld [vmem:[%s35] sm:$0x1]
    %v4662 = vsel %vm211, %v4658, 0.0
    %4663 = vadd.xlane.f32.xlu0 %v4662
    %v4664 = vpop.xlane.xlu0 %4663
    %v4665 = vsel %vm589, %v4659, 0.0
    %4666 = vadd.xlane.f32.xlu0 %v4665
    %v4667 = vpop.xlane.xlu0 %4666
    %v4668 = vmul.f32 %v4664, %v599
    %v4669 = vmul.f32 %v4667, %v599
    %v4670 = vsub.f32 %v4658, %v4668
    %v4671 = vsub.f32 %v4659, %v4669
    %v4672 = vmul.f32 %v4670, %v4670
    %v4673 = vmul.f32 %v4671, %v4671
    %v4674 = vsel %vm211, %v4672, 0.0
    %4675 = vadd.xlane.f32.xlu0 %v4674
    %v4676 = vpop.xlane.xlu0 %4675
    %v4677 = vsel %vm589, %v4673, 0.0
    %4678 = vadd.xlane.f32.xlu0 %v4677
    %v4679 = vpop.xlane.xlu0 %4678
    %v4680 = vmul.f32 %v4676, %v599
    %v4681 = vmul.f32 %v4679, %v599
    %v4682 = vadd.f32 %v4680, 1e-05
    %v4683 = vadd.f32 %v4681, 1e-05
    %v4684 = vrsqrt.pop %v4682
    %v4685 = vmul.f32 %v4684, %v4682
    %v4686 = vmul.f32 %v4685, %v4684
    %v4687 = vmul.f32 0.5, %v4686
    %v4688 = vsub.f32 1.5, %v4687
    %v4689 = vmul.f32 %v4684, %v4688
    %vm4690 = vweird.f32 %v4682
    %vm4691 = vweird.f32 %v4684
    %vm4692 = vmor %vm4690, %vm4691
    %v4693 = vsel %vm4692, %v4684, %v4689
    %v4694 = vrsqrt.pop %v4683
    %v4695 = vmul.f32 %v4694, %v4683
    %v4696 = vmul.f32 %v4695, %v4694
    %v4697 = vmul.f32 0.5, %v4696
    %v4698 = vsub.f32 1.5, %v4697
    %v4699 = vmul.f32 %v4694, %v4698
    %vm4700 = vweird.f32 %v4683
    %vm4701 = vweird.f32 %v4694
    %vm4702 = vmor %vm4700, %vm4701
    %v4703 = vsel %vm4702, %v4694, %v4699
    %v4704 = vmul.f32 %v4670, %v4693
    %v4705 = vmul.f32 %v4671, %v4703
    %v4707 = vperm.slane %v4660, 0
    %v4709 = vmul.f32 %v4704, %v4707
    %v4710 = vmul.f32 %v4705, %v4707
    %v4712 = vperm.slane %v4661, 0
    %v4714 = vadd.f32 %v4709, %v4712
    %v4715 = vadd.f32 %v4710, %v4712
    %s4716 = scalar_lea.vmem %s3, 8
    %v4717 = vld [vmem:[%s4716] sm:$0xff]
    %s4718 = scalar_lea.vmem %s7, 1
    %v4719 = vld [vmem:[%s4718] sm:$0x1]
    %v4721 = vperm.slane %v4719, 0
    %v4723 = vadd.f32 %v181, %v4721
    %v4724 = vld [vmem:[%s37] sm:$0xf]
    %v4725 = vld [vmem:[%s37 + $0x4] sm:$0xf]
    %v4726 = vld [vmem:[%s37 + $0x8] sm:$0xf]
    %v4727 = vld [vmem:[%s37 + $0xc] sm:$0xf]
    %v4728 = vld [vmem:[%s39] sm:$0x1]
    %v4729 = vld [vmem:[%s41] sm:$0xf]
    %v4730 = vld [vmem:[%s41 + $0x4] sm:$0xf]
    %v4731 = vld [vmem:[%s41 + $0x8] sm:$0xf]
    %v4732 = vld [vmem:[%s41 + $0xc] sm:$0xf]
    %v4733 = vld [vmem:[%s43] sm:$0x1]
    %v4734 = vpack.c.bf16 %v4717, %v4717
    %v4736 = vperm.slane %v4728, 0
    %v4742 = vunpack.c.l.b16 %v4724
    %v4743 = vunpack.c.l.b16 %v4725
    %v4744 = vunpack.c.l.b16 %v4726
    %v4745 = vunpack.c.l.b16 %v4727
    %v4746 = vpack.c.b16 %v4743, %v4742
    %v4747 = vpack.c.b16 %v4745, %v4744
    %v4751 = vsel %vm211, %v4734, 0
    %4753 = vmatpush.bf16.msra.mxu0 0
    %4754 = vmatpush.bf16.msra.mxu0 0
    %4755 = vmatpush.bf16.msra.mxu0 0
    %4756 = vmatpush.bf16.msra.mxu0 0
    %4757 = vmatpush.bf16.msra.mxu0 0
    %4758 = vmatpush.bf16.msra.mxu0 0
    %4759 = vmatpush.bf16.msra.mxu0 %v4747
    %4760 = vmatpush.bf16.msra.mxu0 %v4746
    %4761 = vmatmul.bf16.gmra.mxu0 %v4751
    %v4762 = vpop.f32.mrf.mxu0
    %v4763 = vadd.f32 %v4736, %v4762
    %v4764 = vpop.f32.mrf.mxu0
    %4765 = vdwg.mxu0
    %v4766 = vpack.c.bf16 %v4763, %v4763
    %v4768 = vunpack.c.l.b16 %v4766
    %v4769 = vpack.c.b16 %v4768, %v4768
    %4770 = vrot.lane.b32.xlu0 %v4769, 96
    %v4771 = vpop.permute.xlu0 %4770
    %v4773 = vsel %vm241, %v4766, 0
    %v4776 = vsel %vm241, %v4771, 0
    %4778 = vmatpush.bf16.xpose.msra.mxu0 0
    %4779 = vmatpush.bf16.xpose.msra.mxu0 0
    %4780 = vmatpush.bf16.xpose.msra.mxu0 0
    %4781 = vmatpush.bf16.xpose.msra.mxu0 0
    %4782 = vmatpush.bf16.xpose.msra.mxu0 0
    %4783 = vmatpush.bf16.xpose.msra.mxu0 0
    %4784 = vmatpush.bf16.xpose.msra.mxu0 0
    %4785 = vmatpush.bf16.xpose.msra.mxu0 %v4776
    %4786 = vmatmul.bf16.gmra.mxu0 %v4773
    %v4787 = vpop.f32.mrf.mxu0
    %v4788 = vadd.f32 %v4723, %v4787
    %v4789 = vpop.f32.mrf.mxu0
    %4790 = vdwg.mxu0
    %v4791 = vsel %vm241, %v4788, -inf
    %4792 = vmax.xlane.f32.xlu0 %v4791
    %v4793 = vpop.xlane.xlu0 %4792
    %v4794 = vsub.f32 %v4788, %v4793
    %v4795 = vmul.f32 %v4794, 1.442695
    %v4796 = vpow.pop %v4795
    %v4797 = vsel %vm241, %v4796, 0.0
    %4798 = vadd.xlane.f32.xlu0 %v4797
    %v4799 = vpop.xlane.xlu0 %4798
    %v4800 = vrcp.pop %v4799
    %v4801 = vmul.f32 %v4796, %v4800
    %v4802 = vpack.c.bf16 %v4801, %v4801
    %4803 = vrot.lane.b32.xlu0 %v4769, 64
    %v4804 = vpop.permute.xlu0 %4803
    %v4806 = vsel %vm241, %v4802, 0
    %v4809 = vsel %vm1613, %v4804, 0
    %4811 = vmatpush.bf16.msra.mxu0 0
    %4812 = vmatpush.bf16.msra.mxu0 0
    %4813 = vmatpush.bf16.msra.mxu0 0
    %4814 = vmatpush.bf16.msra.mxu0 0
    %4815 = vmatpush.bf16.msra.mxu0 0
    %4816 = vmatpush.bf16.msra.mxu0 0
    %4817 = vmatpush.bf16.msra.mxu0 0
    %4818 = vmatpush.bf16.msra.mxu0 %v4809
    %4819 = vmatmul.bf16.gmra.mxu0 %v4806
    %v4820 = vpop.f32.mrf.mxu0
    %v4821 = vadd.f32 0.0, %v4820
    %v4822 = vpop.f32.mrf.mxu0
    %4823 = vdwg.mxu0
    %4824 = vrot.lane.b32.xlu0 %v4769, 120
    %v4825 = vpop.permute.xlu0 %4824
    %4826 = vrot.lane.b32.xlu0 %v4769, 88
    %v4827 = vpop.permute.xlu0 %4826
    %v4829 = vsel %vm241, %v4825, 0
    %v4832 = vsel %vm241, %v4827, 0
    %4834 = vmatpush.bf16.xpose.msra.mxu0 0
    %4835 = vmatpush.bf16.xpose.msra.mxu0 0
    %4836 = vmatpush.bf16.xpose.msra.mxu0 0
    %4837 = vmatpush.bf16.xpose.msra.mxu0 0
    %4838 = vmatpush.bf16.xpose.msra.mxu0 0
    %4839 = vmatpush.bf16.xpose.msra.mxu0 0
    %4840 = vmatpush.bf16.xpose.msra.mxu0 0
    %4841 = vmatpush.bf16.xpose.msra.mxu0 %v4832
    %4842 = vmatmul.bf16.gmra.mxu0 %v4829
    %v4843 = vpop.f32.mrf.mxu0
    %v4844 = vadd.f32 %v4723, %v4843
    %v4845 = vpop.f32.mrf.mxu0
    %4846 = vdwg.mxu0
    %v4847 = vsel %vm241, %v4844, -inf
    %4848 = vmax.xlane.f32.xlu0 %v4847
    %v4849 = vpop.xlane.xlu0 %4848
    %v4850 = vsub.f32 %v4844, %v4849
    %v4851 = vmul.f32 %v4850, 1.442695
    %v4852 = vpow.pop %v4851
    %v4853 = vsel %vm241, %v4852, 0.0
    %4854 = vadd.xlane.f32.xlu0 %v4853
    %v4855 = vpop.xlane.xlu0 %4854
    %v4856 = vrcp.pop %v4855
    %v4857 = vmul.f32 %v4852, %v4856
    %v4858 = vpack.c.bf16 %v4857, %v4857
    %4859 = vrot.lane.b32.xlu0 %v4769, 56
    %v4860 = vpop.permute.xlu0 %4859
    %v4862 = vsel %vm241, %v4858, 0
    %v4865 = vsel %vm1613, %v4860, 0
    %4867 = vmatpush.bf16.msra.mxu0 0
    %4868 = vmatpush.bf16.msra.mxu0 0
    %4869 = vmatpush.bf16.msra.mxu0 0
    %4870 = vmatpush.bf16.msra.mxu0 0
    %4871 = vmatpush.bf16.msra.mxu0 0
    %4872 = vmatpush.bf16.msra.mxu0 0
    %4873 = vmatpush.bf16.msra.mxu0 0
    %4874 = vmatpush.bf16.msra.mxu0 %v4865
    %4875 = vmatmul.bf16.gmra.mxu0 %v4862
    %v4876 = vpop.f32.mrf.mxu0
    %v4877 = vadd.f32 0.0, %v4876
    %v4878 = vpop.f32.mrf.mxu0
    %4879 = vdwg.mxu0
    %4880 = vrot.lane.b32.xlu0 %v4769, 112
    %v4881 = vpop.permute.xlu0 %4880
    %4882 = vrot.lane.b32.xlu0 %v4769, 80
    %v4883 = vpop.permute.xlu0 %4882
    %v4885 = vsel %vm241, %v4881, 0
    %v4888 = vsel %vm241, %v4883, 0
    %4890 = vmatpush.bf16.xpose.msra.mxu0 0
    %4891 = vmatpush.bf16.xpose.msra.mxu0 0
    %4892 = vmatpush.bf16.xpose.msra.mxu0 0
    %4893 = vmatpush.bf16.xpose.msra.mxu0 0
    %4894 = vmatpush.bf16.xpose.msra.mxu0 0
    %4895 = vmatpush.bf16.xpose.msra.mxu0 0
    %4896 = vmatpush.bf16.xpose.msra.mxu0 0
    %4897 = vmatpush.bf16.xpose.msra.mxu0 %v4888
    %4898 = vmatmul.bf16.gmra.mxu0 %v4885
    %v4899 = vpop.f32.mrf.mxu0
    %v4900 = vadd.f32 %v4723, %v4899
    %v4901 = vpop.f32.mrf.mxu0
    %4902 = vdwg.mxu0
    %v4903 = vsel %vm241, %v4900, -inf
    %4904 = vmax.xlane.f32.xlu0 %v4903
    %v4905 = vpop.xlane.xlu0 %4904
    %v4906 = vsub.f32 %v4900, %v4905
    %v4907 = vmul.f32 %v4906, 1.442695
    %v4908 = vpow.pop %v4907
    %v4909 = vsel %vm241, %v4908, 0.0
    %4910 = vadd.xlane.f32.xlu0 %v4909
    %v4911 = vpop.xlane.xlu0 %4910
    %v4912 = vrcp.pop %v4911
    %v4913 = vmul.f32 %v4908, %v4912
    %v4914 = vpack.c.bf16 %v4913, %v4913
    %4915 = vrot.lane.b32.xlu0 %v4769, 48
    %v4916 = vpop.permute.xlu0 %4915
    %v4918 = vsel %vm241, %v4914, 0
    %v4921 = vsel %vm1613, %v4916, 0
    %4923 = vmatpush.bf16.msra.mxu0 0
    %4924 = vmatpush.bf16.msra.mxu0 0
    %4925 = vmatpush.bf16.msra.mxu0 0
    %4926 = vmatpush.bf16.msra.mxu0 0
    %4927 = vmatpush.bf16.msra.mxu0 0
    %4928 = vmatpush.bf16.msra.mxu0 0
    %4929 = vmatpush.bf16.msra.mxu0 0
    %4930 = vmatpush.bf16.msra.mxu0 %v4921
    %4931 = vmatmul.bf16.gmra.mxu0 %v4918
    %v4932 = vpop.f32.mrf.mxu0
    %v4933 = vadd.f32 0.0, %v4932
    %v4934 = vpop.f32.mrf.mxu0
    %4935 = vdwg.mxu0
    %4936 = vrot.lane.b32.xlu0 %v4769, 104
    %v4937 = vpop.permute.xlu0 %4936
    %4938 = vrot.lane.b32.xlu0 %v4769, 72
    %v4939 = vpop.permute.xlu0 %4938
    %v4941 = vsel %vm241, %v4937, 0
    %v4944 = vsel %vm241, %v4939, 0
    %4946 = vmatpush.bf16.xpose.msra.mxu0 0
    %4947 = vmatpush.bf16.xpose.msra.mxu0 0
    %4948 = vmatpush.bf16.xpose.msra.mxu0 0
    %4949 = vmatpush.bf16.xpose.msra.mxu0 0
    %4950 = vmatpush.bf16.xpose.msra.mxu0 0
    %4951 = vmatpush.bf16.xpose.msra.mxu0 0
    %4952 = vmatpush.bf16.xpose.msra.mxu0 0
    %4953 = vmatpush.bf16.xpose.msra.mxu0 %v4944
    %4954 = vmatmul.bf16.gmra.mxu0 %v4941
    %v4955 = vpop.f32.mrf.mxu0
    %v4956 = vadd.f32 %v4723, %v4955
    %v4957 = vpop.f32.mrf.mxu0
    %4958 = vdwg.mxu0
    %v4959 = vsel %vm241, %v4956, -inf
    %4960 = vmax.xlane.f32.xlu0 %v4959
    %v4961 = vpop.xlane.xlu0 %4960
    %v4962 = vsub.f32 %v4956, %v4961
    %v4963 = vmul.f32 %v4962, 1.442695
    %v4964 = vpow.pop %v4963
    %v4965 = vsel %vm241, %v4964, 0.0
    %4966 = vadd.xlane.f32.xlu0 %v4965
    %v4967 = vpop.xlane.xlu0 %4966
    %v4968 = vrcp.pop %v4967
    %v4969 = vmul.f32 %v4964, %v4968
    %v4970 = vpack.c.bf16 %v4969, %v4969
    %4971 = vrot.lane.b32.xlu0 %v4769, 40
    %v4972 = vpop.permute.xlu0 %4971
    %v4974 = vsel %vm241, %v4970, 0
    %v4977 = vsel %vm1613, %v4972, 0
    %4979 = vmatpush.bf16.msra.mxu0 0
    %4980 = vmatpush.bf16.msra.mxu0 0
    %4981 = vmatpush.bf16.msra.mxu0 0
    %4982 = vmatpush.bf16.msra.mxu0 0
    %4983 = vmatpush.bf16.msra.mxu0 0
    %4984 = vmatpush.bf16.msra.mxu0 0
    %4985 = vmatpush.bf16.msra.mxu0 0
    %4986 = vmatpush.bf16.msra.mxu0 %v4977
    %4987 = vmatmul.bf16.gmra.mxu0 %v4974
    %v4988 = vpop.f32.mrf.mxu0
    %v4989 = vadd.f32 0.0, %v4988
    %v4990 = vpop.f32.mrf.mxu0
    %4991 = vdwg.mxu0
    %4993 = vrot.lane.b32.xlu0 %v4877, 8
    %v4994 = vpop.permute.xlu0 %4993
    %4997 = vrot.lane.b32.xlu0 %v4933, 16
    %v4998 = vpop.permute.xlu0 %4997
    %5001 = vrot.lane.b32.xlu0 %v4989, 24
    %v5002 = vpop.permute.xlu0 %5001
    %v5004 = vsel %vm241, %v4821, %v4994
    %v5005 = vsel %vm543, %v5004, %v4998
    %v5006 = vsel %vm546, %v5005, %v5002
    %v5007 = vpack.c.bf16 %v5006, %v5006
    %v5009 = vperm.slane %v4733, 0
    %v5015 = vunpack.c.l.b16 %v4729
    %v5016 = vunpack.c.l.b16 %v4730
    %v5017 = vunpack.c.l.b16 %v4731
    %v5018 = vunpack.c.l.b16 %v4732
    %v5019 = vpack.c.b16 %v5016, %v5015
    %v5020 = vpack.c.b16 %v5018, %v5017
    %v5024 = vsel %vm211, %v5007, 0
    %5026 = vmatpush.bf16.msra.mxu0 0
    %5027 = vmatpush.bf16.msra.mxu0 0
    %5028 = vmatpush.bf16.msra.mxu0 0
    %5029 = vmatpush.bf16.msra.mxu0 0
    %5030 = vmatpush.bf16.msra.mxu0 0
    %5031 = vmatpush.bf16.msra.mxu0 0
    %5032 = vmatpush.bf16.msra.mxu0 %v5020
    %5033 = vmatpush.bf16.msra.mxu0 %v5019
    %5034 = vmatmul.bf16.gmra.mxu0 %v5024
    %v5035 = vpop.f32.mrf.mxu0
    %v5036 = vadd.f32 %v5009, %v5035
    %v5037 = vpop.f32.mrf.mxu0
    %5038 = vdwg.mxu0
    %v5039 = vadd.f32 %v4717, %v5036
    %v5040 = vld [vmem:[%s45] sm:$0x1]
    %v5041 = vld [vmem:[%s47] sm:$0x1]
    %v5042 = vsel %vm211, %v5039, 0.0
    %5043 = vadd.xlane.f32.xlu0 %v5042
    %v5044 = vpop.xlane.xlu0 %5043
    %v5045 = vmul.f32 %v5044, %v599
    %v5046 = vsub.f32 %v5039, %v5045
    %v5047 = vmul.f32 %v5046, %v5046
    %v5048 = vsel %vm211, %v5047, 0.0
    %5049 = vadd.xlane.f32.xlu0 %v5048
    %v5050 = vpop.xlane.xlu0 %5049
    %v5051 = vmul.f32 %v5050, %v599
    %v5052 = vadd.f32 %v5051, 1e-05
    %v5053 = vrsqrt.pop %v5052
    %v5054 = vmul.f32 %v5053, %v5052
    %v5055 = vmul.f32 %v5054, %v5053
    %v5056 = vmul.f32 0.5, %v5055
    %v5057 = vsub.f32 1.5, %v5056
    %v5058 = vmul.f32 %v5053, %v5057
    %vm5059 = vweird.f32 %v5052
    %vm5060 = vweird.f32 %v5053
    %vm5061 = vmor %vm5059, %vm5060
    %v5062 = vsel %vm5061, %v5053, %v5058
    %v5063 = vmul.f32 %v5046, %v5062
    %v5065 = vperm.slane %v5040, 0
    %v5067 = vmul.f32 %v5063, %v5065
    %v5069 = vperm.slane %v5041, 0
    %v5071 = vadd.f32 %v5067, %v5069
    %v5072 = vld [vmem:[%s49] sm:$0xf]
    %v5073 = vld [vmem:[%s49 + $0x4] sm:$0xf]
    %v5074 = vld [vmem:[%s49 + $0x8] sm:$0xf]
    %v5075 = vld [vmem:[%s49 + $0xc] sm:$0xf]
    %v5076 = vld [vmem:[%s51] sm:$0x1]
    %v5077 = vld [vmem:[%s53] sm:$0xf]
    %v5078 = vld [vmem:[%s53 + $0x4] sm:$0xf]
    %v5079 = vld [vmem:[%s53 + $0x8] sm:$0xf]
    %v5080 = vld [vmem:[%s53 + $0xc] sm:$0xf]
    %v5081 = vld [vmem:[%s55] sm:$0x1]
    %v5082 = vld [vmem:[%s57] sm:$0xf]
    %v5083 = vld [vmem:[%s57 + $0x4] sm:$0xf]
    %v5084 = vld [vmem:[%s57 + $0x8] sm:$0xf]
    %v5085 = vld [vmem:[%s57 + $0xc] sm:$0xf]
    %v5086 = vld [vmem:[%s59] sm:$0x1]
    %v5087 = vpack.c.bf16 %v5071, %v5071
    %v5089 = vperm.slane %v5076, 0
    %v5095 = vunpack.c.l.b16 %v5072
    %v5096 = vunpack.c.l.b16 %v5073
    %v5097 = vunpack.c.l.b16 %v5074
    %v5098 = vunpack.c.l.b16 %v5075
    %v5099 = vpack.c.b16 %v5096, %v5095
    %v5100 = vpack.c.b16 %v5098, %v5097
    %v5104 = vsel %vm211, %v5087, 0
    %5106 = vmatpush.bf16.msra.mxu0 0
    %5107 = vmatpush.bf16.msra.mxu0 0
    %5108 = vmatpush.bf16.msra.mxu0 0
    %5109 = vmatpush.bf16.msra.mxu0 0
    %5110 = vmatpush.bf16.msra.mxu0 0
    %5111 = vmatpush.bf16.msra.mxu0 0
    %5112 = vmatpush.bf16.msra.mxu0 %v5100
    %5113 = vmatpush.bf16.msra.mxu0 %v5099
    %5114 = vmatmul.bf16.gmra.mxu0 %v5104
    %v5115 = vpop.f32.mrf.mxu0
    %v5116 = vadd.f32 %v5089, %v5115
    %v5117 = vpop.f32.mrf.mxu0
    %5118 = vdwg.mxu0
    %v5119 = vpack.c.bf16 %v4715, %v4714
    %v5121 = vperm.slane %v5081, 0
    %v5127 = vunpack.c.l.b16 %v5077
    %v5128 = vunpack.c.l.b16 %v5078
    %v5129 = vunpack.c.l.b16 %v5079
    %v5130 = vunpack.c.l.b16 %v5080
    %v5131 = vpack.c.b16 %v5128, %v5127
    %v5132 = vpack.c.b16 %v5130, %v5129
    %v5136 = vsel %vm211, %v5119, 0
    %5138 = vmatpush.bf16.msra.mxu0 0
    %5139 = vmatpush.bf16.msra.mxu0 0
    %5140 = vmatpush.bf16.msra.mxu0 0
    %5141 = vmatpush.bf16.msra.mxu0 0
    %5142 = vmatpush.bf16.msra.mxu0 0
    %5143 = vmatpush.bf16.msra.mxu0 0
    %5144 = vmatpush.bf16.msra.mxu0 %v5132
    %5145 = vmatpush.bf16.msra.mxu0 %v5131
    %5146 = vmatmul.bf16.gmra.mxu0 %v5136
    %v5147 = vpop.f32.mrf.mxu0
    %v5148 = vadd.f32 %v5121, %v5147
    %v5149 = vpop.f32.mrf.mxu0
    %v5150 = vadd.f32 %v5121, %v5149
    %5151 = vdwg.mxu0
    %v5152 = vpack.c.bf16 %v5116, %v5116
    %v5153 = vpack.c.bf16 %v5148, %v5148
    %v5154 = vpack.c.bf16 %v5150, %v5150
    %v5157 = vunpack.c.l.b16 %v5153
    %v5158 = vunpack.c.l.b16 %v5154
    %v5159 = vpack.c.b16 %v5158, %v5157
    %v5161 = vsel %vm241, %v5152, 0
    %v5164 = vsel %vm241, %v5159, 0
    %5166 = vmatpush.bf16.xpose.msra.mxu0 0
    %5167 = vmatpush.bf16.xpose.msra.mxu0 0
    %5168 = vmatpush.bf16.xpose.msra.mxu0 0
    %5169 = vmatpush.bf16.xpose.msra.mxu0 0
    %5170 = vmatpush.bf16.xpose.msra.mxu0 0
    %5171 = vmatpush.bf16.xpose.msra.mxu0 0
    %5172 = vmatpush.bf16.xpose.msra.mxu0 0
    %5173 = vmatpush.bf16.xpose.msra.mxu0 %v5164
    %5174 = vmatmul.bf16.gmra.mxu0 %v5161
    %v5175 = vpop.f32.mrf.mxu0
    %v5176 = vadd.f32 0.0, %v5175
    %v5177 = vpop.f32.mrf.mxu0
    %5178 = vdwg.mxu0
    %v5179 = vsel %vm262, %v5176, -inf
    %5180 = vmax.xlane.f32.xlu0 %v5179
    %v5181 = vpop.xlane.xlu0 %5180
    %v5182 = vsub.f32 %v5176, %v5181
    %v5183 = vmul.f32 %v5182, 1.442695
    %v5184 = vpow.pop %v5183
    %v5185 = vsel %vm262, %v5184, 0.0
    %5186 = vadd.xlane.f32.xlu0 %v5185
    %v5187 = vpop.xlane.xlu0 %5186
    %v5188 = vrcp.pop %v5187
    %v5189 = vmul.f32 %v5184, %v5188
    %v5190 = vpack.c.bf16 %v5189, %v5189
    %5191 = vrot.lane.b32.xlu0 %v5159, 96
    %v5192 = vpop.permute.xlu0 %5191
    %v5194 = vsel %vm262, %v5190, 0
    %v5197 = vsel %vm292, %v5192, 0
    %5199 = vmatpush.bf16.msra.mxu0 0
    %5200 = vmatpush.bf16.msra.mxu0 0
    %5201 = vmatpush.bf16.msra.mxu0 0
    %5202 = vmatpush.bf16.msra.mxu0 0
    %5203 = vmatpush.bf16.msra.mxu0 0
    %5204 = vmatpush.bf16.msra.mxu0 0
    %5205 = vmatpush.bf16.msra.mxu0 0
    %5206 = vmatpush.bf16.msra.mxu0 %v5197
    %5207 = vmatmul.bf16.gmra.mxu0 %v5194
    %v5208 = vpop.f32.mrf.mxu0
    %v5209 = vadd.f32 0.0, %v5208
    %v5210 = vpop.f32.mrf.mxu0
    %5211 = vdwg.mxu0
    %v5213 = vunpack.c.l.b16 %v5152
    %v5214 = vpack.c.b16 %v5213, %v5213
    %5215 = vrot.lane.b32.xlu0 %v5214, 120
    %v5216 = vpop.permute.xlu0 %5215
    %5217 = vrot.lane.b32.xlu0 %v5159, 120
    %v5218 = vpop.permute.xlu0 %5217
    %v5220 = vsel %vm241, %v5216, 0
    %v5223 = vsel %vm241, %v5218, 0
    %5225 = vmatpush.bf16.xpose.msra.mxu0 0
    %5226 = vmatpush.bf16.xpose.msra.mxu0 0
    %5227 = vmatpush.bf16.xpose.msra.mxu0 0
    %5228 = vmatpush.bf16.xpose.msra.mxu0 0
    %5229 = vmatpush.bf16.xpose.msra.mxu0 0
    %5230 = vmatpush.bf16.xpose.msra.mxu0 0
    %5231 = vmatpush.bf16.xpose.msra.mxu0 0
    %5232 = vmatpush.bf16.xpose.msra.mxu0 %v5223
    %5233 = vmatmul.bf16.gmra.mxu0 %v5220
    %v5234 = vpop.f32.mrf.mxu0
    %v5235 = vadd.f32 0.0, %v5234
    %v5236 = vpop.f32.mrf.mxu0
    %5237 = vdwg.mxu0
    %v5238 = vsel %vm262, %v5235, -inf
    %5239 = vmax.xlane.f32.xlu0 %v5238
    %v5240 = vpop.xlane.xlu0 %5239
    %v5241 = vsub.f32 %v5235, %v5240
    %v5242 = vmul.f32 %v5241, 1.442695
    %v5243 = vpow.pop %v5242
    %v5244 = vsel %vm262, %v5243, 0.0
    %5245 = vadd.xlane.f32.xlu0 %v5244
    %v5246 = vpop.xlane.xlu0 %5245
    %v5247 = vrcp.pop %v5246
    %v5248 = vmul.f32 %v5243, %v5247
    %v5249 = vpack.c.bf16 %v5248, %v5248
    %5250 = vrot.lane.b32.xlu0 %v5159, 88
    %v5251 = vpop.permute.xlu0 %5250
    %v5253 = vsel %vm262, %v5249, 0
    %v5256 = vsel %vm292, %v5251, 0
    %5258 = vmatpush.bf16.msra.mxu0 0
    %5259 = vmatpush.bf16.msra.mxu0 0
    %5260 = vmatpush.bf16.msra.mxu0 0
    %5261 = vmatpush.bf16.msra.mxu0 0
    %5262 = vmatpush.bf16.msra.mxu0 0
    %5263 = vmatpush.bf16.msra.mxu0 0
    %5264 = vmatpush.bf16.msra.mxu0 0
    %5265 = vmatpush.bf16.msra.mxu0 %v5256
    %5266 = vmatmul.bf16.gmra.mxu0 %v5253
    %v5267 = vpop.f32.mrf.mxu0
    %v5268 = vadd.f32 0.0, %v5267
    %v5269 = vpop.f32.mrf.mxu0
    %5270 = vdwg.mxu0
    %5271 = vrot.lane.b32.xlu0 %v5214, 112
    %v5272 = vpop.permute.xlu0 %5271
    %5273 = vrot.lane.b32.xlu0 %v5159, 112
    %v5274 = vpop.permute.xlu0 %5273
    %v5276 = vsel %vm241, %v5272, 0
    %v5279 = vsel %vm241, %v5274, 0
    %5281 = vmatpush.bf16.xpose.msra.mxu0 0
    %5282 = vmatpush.bf16.xpose.msra.mxu0 0
    %5283 = vmatpush.bf16.xpose.msra.mxu0 0
    %5284 = vmatpush.bf16.xpose.msra.mxu0 0
    %5285 = vmatpush.bf16.xpose.msra.mxu0 0
    %5286 = vmatpush.bf16.xpose.msra.mxu0 0
    %5287 = vmatpush.bf16.xpose.msra.mxu0 0
    %5288 = vmatpush.bf16.xpose.msra.mxu0 %v5279
    %5289 = vmatmul.bf16.gmra.mxu0 %v5276
    %v5290 = vpop.f32.mrf.mxu0
    %v5291 = vadd.f32 0.0, %v5290
    %v5292 = vpop.f32.mrf.mxu0
    %5293 = vdwg.mxu0
    %v5294 = vsel %vm262, %v5291, -inf
    %5295 = vmax.xlane.f32.xlu0 %v5294
    %v5296 = vpop.xlane.xlu0 %5295
    %v5297 = vsub.f32 %v5291, %v5296
    %v5298 = vmul.f32 %v5297, 1.442695
    %v5299 = vpow.pop %v5298
    %v5300 = vsel %vm262, %v5299, 0.0
    %5301 = vadd.xlane.f32.xlu0 %v5300
    %v5302 = vpop.xlane.xlu0 %5301
    %v5303 = vrcp.pop %v5302
    %v5304 = vmul.f32 %v5299, %v5303
    %v5305 = vpack.c.bf16 %v5304, %v5304
    %5306 = vrot.lane.b32.xlu0 %v5159, 80
    %v5307 = vpop.permute.xlu0 %5306
    %v5309 = vsel %vm262, %v5305, 0
    %v5312 = vsel %vm292, %v5307, 0
    %5314 = vmatpush.bf16.msra.mxu0 0
    %5315 = vmatpush.bf16.msra.mxu0 0
    %5316 = vmatpush.bf16.msra.mxu0 0
    %5317 = vmatpush.bf16.msra.mxu0 0
    %5318 = vmatpush.bf16.msra.mxu0 0
    %5319 = vmatpush.bf16.msra.mxu0 0
    %5320 = vmatpush.bf16.msra.mxu0 0
    %5321 = vmatpush.bf16.msra.mxu0 %v5312
    %5322 = vmatmul.bf16.gmra.mxu0 %v5309
    %v5323 = vpop.f32.mrf.mxu0
    %v5324 = vadd.f32 0.0, %v5323
    %v5325 = vpop.f32.mrf.mxu0
    %5326 = vdwg.mxu0
    %5327 = vrot.lane.b32.xlu0 %v5214, 104
    %v5328 = vpop.permute.xlu0 %5327
    %5329 = vrot.lane.b32.xlu0 %v5159, 104
    %v5330 = vpop.permute.xlu0 %5329
    %v5332 = vsel %vm241, %v5328, 0
    %v5335 = vsel %vm241, %v5330, 0
    %5337 = vmatpush.bf16.xpose.msra.mxu0 0
    %5338 = vmatpush.bf16.xpose.msra.mxu0 0
    %5339 = vmatpush.bf16.xpose.msra.mxu0 0
    %5340 = vmatpush.bf16.xpose.msra.mxu0 0
    %5341 = vmatpush.bf16.xpose.msra.mxu0 0
    %5342 = vmatpush.bf16.xpose.msra.mxu0 0
    %5343 = vmatpush.bf16.xpose.msra.mxu0 0
    %5344 = vmatpush.bf16.xpose.msra.mxu0 %v5335
    %5345 = vmatmul.bf16.gmra.mxu0 %v5332
    %v5346 = vpop.f32.mrf.mxu0
    %v5347 = vadd.f32 0.0, %v5346
    %v5348 = vpop.f32.mrf.mxu0
    %5349 = vdwg.mxu0
    %v5350 = vsel %vm262, %v5347, -inf
    %5351 = vmax.xlane.f32.xlu0 %v5350
    %v5352 = vpop.xlane.xlu0 %5351
    %v5353 = vsub.f32 %v5347, %v5352
    %v5354 = vmul.f32 %v5353, 1.442695
    %v5355 = vpow.pop %v5354
    %v5356 = vsel %vm262, %v5355, 0.0
    %5357 = vadd.xlane.f32.xlu0 %v5356
    %v5358 = vpop.xlane.xlu0 %5357
    %v5359 = vrcp.pop %v5358
    %v5360 = vmul.f32 %v5355, %v5359
    %v5361 = vpack.c.bf16 %v5360, %v5360
    %5362 = vrot.lane.b32.xlu0 %v5159, 72
    %v5363 = vpop.permute.xlu0 %5362
    %v5365 = vsel %vm262, %v5361, 0
    %v5368 = vsel %vm292, %v5363, 0
    %5370 = vmatpush.bf16.msra.mxu0 0
    %5371 = vmatpush.bf16.msra.mxu0 0
    %5372 = vmatpush.bf16.msra.mxu0 0
    %5373 = vmatpush.bf16.msra.mxu0 0
    %5374 = vmatpush.bf16.msra.mxu0 0
    %5375 = vmatpush.bf16.msra.mxu0 0
    %5376 = vmatpush.bf16.msra.mxu0 0
    %5377 = vmatpush.bf16.msra.mxu0 %v5368
    %5378 = vmatmul.bf16.gmra.mxu0 %v5365
    %v5379 = vpop.f32.mrf.mxu0
    %v5380 = vadd.f32 0.0, %v5379
    %v5381 = vpop.f32.mrf.mxu0
    %5382 = vdwg.mxu0
    %5384 = vrot.lane.b32.xlu0 %v5268, 8
    %v5385 = vpop.permute.xlu0 %5384
    %5388 = vrot.lane.b32.xlu0 %v5324, 16
    %v5389 = vpop.permute.xlu0 %5388
    %5392 = vrot.lane.b32.xlu0 %v5380, 24
    %v5393 = vpop.permute.xlu0 %5392
    %v5395 = vsel %vm241, %v5209, %v5385
    %v5396 = vsel %vm543, %v5395, %v5389
    %v5397 = vsel %vm546, %v5396, %v5393
    %v5398 = vpack.c.bf16 %v5397, %v5397
    %v5400 = vperm.slane %v5086, 0
    %v5406 = vunpack.c.l.b16 %v5082
    %v5407 = vunpack.c.l.b16 %v5083
    %v5408 = vunpack.c.l.b16 %v5084
    %v5409 = vunpack.c.l.b16 %v5085
    %v5410 = vpack.c.b16 %v5407, %v5406
    %v5411 = vpack.c.b16 %v5409, %v5408
    %v5415 = vsel %vm211, %v5398, 0
    %5417 = vmatpush.bf16.msra.mxu0 0
    %5418 = vmatpush.bf16.msra.mxu0 0
    %5419 = vmatpush.bf16.msra.mxu0 0
    %5420 = vmatpush.bf16.msra.mxu0 0
    %5421 = vmatpush.bf16.msra.mxu0 0
    %5422 = vmatpush.bf16.msra.mxu0 0
    %5423 = vmatpush.bf16.msra.mxu0 %v5411
    %5424 = vmatpush.bf16.msra.mxu0 %v5410
    %5425 = vmatmul.bf16.gmra.mxu0 %v5415
    %v5426 = vpop.f32.mrf.mxu0
    %v5427 = vadd.f32 %v5400, %v5426
    %v5428 = vpop.f32.mrf.mxu0
    %5429 = vdwg.mxu0
    %v5430 = vadd.f32 %v5071, %v5427
    %v5431 = vld [vmem:[%s61] sm:$0x1]
    %v5432 = vld [vmem:[%s63] sm:$0x1]
    %v5433 = vsel %vm211, %v5430, 0.0
    %5434 = vadd.xlane.f32.xlu0 %v5433
    %v5435 = vpop.xlane.xlu0 %5434
    %v5436 = vmul.f32 %v5435, %v599
    %v5437 = vsub.f32 %v5430, %v5436
    %v5438 = vmul.f32 %v5437, %v5437
    %v5439 = vsel %vm211, %v5438, 0.0
    %5440 = vadd.xlane.f32.xlu0 %v5439
    %v5441 = vpop.xlane.xlu0 %5440
    %v5442 = vmul.f32 %v5441, %v599
    %v5443 = vadd.f32 %v5442, 1e-05
    %v5444 = vrsqrt.pop %v5443
    %v5445 = vmul.f32 %v5444, %v5443
    %v5446 = vmul.f32 %v5445, %v5444
    %v5447 = vmul.f32 0.5, %v5446
    %v5448 = vsub.f32 1.5, %v5447
    %v5449 = vmul.f32 %v5444, %v5448
    %vm5450 = vweird.f32 %v5443
    %vm5451 = vweird.f32 %v5444
    %vm5452 = vmor %vm5450, %vm5451
    %v5453 = vsel %vm5452, %v5444, %v5449
    %v5454 = vmul.f32 %v5437, %v5453
    %v5456 = vperm.slane %v5431, 0
    %v5458 = vmul.f32 %v5454, %v5456
    %v5460 = vperm.slane %v5432, 0
    %v5462 = vadd.f32 %v5458, %v5460
    %v5463 = vld [vmem:[%s65] sm:$0xf]
    %v5464 = vld [vmem:[%s65 + $0x4] sm:$0xf]
    %v5465 = vld [vmem:[%s65 + $0x8] sm:$0xf]
    %v5466 = vld [vmem:[%s65 + $0xc] sm:$0xf]
    %v5467 = vld [vmem:[%s67] sm:$0x1]
    %v5468 = vld [vmem:[%s69] sm:$0xf]
    %v5469 = vld [vmem:[%s69 + $0x4] sm:$0xf]
    %v5470 = vld [vmem:[%s69 + $0x8] sm:$0xf]
    %v5471 = vld [vmem:[%s69 + $0xc] sm:$0xf]
    %v5472 = vld [vmem:[%s69 + $0x10] sm:$0xf]
    %v5473 = vld [vmem:[%s69 + $0x14] sm:$0xf]
    %v5474 = vld [vmem:[%s69 + $0x18] sm:$0xf]
    %v5475 = vld [vmem:[%s69 + $0x1c] sm:$0xf]
    %v5476 = vld [vmem:[%s69 + $0x20] sm:$0xf]
    %v5477 = vld [vmem:[%s69 + $0x24] sm:$0xf]
    %v5478 = vld [vmem:[%s69 + $0x28] sm:$0xf]
    %v5479 = vld [vmem:[%s69 + $0x2c] sm:$0xf]
    %v5480 = vld [vmem:[%s69 + $0x30] sm:$0xf]
    %v5481 = vld [vmem:[%s69 + $0x34] sm:$0xf]
    %v5482 = vld [vmem:[%s69 + $0x38] sm:$0xf]
    %v5483 = vld [vmem:[%s69 + $0x3c] sm:$0xf]
    %v5484 = vld [vmem:[%s71] sm:$0x1]
    %v5485 = vpack.c.bf16 %v5462, %v5462
    %v5487 = vperm.slane %v5467, 0
    %v5493 = vunpack.c.l.b16 %v5463
    %v5494 = vunpack.c.l.b16 %v5464
    %v5495 = vunpack.c.l.b16 %v5465
    %v5496 = vunpack.c.l.b16 %v5466
    %v5497 = vpack.c.b16 %v5494, %v5493
    %v5498 = vpack.c.b16 %v5496, %v5495
    %v5502 = vsel %vm211, %v5485, 0
    %5504 = vmatpush.bf16.msra.mxu0 0
    %5505 = vmatpush.bf16.msra.mxu0 0
    %5506 = vmatpush.bf16.msra.mxu0 0
    %5507 = vmatpush.bf16.msra.mxu0 0
    %5508 = vmatpush.bf16.msra.mxu0 0
    %5509 = vmatpush.bf16.msra.mxu0 0
    %5510 = vmatpush.bf16.msra.mxu0 %v5498
    %5511 = vmatpush.bf16.msra.mxu0 %v5497
    %5512 = vmatmul.bf16.gmra.mxu0 %v5502
    %v5513 = vpop.f32.mrf.mxu0
    %v5514 = vadd.f32 %v5487, %v5513
    %v5515 = vpop.f32.mrf.mxu0
    %5516 = vdwg.mxu0
    %v5517 = vmax.f32 %v5514, 0.0
    %v5518 = vpack.c.bf16 %v5517, %v5517
    %v5520 = vperm.slane %v5484, 0
    %v5538 = vunpack.c.l.b16 %v5468
    %v5539 = vunpack.c.l.b16 %v5469
    %v5540 = vunpack.c.l.b16 %v5470
    %v5541 = vunpack.c.l.b16 %v5471
    %v5542 = vunpack.c.l.b16 %v5472
    %v5543 = vunpack.c.l.b16 %v5473
    %v5544 = vunpack.c.l.b16 %v5474
    %v5545 = vunpack.c.l.b16 %v5475
    %v5546 = vunpack.c.l.b16 %v5476
    %v5547 = vunpack.c.l.b16 %v5477
    %v5548 = vunpack.c.l.b16 %v5478
    %v5549 = vunpack.c.l.b16 %v5479
    %v5550 = vunpack.c.l.b16 %v5480
    %v5551 = vunpack.c.l.b16 %v5481
    %v5552 = vunpack.c.l.b16 %v5482
    %v5553 = vunpack.c.l.b16 %v5483
    %v5554 = vpack.c.b16 %v5539, %v5538
    %v5555 = vpack.c.b16 %v5541, %v5540
    %v5556 = vpack.c.b16 %v5543, %v5542
    %v5557 = vpack.c.b16 %v5545, %v5544
    %v5558 = vpack.c.b16 %v5547, %v5546
    %v5559 = vpack.c.b16 %v5549, %v5548
    %v5560 = vpack.c.b16 %v5551, %v5550
    %v5561 = vpack.c.b16 %v5553, %v5552
    %5570 = vmatpush.bf16.msra.mxu0 %v5561
    %5571 = vmatpush.bf16.msra.mxu0 %v5560
    %5572 = vmatpush.bf16.msra.mxu0 %v5559
    %5573 = vmatpush.bf16.msra.mxu0 %v5558
    %5574 = vmatpush.bf16.msra.mxu0 %v5557
    %5575 = vmatpush.bf16.msra.mxu0 %v5556
    %5576 = vmatpush.bf16.msra.mxu0 %v5555
    %5577 = vmatpush.bf16.msra.mxu0 %v5554
    %5578 = vmatmul.bf16.gmra.mxu0 %v5518
    %v5579 = vpop.f32.mrf.mxu0
    %v5580 = vadd.f32 %v5520, %v5579
    %v5581 = vpop.f32.mrf.mxu0
    %5582 = vdwg.mxu0
    %v5583 = vadd.f32 %v5462, %v5580
    %v5584 = vld [vmem:[%s73] sm:$0x1]
    %v5585 = vld [vmem:[%s75] sm:$0x1]
    %v5586 = vsel %vm211, %v5583, 0.0
    %5587 = vadd.xlane.f32.xlu0 %v5586
    %v5588 = vpop.xlane.xlu0 %5587
    %v5589 = vmul.f32 %v5588, %v599
    %v5590 = vsub.f32 %v5583, %v5589
    %v5591 = vmul.f32 %v5590, %v5590
    %v5592 = vsel %vm211, %v5591, 0.0
    %5593 = vadd.xlane.f32.xlu0 %v5592
    %v5594 = vpop.xlane.xlu0 %5593
    %v5595 = vmul.f32 %v5594, %v599
    %v5596 = vadd.f32 %v5595, 1e-05
    %v5597 = vrsqrt.pop %v5596
    %v5598 = vmul.f32 %v5597, %v5596
    %v5599 = vmul.f32 %v5598, %v5597
    %v5600 = vmul.f32 0.5, %v5599
    %v5601 = vsub.f32 1.5, %v5600
    %v5602 = vmul.f32 %v5597, %v5601
    %vm5603 = vweird.f32 %v5596
    %vm5604 = vweird.f32 %v5597
    %vm5605 = vmor %vm5603, %vm5604
    %v5606 = vsel %vm5605, %v5597, %v5602
    %v5607 = vmul.f32 %v5590, %v5606
    %v5609 = vperm.slane %v5584, 0
    %v5611 = vmul.f32 %v5607, %v5609
    %v5613 = vperm.slane %v5585, 0
    %v5615 = vadd.f32 %v5611, %v5613
    %v5616 = vld [vmem:[%s2422] sm:$0xf]
    %v5617 = vld [vmem:[%s2422 + $0x4] sm:$0xf]
    %v5618 = vld [vmem:[%s2422 + $0x8] sm:$0xf]
    %v5619 = vld [vmem:[%s2422 + $0xc] sm:$0xf]
    %v5620 = vld [vmem:[%s2427] sm:$0x1]
    %v5621 = vld [vmem:[%s2429] sm:$0xf]
    %v5622 = vld [vmem:[%s2429 + $0x4] sm:$0xf]
    %v5623 = vld [vmem:[%s2429 + $0x8] sm:$0xf]
    %v5624 = vld [vmem:[%s2429 + $0xc] sm:$0xf]
    %v5625 = vld [vmem:[%s2434] sm:$0x1]
    %v5626 = vpack.c.bf16 %v5615, %v5615
    %v5628 = vperm.slane %v5620, 0
    %v5634 = vunpack.c.l.b16 %v5616
    %v5635 = vunpack.c.l.b16 %v5617
    %v5636 = vunpack.c.l.b16 %v5618
    %v5637 = vunpack.c.l.b16 %v5619
    %v5638 = vpack.c.b16 %v5635, %v5634
    %v5639 = vpack.c.b16 %v5637, %v5636
    %v5643 = vsel %vm211, %v5626, 0
    %5645 = vmatpush.bf16.msra.mxu0 0
    %5646 = vmatpush.bf16.msra.mxu0 0
    %5647 = vmatpush.bf16.msra.mxu0 0
    %5648 = vmatpush.bf16.msra.mxu0 0
    %5649 = vmatpush.bf16.msra.mxu0 0
    %5650 = vmatpush.bf16.msra.mxu0 0
    %5651 = vmatpush.bf16.msra.mxu0 %v5639
    %5652 = vmatpush.bf16.msra.mxu0 %v5638
    %5653 = vmatmul.bf16.gmra.mxu0 %v5643
    %v5654 = vpop.f32.mrf.mxu0
    %v5655 = vadd.f32 %v5628, %v5654
    %v5656 = vpop.f32.mrf.mxu0
    %5657 = vdwg.mxu0
    %v5658 = vpack.c.bf16 %v5655, %v5655
    %v5660 = vunpack.c.l.b16 %v5658
    %v5661 = vpack.c.b16 %v5660, %v5660
    %5662 = vrot.lane.b32.xlu0 %v5661, 96
    %v5663 = vpop.permute.xlu0 %5662
    %v5665 = vsel %vm241, %v5658, 0
    %v5668 = vsel %vm241, %v5663, 0
    %5670 = vmatpush.bf16.xpose.msra.mxu0 0
    %5671 = vmatpush.bf16.xpose.msra.mxu0 0
    %5672 = vmatpush.bf16.xpose.msra.mxu0 0
    %5673 = vmatpush.bf16.xpose.msra.mxu0 0
    %5674 = vmatpush.bf16.xpose.msra.mxu0 0
    %5675 = vmatpush.bf16.xpose.msra.mxu0 0
    %5676 = vmatpush.bf16.xpose.msra.mxu0 0
    %5677 = vmatpush.bf16.xpose.msra.mxu0 %v5668
    %5678 = vmatmul.bf16.gmra.mxu0 %v5665
    %v5679 = vpop.f32.mrf.mxu0
    %v5680 = vadd.f32 %v4723, %v5679
    %v5681 = vpop.f32.mrf.mxu0
    %5682 = vdwg.mxu0
    %v5683 = vsel %vm241, %v5680, -inf
    %5684 = vmax.xlane.f32.xlu0 %v5683
    %v5685 = vpop.xlane.xlu0 %5684
    %v5686 = vsub.f32 %v5680, %v5685
    %v5687 = vmul.f32 %v5686, 1.442695
    %v5688 = vpow.pop %v5687
    %v5689 = vsel %vm241, %v5688, 0.0
    %5690 = vadd.xlane.f32.xlu0 %v5689
    %v5691 = vpop.xlane.xlu0 %5690
    %v5692 = vrcp.pop %v5691
    %v5693 = vmul.f32 %v5688, %v5692
    %v5694 = vpack.c.bf16 %v5693, %v5693
    %5695 = vrot.lane.b32.xlu0 %v5661, 64
    %v5696 = vpop.permute.xlu0 %5695
    %v5698 = vsel %vm241, %v5694, 0
    %v5701 = vsel %vm1613, %v5696, 0
    %5703 = vmatpush.bf16.msra.mxu0 0
    %5704 = vmatpush.bf16.msra.mxu0 0
    %5705 = vmatpush.bf16.msra.mxu0 0
    %5706 = vmatpush.bf16.msra.mxu0 0
    %5707 = vmatpush.bf16.msra.mxu0 0
    %5708 = vmatpush.bf16.msra.mxu0 0
    %5709 = vmatpush.bf16.msra.mxu0 0
    %5710 = vmatpush.bf16.msra.mxu0 %v5701
    %5711 = vmatmul.bf16.gmra.mxu0 %v5698
    %v5712 = vpop.f32.mrf.mxu0
    %v5713 = vadd.f32 0.0, %v5712
    %v5714 = vpop.f32.mrf.mxu0
    %5715 = vdwg.mxu0
    %5716 = vrot.lane.b32.xlu0 %v5661, 120
    %v5717 = vpop.permute.xlu0 %5716
    %5718 = vrot.lane.b32.xlu0 %v5661, 88
    %v5719 = vpop.permute.xlu0 %5718
    %v5721 = vsel %vm241, %v5717, 0
    %v5724 = vsel %vm241, %v5719, 0
    %5726 = vmatpush.bf16.xpose.msra.mxu0 0
    %5727 = vmatpush.bf16.xpose.msra.mxu0 0
    %5728 = vmatpush.bf16.xpose.msra.mxu0 0
    %5729 = vmatpush.bf16.xpose.msra.mxu0 0
    %5730 = vmatpush.bf16.xpose.msra.mxu0 0
    %5731 = vmatpush.bf16.xpose.msra.mxu0 0
    %5732 = vmatpush.bf16.xpose.msra.mxu0 0
    %5733 = vmatpush.bf16.xpose.msra.mxu0 %v5724
    %5734 = vmatmul.bf16.gmra.mxu0 %v5721
    %v5735 = vpop.f32.mrf.mxu0
    %v5736 = vadd.f32 %v4723, %v5735
    %v5737 = vpop.f32.mrf.mxu0
    %5738 = vdwg.mxu0
    %v5739 = vsel %vm241, %v5736, -inf
    %5740 = vmax.xlane.f32.xlu0 %v5739
    %v5741 = vpop.xlane.xlu0 %5740
    %v5742 = vsub.f32 %v5736, %v5741
    %v5743 = vmul.f32 %v5742, 1.442695
    %v5744 = vpow.pop %v5743
    %v5745 = vsel %vm241, %v5744, 0.0
    %5746 = vadd.xlane.f32.xlu0 %v5745
    %v5747 = vpop.xlane.xlu0 %5746
    %v5748 = vrcp.pop %v5747
    %v5749 = vmul.f32 %v5744, %v5748
    %v5750 = vpack.c.bf16 %v5749, %v5749
    %5751 = vrot.lane.b32.xlu0 %v5661, 56
    %v5752 = vpop.permute.xlu0 %5751
    %v5754 = vsel %vm241, %v5750, 0
    %v5757 = vsel %vm1613, %v5752, 0
    %5759 = vmatpush.bf16.msra.mxu0 0
    %5760 = vmatpush.bf16.msra.mxu0 0
    %5761 = vmatpush.bf16.msra.mxu0 0
    %5762 = vmatpush.bf16.msra.mxu0 0
    %5763 = vmatpush.bf16.msra.mxu0 0
    %5764 = vmatpush.bf16.msra.mxu0 0
    %5765 = vmatpush.bf16.msra.mxu0 0
    %5766 = vmatpush.bf16.msra.mxu0 %v5757
    %5767 = vmatmul.bf16.gmra.mxu0 %v5754
    %v5768 = vpop.f32.mrf.mxu0
    %v5769 = vadd.f32 0.0, %v5768
    %v5770 = vpop.f32.mrf.mxu0
    %5771 = vdwg.mxu0
    %5772 = vrot.lane.b32.xlu0 %v5661, 112
    %v5773 = vpop.permute.xlu0 %5772
    %5774 = vrot.lane.b32.xlu0 %v5661, 80
    %v5775 = vpop.permute.xlu0 %5774
    %v5777 = vsel %vm241, %v5773, 0
    %v5780 = vsel %vm241, %v5775, 0
    %5782 = vmatpush.bf16.xpose.msra.mxu0 0
    %5783 = vmatpush.bf16.xpose.msra.mxu0 0
    %5784 = vmatpush.bf16.xpose.msra.mxu0 0
    %5785 = vmatpush.bf16.xpose.msra.mxu0 0
    %5786 = vmatpush.bf16.xpose.msra.mxu0 0
    %5787 = vmatpush.bf16.xpose.msra.mxu0 0
    %5788 = vmatpush.bf16.xpose.msra.mxu0 0
    %5789 = vmatpush.bf16.xpose.msra.mxu0 %v5780
    %5790 = vmatmul.bf16.gmra.mxu0 %v5777
    %v5791 = vpop.f32.mrf.mxu0
    %v5792 = vadd.f32 %v4723, %v5791
    %v5793 = vpop.f32.mrf.mxu0
    %5794 = vdwg.mxu0
    %v5795 = vsel %vm241, %v5792, -inf
    %5796 = vmax.xlane.f32.xlu0 %v5795
    %v5797 = vpop.xlane.xlu0 %5796
    %v5798 = vsub.f32 %v5792, %v5797
    %v5799 = vmul.f32 %v5798, 1.442695
    %v5800 = vpow.pop %v5799
    %v5801 = vsel %vm241, %v5800, 0.0
    %5802 = vadd.xlane.f32.xlu0 %v5801
    %v5803 = vpop.xlane.xlu0 %5802
    %v5804 = vrcp.pop %v5803
    %v5805 = vmul.f32 %v5800, %v5804
    %v5806 = vpack.c.bf16 %v5805, %v5805
    %5807 = vrot.lane.b32.xlu0 %v5661, 48
    %v5808 = vpop.permute.xlu0 %5807
    %v5810 = vsel %vm241, %v5806, 0
    %v5813 = vsel %vm1613, %v5808, 0
    %5815 = vmatpush.bf16.msra.mxu0 0
    %5816 = vmatpush.bf16.msra.mxu0 0
    %5817 = vmatpush.bf16.msra.mxu0 0
    %5818 = vmatpush.bf16.msra.mxu0 0
    %5819 = vmatpush.bf16.msra.mxu0 0
    %5820 = vmatpush.bf16.msra.mxu0 0
    %5821 = vmatpush.bf16.msra.mxu0 0
    %5822 = vmatpush.bf16.msra.mxu0 %v5813
    %5823 = vmatmul.bf16.gmra.mxu0 %v5810
    %v5824 = vpop.f32.mrf.mxu0
    %v5825 = vadd.f32 0.0, %v5824
    %v5826 = vpop.f32.mrf.mxu0
    %5827 = vdwg.mxu0
    %5828 = vrot.lane.b32.xlu0 %v5661, 104
    %v5829 = vpop.permute.xlu0 %5828
    %5830 = vrot.lane.b32.xlu0 %v5661, 72
    %v5831 = vpop.permute.xlu0 %5830
    %v5833 = vsel %vm241, %v5829, 0
    %v5836 = vsel %vm241, %v5831, 0
    %5838 = vmatpush.bf16.xpose.msra.mxu0 0
    %5839 = vmatpush.bf16.xpose.msra.mxu0 0
    %5840 = vmatpush.bf16.xpose.msra.mxu0 0
    %5841 = vmatpush.bf16.xpose.msra.mxu0 0
    %5842 = vmatpush.bf16.xpose.msra.mxu0 0
    %5843 = vmatpush.bf16.xpose.msra.mxu0 0
    %5844 = vmatpush.bf16.xpose.msra.mxu0 0
    %5845 = vmatpush.bf16.xpose.msra.mxu0 %v5836
    %5846 = vmatmul.bf16.gmra.mxu0 %v5833
    %v5847 = vpop.f32.mrf.mxu0
    %v5848 = vadd.f32 %v4723, %v5847
    %v5849 = vpop.f32.mrf.mxu0
    %5850 = vdwg.mxu0
    %v5851 = vsel %vm241, %v5848, -inf
    %5852 = vmax.xlane.f32.xlu0 %v5851
    %v5853 = vpop.xlane.xlu0 %5852
    %v5854 = vsub.f32 %v5848, %v5853
    %v5855 = vmul.f32 %v5854, 1.442695
    %v5856 = vpow.pop %v5855
    %v5857 = vsel %vm241, %v5856, 0.0
    %5858 = vadd.xlane.f32.xlu0 %v5857
    %v5859 = vpop.xlane.xlu0 %5858
    %v5860 = vrcp.pop %v5859
    %v5861 = vmul.f32 %v5856, %v5860
    %v5862 = vpack.c.bf16 %v5861, %v5861
    %5863 = vrot.lane.b32.xlu0 %v5661, 40
    %v5864 = vpop.permute.xlu0 %5863
    %v5866 = vsel %vm241, %v5862, 0
    %v5869 = vsel %vm1613, %v5864, 0
    %5871 = vmatpush.bf16.msra.mxu0 0
    %5872 = vmatpush.bf16.msra.mxu0 0
    %5873 = vmatpush.bf16.msra.mxu0 0
    %5874 = vmatpush.bf16.msra.mxu0 0
    %5875 = vmatpush.bf16.msra.mxu0 0
    %5876 = vmatpush.bf16.msra.mxu0 0
    %5877 = vmatpush.bf16.msra.mxu0 0
    %5878 = vmatpush.bf16.msra.mxu0 %v5869
    %5879 = vmatmul.bf16.gmra.mxu0 %v5866
    %v5880 = vpop.f32.mrf.mxu0
    %v5881 = vadd.f32 0.0, %v5880
    %v5882 = vpop.f32.mrf.mxu0
    %5883 = vdwg.mxu0
    %5885 = vrot.lane.b32.xlu0 %v5769, 8
    %v5886 = vpop.permute.xlu0 %5885
    %5889 = vrot.lane.b32.xlu0 %v5825, 16
    %v5890 = vpop.permute.xlu0 %5889
    %5893 = vrot.lane.b32.xlu0 %v5881, 24
    %v5894 = vpop.permute.xlu0 %5893
    %v5896 = vsel %vm241, %v5713, %v5886
    %v5897 = vsel %vm543, %v5896, %v5890
    %v5898 = vsel %vm546, %v5897, %v5894
    %v5899 = vpack.c.bf16 %v5898, %v5898
    %v5901 = vperm.slane %v5625, 0
    %v5907 = vunpack.c.l.b16 %v5621
    %v5908 = vunpack.c.l.b16 %v5622
    %v5909 = vunpack.c.l.b16 %v5623
    %v5910 = vunpack.c.l.b16 %v5624
    %v5911 = vpack.c.b16 %v5908, %v5907
    %v5912 = vpack.c.b16 %v5910, %v5909
    %v5916 = vsel %vm211, %v5899, 0
    %5918 = vmatpush.bf16.msra.mxu0 0
    %5919 = vmatpush.bf16.msra.mxu0 0
    %5920 = vmatpush.bf16.msra.mxu0 0
    %5921 = vmatpush.bf16.msra.mxu0 0
    %5922 = vmatpush.bf16.msra.mxu0 0
    %5923 = vmatpush.bf16.msra.mxu0 0
    %5924 = vmatpush.bf16.msra.mxu0 %v5912
    %5925 = vmatpush.bf16.msra.mxu0 %v5911
    %5926 = vmatmul.bf16.gmra.mxu0 %v5916
    %v5927 = vpop.f32.mrf.mxu0
    %v5928 = vadd.f32 %v5901, %v5927
    %v5929 = vpop.f32.mrf.mxu0
    %5930 = vdwg.mxu0
    %v5931 = vadd.f32 %v5615, %v5928
    %v5932 = vld [vmem:[%s2742] sm:$0x1]
    %v5933 = vld [vmem:[%s2744] sm:$0x1]
    %v5934 = vsel %vm211, %v5931, 0.0
    %5935 = vadd.xlane.f32.xlu0 %v5934
    %v5936 = vpop.xlane.xlu0 %5935
    %v5937 = vmul.f32 %v5936, %v599
    %v5938 = vsub.f32 %v5931, %v5937
    %v5939 = vmul.f32 %v5938, %v5938
    %v5940 = vsel %vm211, %v5939, 0.0
    %5941 = vadd.xlane.f32.xlu0 %v5940
    %v5942 = vpop.xlane.xlu0 %5941
    %v5943 = vmul.f32 %v5942, %v599
    %v5944 = vadd.f32 %v5943, 1e-05
    %v5945 = vrsqrt.pop %v5944
    %v5946 = vmul.f32 %v5945, %v5944
    %v5947 = vmul.f32 %v5946, %v5945
    %v5948 = vmul.f32 0.5, %v5947
    %v5949 = vsub.f32 1.5, %v5948
    %v5950 = vmul.f32 %v5945, %v5949
    %vm5951 = vweird.f32 %v5944
    %vm5952 = vweird.f32 %v5945
    %vm5953 = vmor %vm5951, %vm5952
    %v5954 = vsel %vm5953, %v5945, %v5950
    %v5955 = vmul.f32 %v5938, %v5954
    %v5957 = vperm.slane %v5932, 0
    %v5959 = vmul.f32 %v5955, %v5957
    %v5961 = vperm.slane %v5933, 0
    %v5963 = vadd.f32 %v5959, %v5961
    %v5964 = vld [vmem:[%s2776] sm:$0xf]
    %v5965 = vld [vmem:[%s2776 + $0x4] sm:$0xf]
    %v5966 = vld [vmem:[%s2776 + $0x8] sm:$0xf]
    %v5967 = vld [vmem:[%s2776 + $0xc] sm:$0xf]
    %v5968 = vld [vmem:[%s2781] sm:$0x1]
    %v5969 = vld [vmem:[%s2783] sm:$0xf]
    %v5970 = vld [vmem:[%s2783 + $0x4] sm:$0xf]
    %v5971 = vld [vmem:[%s2783 + $0x8] sm:$0xf]
    %v5972 = vld [vmem:[%s2783 + $0xc] sm:$0xf]
    %v5973 = vld [vmem:[%s2788] sm:$0x1]
    %v5974 = vld [vmem:[%s2790] sm:$0xf]
    %v5975 = vld [vmem:[%s2790 + $0x4] sm:$0xf]
    %v5976 = vld [vmem:[%s2790 + $0x8] sm:$0xf]
    %v5977 = vld [vmem:[%s2790 + $0xc] sm:$0xf]
    %v5978 = vld [vmem:[%s2795] sm:$0x1]
    %v5979 = vpack.c.bf16 %v5963, %v5963
    %v5981 = vperm.slane %v5968, 0
    %v5987 = vunpack.c.l.b16 %v5964
    %v5988 = vunpack.c.l.b16 %v5965
    %v5989 = vunpack.c.l.b16 %v5966
    %v5990 = vunpack.c.l.b16 %v5967
    %v5991 = vpack.c.b16 %v5988, %v5987
    %v5992 = vpack.c.b16 %v5990, %v5989
    %v5996 = vsel %vm211, %v5979, 0
    %5998 = vmatpush.bf16.msra.mxu0 0
    %5999 = vmatpush.bf16.msra.mxu0 0
    %6000 = vmatpush.bf16.msra.mxu0 0
    %6001 = vmatpush.bf16.msra.mxu0 0
    %6002 = vmatpush.bf16.msra.mxu0 0
    %6003 = vmatpush.bf16.msra.mxu0 0
    %6004 = vmatpush.bf16.msra.mxu0 %v5992
    %6005 = vmatpush.bf16.msra.mxu0 %v5991
    %6006 = vmatmul.bf16.gmra.mxu0 %v5996
    %v6007 = vpop.f32.mrf.mxu0
    %v6008 = vadd.f32 %v5981, %v6007
    %v6009 = vpop.f32.mrf.mxu0
    %6010 = vdwg.mxu0
    %v6012 = vperm.slane %v5973, 0
    %v6018 = vunpack.c.l.b16 %v5969
    %v6019 = vunpack.c.l.b16 %v5970
    %v6020 = vunpack.c.l.b16 %v5971
    %v6021 = vunpack.c.l.b16 %v5972
    %v6022 = vpack.c.b16 %v6019, %v6018
    %v6023 = vpack.c.b16 %v6021, %v6020
    %6026 = vmatpush.bf16.msra.mxu0 0
    %6027 = vmatpush.bf16.msra.mxu0 0
    %6028 = vmatpush.bf16.msra.mxu0 0
    %6029 = vmatpush.bf16.msra.mxu0 0
    %6030 = vmatpush.bf16.msra.mxu0 0
    %6031 = vmatpush.bf16.msra.mxu0 0
    %6032 = vmatpush.bf16.msra.mxu0 %v6023
    %6033 = vmatpush.bf16.msra.mxu0 %v6022
    %6034 = vmatmul.bf16.gmra.mxu0 %v5136
    %v6035 = vpop.f32.mrf.mxu0
    %v6036 = vadd.f32 %v6012, %v6035
    %v6037 = vpop.f32.mrf.mxu0
    %v6038 = vadd.f32 %v6012, %v6037
    %6039 = vdwg.mxu0
    %v6040 = vpack.c.bf16 %v6008, %v6008
    %v6041 = vpack.c.bf16 %v6036, %v6036
    %v6042 = vpack.c.bf16 %v6038, %v6038
    %v6045 = vunpack.c.l.b16 %v6041
    %v6046 = vunpack.c.l.b16 %v6042
    %v6047 = vpack.c.b16 %v6046, %v6045
    %v6049 = vsel %vm241, %v6040, 0
    %v6052 = vsel %vm241, %v6047, 0
    %6054 = vmatpush.bf16.xpose.msra.mxu0 0
    %6055 = vmatpush.bf16.xpose.msra.mxu0 0
    %6056 = vmatpush.bf16.xpose.msra.mxu0 0
    %6057 = vmatpush.bf16.xpose.msra.mxu0 0
    %6058 = vmatpush.bf16.xpose.msra.mxu0 0
    %6059 = vmatpush.bf16.xpose.msra.mxu0 0
    %6060 = vmatpush.bf16.xpose.msra.mxu0 0
    %6061 = vmatpush.bf16.xpose.msra.mxu0 %v6052
    %6062 = vmatmul.bf16.gmra.mxu0 %v6049
    %v6063 = vpop.f32.mrf.mxu0
    %v6064 = vadd.f32 0.0, %v6063
    %v6065 = vpop.f32.mrf.mxu0
    %6066 = vdwg.mxu0
    %v6067 = vsel %vm262, %v6064, -inf
    %6068 = vmax.xlane.f32.xlu0 %v6067
    %v6069 = vpop.xlane.xlu0 %6068
    %v6070 = vsub.f32 %v6064, %v6069
    %v6071 = vmul.f32 %v6070, 1.442695
    %v6072 = vpow.pop %v6071
    %v6073 = vsel %vm262, %v6072, 0.0
    %6074 = vadd.xlane.f32.xlu0 %v6073
    %v6075 = vpop.xlane.xlu0 %6074
    %v6076 = vrcp.pop %v6075
    %v6077 = vmul.f32 %v6072, %v6076
    %v6078 = vpack.c.bf16 %v6077, %v6077
    %6079 = vrot.lane.b32.xlu0 %v6047, 96
    %v6080 = vpop.permute.xlu0 %6079
    %v6082 = vsel %vm262, %v6078, 0
    %v6085 = vsel %vm292, %v6080, 0
    %6087 = vmatpush.bf16.msra.mxu0 0
    %6088 = vmatpush.bf16.msra.mxu0 0
    %6089 = vmatpush.bf16.msra.mxu0 0
    %6090 = vmatpush.bf16.msra.mxu0 0
    %6091 = vmatpush.bf16.msra.mxu0 0
    %6092 = vmatpush.bf16.msra.mxu0 0
    %6093 = vmatpush.bf16.msra.mxu0 0
    %6094 = vmatpush.bf16.msra.mxu0 %v6085
    %6095 = vmatmul.bf16.gmra.mxu0 %v6082
    %v6096 = vpop.f32.mrf.mxu0
    %v6097 = vadd.f32 0.0, %v6096
    %v6098 = vpop.f32.mrf.mxu0
    %6099 = vdwg.mxu0
    %v6101 = vunpack.c.l.b16 %v6040
    %v6102 = vpack.c.b16 %v6101, %v6101
    %6103 = vrot.lane.b32.xlu0 %v6102, 120
    %v6104 = vpop.permute.xlu0 %6103
    %6105 = vrot.lane.b32.xlu0 %v6047, 120
    %v6106 = vpop.permute.xlu0 %6105
    %v6108 = vsel %vm241, %v6104, 0
    %v6111 = vsel %vm241, %v6106, 0
    %6113 = vmatpush.bf16.xpose.msra.mxu0 0
    %6114 = vmatpush.bf16.xpose.msra.mxu0 0
    %6115 = vmatpush.bf16.xpose.msra.mxu0 0
    %6116 = vmatpush.bf16.xpose.msra.mxu0 0
    %6117 = vmatpush.bf16.xpose.msra.mxu0 0
    %6118 = vmatpush.bf16.xpose.msra.mxu0 0
    %6119 = vmatpush.bf16.xpose.msra.mxu0 0
    %6120 = vmatpush.bf16.xpose.msra.mxu0 %v6111
    %6121 = vmatmul.bf16.gmra.mxu0 %v6108
    %v6122 = vpop.f32.mrf.mxu0
    %v6123 = vadd.f32 0.0, %v6122
    %v6124 = vpop.f32.mrf.mxu0
    %6125 = vdwg.mxu0
    %v6126 = vsel %vm262, %v6123, -inf
    %6127 = vmax.xlane.f32.xlu0 %v6126
    %v6128 = vpop.xlane.xlu0 %6127
    %v6129 = vsub.f32 %v6123, %v6128
    %v6130 = vmul.f32 %v6129, 1.442695
    %v6131 = vpow.pop %v6130
    %v6132 = vsel %vm262, %v6131, 0.0
    %6133 = vadd.xlane.f32.xlu0 %v6132
    %v6134 = vpop.xlane.xlu0 %6133
    %v6135 = vrcp.pop %v6134
    %v6136 = vmul.f32 %v6131, %v6135
    %v6137 = vpack.c.bf16 %v6136, %v6136
    %6138 = vrot.lane.b32.xlu0 %v6047, 88
    %v6139 = vpop.permute.xlu0 %6138
    %v6141 = vsel %vm262, %v6137, 0
    %v6144 = vsel %vm292, %v6139, 0
    %6146 = vmatpush.bf16.msra.mxu0 0
    %6147 = vmatpush.bf16.msra.mxu0 0
    %6148 = vmatpush.bf16.msra.mxu0 0
    %6149 = vmatpush.bf16.msra.mxu0 0
    %6150 = vmatpush.bf16.msra.mxu0 0
    %6151 = vmatpush.bf16.msra.mxu0 0
    %6152 = vmatpush.bf16.msra.mxu0 0
    %6153 = vmatpush.bf16.msra.mxu0 %v6144
    %6154 = vmatmul.bf16.gmra.mxu0 %v6141
    %v6155 = vpop.f32.mrf.mxu0
    %v6156 = vadd.f32 0.0, %v6155
    %v6157 = vpop.f32.mrf.mxu0
    %6158 = vdwg.mxu0
    %6159 = vrot.lane.b32.xlu0 %v6102, 112
    %v6160 = vpop.permute.xlu0 %6159
    %6161 = vrot.lane.b32.xlu0 %v6047, 112
    %v6162 = vpop.permute.xlu0 %6161
    %v6164 = vsel %vm241, %v6160, 0
    %v6167 = vsel %vm241, %v6162, 0
    %6169 = vmatpush.bf16.xpose.msra.mxu0 0
    %6170 = vmatpush.bf16.xpose.msra.mxu0 0
    %6171 = vmatpush.bf16.xpose.msra.mxu0 0
    %6172 = vmatpush.bf16.xpose.msra.mxu0 0
    %6173 = vmatpush.bf16.xpose.msra.mxu0 0
    %6174 = vmatpush.bf16.xpose.msra.mxu0 0
    %6175 = vmatpush.bf16.xpose.msra.mxu0 0
    %6176 = vmatpush.bf16.xpose.msra.mxu0 %v6167
    %6177 = vmatmul.bf16.gmra.mxu0 %v6164
    %v6178 = vpop.f32.mrf.mxu0
    %v6179 = vadd.f32 0.0, %v6178
    %v6180 = vpop.f32.mrf.mxu0
    %6181 = vdwg.mxu0
    %v6182 = vsel %vm262, %v6179, -inf
    %6183 = vmax.xlane.f32.xlu0 %v6182
    %v6184 = vpop.xlane.xlu0 %6183
    %v6185 = vsub.f32 %v6179, %v6184
    %v6186 = vmul.f32 %v6185, 1.442695
    %v6187 = vpow.pop %v6186
    %v6188 = vsel %vm262, %v6187, 0.0
    %6189 = vadd.xlane.f32.xlu0 %v6188
    %v6190 = vpop.xlane.xlu0 %6189
    %v6191 = vrcp.pop %v6190
    %v6192 = vmul.f32 %v6187, %v6191
    %v6193 = vpack.c.bf16 %v6192, %v6192
    %6194 = vrot.lane.b32.xlu0 %v6047, 80
    %v6195 = vpop.permute.xlu0 %6194
    %v6197 = vsel %vm262, %v6193, 0
    %v6200 = vsel %vm292, %v6195, 0
    %6202 = vmatpush.bf16.msra.mxu0 0
    %6203 = vmatpush.bf16.msra.mxu0 0
    %6204 = vmatpush.bf16.msra.mxu0 0
    %6205 = vmatpush.bf16.msra.mxu0 0
    %6206 = vmatpush.bf16.msra.mxu0 0
    %6207 = vmatpush.bf16.msra.mxu0 0
    %6208 = vmatpush.bf16.msra.mxu0 0
    %6209 = vmatpush.bf16.msra.mxu0 %v6200
    %6210 = vmatmul.bf16.gmra.mxu0 %v6197
    %v6211 = vpop.f32.mrf.mxu0
    %v6212 = vadd.f32 0.0, %v6211
    %v6213 = vpop.f32.mrf.mxu0
    %6214 = vdwg.mxu0
    %6215 = vrot.lane.b32.xlu0 %v6102, 104
    %v6216 = vpop.permute.xlu0 %6215
    %6217 = vrot.lane.b32.xlu0 %v6047, 104
    %v6218 = vpop.permute.xlu0 %6217
    %v6220 = vsel %vm241, %v6216, 0
    %v6223 = vsel %vm241, %v6218, 0
    %6225 = vmatpush.bf16.xpose.msra.mxu0 0
    %6226 = vmatpush.bf16.xpose.msra.mxu0 0
    %6227 = vmatpush.bf16.xpose.msra.mxu0 0
    %6228 = vmatpush.bf16.xpose.msra.mxu0 0
    %6229 = vmatpush.bf16.xpose.msra.mxu0 0
    %6230 = vmatpush.bf16.xpose.msra.mxu0 0
    %6231 = vmatpush.bf16.xpose.msra.mxu0 0
    %6232 = vmatpush.bf16.xpose.msra.mxu0 %v6223
    %6233 = vmatmul.bf16.gmra.mxu0 %v6220
    %v6234 = vpop.f32.mrf.mxu0
    %v6235 = vadd.f32 0.0, %v6234
    %v6236 = vpop.f32.mrf.mxu0
    %6237 = vdwg.mxu0
    %v6238 = vsel %vm262, %v6235, -inf
    %6239 = vmax.xlane.f32.xlu0 %v6238
    %v6240 = vpop.xlane.xlu0 %6239
    %v6241 = vsub.f32 %v6235, %v6240
    %v6242 = vmul.f32 %v6241, 1.442695
    %v6243 = vpow.pop %v6242
    %v6244 = vsel %vm262, %v6243, 0.0
    %6245 = vadd.xlane.f32.xlu0 %v6244
    %v6246 = vpop.xlane.xlu0 %6245
    %v6247 = vrcp.pop %v6246
    %v6248 = vmul.f32 %v6243, %v6247
    %v6249 = vpack.c.bf16 %v6248, %v6248
    %6250 = vrot.lane.b32.xlu0 %v6047, 72
    %v6251 = vpop.permute.xlu0 %6250
    %v6253 = vsel %vm262, %v6249, 0
    %v6256 = vsel %vm292, %v6251, 0
    %6258 = vmatpush.bf16.msra.mxu0 0
    %6259 = vmatpush.bf16.msra.mxu0 0
    %6260 = vmatpush.bf16.msra.mxu0 0
    %6261 = vmatpush.bf16.msra.mxu0 0
    %6262 = vmatpush.bf16.msra.mxu0 0
    %6263 = vmatpush.bf16.msra.mxu0 0
    %6264 = vmatpush.bf16.msra.mxu0 0
    %6265 = vmatpush.bf16.msra.mxu0 %v6256
    %6266 = vmatmul.bf16.gmra.mxu0 %v6253
    %v6267 = vpop.f32.mrf.mxu0
    %v6268 = vadd.f32 0.0, %v6267
    %v6269 = vpop.f32.mrf.mxu0
    %6270 = vdwg.mxu0
    %6272 = vrot.lane.b32.xlu0 %v6156, 8
    %v6273 = vpop.permute.xlu0 %6272
    %6276 = vrot.lane.b32.xlu0 %v6212, 16
    %v6277 = vpop.permute.xlu0 %6276
    %6280 = vrot.lane.b32.xlu0 %v6268, 24
    %v6281 = vpop.permute.xlu0 %6280
    %v6283 = vsel %vm241, %v6097, %v6273
    %v6284 = vsel %vm543, %v6283, %v6277
    %v6285 = vsel %vm546, %v6284, %v6281
    %v6286 = vpack.c.bf16 %v6285, %v6285
    %v6288 = vperm.slane %v5978, 0
    %v6294 = vunpack.c.l.b16 %v5974
    %v6295 = vunpack.c.l.b16 %v5975
    %v6296 = vunpack.c.l.b16 %v5976
    %v6297 = vunpack.c.l.b16 %v5977
    %v6298 = vpack.c.b16 %v6295, %v6294
    %v6299 = vpack.c.b16 %v6297, %v6296
    %v6303 = vsel %vm211, %v6286, 0
    %6305 = vmatpush.bf16.msra.mxu0 0
    %6306 = vmatpush.bf16.msra.mxu0 0
    %6307 = vmatpush.bf16.msra.mxu0 0
    %6308 = vmatpush.bf16.msra.mxu0 0
    %6309 = vmatpush.bf16.msra.mxu0 0
    %6310 = vmatpush.bf16.msra.mxu0 0
    %6311 = vmatpush.bf16.msra.mxu0 %v6299
    %6312 = vmatpush.bf16.msra.mxu0 %v6298
    %6313 = vmatmul.bf16.gmra.mxu0 %v6303
    %v6314 = vpop.f32.mrf.mxu0
    %v6315 = vadd.f32 %v6288, %v6314
    %v6316 = vpop.f32.mrf.mxu0
    %6317 = vdwg.mxu0
    %v6318 = vadd.f32 %v5963, %v6315
    %v6319 = vld [vmem:[%s3137] sm:$0x1]
    %v6320 = vld [vmem:[%s3139] sm:$0x1]
    %v6321 = vsel %vm211, %v6318, 0.0
    %6322 = vadd.xlane.f32.xlu0 %v6321
    %v6323 = vpop.xlane.xlu0 %6322
    %v6324 = vmul.f32 %v6323, %v599
    %v6325 = vsub.f32 %v6318, %v6324
    %v6326 = vmul.f32 %v6325, %v6325
    %v6327 = vsel %vm211, %v6326, 0.0
    %6328 = vadd.xlane.f32.xlu0 %v6327
    %v6329 = vpop.xlane.xlu0 %6328
    %v6330 = vmul.f32 %v6329, %v599
    %v6331 = vadd.f32 %v6330, 1e-05
    %v6332 = vrsqrt.pop %v6331
    %v6333 = vmul.f32 %v6332, %v6331
    %v6334 = vmul.f32 %v6333, %v6332
    %v6335 = vmul.f32 0.5, %v6334
    %v6336 = vsub.f32 1.5, %v6335
    %v6337 = vmul.f32 %v6332, %v6336
    %vm6338 = vweird.f32 %v6331
    %vm6339 = vweird.f32 %v6332
    %vm6340 = vmor %vm6338, %vm6339
    %v6341 = vsel %vm6340, %v6332, %v6337
    %v6342 = vmul.f32 %v6325, %v6341
    %v6344 = vperm.slane %v6319, 0
    %v6346 = vmul.f32 %v6342, %v6344
    %v6348 = vperm.slane %v6320, 0
    %v6350 = vadd.f32 %v6346, %v6348
    %v6351 = vld [vmem:[%s3171] sm:$0xf]
    %v6352 = vld [vmem:[%s3171 + $0x4] sm:$0xf]
    %v6353 = vld [vmem:[%s3171 + $0x8] sm:$0xf]
    %v6354 = vld [vmem:[%s3171 + $0xc] sm:$0xf]
    %v6355 = vld [vmem:[%s3176] sm:$0x1]
    %v6356 = vld [vmem:[%s3178] sm:$0xf]
    %v6357 = vld [vmem:[%s3178 + $0x4] sm:$0xf]
    %v6358 = vld [vmem:[%s3178 + $0x8] sm:$0xf]
    %v6359 = vld [vmem:[%s3178 + $0xc] sm:$0xf]
    %v6360 = vld [vmem:[%s3178 + $0x10] sm:$0xf]
    %v6361 = vld [vmem:[%s3178 + $0x14] sm:$0xf]
    %v6362 = vld [vmem:[%s3178 + $0x18] sm:$0xf]
    %v6363 = vld [vmem:[%s3178 + $0x1c] sm:$0xf]
    %v6364 = vld [vmem:[%s3178 + $0x20] sm:$0xf]
    %v6365 = vld [vmem:[%s3178 + $0x24] sm:$0xf]
    %v6366 = vld [vmem:[%s3178 + $0x28] sm:$0xf]
    %v6367 = vld [vmem:[%s3178 + $0x2c] sm:$0xf]
    %v6368 = vld [vmem:[%s3178 + $0x30] sm:$0xf]
    %v6369 = vld [vmem:[%s3178 + $0x34] sm:$0xf]
    %v6370 = vld [vmem:[%s3178 + $0x38] sm:$0xf]
    %v6371 = vld [vmem:[%s3178 + $0x3c] sm:$0xf]
    %v6372 = vld [vmem:[%s3195] sm:$0x1]
    %v6373 = vpack.c.bf16 %v6350, %v6350
    %v6375 = vperm.slane %v6355, 0
    %v6381 = vunpack.c.l.b16 %v6351
    %v6382 = vunpack.c.l.b16 %v6352
    %v6383 = vunpack.c.l.b16 %v6353
    %v6384 = vunpack.c.l.b16 %v6354
    %v6385 = vpack.c.b16 %v6382, %v6381
    %v6386 = vpack.c.b16 %v6384, %v6383
    %v6390 = vsel %vm211, %v6373, 0
    %6392 = vmatpush.bf16.msra.mxu0 0
    %6393 = vmatpush.bf16.msra.mxu0 0
    %6394 = vmatpush.bf16.msra.mxu0 0
    %6395 = vmatpush.bf16.msra.mxu0 0
    %6396 = vmatpush.bf16.msra.mxu0 0
    %6397 = vmatpush.bf16.msra.mxu0 0
    %6398 = vmatpush.bf16.msra.mxu0 %v6386
    %6399 = vmatpush.bf16.msra.mxu0 %v6385
    %6400 = vmatmul.bf16.gmra.mxu0 %v6390
    %v6401 = vpop.f32.mrf.mxu0
    %v6402 = vadd.f32 %v6375, %v6401
    %v6403 = vpop.f32.mrf.mxu0
    %6404 = vdwg.mxu0
    %v6405 = vmax.f32 %v6402, 0.0
    %v6406 = vpack.c.bf16 %v6405, %v6405
    %v6408 = vperm.slane %v6372, 0
    %v6426 = vunpack.c.l.b16 %v6356
    %v6427 = vunpack.c.l.b16 %v6357
    %v6428 = vunpack.c.l.b16 %v6358
    %v6429 = vunpack.c.l.b16 %v6359
    %v6430 = vunpack.c.l.b16 %v6360
    %v6431 = vunpack.c.l.b16 %v6361
    %v6432 = vunpack.c.l.b16 %v6362
    %v6433 = vunpack.c.l.b16 %v6363
    %v6434 = vunpack.c.l.b16 %v6364
    %v6435 = vunpack.c.l.b16 %v6365
    %v6436 = vunpack.c.l.b16 %v6366
    %v6437 = vunpack.c.l.b16 %v6367
    %v6438 = vunpack.c.l.b16 %v6368
    %v6439 = vunpack.c.l.b16 %v6369
    %v6440 = vunpack.c.l.b16 %v6370
    %v6441 = vunpack.c.l.b16 %v6371
    %v6442 = vpack.c.b16 %v6427, %v6426
    %v6443 = vpack.c.b16 %v6429, %v6428
    %v6444 = vpack.c.b16 %v6431, %v6430
    %v6445 = vpack.c.b16 %v6433, %v6432
    %v6446 = vpack.c.b16 %v6435, %v6434
    %v6447 = vpack.c.b16 %v6437, %v6436
    %v6448 = vpack.c.b16 %v6439, %v6438
    %v6449 = vpack.c.b16 %v6441, %v6440
    %6458 = vmatpush.bf16.msra.mxu0 %v6449
    %6459 = vmatpush.bf16.msra.mxu0 %v6448
    %6460 = vmatpush.bf16.msra.mxu0 %v6447
    %6461 = vmatpush.bf16.msra.mxu0 %v6446
    %6462 = vmatpush.bf16.msra.mxu0 %v6445
    %6463 = vmatpush.bf16.msra.mxu0 %v6444
    %6464 = vmatpush.bf16.msra.mxu0 %v6443
    %6465 = vmatpush.bf16.msra.mxu0 %v6442
    %6466 = vmatmul.bf16.gmra.mxu0 %v6406
    %v6467 = vpop.f32.mrf.mxu0
    %v6468 = vadd.f32 %v6408, %v6467
    %v6469 = vpop.f32.mrf.mxu0
    %6470 = vdwg.mxu0
    %v6471 = vadd.f32 %v6350, %v6468
    %v6472 = vld [vmem:[%s3296] sm:$0x1]
    %v6473 = vld [vmem:[%s3298] sm:$0x1]
    %v6474 = vsel %vm211, %v6471, 0.0
    %6475 = vadd.xlane.f32.xlu0 %v6474
    %v6476 = vpop.xlane.xlu0 %6475
    %v6477 = vmul.f32 %v6476, %v599
    %v6478 = vsub.f32 %v6471, %v6477
    %v6479 = vmul.f32 %v6478, %v6478
    %v6480 = vsel %vm211, %v6479, 0.0
    %6481 = vadd.xlane.f32.xlu0 %v6480
    %v6482 = vpop.xlane.xlu0 %6481
    %v6483 = vmul.f32 %v6482, %v599
    %v6484 = vadd.f32 %v6483, 1e-05
    %v6485 = vrsqrt.pop %v6484
    %v6486 = vmul.f32 %v6485, %v6484
    %v6487 = vmul.f32 %v6486, %v6485
    %v6488 = vmul.f32 0.5, %v6487
    %v6489 = vsub.f32 1.5, %v6488
    %v6490 = vmul.f32 %v6485, %v6489
    %vm6491 = vweird.f32 %v6484
    %vm6492 = vweird.f32 %v6485
    %vm6493 = vmor %vm6491, %vm6492
    %v6494 = vsel %vm6493, %v6485, %v6490
    %v6495 = vmul.f32 %v6478, %v6494
    %v6497 = vperm.slane %v6472, 0
    %v6499 = vmul.f32 %v6495, %v6497
    %v6501 = vperm.slane %v6473, 0
    %v6503 = vadd.f32 %v6499, %v6501
    %v6504 = vld [vmem:[%s77] sm:$0x1]
    %v6505 = vld [vmem:[%s79] sm:$0x1]
    %v6506 = vsel %vm211, %v6503, 0.0
    %6507 = vadd.xlane.f32.xlu0 %v6506
    %v6508 = vpop.xlane.xlu0 %6507
    %v6509 = vmul.f32 %v6508, %v599
    %v6510 = vsub.f32 %v6503, %v6509
    %v6511 = vmul.f32 %v6510, %v6510
    %v6512 = vsel %vm211, %v6511, 0.0
    %6513 = vadd.xlane.f32.xlu0 %v6512
    %v6514 = vpop.xlane.xlu0 %6513
    %v6515 = vmul.f32 %v6514, %v599
    %v6516 = vadd.f32 %v6515, 1e-05
    %v6517 = vrsqrt.pop %v6516
    %v6518 = vmul.f32 %v6517, %v6516
    %v6519 = vmul.f32 %v6518, %v6517
    %v6520 = vmul.f32 0.5, %v6519
    %v6521 = vsub.f32 1.5, %v6520
    %v6522 = vmul.f32 %v6517, %v6521
    %vm6523 = vweird.f32 %v6516
    %vm6524 = vweird.f32 %v6517
    %vm6525 = vmor %vm6523, %vm6524
    %v6526 = vsel %vm6525, %v6517, %v6522
    %v6527 = vmul.f32 %v6510, %v6526
    %v6529 = vperm.slane %v6504, 0
    %v6531 = vmul.f32 %v6527, %v6529
    %v6533 = vperm.slane %v6505, 0
    %v6535 = vadd.f32 %v6531, %v6533
    %v6536 = vpack.c.bf16 %v6535, %v6535
    %v6537 = vld [vmem:[%s81] sm:$0xf]
    %v6538 = vld [vmem:[%s81 + $0x4] sm:$0xf]
    %v6539 = vld [vmem:[%s81 + $0x8] sm:$0xf]
    %v6540 = vld [vmem:[%s81 + $0xc] sm:$0xf]
    %v6541 = vld [vmem:[%s83] sm:$0x1]
    %v6543 = vperm.slane %v6541, 0
    %v6549 = vunpack.c.l.b16 %v6537
    %v6550 = vunpack.c.l.b16 %v6538
    %v6551 = vunpack.c.l.b16 %v6539
    %v6552 = vunpack.c.l.b16 %v6540
    %v6553 = vpack.c.b16 %v6550, %v6549
    %v6554 = vpack.c.b16 %v6552, %v6551
    %v6558 = vsel %vm211, %v6536, 0
    %6560 = vmatpush.bf16.msra.mxu0 0
    %6561 = vmatpush.bf16.msra.mxu0 0
    %6562 = vmatpush.bf16.msra.mxu0 0
    %6563 = vmatpush.bf16.msra.mxu0 0
    %6564 = vmatpush.bf16.msra.mxu0 0
    %6565 = vmatpush.bf16.msra.mxu0 0
    %6566 = vmatpush.bf16.msra.mxu0 %v6554
    %6567 = vmatpush.bf16.msra.mxu0 %v6553
    %6568 = vmatmul.bf16.gmra.mxu0 %v6558
    %v6569 = vpop.f32.mrf.mxu0
    %v6570 = vadd.f32 %v6543, %v6569
    %v6571 = vpop.f32.mrf.mxu0
    %6572 = vdwg.mxu0
    %s6573 = scalar_lea.vmem [#allocation2], 8
    %6574 = vst [vmem:[%s6573] sm:$0xff] %v6570
    // Predicated region
    $region170: #{transformer_forward.1} parent=1 // pred_check
      _
    $region171: #{transformer_forward.1} parent=1 // pred_check_branch
      %6576 = sbr.rel (0) target = $region173
    $region172: #{transformer_forward.1} parent=1 // pred_region
      %6578 = vsyncadd [#allocation3], 0
      %s6579 = sshll.u32 [#allocation2], 4
      %s6580 = int_to_ptr.vmem [resolvable:$true] %s6579
      %s6581 = sshll.u32 %s85, 4
      %s6582 = int_to_ptr.hbm [resolvable:$true] %s6581
      %6587 = dma.vmem_to_hbm [thread:$0]  %s6580, 256, %s6582, [#allocation3], 128, 128, 8
    $region173: #{transformer_forward.1} parent=1 // pred_fallthru
      _
    // Predicated region
    $region174: #{transformer_forward.1} parent=1 // pred_check
      _
    $region175: #{transformer_forward.1} parent=1 // pred_check_branch
      %6589 = sbr.rel (0) target = $region177
    $region176: #{transformer_forward.1} parent=1 // pred_region
      %6591 = dma.done [#allocation3], 256
    $region177: #{transformer_forward.1} parent=1 // pred_fallthru
      _
    %6592 = vsyncpa [#allocation3], 1

</llo_original>
